<compile_context>
chip_gen: v5e
topology: v5e:2x2
jax: 0.10.0
libtpu: 0.0.40
codegen_flags: <defaults>
</compile_context>

<pallas_src>
import functools

import jax
import jax.numpy as jnp
from jax.experimental import pallas as pl
from jax.experimental.pallas import tpu as pltpu

BN_EPS = 1e-5


def _round_up(x, m):
    return (x + m - 1) // m * m


def _conv_tile(x_ref, w_ref, *, cin, k, stride, oh, ow, cp):
    """Conv of one padded NHWC image as a sum of K*K shifted matmuls (implicit im2col).

    x_ref: (1, Hp, Wp, Cin) bf16 VMEM block (spatially zero-padded image).
    w_ref: (K*K*Cin, Cp) bf16 VMEM block, rows ordered (kh, kw, ci).
    Returns y: (OH*OW, Cp) f32 conv output for this image (no bias).
    """
    tm = oh * ow
    acc = jnp.zeros((tm, cp), jnp.float32)
    for kh in range(k):
        for kw in range(k):
            if stride == 1:
                sl = x_ref[0, kh:kh + oh, kw:kw + ow, :]
            else:
                sl = x_ref[0, pl.ds(kh, oh, stride=stride),
                           pl.ds(kw, ow, stride=stride), :]
            lhs = sl.reshape(tm, cin)          # collapse (OH, OW); last dim kept
            base = (kh * k + kw) * cin
            acc += jnp.dot(lhs, w_ref[base:base + cin, :],
                           preferred_element_type=jnp.float32)
    return acc


def _stats_kernel(x_ref, w_ref, sum_ref, ssq_ref, *, cin, k, stride, oh, ow, cp):
    # Per-image partial BN statistics of the conv output (f32).
    y = _conv_tile(x_ref, w_ref, cin=cin, k=k, stride=stride, oh=oh, ow=ow, cp=cp)
    sum_ref[0] = jnp.sum(y, axis=0, keepdims=True)
    ssq_ref[0] = jnp.sum(y * y, axis=0, keepdims=True)


def _normalize_kernel(x_ref, w_ref, scale_ref, shift_ref, o_ref, *,
                      cin, k, stride, oh, ow, cp, cout):
    # Recompute the (cheap) conv, then one fused elementwise pass: BN affine + ReLU.
    y = _conv_tile(x_ref, w_ref, cin=cin, k=k, stride=stride, oh=oh, ow=ow, cp=cp)
    z = jnp.maximum(y * scale_ref[...] + shift_ref[...], 0.0)
    o_ref[0] = z[:, :cout].astype(o_ref.dtype)   # unpadded, bf16 writeback


@functools.partial(jax.jit, static_argnames=("kernel", "stride", "padding"))
def conv_bn_block(x, weight, bias, gamma, beta, *, kernel, stride, padding):
    """ConvBNBlock.forward.  x: (N, Cin, H, W) NCHW.  Returns (N, Cout, OH, OW) f32."""
    del bias  # exactly cancelled by training-mode BatchNorm mean subtraction
    n, cin, h, w = x.shape
    cout = weight.shape[0]
    k, s, p = kernel, stride, padding
    oh = (h + 2 * p - k) // s + 1
    ow = (w + 2 * p - k) // s + 1
    hp, wp = h + 2 * p, w + 2 * p
    tm = oh * ow                      # output pixels per image
    m = n * tm                        # BN reduction size
    kd = k * k * cin
    cp = _round_up(cout, 128)         # lane-dense channels inside the kernels

    # Spatially zero-padded NHWC bf16 input: the ONLY activation copy in HBM
    # ((Hp*Wp)/(H*W) inflation instead of K^2 for an HBM im2col patch matrix).
    x_nhwc = jnp.pad(
        x.transpose(0, 2, 3, 1),
        ((0, 0), (p, p), (p, p), (0, 0))).astype(jnp.bfloat16)

    # Weight rows ordered (kh, kw, ci) so the kernel takes static (Cin, Cp) slices.
    w_flat = weight.astype(jnp.float32).transpose(2, 3, 1, 0).reshape(kd, cout)
    w_p = jnp.pad(w_flat, ((0, 0), (0, cp - cout))).astype(jnp.bfloat16)

    # --- VMEM budget: rough per-step footprint (double-buffered in/out blocks). ---
    x_blk = hp * _round_up(wp, 16) * _round_up(cin, 128) * 2
    out_blk = _round_up(tm, 16) * _round_up(cout, 128) * 2
    w_blk = _round_up(kd, 16) * cp * 2
    y_f32 = _round_up(tm, 8) * cp * 4
    est = 2 * (x_blk + out_blk) + w_blk + 3 * y_f32 + (1 << 20)
    try:  # v5e/v6e: 128 MiB physical, v7x: 64 MiB -- derive instead of hard-coding.
        vmem_cap = int(pltpu.get_tpu_info().vmem_capacity_bytes)
    except Exception:
        vmem_cap = 64 * 1024 * 1024
    vmem_limit = int(min(0.7 * vmem_cap, max(32 * 1024 * 1024, 2 * est)))
    # TODO(synk): for images whose padded NHWC block exceeds the VMEM budget, tile
    # output rows with a (K-1)-row halo via manual make_async_copy double-buffering.

    cparams = pltpu.CompilerParams(
        dimension_semantics=("parallel",),     # per-image blocks are independent
        vmem_limit_bytes=vmem_limit,
    )

    x_spec = pl.BlockSpec((1, hp, wp, cin), lambda i: (i, 0, 0, 0))
    w_spec = pl.BlockSpec((kd, cp), lambda i: (0, 0))        # weights stay resident

    # ---- Pass 1: per-image partial BN statistics of the conv output. ------------
    stats_fn = functools.partial(_stats_kernel, cin=cin, k=k, stride=s,
                                 oh=oh, ow=ow, cp=cp)
    psum, pssq = pl.pallas_call(
        stats_fn,
        grid=(n,),
        in_specs=[x_spec, w_spec],
        out_specs=(pl.BlockSpec((1, 1, cp), lambda i: (i, 0, 0)),
                   pl.BlockSpec((1, 1, cp), lambda i: (i, 0, 0))),
        out_shape=(jax.ShapeDtypeStruct((n, 1, cp), jnp.float32),
                   jax.ShapeDtypeStruct((n, 1, cp), jnp.float32)),
        compiler_params=cparams,
        cost_estimate=pl.CostEstimate(
            flops=2 * m * kd * cp, transcendentals=0,
            bytes_accessed=x_nhwc.size * 2 + w_p.size * 2 + 2 * n * cp * 4),
    )(x_nhwc, w_p)

    # ---- BN finalize: tiny (Cout,)-sized math, done once in XLA. -----------------
    inv_m = 1.0 / m
    mean = jnp.sum(psum[:, 0, :], axis=0) * inv_m
    # TODO(synk): E[y^2]-E[y]^2 in f32 can lose precision when |mean| >> std at very
    # large N*OH*OW; switch to shifted / Welford accumulation for that regime.
    var = jnp.maximum(jnp.sum(pssq[:, 0, :], axis=0) * inv_m - mean * mean, 0.0)
    g_p = jnp.pad(gamma.astype(jnp.float32), (0, cp - cout))
    b_p = jnp.pad(beta.astype(jnp.float32), (0, cp - cout))
    scale = g_p * jax.lax.rsqrt(var + BN_EPS)
    shift = b_p - mean * scale
    scale = scale.reshape(1, cp)
    shift = shift.reshape(1, cp)

    # ---- Pass 2: recompute conv + fused affine + ReLU, bf16 unpadded output. -----
    norm_fn = functools.partial(_normalize_kernel, cin=cin, k=k, stride=s,
                                oh=oh, ow=ow, cp=cp, cout=cout)
    out = pl.pallas_call(
        norm_fn,
        grid=(n,),
        in_specs=[x_spec, w_spec,
                  pl.BlockSpec((1, cp), lambda i: (0, 0)),
                  pl.BlockSpec((1, cp), lambda i: (0, 0))],
        out_specs=pl.BlockSpec((1, tm, cout), lambda i: (i, 0, 0)),
        out_shape=jax.ShapeDtypeStruct((n, tm, cout), jnp.bfloat16),
        compiler_params=cparams,
        cost_estimate=pl.CostEstimate(
            flops=2 * m * kd * cp, transcendentals=0,
            bytes_accessed=(x_nhwc.size * 2 + w_p.size * 2 + 2 * cp * 4
                            + m * cout * 2)),
    )(x_nhwc, w_p, scale, shift)

    # Back to the module's NCHW float32 contract (layout glue stays in XLA).
    out = out.reshape(n, oh, ow, cout).astype(jnp.float32)
    return out.transpose(0, 3, 1, 2)


def _reference(x, weight, bias, gamma, beta, *, stride, padding):
    # Matches the kernel's bf16 matmul inputs (f32 accumulation); BN math in f32.
    y = jax.lax.conv_general_dilated(
        x.astype(jnp.bfloat16), weight.astype(jnp.bfloat16),
        window_strides=(stride, stride),
        padding=[(padding, padding), (padding, padding)],
        dimension_numbers=("NCHW", "OIHW", "NCHW"),
        preferred_element_type=jnp.float32)
    y = y + bias[None, :, None, None]
    mean = y.mean(axis=(0, 2, 3), keepdims=True)
    var = ((y - mean) ** 2).mean(axis=(0, 2, 3), keepdims=True)
    z = (y - mean) * jax.lax.rsqrt(var + BN_EPS)
    z = z * gamma[None, :, None, None] + beta[None, :, None, None]
    return jnp.maximum(z, 0.0)


if __name__ == "__main__":
    # ConvBNBlock(input_size=4, output_size=8, kernel=3, stride=1, padding=1)
    N, CIN, H, W = 2, 4, 16, 16
    COUT, K, STRIDE, PAD = 8, 3, 1, 1

    key = jax.random.PRNGKey(0)
    kx, kw, kb = jax.random.split(key, 3)

    x = jax.random.normal(kx, (N, CIN, H, W), dtype=jnp.float32)
    # Conv2d params (PyTorch shapes: weight (Cout, Cin, K, K), bias (Cout,))
    fan_in = CIN * K * K
    bound = 1.0 / (fan_in ** 0.5)
    conv_w = jax.random.uniform(kw, (COUT, CIN, K, K), jnp.float32, -bound, bound)
    conv_b = jax.random.uniform(kb, (COUT,), jnp.float32, -bound, bound)
    # BatchNorm2d default init: gamma = 1, beta = 0.
    bn_gamma = jnp.ones((COUT,), jnp.float32)
    bn_beta = jnp.zeros((COUT,), jnp.float32)

    out = conv_bn_block(x, conv_w, conv_b, bn_gamma, bn_beta,
                        kernel=K, stride=STRIDE, padding=PAD)
    out = jax.block_until_ready(out)

    ref = _reference(x, conv_w, conv_b, bn_gamma, bn_beta, stride=STRIDE, padding=PAD)
    assert out.shape == (N, COUT, H, W), out.shape
    err = float(jnp.max(jnp.abs(out - ref)))
    # bf16 matmul inputs + bf16 output writeback; all statistics / affine math in f32.
    assert err < 3e-2, err

    print("KERNEL_OK")
</pallas_src>

<mosaic_0001>
module attributes {stable_mosaic.version = 11 : i64} {
  func.func @_normalize_kernel(%arg0: i32, %arg1: memref<1x18x18x4xbf16, #tpu.memory_space<vmem>>, %arg2: memref<36x128xbf16, #tpu.memory_space<vmem>>, %arg3: memref<1x128xf32, #tpu.memory_space<vmem>>, %arg4: memref<1x128xf32, #tpu.memory_space<vmem>>, %arg5: memref<1x256x8xbf16, #tpu.memory_space<vmem>>) attributes {dimension_semantics = [#tpu.dimension_semantics<parallel>], iteration_bounds = array<i64: 2>, scalar_prefetch = 0 : i64, scratch_operands = 0 : i64, tpu.core_type = #tpu.core_type<tc>, window_params = [{transform_indices = @transform_0, window_bounds = array<i64: 1, 18, 18, 4>}, {pipeline_mode = #tpu.pipeline_mode<synchronous>, transform_indices = @transform_1, window_bounds = array<i64: 36, 128>}, {pipeline_mode = #tpu.pipeline_mode<synchronous>, transform_indices = @transform_2, window_bounds = array<i64: 1, 128>}, {pipeline_mode = #tpu.pipeline_mode<synchronous>, transform_indices = @transform_3, window_bounds = array<i64: 1, 128>}, {transform_indices = @transform_4, window_bounds = array<i64: 1, 256, 8>}]} {
    %cst = arith.constant 0.000000e+00 : f32
    %0 = vector.broadcast %cst : f32 to vector<256x128xf32>
    %c0 = arith.constant 0 : index
    %c0_0 = arith.constant 0 : index
    %c0_1 = arith.constant 0 : index
    %c0_2 = arith.constant 0 : index
    %1 = vector.load %arg1[%c0, %c0_0, %c0_1, %c0_2] : memref<1x18x18x4xbf16, #tpu.memory_space<vmem>>, vector<1x16x16x4xbf16>
    %2 = vector.shape_cast %1 : vector<1x16x16x4xbf16> to vector<16x16x4xbf16>
    %3 = vector.shape_cast %2 : vector<16x16x4xbf16> to vector<256x4xbf16>
    %c0_3 = arith.constant 0 : index
    %c0_4 = arith.constant 0 : index
    %4 = vector.load %arg2[%c0_3, %c0_4] : memref<36x128xbf16, #tpu.memory_space<vmem>>, vector<4x128xbf16>
    %cst_5 = arith.constant dense<0.000000e+00> : vector<256x128xf32>
    %5 = tpu.matmul %3, %4, %cst_5 {dimension_numbers = #tpu.dot_dimension_numbers<[1], [0], [0], [1], [0, 0, 1, 1], [], []>} : vector<256x4xbf16>, vector<4x128xbf16>, vector<256x128xf32> -> vector<256x128xf32>
    %6 = arith.addf %0, %5 : vector<256x128xf32>
    %c0_6 = arith.constant 0 : index
    %c0_7 = arith.constant 0 : index
    %c1 = arith.constant 1 : index
    %c0_8 = arith.constant 0 : index
    %7 = vector.load %arg1[%c0_6, %c0_7, %c1, %c0_8] : memref<1x18x18x4xbf16, #tpu.memory_space<vmem>>, vector<1x16x16x4xbf16>
    %8 = vector.shape_cast %7 : vector<1x16x16x4xbf16> to vector<16x16x4xbf16>
    %9 = vector.shape_cast %8 : vector<16x16x4xbf16> to vector<256x4xbf16>
    %c4 = arith.constant 4 : index
    %c0_9 = arith.constant 0 : index
    %10 = vector.load %arg2[%c4, %c0_9] : memref<36x128xbf16, #tpu.memory_space<vmem>>, vector<4x128xbf16>
    %cst_10 = arith.constant dense<0.000000e+00> : vector<256x128xf32>
    %11 = tpu.matmul %9, %10, %cst_10 {dimension_numbers = #tpu.dot_dimension_numbers<[1], [0], [0], [1], [0, 0, 1, 1], [], []>} : vector<256x4xbf16>, vector<4x128xbf16>, vector<256x128xf32> -> vector<256x128xf32>
    %12 = arith.addf %6, %11 : vector<256x128xf32>
    %c0_11 = arith.constant 0 : index
    %c0_12 = arith.constant 0 : index
    %c2 = arith.constant 2 : index
    %c0_13 = arith.constant 0 : index
    %13 = vector.load %arg1[%c0_11, %c0_12, %c2, %c0_13] : memref<1x18x18x4xbf16, #tpu.memory_space<vmem>>, vector<1x16x16x4xbf16>
    %14 = vector.shape_cast %13 : vector<1x16x16x4xbf16> to vector<16x16x4xbf16>
    %15 = vector.shape_cast %14 : vector<16x16x4xbf16> to vector<256x4xbf16>
    %c8 = arith.constant 8 : index
    %c0_14 = arith.constant 0 : index
    %16 = vector.load %arg2[%c8, %c0_14] : memref<36x128xbf16, #tpu.memory_space<vmem>>, vector<4x128xbf16>
    %cst_15 = arith.constant dense<0.000000e+00> : vector<256x128xf32>
    %17 = tpu.matmul %15, %16, %cst_15 {dimension_numbers = #tpu.dot_dimension_numbers<[1], [0], [0], [1], [0, 0, 1, 1], [], []>} : vector<256x4xbf16>, vector<4x128xbf16>, vector<256x128xf32> -> vector<256x128xf32>
    %18 = arith.addf %12, %17 : vector<256x128xf32>
    %c0_16 = arith.constant 0 : index
    %c1_17 = arith.constant 1 : index
    %c0_18 = arith.constant 0 : index
    %c0_19 = arith.constant 0 : index
    %19 = vector.load %arg1[%c0_16, %c1_17, %c0_18, %c0_19] : memref<1x18x18x4xbf16, #tpu.memory_space<vmem>>, vector<1x16x16x4xbf16>
    %20 = vector.shape_cast %19 : vector<1x16x16x4xbf16> to vector<16x16x4xbf16>
    %21 = vector.shape_cast %20 : vector<16x16x4xbf16> to vector<256x4xbf16>
    %c12 = arith.constant 12 : index
    %c0_20 = arith.constant 0 : index
    %22 = vector.load %arg2[%c12, %c0_20] : memref<36x128xbf16, #tpu.memory_space<vmem>>, vector<4x128xbf16>
    %cst_21 = arith.constant dense<0.000000e+00> : vector<256x128xf32>
    %23 = tpu.matmul %21, %22, %cst_21 {dimension_numbers = #tpu.dot_dimension_numbers<[1], [0], [0], [1], [0, 0, 1, 1], [], []>} : vector<256x4xbf16>, vector<4x128xbf16>, vector<256x128xf32> -> vector<256x128xf32>
    %24 = arith.addf %18, %23 : vector<256x128xf32>
    %c0_22 = arith.constant 0 : index
    %c1_23 = arith.constant 1 : index
    %c1_24 = arith.constant 1 : index
    %c0_25 = arith.constant 0 : index
    %25 = vector.load %arg1[%c0_22, %c1_23, %c1_24, %c0_25] : memref<1x18x18x4xbf16, #tpu.memory_space<vmem>>, vector<1x16x16x4xbf16>
    %26 = vector.shape_cast %25 : vector<1x16x16x4xbf16> to vector<16x16x4xbf16>
    %27 = vector.shape_cast %26 : vector<16x16x4xbf16> to vector<256x4xbf16>
    %c16 = arith.constant 16 : index
    %c0_26 = arith.constant 0 : index
    %28 = vector.load %arg2[%c16, %c0_26] : memref<36x128xbf16, #tpu.memory_space<vmem>>, vector<4x128xbf16>
    %cst_27 = arith.constant dense<0.000000e+00> : vector<256x128xf32>
    %29 = tpu.matmul %27, %28, %cst_27 {dimension_numbers = #tpu.dot_dimension_numbers<[1], [0], [0], [1], [0, 0, 1, 1], [], []>} : vector<256x4xbf16>, vector<4x128xbf16>, vector<256x128xf32> -> vector<256x128xf32>
    %30 = arith.addf %24, %29 : vector<256x128xf32>
    %c0_28 = arith.constant 0 : index
    %c1_29 = arith.constant 1 : index
    %c2_30 = arith.constant 2 : index
    %c0_31 = arith.constant 0 : index
    %31 = vector.load %arg1[%c0_28, %c1_29, %c2_30, %c0_31] : memref<1x18x18x4xbf16, #tpu.memory_space<vmem>>, vector<1x16x16x4xbf16>
    %32 = vector.shape_cast %31 : vector<1x16x16x4xbf16> to vector<16x16x4xbf16>
    %33 = vector.shape_cast %32 : vector<16x16x4xbf16> to vector<256x4xbf16>
    %c20 = arith.constant 20 : index
    %c0_32 = arith.constant 0 : index
    %34 = vector.load %arg2[%c20, %c0_32] : memref<36x128xbf16, #tpu.memory_space<vmem>>, vector<4x128xbf16>
    %cst_33 = arith.constant dense<0.000000e+00> : vector<256x128xf32>
    %35 = tpu.matmul %33, %34, %cst_33 {dimension_numbers = #tpu.dot_dimension_numbers<[1], [0], [0], [1], [0, 0, 1, 1], [], []>} : vector<256x4xbf16>, vector<4x128xbf16>, vector<256x128xf32> -> vector<256x128xf32>
    %36 = arith.addf %30, %35 : vector<256x128xf32>
    %c0_34 = arith.constant 0 : index
    %c2_35 = arith.constant 2 : index
    %c0_36 = arith.constant 0 : index
    %c0_37 = arith.constant 0 : index
    %37 = vector.load %arg1[%c0_34, %c2_35, %c0_36, %c0_37] : memref<1x18x18x4xbf16, #tpu.memory_space<vmem>>, vector<1x16x16x4xbf16>
    %38 = vector.shape_cast %37 : vector<1x16x16x4xbf16> to vector<16x16x4xbf16>
    %39 = vector.shape_cast %38 : vector<16x16x4xbf16> to vector<256x4xbf16>
    %c24 = arith.constant 24 : index
    %c0_38 = arith.constant 0 : index
    %40 = vector.load %arg2[%c24, %c0_38] : memref<36x128xbf16, #tpu.memory_space<vmem>>, vector<4x128xbf16>
    %cst_39 = arith.constant dense<0.000000e+00> : vector<256x128xf32>
    %41 = tpu.matmul %39, %40, %cst_39 {dimension_numbers = #tpu.dot_dimension_numbers<[1], [0], [0], [1], [0, 0, 1, 1], [], []>} : vector<256x4xbf16>, vector<4x128xbf16>, vector<256x128xf32> -> vector<256x128xf32>
    %42 = arith.addf %36, %41 : vector<256x128xf32>
    %c0_40 = arith.constant 0 : index
    %c2_41 = arith.constant 2 : index
    %c1_42 = arith.constant 1 : index
    %c0_43 = arith.constant 0 : index
    %43 = vector.load %arg1[%c0_40, %c2_41, %c1_42, %c0_43] : memref<1x18x18x4xbf16, #tpu.memory_space<vmem>>, vector<1x16x16x4xbf16>
    %44 = vector.shape_cast %43 : vector<1x16x16x4xbf16> to vector<16x16x4xbf16>
    %45 = vector.shape_cast %44 : vector<16x16x4xbf16> to vector<256x4xbf16>
    %c28 = arith.constant 28 : index
    %c0_44 = arith.constant 0 : index
    %46 = vector.load %arg2[%c28, %c0_44] : memref<36x128xbf16, #tpu.memory_space<vmem>>, vector<4x128xbf16>
    %cst_45 = arith.constant dense<0.000000e+00> : vector<256x128xf32>
    %47 = tpu.matmul %45, %46, %cst_45 {dimension_numbers = #tpu.dot_dimension_numbers<[1], [0], [0], [1], [0, 0, 1, 1], [], []>} : vector<256x4xbf16>, vector<4x128xbf16>, vector<256x128xf32> -> vector<256x128xf32>
    %48 = arith.addf %42, %47 : vector<256x128xf32>
    %c0_46 = arith.constant 0 : index
    %c2_47 = arith.constant 2 : index
    %c2_48 = arith.constant 2 : index
    %c0_49 = arith.constant 0 : index
    %49 = vector.load %arg1[%c0_46, %c2_47, %c2_48, %c0_49] : memref<1x18x18x4xbf16, #tpu.memory_space<vmem>>, vector<1x16x16x4xbf16>
    %50 = vector.shape_cast %49 : vector<1x16x16x4xbf16> to vector<16x16x4xbf16>
    %51 = vector.shape_cast %50 : vector<16x16x4xbf16> to vector<256x4xbf16>
    %c32 = arith.constant 32 : index
    %c0_50 = arith.constant 0 : index
    %52 = vector.load %arg2[%c32, %c0_50] : memref<36x128xbf16, #tpu.memory_space<vmem>>, vector<4x128xbf16>
    %cst_51 = arith.constant dense<0.000000e+00> : vector<256x128xf32>
    %53 = tpu.matmul %51, %52, %cst_51 {dimension_numbers = #tpu.dot_dimension_numbers<[1], [0], [0], [1], [0, 0, 1, 1], [], []>} : vector<256x4xbf16>, vector<4x128xbf16>, vector<256x128xf32> -> vector<256x128xf32>
    %54 = arith.addf %48, %53 : vector<256x128xf32>
    %c0_52 = arith.constant 0 : index
    %c0_53 = arith.constant 0 : index
    %55 = vector.load %arg3[%c0_52, %c0_53] : memref<1x128xf32, #tpu.memory_space<vmem>>, vector<1x128xf32>
    %56 = vector.broadcast %55 : vector<1x128xf32> to vector<256x128xf32>
    %57 = arith.mulf %54, %56 : vector<256x128xf32>
    %c0_54 = arith.constant 0 : index
    %c0_55 = arith.constant 0 : index
    %58 = vector.load %arg4[%c0_54, %c0_55] : memref<1x128xf32, #tpu.memory_space<vmem>>, vector<1x128xf32>
    %59 = vector.broadcast %58 : vector<1x128xf32> to vector<256x128xf32>
    %60 = arith.addf %57, %59 : vector<256x128xf32>
    %cst_56 = arith.constant 0.000000e+00 : f32
    %61 = vector.broadcast %cst_56 : f32 to vector<256x128xf32>
    %62 = arith.maximumf %60, %61 : vector<256x128xf32>
    %63 = vector.extract_strided_slice %62 {offsets = [0, 0], sizes = [256, 8], strides = [1, 1]} : vector<256x128xf32> to vector<256x8xf32>
    %64 = arith.truncf %63 : vector<256x8xf32> to vector<256x8xbf16>
    %c0_57 = arith.constant 0 : index
    %c0_58 = arith.constant 0 : index
    %c0_59 = arith.constant 0 : index
    %65 = vector.load %arg5[%c0_57, %c0_58, %c0_59] : memref<1x256x8xbf16, #tpu.memory_space<vmem>>, vector<1x256x8xbf16>
    %66 = vector.shape_cast %65 : vector<1x256x8xbf16> to vector<256x8xbf16>
    %67 = vector.shape_cast %64 : vector<256x8xbf16> to vector<1x256x8xbf16>
    tpu.vector_store %arg5[%c0_57, %c0_58, %c0_59], %67 {strides = array<i32>} : memref<1x256x8xbf16, #tpu.memory_space<vmem>>, vector<1x256x8xbf16>,
    return
  }
  func.func @transform_0(%arg0: i32) -> (i32, i32, i32, i32) {
    %c0_i32 = arith.constant 0 : i32
    %c0_i32_0 = arith.constant 0 : i32
    %c0_i32_1 = arith.constant 0 : i32
    %c0_i32_2 = arith.constant 0 : i32
    return %arg0, %c0_i32, %c0_i32_0, %c0_i32_1 : i32, i32, i32, i32
  }
  func.func @transform_1(%arg0: i32) -> (i32, i32) {
    %c0_i32 = arith.constant 0 : i32
    %c0_i32_0 = arith.constant 0 : i32
    %c0_i32_1 = arith.constant 0 : i32
    return %c0_i32, %c0_i32_0 : i32, i32
  }
  func.func @transform_2(%arg0: i32) -> (i32, i32) {
    %c0_i32 = arith.constant 0 : i32
    %c0_i32_0 = arith.constant 0 : i32
    %c0_i32_1 = arith.constant 0 : i32
    return %c0_i32, %c0_i32_0 : i32, i32
  }
  func.func @transform_3(%arg0: i32) -> (i32, i32) {
    %c0_i32 = arith.constant 0 : i32
    %c0_i32_0 = arith.constant 0 : i32
    %c0_i32_1 = arith.constant 0 : i32
    return %c0_i32, %c0_i32_0 : i32, i32
  }
  func.func @transform_4(%arg0: i32) -> (i32, i32, i32) {
    %c0_i32 = arith.constant 0 : i32
    %c0_i32_0 = arith.constant 0 : i32
    %c0_i32_1 = arith.constant 0 : i32
    return %arg0, %c0_i32, %c0_i32_0 : i32, i32, i32
  }
}

module attributes {stable_mosaic.version = 11 : i64} {
  func.func @_stats_kernel(%arg0: i32, %arg1: memref<1x18x18x4xbf16, #tpu.memory_space<vmem>>, %arg2: memref<36x128xbf16, #tpu.memory_space<vmem>>, %arg3: memref<1x1x128xf32, #tpu.memory_space<vmem>>, %arg4: memref<1x1x128xf32, #tpu.memory_space<vmem>>) attributes {dimension_semantics = [#tpu.dimension_semantics<parallel>], iteration_bounds = array<i64: 2>, scalar_prefetch = 0 : i64, scratch_operands = 0 : i64, tpu.core_type = #tpu.core_type<tc>, window_params = [{transform_indices = @transform_0, window_bounds = array<i64: 1, 18, 18, 4>}, {pipeline_mode = #tpu.pipeline_mode<synchronous>, transform_indices = @transform_1, window_bounds = array<i64: 36, 128>}, {transform_indices = @transform_2, window_bounds = array<i64: 1, 1, 128>}, {transform_indices = @transform_3, window_bounds = array<i64: 1, 1, 128>}]} {
    %cst = arith.constant 0.000000e+00 : f32
    %0 = vector.broadcast %cst : f32 to vector<256x128xf32>
    %c0 = arith.constant 0 : index
    %c0_0 = arith.constant 0 : index
    %c0_1 = arith.constant 0 : index
    %c0_2 = arith.constant 0 : index
    %1 = vector.load %arg1[%c0, %c0_0, %c0_1, %c0_2] : memref<1x18x18x4xbf16, #tpu.memory_space<vmem>>, vector<1x16x16x4xbf16>
    %2 = vector.shape_cast %1 : vector<1x16x16x4xbf16> to vector<16x16x4xbf16>
    %3 = vector.shape_cast %2 : vector<16x16x4xbf16> to vector<256x4xbf16>
    %c0_3 = arith.constant 0 : index
    %c0_4 = arith.constant 0 : index
    %4 = vector.load %arg2[%c0_3, %c0_4] : memref<36x128xbf16, #tpu.memory_space<vmem>>, vector<4x128xbf16>
    %cst_5 = arith.constant dense<0.000000e+00> : vector<256x128xf32>
    %5 = tpu.matmul %3, %4, %cst_5 {dimension_numbers = #tpu.dot_dimension_numbers<[1], [0], [0], [1], [0, 0, 1, 1], [], []>} : vector<256x4xbf16>, vector<4x128xbf16>, vector<256x128xf32> -> vector<256x128xf32>
    %6 = arith.addf %0, %5 : vector<256x128xf32>
    %c0_6 = arith.constant 0 : index
    %c0_7 = arith.constant 0 : index
    %c1 = arith.constant 1 : index
    %c0_8 = arith.constant 0 : index
    %7 = vector.load %arg1[%c0_6, %c0_7, %c1, %c0_8] : memref<1x18x18x4xbf16, #tpu.memory_space<vmem>>, vector<1x16x16x4xbf16>
    %8 = vector.shape_cast %7 : vector<1x16x16x4xbf16> to vector<16x16x4xbf16>
    %9 = vector.shape_cast %8 : vector<16x16x4xbf16> to vector<256x4xbf16>
    %c4 = arith.constant 4 : index
    %c0_9 = arith.constant 0 : index
    %10 = vector.load %arg2[%c4, %c0_9] : memref<36x128xbf16, #tpu.memory_space<vmem>>, vector<4x128xbf16>
    %cst_10 = arith.constant dense<0.000000e+00> : vector<256x128xf32>
    %11 = tpu.matmul %9, %10, %cst_10 {dimension_numbers = #tpu.dot_dimension_numbers<[1], [0], [0], [1], [0, 0, 1, 1], [], []>} : vector<256x4xbf16>, vector<4x128xbf16>, vector<256x128xf32> -> vector<256x128xf32>
    %12 = arith.addf %6, %11 : vector<256x128xf32>
    %c0_11 = arith.constant 0 : index
    %c0_12 = arith.constant 0 : index
    %c2 = arith.constant 2 : index
    %c0_13 = arith.constant 0 : index
    %13 = vector.load %arg1[%c0_11, %c0_12, %c2, %c0_13] : memref<1x18x18x4xbf16, #tpu.memory_space<vmem>>, vector<1x16x16x4xbf16>
    %14 = vector.shape_cast %13 : vector<1x16x16x4xbf16> to vector<16x16x4xbf16>
    %15 = vector.shape_cast %14 : vector<16x16x4xbf16> to vector<256x4xbf16>
    %c8 = arith.constant 8 : index
    %c0_14 = arith.constant 0 : index
    %16 = vector.load %arg2[%c8, %c0_14] : memref<36x128xbf16, #tpu.memory_space<vmem>>, vector<4x128xbf16>
    %cst_15 = arith.constant dense<0.000000e+00> : vector<256x128xf32>
    %17 = tpu.matmul %15, %16, %cst_15 {dimension_numbers = #tpu.dot_dimension_numbers<[1], [0], [0], [1], [0, 0, 1, 1], [], []>} : vector<256x4xbf16>, vector<4x128xbf16>, vector<256x128xf32> -> vector<256x128xf32>
    %18 = arith.addf %12, %17 : vector<256x128xf32>
    %c0_16 = arith.constant 0 : index
    %c1_17 = arith.constant 1 : index
    %c0_18 = arith.constant 0 : index
    %c0_19 = arith.constant 0 : index
    %19 = vector.load %arg1[%c0_16, %c1_17, %c0_18, %c0_19] : memref<1x18x18x4xbf16, #tpu.memory_space<vmem>>, vector<1x16x16x4xbf16>
    %20 = vector.shape_cast %19 : vector<1x16x16x4xbf16> to vector<16x16x4xbf16>
    %21 = vector.shape_cast %20 : vector<16x16x4xbf16> to vector<256x4xbf16>
    %c12 = arith.constant 12 : index
    %c0_20 = arith.constant 0 : index
    %22 = vector.load %arg2[%c12, %c0_20] : memref<36x128xbf16, #tpu.memory_space<vmem>>, vector<4x128xbf16>
    %cst_21 = arith.constant dense<0.000000e+00> : vector<256x128xf32>
    %23 = tpu.matmul %21, %22, %cst_21 {dimension_numbers = #tpu.dot_dimension_numbers<[1], [0], [0], [1], [0, 0, 1, 1], [], []>} : vector<256x4xbf16>, vector<4x128xbf16>, vector<256x128xf32> -> vector<256x128xf32>
    %24 = arith.addf %18, %23 : vector<256x128xf32>
    %c0_22 = arith.constant 0 : index
    %c1_23 = arith.constant 1 : index
    %c1_24 = arith.constant 1 : index
    %c0_25 = arith.constant 0 : index
    %25 = vector.load %arg1[%c0_22, %c1_23, %c1_24, %c0_25] : memref<1x18x18x4xbf16, #tpu.memory_space<vmem>>, vector<1x16x16x4xbf16>
    %26 = vector.shape_cast %25 : vector<1x16x16x4xbf16> to vector<16x16x4xbf16>
    %27 = vector.shape_cast %26 : vector<16x16x4xbf16> to vector<256x4xbf16>
    %c16 = arith.constant 16 : index
    %c0_26 = arith.constant 0 : index
    %28 = vector.load %arg2[%c16, %c0_26] : memref<36x128xbf16, #tpu.memory_space<vmem>>, vector<4x128xbf16>
    %cst_27 = arith.constant dense<0.000000e+00> : vector<256x128xf32>
    %29 = tpu.matmul %27, %28, %cst_27 {dimension_numbers = #tpu.dot_dimension_numbers<[1], [0], [0], [1], [0, 0, 1, 1], [], []>} : vector<256x4xbf16>, vector<4x128xbf16>, vector<256x128xf32> -> vector<256x128xf32>
    %30 = arith.addf %24, %29 : vector<256x128xf32>
    %c0_28 = arith.constant 0 : index
    %c1_29 = arith.constant 1 : index
    %c2_30 = arith.constant 2 : index
    %c0_31 = arith.constant 0 : index
    %31 = vector.load %arg1[%c0_28, %c1_29, %c2_30, %c0_31] : memref<1x18x18x4xbf16, #tpu.memory_space<vmem>>, vector<1x16x16x4xbf16>
    %32 = vector.shape_cast %31 : vector<1x16x16x4xbf16> to vector<16x16x4xbf16>
    %33 = vector.shape_cast %32 : vector<16x16x4xbf16> to vector<256x4xbf16>
    %c20 = arith.constant 20 : index
    %c0_32 = arith.constant 0 : index
    %34 = vector.load %arg2[%c20, %c0_32] : memref<36x128xbf16, #tpu.memory_space<vmem>>, vector<4x128xbf16>
    %cst_33 = arith.constant dense<0.000000e+00> : vector<256x128xf32>
    %35 = tpu.matmul %33, %34, %cst_33 {dimension_numbers = #tpu.dot_dimension_numbers<[1], [0], [0], [1], [0, 0, 1, 1], [], []>} : vector<256x4xbf16>, vector<4x128xbf16>, vector<256x128xf32> -> vector<256x128xf32>
    %36 = arith.addf %30, %35 : vector<256x128xf32>
    %c0_34 = arith.constant 0 : index
    %c2_35 = arith.constant 2 : index
    %c0_36 = arith.constant 0 : index
    %c0_37 = arith.constant 0 : index
    %37 = vector.load %arg1[%c0_34, %c2_35, %c0_36, %c0_37] : memref<1x18x18x4xbf16, #tpu.memory_space<vmem>>, vector<1x16x16x4xbf16>
    %38 = vector.shape_cast %37 : vector<1x16x16x4xbf16> to vector<16x16x4xbf16>
    %39 = vector.shape_cast %38 : vector<16x16x4xbf16> to vector<256x4xbf16>
    %c24 = arith.constant 24 : index
    %c0_38 = arith.constant 0 : index
    %40 = vector.load %arg2[%c24, %c0_38] : memref<36x128xbf16, #tpu.memory_space<vmem>>, vector<4x128xbf16>
    %cst_39 = arith.constant dense<0.000000e+00> : vector<256x128xf32>
    %41 = tpu.matmul %39, %40, %cst_39 {dimension_numbers = #tpu.dot_dimension_numbers<[1], [0], [0], [1], [0, 0, 1, 1], [], []>} : vector<256x4xbf16>, vector<4x128xbf16>, vector<256x128xf32> -> vector<256x128xf32>
    %42 = arith.addf %36, %41 : vector<256x128xf32>
    %c0_40 = arith.constant 0 : index
    %c2_41 = arith.constant 2 : index
    %c1_42 = arith.constant 1 : index
    %c0_43 = arith.constant 0 : index
    %43 = vector.load %arg1[%c0_40, %c2_41, %c1_42, %c0_43] : memref<1x18x18x4xbf16, #tpu.memory_space<vmem>>, vector<1x16x16x4xbf16>
    %44 = vector.shape_cast %43 : vector<1x16x16x4xbf16> to vector<16x16x4xbf16>
    %45 = vector.shape_cast %44 : vector<16x16x4xbf16> to vector<256x4xbf16>
    %c28 = arith.constant 28 : index
    %c0_44 = arith.constant 0 : index
    %46 = vector.load %arg2[%c28, %c0_44] : memref<36x128xbf16, #tpu.memory_space<vmem>>, vector<4x128xbf16>
    %cst_45 = arith.constant dense<0.000000e+00> : vector<256x128xf32>
    %47 = tpu.matmul %45, %46, %cst_45 {dimension_numbers = #tpu.dot_dimension_numbers<[1], [0], [0], [1], [0, 0, 1, 1], [], []>} : vector<256x4xbf16>, vector<4x128xbf16>, vector<256x128xf32> -> vector<256x128xf32>
    %48 = arith.addf %42, %47 : vector<256x128xf32>
    %c0_46 = arith.constant 0 : index
    %c2_47 = arith.constant 2 : index
    %c2_48 = arith.constant 2 : index
    %c0_49 = arith.constant 0 : index
    %49 = vector.load %arg1[%c0_46, %c2_47, %c2_48, %c0_49] : memref<1x18x18x4xbf16, #tpu.memory_space<vmem>>, vector<1x16x16x4xbf16>
    %50 = vector.shape_cast %49 : vector<1x16x16x4xbf16> to vector<16x16x4xbf16>
    %51 = vector.shape_cast %50 : vector<16x16x4xbf16> to vector<256x4xbf16>
    %c32 = arith.constant 32 : index
    %c0_50 = arith.constant 0 : index
    %52 = vector.load %arg2[%c32, %c0_50] : memref<36x128xbf16, #tpu.memory_space<vmem>>, vector<4x128xbf16>
    %cst_51 = arith.constant dense<0.000000e+00> : vector<256x128xf32>
    %53 = tpu.matmul %51, %52, %cst_51 {dimension_numbers = #tpu.dot_dimension_numbers<[1], [0], [0], [1], [0, 0, 1, 1], [], []>} : vector<256x4xbf16>, vector<4x128xbf16>, vector<256x128xf32> -> vector<256x128xf32>
    %54 = arith.addf %48, %53 : vector<256x128xf32>
    %cst_52 = arith.constant dense<0.000000e+00> : vector<128xf32>
    %55 = vector.multi_reduction <add>, %54, %cst_52 [0] : vector<256x128xf32> to vector<128xf32>
    %56 = vector.shape_cast %55 : vector<128xf32> to vector<1x128xf32>
    %c0_53 = arith.constant 0 : index
    %c0_54 = arith.constant 0 : index
    %c0_55 = arith.constant 0 : index
    %57 = vector.load %arg3[%c0_53, %c0_54, %c0_55] : memref<1x1x128xf32, #tpu.memory_space<vmem>>, vector<1x1x128xf32>
    %58 = vector.shape_cast %57 : vector<1x1x128xf32> to vector<1x128xf32>
    %59 = vector.shape_cast %56 : vector<1x128xf32> to vector<1x1x128xf32>
    tpu.vector_store %arg3[%c0_53, %c0_54, %c0_55], %59 {strides = array<i32>} : memref<1x1x128xf32, #tpu.memory_space<vmem>>, vector<1x1x128xf32>,
    %60 = arith.mulf %54, %54 : vector<256x128xf32>
    %cst_56 = arith.constant dense<0.000000e+00> : vector<128xf32>
    %61 = vector.multi_reduction <add>, %60, %cst_56 [0] : vector<256x128xf32> to vector<128xf32>
    %62 = vector.shape_cast %61 : vector<128xf32> to vector<1x128xf32>
    %c0_57 = arith.constant 0 : index
    %c0_58 = arith.constant 0 : index
    %c0_59 = arith.constant 0 : index
    %63 = vector.load %arg4[%c0_57, %c0_58, %c0_59] : memref<1x1x128xf32, #tpu.memory_space<vmem>>, vector<1x1x128xf32>
    %64 = vector.shape_cast %63 : vector<1x1x128xf32> to vector<1x128xf32>
    %65 = vector.shape_cast %62 : vector<1x128xf32> to vector<1x1x128xf32>
    tpu.vector_store %arg4[%c0_57, %c0_58, %c0_59], %65 {strides = array<i32>} : memref<1x1x128xf32, #tpu.memory_space<vmem>>, vector<1x1x128xf32>,
    return
  }
  func.func @transform_0(%arg0: i32) -> (i32, i32, i32, i32) {
    %c0_i32 = arith.constant 0 : i32
    %c0_i32_0 = arith.constant 0 : i32
    %c0_i32_1 = arith.constant 0 : i32
    %c0_i32_2 = arith.constant 0 : i32
    return %arg0, %c0_i32, %c0_i32_0, %c0_i32_1 : i32, i32, i32, i32
  }
  func.func @transform_1(%arg0: i32) -> (i32, i32) {
    %c0_i32 = arith.constant 0 : i32
    %c0_i32_0 = arith.constant 0 : i32
    %c0_i32_1 = arith.constant 0 : i32
    return %c0_i32, %c0_i32_0 : i32, i32
  }
  func.func @transform_2(%arg0: i32) -> (i32, i32, i32) {
    %c0_i32 = arith.constant 0 : i32
    %c0_i32_0 = arith.constant 0 : i32
    %c0_i32_1 = arith.constant 0 : i32
    return %arg0, %c0_i32, %c0_i32_0 : i32, i32, i32
  }
  func.func @transform_3(%arg0: i32) -> (i32, i32, i32) {
    %c0_i32 = arith.constant 0 : i32
    %c0_i32_0 = arith.constant 0 : i32
    %c0_i32_1 = arith.constant 0 : i32
    return %arg0, %c0_i32, %c0_i32_0 : i32, i32, i32
  }
}

</mosaic_0001>

<llo_original>
// kernel: conv_bn_block.2
$region0: #{conv_bn_block.2}
  #allocation0 [shape = 'u32[]', space=smem, size = 0x4, offset = 0x4, fixed_abs, tag = 'smem constant byte address 0x4 - core index']
  #allocation1 [shape = 'u32[72,128]{1,0:T(1,128)}', space=vmem, size = 0x9000, scoped, tag = 'internal scratch']
  %s0 = inlined_call_operand.vmem [shape: bf16[2,18,18,4], index: 0, kind: input, shape index: {}]
  %s1 = inlined_call_operand.vmem [shape: bf16[36,128], index: 1, kind: input, shape index: {}]
  %s2 = inlined_call_operand.vmem [shape: f32[2,1,128], index: 2, kind: output, shape index: {0}]
  %s3 = inlined_call_operand.vmem [shape: f32[2,1,128], index: 3, kind: output, shape index: {1}]
  %4 = xla_tuple %s2, %s3
  %s5 = sld [smem:[#allocation0]]
  $region49: #{conv_bn_block.2} parent=0
    _
  %s7 = ssub.s32 1, %s5
  %s8 = scalar_select 0, %s7, %s5
  loop: start=0, step=1, limit=4
  $region2: #{conv_bn_block.2} parent=0 // loop_pre_header
    _
  $region3: #{conv_bn_block.2} parent=0 // loop_header
    %s10 = sphi 0, %s14
    %p11 = scmp.ge.s32.totalorder %s10, 4
    %s20 = sphi 0, %s22
    %s23 = sphi 0, %s20
    %s24 = sphi 0, %s23
    %s40 = sphi 0, %s24
    %s44 = sphi 0, %s44
    %s46 = sphi 0, %s44
    %s47 = sphi 0, %s46
    %s61 = sphi 0, %s47
    %s67 = sphi 0, %s69
    %s70 = sphi 0, %s67
    %s71 = sphi 0, %s70
    %s87 = sphi 0, %s71
    %s93 = sphi 0, %s95
    %s96 = sphi 0, %s93
    %s97 = sphi 0, %s96
    %s113 = sphi 0, %s97
  $region4: #{conv_bn_block.2} parent=0 // loop_header_branch
    %13 = sbr.rel (%p11) target = $region8
  $region5: #{conv_bn_block.2} parent=0 // loop_body
    %s15 = ssub.s32 %s10, 1
    %s16 = ssub.s32 %s10, 2
    %s17 = sadd.s32 %s10, 1
    %s18 = ssub.s32 %s10, %s17
    %p19 = scmp.eq.s32.totalorder %s18, 0
    %s21 = sadd.s32 %s20, 1
    %s22 = scalar_select %p19, %s20, %s21
    %p25 = pneg %p19
    %p26 = scmp.eq.s32.totalorder %s10, 1
    %p27 = por %p25, %p26
    %p28 = scmp.ne.s32.totalorder %s20, %s23
    %p29 = scmp.eq.s32.totalorder %s10, 0
    %p30 = por %p28, %p29
    %p31 = scmp.ne.s32.totalorder %s20, %s23
    %p32 = scmp.eq.s32.totalorder %s15, 1
    %p33 = por %p31, %p32
    %p34 = scmp.ne.s32.totalorder %s23, %s24
    %p35 = scmp.eq.s32.totalorder %s15, 0
    %p36 = por %p34, %p35
    %p37 = scmp.ne.s32.totalorder %s23, %s24
    %p38 = scmp.eq.s32.totalorder %s16, 1
    %p39 = por %p37, %p38
    %p41 = scmp.ne.s32.totalorder %s24, %s40
    %p42 = scmp.eq.s32.totalorder %s16, 0
    %p43 = por %p41, %p42
    %s45 = sadd.s32 %s44, 1
    %p48 = scmp.eq.s32.totalorder %s10, 1
    %p49 = scmp.ne.s32.totalorder %s44, %s46
    %p50 = scmp.eq.s32.totalorder %s10, 0
    %p51 = por %p49, %p50
    %p52 = scmp.ne.s32.totalorder %s44, %s46
    %p53 = scmp.eq.s32.totalorder %s15, 1
    %p54 = por %p52, %p53
    %p55 = scmp.ne.s32.totalorder %s46, %s47
    %p56 = scmp.eq.s32.totalorder %s15, 0
    %p57 = por %p55, %p56
    %p58 = scmp.ne.s32.totalorder %s46, %s47
    %p59 = scmp.eq.s32.totalorder %s16, 1
    %p60 = por %p58, %p59
    %p62 = scmp.ne.s32.totalorder %s47, %s61
    %p63 = scmp.eq.s32.totalorder %s16, 0
    %p64 = por %p62, %p63
    %s65 = ssub.s32 %s10, %s17
    %p66 = scmp.eq.s32.totalorder %s65, 0
    %s68 = sadd.s32 %s67, 1
    %s69 = scalar_select %p66, %s67, %s68
    %p72 = pneg %p66
    %p73 = scmp.eq.s32.totalorder %s10, 1
    %p74 = por %p72, %p73
    %p75 = scmp.ne.s32.totalorder %s67, %s70
    %p76 = scmp.eq.s32.totalorder %s10, 0
    %p77 = por %p75, %p76
    %p78 = scmp.ne.s32.totalorder %s67, %s70
    %p79 = scmp.eq.s32.totalorder %s15, 1
    %p80 = por %p78, %p79
    %p81 = scmp.ne.s32.totalorder %s70, %s71
    %p82 = scmp.eq.s32.totalorder %s15, 0
    %p83 = por %p81, %p82
    %p84 = scmp.ne.s32.totalorder %s70, %s71
    %p85 = scmp.eq.s32.totalorder %s16, 1
    %p86 = por %p84, %p85
    %p88 = scmp.ne.s32.totalorder %s71, %s87
    %p89 = scmp.eq.s32.totalorder %s16, 0
    %p90 = por %p88, %p89
    %s91 = ssub.s32 %s10, %s17
    %p92 = scmp.eq.s32.totalorder %s91, 0
    %s94 = sadd.s32 %s93, 1
    %s95 = scalar_select %p92, %s93, %s94
    %p98 = pneg %p92
    %p99 = scmp.eq.s32.totalorder %s10, 1
    %p100 = por %p98, %p99
    %p101 = scmp.ne.s32.totalorder %s93, %s96
    %p102 = scmp.eq.s32.totalorder %s10, 0
    %p103 = por %p101, %p102
    %p104 = scmp.ne.s32.totalorder %s93, %s96
    %p105 = scmp.eq.s32.totalorder %s15, 1
    %p106 = por %p104, %p105
    %p107 = scmp.ne.s32.totalorder %s96, %s97
    %p108 = scmp.eq.s32.totalorder %s15, 0
    %p109 = por %p107, %p108
    %p110 = scmp.ne.s32.totalorder %s96, %s97
    %p111 = scmp.eq.s32.totalorder %s16, 1
    %p112 = por %p110, %p111
    %p114 = scmp.ne.s32.totalorder %s97, %s113
    %p115 = scmp.eq.s32.totalorder %s16, 0
    %p116 = por %p114, %p115
    %p117 = scmp.le.s32.totalorder 1, %s10
    %p118 = scmp.lt.s32.totalorder %s10, 3
    %p119 = pnand %p117, %p118
    %p120 = pneg %p119
    // Predicated region
    $region9: #{conv_bn_block.2} parent=5 // pred_check
      _
    $region10: #{conv_bn_block.2} parent=5 // pred_check_branch
      %122 = sbr.rel (%p119) target = $region12
    $region11: #{conv_bn_block.2} parent=5 // pred_region
      %s123 = ssub.s32 %s10, 1
      // Predicated region
      $region13: #{conv_bn_block.2} parent=11 // pred_check
        %p124 = pneg %p57
      $region14: #{conv_bn_block.2} parent=11 // pred_check_branch
        %126 = sbr.rel (%p124) target = $region16
      $region15: #{conv_bn_block.2} parent=11 // pred_region
        _
      $region16: #{conv_bn_block.2} parent=11 // pred_fallthru
        _
    $region12: #{conv_bn_block.2} parent=5 // pred_fallthru
      _
    %p127 = scmp.lt.s32.totalorder %s10, 2
    // Predicated region
    $region17: #{conv_bn_block.2} parent=5 // pred_check
      %p128 = pneg %p127
    $region18: #{conv_bn_block.2} parent=5 // pred_check_branch
      %130 = sbr.rel (%p128) target = $region20
    $region19: #{conv_bn_block.2} parent=5 // pred_region
      // Predicated region
      $region21: #{conv_bn_block.2} parent=19 // pred_check
        %p131 = pneg %p30
      $region22: #{conv_bn_block.2} parent=19 // pred_check_branch
        %133 = sbr.rel (%p131) target = $region24
      $region23: #{conv_bn_block.2} parent=19 // pred_region
        %p134 = scmp.lt.s32.totalorder %s10, 1
        %s135 = scalar_select %p134, %s10, 1
        %s136 = smul.addr %s135, 54
        %s137 = smul.addr %s136, 4
        %s138 = scalar_lea.vmem %s0, %s137
      $region24: #{conv_bn_block.2} parent=19 // pred_fallthru
        _
    $region20: #{conv_bn_block.2} parent=5 // pred_fallthru
      _
    %p139 = scmp.le.s32.totalorder 1, %s10
    %p140 = scmp.lt.s32.totalorder %s10, 3
    %p141 = pnand %p139, %p140
    %p142 = pneg %p141
    // Predicated region
    $region25: #{conv_bn_block.2} parent=5 // pred_check
      _
    $region26: #{conv_bn_block.2} parent=5 // pred_check_branch
      %144 = sbr.rel (%p141) target = $region28
    $region27: #{conv_bn_block.2} parent=5 // pred_region
      %s145 = ssub.s32 %s10, 1
      %p146 = scmp.lt.s32.totalorder %s15, 1
      %s147 = scalar_select %p146, %s15, 1
      %s148 = smul.addr %s147, 54
      %s149 = smul.addr %s148, 4
      %s150 = scalar_lea.vmem %s0, %s149
      %p151 = pneg %p36
      %p152 = pneg %p33
      %p153 = pneg %p57
      %p154 = pneg %p54
      %p155 = pneg %p83
      %p156 = pneg %p80
      %p157 = scmp.lt.s32.totalorder %s15, 1
      %s158 = scalar_select %p157, %s15, 1
      %s159 = scalar_lea.vmem %s2, %s158
      %p160 = pneg %p109
      %p161 = pneg %p106
      %p162 = scmp.lt.s32.totalorder %s15, 1
      %s163 = scalar_select %p162, %s15, 1
      %s164 = scalar_lea.vmem %s3, %s163
      %p165 = scmp.lt.s32.totalorder %s15, 1
      %s166 = scalar_select %p165, %s15, 1
      %s167 = smul.addr %s166, 54
      %s168 = smul.addr %s167, 4
      %s169 = scalar_lea.vmem %s0, %s168
      %p170 = scmp.lt.s32.totalorder %s15, 1
      %s171 = scalar_select %p170, %s15, 1
      %s172 = scalar_lea.vmem %s2, %s171
      %p173 = scmp.lt.s32.totalorder %s15, 1
      %s174 = scalar_select %p173, %s15, 1
      %s175 = scalar_lea.vmem %s3, %s174
      %v177 = vld [vmem:[%s169] sm:$0xf]
      %v178 = vld [vmem:[%s169 + $0x4] sm:$0xf]
      %v179 = vld [vmem:[%s169 + $0xc] sm:$0xf]
      %v180 = vld [vmem:[%s169 + $0x10] sm:$0xf]
      %v181 = vld [vmem:[%s169 + $0x18] sm:$0xf]
      %v182 = vld [vmem:[%s169 + $0x1c] sm:$0xf]
      %v183 = vld [vmem:[%s169 + $0x24] sm:$0xf]
      %v184 = vld [vmem:[%s169 + $0x28] sm:$0xf]
      %v185 = vld [vmem:[%s169 + $0x30] sm:$0xf]
      %v186 = vld [vmem:[%s169 + $0x34] sm:$0xf]
      %v187 = vld [vmem:[%s169 + $0x3c] sm:$0xf]
      %v188 = vld [vmem:[%s169 + $0x40] sm:$0xf]
      %v189 = vld [vmem:[%s169 + $0x48] sm:$0xf]
      %v190 = vld [vmem:[%s169 + $0x4c] sm:$0xf]
      %v191 = vld [vmem:[%s169 + $0x54] sm:$0xf]
      %v192 = vld [vmem:[%s169 + $0x58] sm:$0xf]
      %v193 = vld [vmem:[%s169 + $0x60] sm:$0xf]
      %v194 = vld [vmem:[%s169 + $0x64] sm:$0xf]
      %v195 = vld [vmem:[%s169 + $0x6c] sm:$0xf]
      %v196 = vld [vmem:[%s169 + $0x70] sm:$0xf]
      %v197 = vld [vmem:[%s169 + $0x78] sm:$0xf]
      %v198 = vld [vmem:[%s169 + $0x7c] sm:$0xf]
      %v199 = vld [vmem:[%s169 + $0x84] sm:$0xf]
      %v200 = vld [vmem:[%s169 + $0x88] sm:$0xf]
      %v201 = vld [vmem:[%s169 + $0x90] sm:$0xf]
      %v202 = vld [vmem:[%s169 + $0x94] sm:$0xf]
      %v203 = vld [vmem:[%s169 + $0x9c] sm:$0xf]
      %v204 = vld [vmem:[%s169 + $0xa0] sm:$0xf]
      %v205 = vld [vmem:[%s169 + $0xa8] sm:$0xf]
      %v206 = vld [vmem:[%s169 + $0xac] sm:$0xf]
      %v207 = vld [vmem:[%s169 + $0xb4] sm:$0xf]
      %v208 = vld [vmem:[%s169 + $0xb8] sm:$0xf]
      %v209 = vld [vmem:[%s1] sm:$0x3]
      %v210 = vld [vmem:[%s169 + $0x8] sm:$0x1]
      %v211 = vld [vmem:[%s169 + $0x14] sm:$0x1]
      %v212 = vld [vmem:[%s169 + $0x20] sm:$0x1]
      %v213 = vld [vmem:[%s169 + $0x2c] sm:$0x1]
      %v214 = vld [vmem:[%s169 + $0x38] sm:$0x1]
      %v215 = vld [vmem:[%s169 + $0x44] sm:$0x1]
      %v216 = vld [vmem:[%s169 + $0x50] sm:$0x1]
      %v217 = vld [vmem:[%s169 + $0x5c] sm:$0x1]
      %v218 = vld [vmem:[%s169 + $0x68] sm:$0x1]
      %v219 = vld [vmem:[%s169 + $0x74] sm:$0x1]
      %v220 = vld [vmem:[%s169 + $0x80] sm:$0x1]
      %v221 = vld [vmem:[%s169 + $0x8c] sm:$0x1]
      %v222 = vld [vmem:[%s169 + $0x98] sm:$0x1]
      %v223 = vld [vmem:[%s169 + $0xa4] sm:$0x1]
      %v224 = vld [vmem:[%s169 + $0xb0] sm:$0x1]
      %v225 = vld [vmem:[%s169 + $0xbc] sm:$0x1]
      %vm226 = vsmask.f32 3328
      %vm227 = vsmask.f32 7440
      %vm228 = vmor %vm226, %vm227
      %v230 = vshrl.u32 %v177, 16
      %v232 = vrot.slane %v230, 4
      %v233 = vshll.u32 %v177, 16
      %v235 = vrot.slane %v233, 5
      %v236 = vor.u32 %v232, %v235
      %v237 = vrot.slane %v236, 4
      %v239 = vshll.u32 %v178, 16
      %v241 = vrot.slane %v239, 5
      %v242 = vsel %vm228, %v237, %v241
      %v243 = vshrl.u32 %v178, 16
      %v245 = vrot.slane %v243, 4
      %v246 = vor.u32 %v245, %v241
      %v247 = vrot.slane %v246, 4
      %v249 = vshll.u32 %v210, 16
      %v251 = vrot.slane %v249, 5
      %v252 = vsel %vm228, %v247, %v251
      %v254 = vshrl.u32 %v179, 16
      %v256 = vrot.slane %v254, 4
      %v257 = vshll.u32 %v179, 16
      %v259 = vrot.slane %v257, 5
      %v260 = vor.u32 %v256, %v259
      %v261 = vrot.slane %v260, 4
      %v263 = vshll.u32 %v180, 16
      %v265 = vrot.slane %v263, 5
      %v266 = vsel %vm228, %v261, %v265
      %v267 = vshrl.u32 %v180, 16
      %v269 = vrot.slane %v267, 4
      %v270 = vor.u32 %v269, %v265
      %v271 = vrot.slane %v270, 4
      %v273 = vshll.u32 %v211, 16
      %v275 = vrot.slane %v273, 5
      %v276 = vsel %vm228, %v271, %v275
      %v278 = vshrl.u32 %v181, 16
      %v280 = vrot.slane %v278, 4
      %v281 = vshll.u32 %v181, 16
      %v283 = vrot.slane %v281, 5
      %v284 = vor.u32 %v280, %v283
      %v285 = vrot.slane %v284, 4
      %v287 = vshll.u32 %v182, 16
      %v289 = vrot.slane %v287, 5
      %v290 = vsel %vm228, %v285, %v289
      %v291 = vshrl.u32 %v182, 16
      %v293 = vrot.slane %v291, 4
      %v294 = vor.u32 %v293, %v289
      %v295 = vrot.slane %v294, 4
      %v297 = vshll.u32 %v212, 16
      %v299 = vrot.slane %v297, 5
      %v300 = vsel %vm228, %v295, %v299
      %v302 = vshrl.u32 %v183, 16
      %v304 = vrot.slane %v302, 4
      %v305 = vshll.u32 %v183, 16
      %v307 = vrot.slane %v305, 5
      %v308 = vor.u32 %v304, %v307
      %v309 = vrot.slane %v308, 4
      %v311 = vshll.u32 %v184, 16
      %v313 = vrot.slane %v311, 5
      %v314 = vsel %vm228, %v309, %v313
      %v315 = vshrl.u32 %v184, 16
      %v317 = vrot.slane %v315, 4
      %v318 = vor.u32 %v317, %v313
      %v319 = vrot.slane %v318, 4
      %v321 = vshll.u32 %v213, 16
      %v323 = vrot.slane %v321, 5
      %v324 = vsel %vm228, %v319, %v323
      %v326 = vshrl.u32 %v185, 16
      %v328 = vrot.slane %v326, 4
      %v329 = vshll.u32 %v185, 16
      %v331 = vrot.slane %v329, 5
      %v332 = vor.u32 %v328, %v331
      %v333 = vrot.slane %v332, 4
      %v335 = vshll.u32 %v186, 16
      %v337 = vrot.slane %v335, 5
      %v338 = vsel %vm228, %v333, %v337
      %v339 = vshrl.u32 %v186, 16
      %v341 = vrot.slane %v339, 4
      %v342 = vor.u32 %v341, %v337
      %v343 = vrot.slane %v342, 4
      %v345 = vshll.u32 %v214, 16
      %v347 = vrot.slane %v345, 5
      %v348 = vsel %vm228, %v343, %v347
      %v350 = vshrl.u32 %v187, 16
      %v352 = vrot.slane %v350, 4
      %v353 = vshll.u32 %v187, 16
      %v355 = vrot.slane %v353, 5
      %v356 = vor.u32 %v352, %v355
      %v357 = vrot.slane %v356, 4
      %v359 = vshll.u32 %v188, 16
      %v361 = vrot.slane %v359, 5
      %v362 = vsel %vm228, %v357, %v361
      %v363 = vshrl.u32 %v188, 16
      %v365 = vrot.slane %v363, 4
      %v366 = vor.u32 %v365, %v361
      %v367 = vrot.slane %v366, 4
      %v369 = vshll.u32 %v215, 16
      %v371 = vrot.slane %v369, 5
      %v372 = vsel %vm228, %v367, %v371
      %v374 = vshrl.u32 %v189, 16
      %v376 = vrot.slane %v374, 4
      %v377 = vshll.u32 %v189, 16
      %v379 = vrot.slane %v377, 5
      %v380 = vor.u32 %v376, %v379
      %v381 = vrot.slane %v380, 4
      %v383 = vshll.u32 %v190, 16
      %v385 = vrot.slane %v383, 5
      %v386 = vsel %vm228, %v381, %v385
      %v387 = vshrl.u32 %v190, 16
      %v389 = vrot.slane %v387, 4
      %v390 = vor.u32 %v389, %v385
      %v391 = vrot.slane %v390, 4
      %v393 = vshll.u32 %v216, 16
      %v395 = vrot.slane %v393, 5
      %v396 = vsel %vm228, %v391, %v395
      %v398 = vshrl.u32 %v191, 16
      %v400 = vrot.slane %v398, 4
      %v401 = vshll.u32 %v191, 16
      %v403 = vrot.slane %v401, 5
      %v404 = vor.u32 %v400, %v403
      %v405 = vrot.slane %v404, 4
      %v407 = vshll.u32 %v192, 16
      %v409 = vrot.slane %v407, 5
      %v410 = vsel %vm228, %v405, %v409
      %v411 = vshrl.u32 %v192, 16
      %v413 = vrot.slane %v411, 4
      %v414 = vor.u32 %v413, %v409
      %v415 = vrot.slane %v414, 4
      %v417 = vshll.u32 %v217, 16
      %v419 = vrot.slane %v417, 5
      %v420 = vsel %vm228, %v415, %v419
      %v422 = vshrl.u32 %v193, 16
      %v424 = vrot.slane %v422, 4
      %v425 = vshll.u32 %v193, 16
      %v427 = vrot.slane %v425, 5
      %v428 = vor.u32 %v424, %v427
      %v429 = vrot.slane %v428, 4
      %v431 = vshll.u32 %v194, 16
      %v433 = vrot.slane %v431, 5
      %v434 = vsel %vm228, %v429, %v433
      %v435 = vshrl.u32 %v194, 16
      %v437 = vrot.slane %v435, 4
      %v438 = vor.u32 %v437, %v433
      %v439 = vrot.slane %v438, 4
      %v441 = vshll.u32 %v218, 16
      %v443 = vrot.slane %v441, 5
      %v444 = vsel %vm228, %v439, %v443
      %v446 = vshrl.u32 %v195, 16
      %v448 = vrot.slane %v446, 4
      %v449 = vshll.u32 %v195, 16
      %v451 = vrot.slane %v449, 5
      %v452 = vor.u32 %v448, %v451
      %v453 = vrot.slane %v452, 4
      %v455 = vshll.u32 %v196, 16
      %v457 = vrot.slane %v455, 5
      %v458 = vsel %vm228, %v453, %v457
      %v459 = vshrl.u32 %v196, 16
      %v461 = vrot.slane %v459, 4
      %v462 = vor.u32 %v461, %v457
      %v463 = vrot.slane %v462, 4
      %v465 = vshll.u32 %v219, 16
      %v467 = vrot.slane %v465, 5
      %v468 = vsel %vm228, %v463, %v467
      %v470 = vshrl.u32 %v197, 16
      %v472 = vrot.slane %v470, 4
      %v473 = vshll.u32 %v197, 16
      %v475 = vrot.slane %v473, 5
      %v476 = vor.u32 %v472, %v475
      %v477 = vrot.slane %v476, 4
      %v479 = vshll.u32 %v198, 16
      %v481 = vrot.slane %v479, 5
      %v482 = vsel %vm228, %v477, %v481
      %v483 = vshrl.u32 %v198, 16
      %v485 = vrot.slane %v483, 4
      %v486 = vor.u32 %v485, %v481
      %v487 = vrot.slane %v486, 4
      %v489 = vshll.u32 %v220, 16
      %v491 = vrot.slane %v489, 5
      %v492 = vsel %vm228, %v487, %v491
      %v494 = vshrl.u32 %v199, 16
      %v496 = vrot.slane %v494, 4
      %v497 = vshll.u32 %v199, 16
      %v499 = vrot.slane %v497, 5
      %v500 = vor.u32 %v496, %v499
      %v501 = vrot.slane %v500, 4
      %v503 = vshll.u32 %v200, 16
      %v505 = vrot.slane %v503, 5
      %v506 = vsel %vm228, %v501, %v505
      %v507 = vshrl.u32 %v200, 16
      %v509 = vrot.slane %v507, 4
      %v510 = vor.u32 %v509, %v505
      %v511 = vrot.slane %v510, 4
      %v513 = vshll.u32 %v221, 16
      %v515 = vrot.slane %v513, 5
      %v516 = vsel %vm228, %v511, %v515
      %v518 = vshrl.u32 %v201, 16
      %v520 = vrot.slane %v518, 4
      %v521 = vshll.u32 %v201, 16
      %v523 = vrot.slane %v521, 5
      %v524 = vor.u32 %v520, %v523
      %v525 = vrot.slane %v524, 4
      %v527 = vshll.u32 %v202, 16
      %v529 = vrot.slane %v527, 5
      %v530 = vsel %vm228, %v525, %v529
      %v531 = vshrl.u32 %v202, 16
      %v533 = vrot.slane %v531, 4
      %v534 = vor.u32 %v533, %v529
      %v535 = vrot.slane %v534, 4
      %v537 = vshll.u32 %v222, 16
      %v539 = vrot.slane %v537, 5
      %v540 = vsel %vm228, %v535, %v539
      %v542 = vshrl.u32 %v203, 16
      %v544 = vrot.slane %v542, 4
      %v545 = vshll.u32 %v203, 16
      %v547 = vrot.slane %v545, 5
      %v548 = vor.u32 %v544, %v547
      %v549 = vrot.slane %v548, 4
      %v551 = vshll.u32 %v204, 16
      %v553 = vrot.slane %v551, 5
      %v554 = vsel %vm228, %v549, %v553
      %v555 = vshrl.u32 %v204, 16
      %v557 = vrot.slane %v555, 4
      %v558 = vor.u32 %v557, %v553
      %v559 = vrot.slane %v558, 4
      %v561 = vshll.u32 %v223, 16
      %v563 = vrot.slane %v561, 5
      %v564 = vsel %vm228, %v559, %v563
      %v566 = vshrl.u32 %v205, 16
      %v568 = vrot.slane %v566, 4
      %v569 = vshll.u32 %v205, 16
      %v571 = vrot.slane %v569, 5
      %v572 = vor.u32 %v568, %v571
      %v573 = vrot.slane %v572, 4
      %v575 = vshll.u32 %v206, 16
      %v577 = vrot.slane %v575, 5
      %v578 = vsel %vm228, %v573, %v577
      %v579 = vshrl.u32 %v206, 16
      %v581 = vrot.slane %v579, 4
      %v582 = vor.u32 %v581, %v577
      %v583 = vrot.slane %v582, 4
      %v585 = vshll.u32 %v224, 16
      %v587 = vrot.slane %v585, 5
      %v588 = vsel %vm228, %v583, %v587
      %v590 = vshrl.u32 %v207, 16
      %v592 = vrot.slane %v590, 4
      %v593 = vshll.u32 %v207, 16
      %v595 = vrot.slane %v593, 5
      %v596 = vor.u32 %v592, %v595
      %v597 = vrot.slane %v596, 4
      %v599 = vshll.u32 %v208, 16
      %v601 = vrot.slane %v599, 5
      %v602 = vsel %vm228, %v597, %v601
      %v603 = vshrl.u32 %v208, 16
      %v605 = vrot.slane %v603, 4
      %v606 = vor.u32 %v605, %v601
      %v607 = vrot.slane %v606, 4
      %v609 = vshll.u32 %v225, 16
      %v611 = vrot.slane %v609, 5
      %v612 = vsel %vm228, %v607, %v611
      %v613 = vld [vmem:[%s1] sm:$0xc]
      %v614 = vunpack.c.l.b16 %v242
      %v615 = vunpack.c.l.b16 %v252
      %v616 = vunpack.c.l.b16 %v266
      %v617 = vunpack.c.l.b16 %v276
      %v618 = vunpack.c.l.b16 %v290
      %v619 = vunpack.c.l.b16 %v300
      %v620 = vunpack.c.l.b16 %v314
      %v621 = vunpack.c.l.b16 %v324
      %v622 = vunpack.c.l.b16 %v338
      %v623 = vunpack.c.l.b16 %v348
      %v624 = vunpack.c.l.b16 %v362
      %v625 = vunpack.c.l.b16 %v372
      %v626 = vunpack.c.l.b16 %v386
      %v627 = vunpack.c.l.b16 %v396
      %v628 = vunpack.c.l.b16 %v410
      %v629 = vunpack.c.l.b16 %v420
      %v630 = vunpack.c.l.b16 %v434
      %v631 = vunpack.c.l.b16 %v444
      %v632 = vunpack.c.l.b16 %v458
      %v633 = vunpack.c.l.b16 %v468
      %v634 = vunpack.c.l.b16 %v482
      %v635 = vunpack.c.l.b16 %v492
      %v636 = vunpack.c.l.b16 %v506
      %v637 = vunpack.c.l.b16 %v516
      %v638 = vunpack.c.l.b16 %v530
      %v639 = vunpack.c.l.b16 %v540
      %v640 = vunpack.c.l.b16 %v554
      %v641 = vunpack.c.l.b16 %v564
      %v642 = vunpack.c.l.b16 %v578
      %v643 = vunpack.c.l.b16 %v588
      %v644 = vunpack.c.l.b16 %v602
      %v645 = vunpack.c.l.b16 %v612
      %v646 = vpack.c.b16 %v615, %v614
      %v647 = vpack.c.b16 %v617, %v616
      %v648 = vpack.c.b16 %v619, %v618
      %v649 = vpack.c.b16 %v621, %v620
      %v650 = vpack.c.b16 %v623, %v622
      %v651 = vpack.c.b16 %v625, %v624
      %v652 = vpack.c.b16 %v627, %v626
      %v653 = vpack.c.b16 %v629, %v628
      %v654 = vpack.c.b16 %v631, %v630
      %v655 = vpack.c.b16 %v633, %v632
      %v656 = vpack.c.b16 %v635, %v634
      %v657 = vpack.c.b16 %v637, %v636
      %v658 = vpack.c.b16 %v639, %v638
      %v659 = vpack.c.b16 %v641, %v640
      %v660 = vpack.c.b16 %v643, %v642
      %v661 = vpack.c.b16 %v645, %v644
      %v663 = vunpack.c.l.b16 %v613
      %v664 = vpack.c.b16 %v663, %v663
      %v665 = vrot.slane %v664, 2
      %vm666 = vcmask 31744
      %v668 = vsel %vm666, %v646, 0
      %v671 = vsel %vm666, %v647, 0
      %v674 = vsel %vm666, %v648, 0
      %v677 = vsel %vm666, %v649, 0
      %v680 = vsel %vm666, %v650, 0
      %v683 = vsel %vm666, %v651, 0
      %v686 = vsel %vm666, %v652, 0
      %v689 = vsel %vm666, %v653, 0
      %v692 = vsel %vm666, %v654, 0
      %v695 = vsel %vm666, %v655, 0
      %v698 = vsel %vm666, %v656, 0
      %v701 = vsel %vm666, %v657, 0
      %v704 = vsel %vm666, %v658, 0
      %v707 = vsel %vm666, %v659, 0
      %v710 = vsel %vm666, %v660, 0
      %v713 = vsel %vm666, %v661, 0
      %vm715 = vcmask 1041408
      %v717 = vsel %vm715, %v665, 0
      %719 = vmatpush.bf16.msra.mxu0 0
      %720 = vmatpush.bf16.msra.mxu0 0
      %721 = vmatpush.bf16.msra.mxu0 0
      %722 = vmatpush.bf16.msra.mxu0 0
      %723 = vmatpush.bf16.msra.mxu0 0
      %724 = vmatpush.bf16.msra.mxu0 0
      %725 = vmatpush.bf16.msra.mxu0 0
      %726 = vmatpush.bf16.msra.mxu0 %v717
      %727 = vmatmul.bf16.gmra.mxu0 %v668
      %v728 = vpop.f32.mrf.mxu0
      %v729 = vadd.f32 0.0, %v728
      %v730 = vpop.f32.mrf.mxu0
      %v731 = vadd.f32 0.0, %v730
      %732 = vmatmul.bf16.gmra.mxu0 %v671
      %v733 = vpop.f32.mrf.mxu0
      %v734 = vadd.f32 0.0, %v733
      %v735 = vpop.f32.mrf.mxu0
      %v736 = vadd.f32 0.0, %v735
      %737 = vmatmul.bf16.gmra.mxu0 %v674
      %v738 = vpop.f32.mrf.mxu0
      %v739 = vadd.f32 0.0, %v738
      %v740 = vpop.f32.mrf.mxu0
      %v741 = vadd.f32 0.0, %v740
      %742 = vmatmul.bf16.gmra.mxu0 %v677
      %v743 = vpop.f32.mrf.mxu0
      %v744 = vadd.f32 0.0, %v743
      %v745 = vpop.f32.mrf.mxu0
      %v746 = vadd.f32 0.0, %v745
      %747 = vmatmul.bf16.gmra.mxu0 %v680
      %v748 = vpop.f32.mrf.mxu0
      %v749 = vadd.f32 0.0, %v748
      %v750 = vpop.f32.mrf.mxu0
      %v751 = vadd.f32 0.0, %v750
      %752 = vmatmul.bf16.gmra.mxu0 %v683
      %v753 = vpop.f32.mrf.mxu0
      %v754 = vadd.f32 0.0, %v753
      %v755 = vpop.f32.mrf.mxu0
      %v756 = vadd.f32 0.0, %v755
      %757 = vmatmul.bf16.gmra.mxu0 %v686
      %v758 = vpop.f32.mrf.mxu0
      %v759 = vadd.f32 0.0, %v758
      %v760 = vpop.f32.mrf.mxu0
      %v761 = vadd.f32 0.0, %v760
      %762 = vmatmul.bf16.gmra.mxu0 %v689
      %v763 = vpop.f32.mrf.mxu0
      %v764 = vadd.f32 0.0, %v763
      %v765 = vpop.f32.mrf.mxu0
      %v766 = vadd.f32 0.0, %v765
      %767 = vmatmul.bf16.gmra.mxu0 %v692
      %v768 = vpop.f32.mrf.mxu0
      %v769 = vadd.f32 0.0, %v768
      %v770 = vpop.f32.mrf.mxu0
      %v771 = vadd.f32 0.0, %v770
      %772 = vmatmul.bf16.gmra.mxu0 %v695
      %v773 = vpop.f32.mrf.mxu0
      %v774 = vadd.f32 0.0, %v773
      %v775 = vpop.f32.mrf.mxu0
      %v776 = vadd.f32 0.0, %v775
      %777 = vmatmul.bf16.gmra.mxu0 %v698
      %v778 = vpop.f32.mrf.mxu0
      %v779 = vadd.f32 0.0, %v778
      %v780 = vpop.f32.mrf.mxu0
      %v781 = vadd.f32 0.0, %v780
      %782 = vmatmul.bf16.gmra.mxu0 %v701
      %v783 = vpop.f32.mrf.mxu0
      %v784 = vadd.f32 0.0, %v783
      %v785 = vpop.f32.mrf.mxu0
      %v786 = vadd.f32 0.0, %v785
      %787 = vmatmul.bf16.gmra.mxu0 %v704
      %v788 = vpop.f32.mrf.mxu0
      %v789 = vadd.f32 0.0, %v788
      %v790 = vpop.f32.mrf.mxu0
      %v791 = vadd.f32 0.0, %v790
      %792 = vmatmul.bf16.gmra.mxu0 %v707
      %v793 = vpop.f32.mrf.mxu0
      %v794 = vadd.f32 0.0, %v793
      %v795 = vpop.f32.mrf.mxu0
      %v796 = vadd.f32 0.0, %v795
      %797 = vmatmul.bf16.gmra.mxu0 %v710
      %v798 = vpop.f32.mrf.mxu0
      %v799 = vadd.f32 0.0, %v798
      %v800 = vpop.f32.mrf.mxu0
      %v801 = vadd.f32 0.0, %v800
      %802 = vmatmul.bf16.gmra.mxu0 %v713
      %v803 = vpop.f32.mrf.mxu0
      %v804 = vadd.f32 0.0, %v803
      %v805 = vpop.f32.mrf.mxu0
      %v806 = vadd.f32 0.0, %v805
      %807 = vdwg.mxu0
      %v840 = vunpack.c.l.b16 %v177
      %v841 = vunpack.c.l.b16 %v178
      %v842 = vunpack.c.l.b16 %v179
      %v843 = vunpack.c.l.b16 %v180
      %v844 = vunpack.c.l.b16 %v181
      %v845 = vunpack.c.l.b16 %v182
      %v846 = vunpack.c.l.b16 %v183
      %v847 = vunpack.c.l.b16 %v184
      %v848 = vunpack.c.l.b16 %v185
      %v849 = vunpack.c.l.b16 %v186
      %v850 = vunpack.c.l.b16 %v187
      %v851 = vunpack.c.l.b16 %v188
      %v852 = vunpack.c.l.b16 %v189
      %v853 = vunpack.c.l.b16 %v190
      %v854 = vunpack.c.l.b16 %v191
      %v855 = vunpack.c.l.b16 %v192
      %v856 = vunpack.c.l.b16 %v193
      %v857 = vunpack.c.l.b16 %v194
      %v858 = vunpack.c.l.b16 %v195
      %v859 = vunpack.c.l.b16 %v196
      %v860 = vunpack.c.l.b16 %v197
      %v861 = vunpack.c.l.b16 %v198
      %v862 = vunpack.c.l.b16 %v199
      %v863 = vunpack.c.l.b16 %v200
      %v864 = vunpack.c.l.b16 %v201
      %v865 = vunpack.c.l.b16 %v202
      %v866 = vunpack.c.l.b16 %v203
      %v867 = vunpack.c.l.b16 %v204
      %v868 = vunpack.c.l.b16 %v205
      %v869 = vunpack.c.l.b16 %v206
      %v870 = vunpack.c.l.b16 %v207
      %v871 = vunpack.c.l.b16 %v208
      %v872 = vpack.c.b16 %v841, %v840
      %v873 = vpack.c.b16 %v843, %v842
      %v874 = vpack.c.b16 %v845, %v844
      %v875 = vpack.c.b16 %v847, %v846
      %v876 = vpack.c.b16 %v849, %v848
      %v877 = vpack.c.b16 %v851, %v850
      %v878 = vpack.c.b16 %v853, %v852
      %v879 = vpack.c.b16 %v855, %v854
      %v880 = vpack.c.b16 %v857, %v856
      %v881 = vpack.c.b16 %v859, %v858
      %v882 = vpack.c.b16 %v861, %v860
      %v883 = vpack.c.b16 %v863, %v862
      %v884 = vpack.c.b16 %v865, %v864
      %v885 = vpack.c.b16 %v867, %v866
      %v886 = vpack.c.b16 %v869, %v868
      %v887 = vpack.c.b16 %v871, %v870
      %v889 = vsel %vm666, %v872, 0
      %v892 = vsel %vm666, %v873, 0
      %v895 = vsel %vm666, %v874, 0
      %v898 = vsel %vm666, %v875, 0
      %v901 = vsel %vm666, %v876, 0
      %v904 = vsel %vm666, %v877, 0
      %v907 = vsel %vm666, %v878, 0
      %v910 = vsel %vm666, %v879, 0
      %v913 = vsel %vm666, %v880, 0
      %v916 = vsel %vm666, %v881, 0
      %v919 = vsel %vm666, %v882, 0
      %v922 = vsel %vm666, %v883, 0
      %v925 = vsel %vm666, %v884, 0
      %v928 = vsel %vm666, %v885, 0
      %v931 = vsel %vm666, %v886, 0
      %v934 = vsel %vm666, %v887, 0
      %v937 = vsel %vm715, %v209, 0
      %939 = vmatpush.bf16.msra.mxu0 0
      %940 = vmatpush.bf16.msra.mxu0 0
      %941 = vmatpush.bf16.msra.mxu0 0
      %942 = vmatpush.bf16.msra.mxu0 0
      %943 = vmatpush.bf16.msra.mxu0 0
      %944 = vmatpush.bf16.msra.mxu0 0
      %945 = vmatpush.bf16.msra.mxu0 0
      %946 = vmatpush.bf16.msra.mxu0 %v937
      %947 = vmatmul.bf16.gmra.mxu0 %v889
      %v948 = vpop.f32.mrf.mxu0
      %v949 = vadd.f32 %v729, %v948
      %v950 = vpop.f32.mrf.mxu0
      %v951 = vadd.f32 %v731, %v950
      %952 = vmatmul.bf16.gmra.mxu0 %v892
      %v953 = vpop.f32.mrf.mxu0
      %v954 = vadd.f32 %v734, %v953
      %v955 = vpop.f32.mrf.mxu0
      %v956 = vadd.f32 %v736, %v955
      %957 = vmatmul.bf16.gmra.mxu0 %v895
      %v958 = vpop.f32.mrf.mxu0
      %v959 = vadd.f32 %v739, %v958
      %v960 = vpop.f32.mrf.mxu0
      %v961 = vadd.f32 %v741, %v960
      %962 = vmatmul.bf16.gmra.mxu0 %v898
      %v963 = vpop.f32.mrf.mxu0
      %v964 = vadd.f32 %v744, %v963
      %v965 = vpop.f32.mrf.mxu0
      %v966 = vadd.f32 %v746, %v965
      %967 = vmatmul.bf16.gmra.mxu0 %v901
      %v968 = vpop.f32.mrf.mxu0
      %v969 = vadd.f32 %v749, %v968
      %v970 = vpop.f32.mrf.mxu0
      %v971 = vadd.f32 %v751, %v970
      %972 = vmatmul.bf16.gmra.mxu0 %v904
      %v973 = vpop.f32.mrf.mxu0
      %v974 = vadd.f32 %v754, %v973
      %v975 = vpop.f32.mrf.mxu0
      %v976 = vadd.f32 %v756, %v975
      %977 = vmatmul.bf16.gmra.mxu0 %v907
      %v978 = vpop.f32.mrf.mxu0
      %v979 = vadd.f32 %v759, %v978
      %v980 = vpop.f32.mrf.mxu0
      %v981 = vadd.f32 %v761, %v980
      %982 = vmatmul.bf16.gmra.mxu0 %v910
      %v983 = vpop.f32.mrf.mxu0
      %v984 = vadd.f32 %v764, %v983
      %v985 = vpop.f32.mrf.mxu0
      %v986 = vadd.f32 %v766, %v985
      %987 = vmatmul.bf16.gmra.mxu0 %v913
      %v988 = vpop.f32.mrf.mxu0
      %v989 = vadd.f32 %v769, %v988
      %v990 = vpop.f32.mrf.mxu0
      %v991 = vadd.f32 %v771, %v990
      %992 = vmatmul.bf16.gmra.mxu0 %v916
      %v993 = vpop.f32.mrf.mxu0
      %v994 = vadd.f32 %v774, %v993
      %v995 = vpop.f32.mrf.mxu0
      %v996 = vadd.f32 %v776, %v995
      %997 = vmatmul.bf16.gmra.mxu0 %v919
      %v998 = vpop.f32.mrf.mxu0
      %v999 = vadd.f32 %v779, %v998
      %v1000 = vpop.f32.mrf.mxu0
      %v1001 = vadd.f32 %v781, %v1000
      %1002 = vmatmul.bf16.gmra.mxu0 %v922
      %v1003 = vpop.f32.mrf.mxu0
      %v1004 = vadd.f32 %v784, %v1003
      %v1005 = vpop.f32.mrf.mxu0
      %v1006 = vadd.f32 %v786, %v1005
      %1007 = vmatmul.bf16.gmra.mxu0 %v925
      %v1008 = vpop.f32.mrf.mxu0
      %v1009 = vadd.f32 %v789, %v1008
      %v1010 = vpop.f32.mrf.mxu0
      %v1011 = vadd.f32 %v791, %v1010
      %1012 = vmatmul.bf16.gmra.mxu0 %v928
      %v1013 = vpop.f32.mrf.mxu0
      %v1014 = vadd.f32 %v794, %v1013
      %v1015 = vpop.f32.mrf.mxu0
      %v1016 = vadd.f32 %v796, %v1015
      %1017 = vmatmul.bf16.gmra.mxu0 %v931
      %v1018 = vpop.f32.mrf.mxu0
      %v1019 = vadd.f32 %v799, %v1018
      %v1020 = vpop.f32.mrf.mxu0
      %v1021 = vadd.f32 %v801, %v1020
      %1022 = vmatmul.bf16.gmra.mxu0 %v934
      %v1023 = vpop.f32.mrf.mxu0
      %v1024 = vadd.f32 %v804, %v1023
      %v1025 = vpop.f32.mrf.mxu0
      %v1026 = vadd.f32 %v806, %v1025
      %1027 = vdwg.mxu0
      %v1028 = vld [vmem:[%s169] sm:$0xe]
      %v1029 = vld [vmem:[%s169 + $0xc] sm:$0xe]
      %v1030 = vld [vmem:[%s169 + $0x18] sm:$0xe]
      %v1031 = vld [vmem:[%s169 + $0x24] sm:$0xe]
      %v1032 = vld [vmem:[%s169 + $0x30] sm:$0xe]
      %v1033 = vld [vmem:[%s169 + $0x3c] sm:$0xe]
      %v1034 = vld [vmem:[%s169 + $0x48] sm:$0xe]
      %v1035 = vld [vmem:[%s169 + $0x54] sm:$0xe]
      %v1036 = vld [vmem:[%s169 + $0x60] sm:$0xe]
      %v1037 = vld [vmem:[%s169 + $0x6c] sm:$0xe]
      %v1038 = vld [vmem:[%s169 + $0x78] sm:$0xe]
      %v1039 = vld [vmem:[%s169 + $0x84] sm:$0xe]
      %v1040 = vld [vmem:[%s169 + $0x90] sm:$0xe]
      %v1041 = vld [vmem:[%s169 + $0x9c] sm:$0xe]
      %v1042 = vld [vmem:[%s169 + $0xa8] sm:$0xe]
      %v1043 = vld [vmem:[%s169 + $0xb4] sm:$0xe]
      %vm1076 = vcmask 1042432
      %vm1077 = vcmask 1046532
      %vm1078 = vmor %vm1076, %vm1077
      %v1079 = vrot.slane %v1028, 5
      %v1080 = vrot.slane %v1079, 4
      %v1081 = vrot.slane %v178, 5
      %v1082 = vsel %vm1078, %v1080, %v1081
      %v1083 = vrot.slane %v1081, 4
      %v1084 = vrot.slane %v210, 5
      %v1085 = vsel %vm1078, %v1083, %v1084
      %v1086 = vrot.slane %v1029, 5
      %v1087 = vrot.slane %v1086, 4
      %v1088 = vrot.slane %v180, 5
      %v1089 = vsel %vm1078, %v1087, %v1088
      %v1090 = vrot.slane %v1088, 4
      %v1091 = vrot.slane %v211, 5
      %v1092 = vsel %vm1078, %v1090, %v1091
      %v1093 = vrot.slane %v1030, 5
      %v1094 = vrot.slane %v1093, 4
      %v1095 = vrot.slane %v182, 5
      %v1096 = vsel %vm1078, %v1094, %v1095
      %v1097 = vrot.slane %v1095, 4
      %v1098 = vrot.slane %v212, 5
      %v1099 = vsel %vm1078, %v1097, %v1098
      %v1100 = vrot.slane %v1031, 5
      %v1101 = vrot.slane %v1100, 4
      %v1102 = vrot.slane %v184, 5
      %v1103 = vsel %vm1078, %v1101, %v1102
      %v1104 = vrot.slane %v1102, 4
      %v1105 = vrot.slane %v213, 5
      %v1106 = vsel %vm1078, %v1104, %v1105
      %v1107 = vrot.slane %v1032, 5
      %v1108 = vrot.slane %v1107, 4
      %v1109 = vrot.slane %v186, 5
      %v1110 = vsel %vm1078, %v1108, %v1109
      %v1111 = vrot.slane %v1109, 4
      %v1112 = vrot.slane %v214, 5
      %v1113 = vsel %vm1078, %v1111, %v1112
      %v1114 = vrot.slane %v1033, 5
      %v1115 = vrot.slane %v1114, 4
      %v1116 = vrot.slane %v188, 5
      %v1117 = vsel %vm1078, %v1115, %v1116
      %v1118 = vrot.slane %v1116, 4
      %v1119 = vrot.slane %v215, 5
      %v1120 = vsel %vm1078, %v1118, %v1119
      %v1121 = vrot.slane %v1034, 5
      %v1122 = vrot.slane %v1121, 4
      %v1123 = vrot.slane %v190, 5
      %v1124 = vsel %vm1078, %v1122, %v1123
      %v1125 = vrot.slane %v1123, 4
      %v1126 = vrot.slane %v216, 5
      %v1127 = vsel %vm1078, %v1125, %v1126
      %v1128 = vrot.slane %v1035, 5
      %v1129 = vrot.slane %v1128, 4
      %v1130 = vrot.slane %v192, 5
      %v1131 = vsel %vm1078, %v1129, %v1130
      %v1132 = vrot.slane %v1130, 4
      %v1133 = vrot.slane %v217, 5
      %v1134 = vsel %vm1078, %v1132, %v1133
      %v1135 = vrot.slane %v1036, 5
      %v1136 = vrot.slane %v1135, 4
      %v1137 = vrot.slane %v194, 5
      %v1138 = vsel %vm1078, %v1136, %v1137
      %v1139 = vrot.slane %v1137, 4
      %v1140 = vrot.slane %v218, 5
      %v1141 = vsel %vm1078, %v1139, %v1140
      %v1142 = vrot.slane %v1037, 5
      %v1143 = vrot.slane %v1142, 4
      %v1144 = vrot.slane %v196, 5
      %v1145 = vsel %vm1078, %v1143, %v1144
      %v1146 = vrot.slane %v1144, 4
      %v1147 = vrot.slane %v219, 5
      %v1148 = vsel %vm1078, %v1146, %v1147
      %v1149 = vrot.slane %v1038, 5
      %v1150 = vrot.slane %v1149, 4
      %v1151 = vrot.slane %v198, 5
      %v1152 = vsel %vm1078, %v1150, %v1151
      %v1153 = vrot.slane %v1151, 4
      %v1154 = vrot.slane %v220, 5
      %v1155 = vsel %vm1078, %v1153, %v1154
      %v1156 = vrot.slane %v1039, 5
      %v1157 = vrot.slane %v1156, 4
      %v1158 = vrot.slane %v200, 5
      %v1159 = vsel %vm1078, %v1157, %v1158
      %v1160 = vrot.slane %v1158, 4
      %v1161 = vrot.slane %v221, 5
      %v1162 = vsel %vm1078, %v1160, %v1161
      %v1163 = vrot.slane %v1040, 5
      %v1164 = vrot.slane %v1163, 4
      %v1165 = vrot.slane %v202, 5
      %v1166 = vsel %vm1078, %v1164, %v1165
      %v1167 = vrot.slane %v1165, 4
      %v1168 = vrot.slane %v222, 5
      %v1169 = vsel %vm1078, %v1167, %v1168
      %v1170 = vrot.slane %v1041, 5
      %v1171 = vrot.slane %v1170, 4
      %v1172 = vrot.slane %v204, 5
      %v1173 = vsel %vm1078, %v1171, %v1172
      %v1174 = vrot.slane %v1172, 4
      %v1175 = vrot.slane %v223, 5
      %v1176 = vsel %vm1078, %v1174, %v1175
      %v1177 = vrot.slane %v1042, 5
      %v1178 = vrot.slane %v1177, 4
      %v1179 = vrot.slane %v206, 5
      %v1180 = vsel %vm1078, %v1178, %v1179
      %v1181 = vrot.slane %v1179, 4
      %v1182 = vrot.slane %v224, 5
      %v1183 = vsel %vm1078, %v1181, %v1182
      %v1184 = vrot.slane %v1043, 5
      %v1185 = vrot.slane %v1184, 4
      %v1186 = vrot.slane %v208, 5
      %v1187 = vsel %vm1078, %v1185, %v1186
      %v1188 = vrot.slane %v1186, 4
      %v1189 = vrot.slane %v225, 5
      %v1190 = vsel %vm1078, %v1188, %v1189
      %v1191 = vld [vmem:[%s1 + $0x4] sm:$0x3]
      %v1192 = vunpack.c.l.b16 %v1082
      %v1193 = vunpack.c.l.b16 %v1085
      %v1194 = vunpack.c.l.b16 %v1089
      %v1195 = vunpack.c.l.b16 %v1092
      %v1196 = vunpack.c.l.b16 %v1096
      %v1197 = vunpack.c.l.b16 %v1099
      %v1198 = vunpack.c.l.b16 %v1103
      %v1199 = vunpack.c.l.b16 %v1106
      %v1200 = vunpack.c.l.b16 %v1110
      %v1201 = vunpack.c.l.b16 %v1113
      %v1202 = vunpack.c.l.b16 %v1117
      %v1203 = vunpack.c.l.b16 %v1120
      %v1204 = vunpack.c.l.b16 %v1124
      %v1205 = vunpack.c.l.b16 %v1127
      %v1206 = vunpack.c.l.b16 %v1131
      %v1207 = vunpack.c.l.b16 %v1134
      %v1208 = vunpack.c.l.b16 %v1138
      %v1209 = vunpack.c.l.b16 %v1141
      %v1210 = vunpack.c.l.b16 %v1145
      %v1211 = vunpack.c.l.b16 %v1148
      %v1212 = vunpack.c.l.b16 %v1152
      %v1213 = vunpack.c.l.b16 %v1155
      %v1214 = vunpack.c.l.b16 %v1159
      %v1215 = vunpack.c.l.b16 %v1162
      %v1216 = vunpack.c.l.b16 %v1166
      %v1217 = vunpack.c.l.b16 %v1169
      %v1218 = vunpack.c.l.b16 %v1173
      %v1219 = vunpack.c.l.b16 %v1176
      %v1220 = vunpack.c.l.b16 %v1180
      %v1221 = vunpack.c.l.b16 %v1183
      %v1222 = vunpack.c.l.b16 %v1187
      %v1223 = vunpack.c.l.b16 %v1190
      %v1224 = vpack.c.b16 %v1193, %v1192
      %v1225 = vpack.c.b16 %v1195, %v1194
      %v1226 = vpack.c.b16 %v1197, %v1196
      %v1227 = vpack.c.b16 %v1199, %v1198
      %v1228 = vpack.c.b16 %v1201, %v1200
      %v1229 = vpack.c.b16 %v1203, %v1202
      %v1230 = vpack.c.b16 %v1205, %v1204
      %v1231 = vpack.c.b16 %v1207, %v1206
      %v1232 = vpack.c.b16 %v1209, %v1208
      %v1233 = vpack.c.b16 %v1211, %v1210
      %v1234 = vpack.c.b16 %v1213, %v1212
      %v1235 = vpack.c.b16 %v1215, %v1214
      %v1236 = vpack.c.b16 %v1217, %v1216
      %v1237 = vpack.c.b16 %v1219, %v1218
      %v1238 = vpack.c.b16 %v1221, %v1220
      %v1239 = vpack.c.b16 %v1223, %v1222
      %v1241 = vsel %vm666, %v1224, 0
      %v1244 = vsel %vm666, %v1225, 0
      %v1247 = vsel %vm666, %v1226, 0
      %v1250 = vsel %vm666, %v1227, 0
      %v1253 = vsel %vm666, %v1228, 0
      %v1256 = vsel %vm666, %v1229, 0
      %v1259 = vsel %vm666, %v1230, 0
      %v1262 = vsel %vm666, %v1231, 0
      %v1265 = vsel %vm666, %v1232, 0
      %v1268 = vsel %vm666, %v1233, 0
      %v1271 = vsel %vm666, %v1234, 0
      %v1274 = vsel %vm666, %v1235, 0
      %v1277 = vsel %vm666, %v1236, 0
      %v1280 = vsel %vm666, %v1237, 0
      %v1283 = vsel %vm666, %v1238, 0
      %v1286 = vsel %vm666, %v1239, 0
      %v1289 = vsel %vm715, %v1191, 0
      %1291 = vmatpush.bf16.msra.mxu0 0
      %1292 = vmatpush.bf16.msra.mxu0 0
      %1293 = vmatpush.bf16.msra.mxu0 0
      %1294 = vmatpush.bf16.msra.mxu0 0
      %1295 = vmatpush.bf16.msra.mxu0 0
      %1296 = vmatpush.bf16.msra.mxu0 0
      %1297 = vmatpush.bf16.msra.mxu0 0
      %1298 = vmatpush.bf16.msra.mxu0 %v1289
      %1299 = vmatmul.bf16.gmra.mxu0 %v1241
      %v1300 = vpop.f32.mrf.mxu0
      %v1301 = vadd.f32 0.0, %v1300
      %v1302 = vpop.f32.mrf.mxu0
      %v1303 = vadd.f32 0.0, %v1302
      %1304 = vmatmul.bf16.gmra.mxu0 %v1244
      %v1305 = vpop.f32.mrf.mxu0
      %v1306 = vadd.f32 0.0, %v1305
      %v1307 = vpop.f32.mrf.mxu0
      %v1308 = vadd.f32 0.0, %v1307
      %1309 = vmatmul.bf16.gmra.mxu0 %v1247
      %v1310 = vpop.f32.mrf.mxu0
      %v1311 = vadd.f32 0.0, %v1310
      %v1312 = vpop.f32.mrf.mxu0
      %v1313 = vadd.f32 0.0, %v1312
      %1314 = vmatmul.bf16.gmra.mxu0 %v1250
      %v1315 = vpop.f32.mrf.mxu0
      %v1316 = vadd.f32 0.0, %v1315
      %v1317 = vpop.f32.mrf.mxu0
      %v1318 = vadd.f32 0.0, %v1317
      %1319 = vmatmul.bf16.gmra.mxu0 %v1253
      %v1320 = vpop.f32.mrf.mxu0
      %v1321 = vadd.f32 0.0, %v1320
      %v1322 = vpop.f32.mrf.mxu0
      %v1323 = vadd.f32 0.0, %v1322
      %1324 = vmatmul.bf16.gmra.mxu0 %v1256
      %v1325 = vpop.f32.mrf.mxu0
      %v1326 = vadd.f32 0.0, %v1325
      %v1327 = vpop.f32.mrf.mxu0
      %v1328 = vadd.f32 0.0, %v1327
      %1329 = vmatmul.bf16.gmra.mxu0 %v1259
      %v1330 = vpop.f32.mrf.mxu0
      %v1331 = vadd.f32 0.0, %v1330
      %v1332 = vpop.f32.mrf.mxu0
      %v1333 = vadd.f32 0.0, %v1332
      %1334 = vmatmul.bf16.gmra.mxu0 %v1262
      %v1335 = vpop.f32.mrf.mxu0
      %v1336 = vadd.f32 0.0, %v1335
      %v1337 = vpop.f32.mrf.mxu0
      %v1338 = vadd.f32 0.0, %v1337
      %1339 = vmatmul.bf16.gmra.mxu0 %v1265
      %v1340 = vpop.f32.mrf.mxu0
      %v1341 = vadd.f32 0.0, %v1340
      %v1342 = vpop.f32.mrf.mxu0
      %v1343 = vadd.f32 0.0, %v1342
      %1344 = vmatmul.bf16.gmra.mxu0 %v1268
      %v1345 = vpop.f32.mrf.mxu0
      %v1346 = vadd.f32 0.0, %v1345
      %v1347 = vpop.f32.mrf.mxu0
      %v1348 = vadd.f32 0.0, %v1347
      %1349 = vmatmul.bf16.gmra.mxu0 %v1271
      %v1350 = vpop.f32.mrf.mxu0
      %v1351 = vadd.f32 0.0, %v1350
      %v1352 = vpop.f32.mrf.mxu0
      %v1353 = vadd.f32 0.0, %v1352
      %1354 = vmatmul.bf16.gmra.mxu0 %v1274
      %v1355 = vpop.f32.mrf.mxu0
      %v1356 = vadd.f32 0.0, %v1355
      %v1357 = vpop.f32.mrf.mxu0
      %v1358 = vadd.f32 0.0, %v1357
      %1359 = vmatmul.bf16.gmra.mxu0 %v1277
      %v1360 = vpop.f32.mrf.mxu0
      %v1361 = vadd.f32 0.0, %v1360
      %v1362 = vpop.f32.mrf.mxu0
      %v1363 = vadd.f32 0.0, %v1362
      %1364 = vmatmul.bf16.gmra.mxu0 %v1280
      %v1365 = vpop.f32.mrf.mxu0
      %v1366 = vadd.f32 0.0, %v1365
      %v1367 = vpop.f32.mrf.mxu0
      %v1368 = vadd.f32 0.0, %v1367
      %1369 = vmatmul.bf16.gmra.mxu0 %v1283
      %v1370 = vpop.f32.mrf.mxu0
      %v1371 = vadd.f32 0.0, %v1370
      %v1372 = vpop.f32.mrf.mxu0
      %v1373 = vadd.f32 0.0, %v1372
      %1374 = vmatmul.bf16.gmra.mxu0 %v1286
      %v1375 = vpop.f32.mrf.mxu0
      %v1376 = vadd.f32 0.0, %v1375
      %v1377 = vpop.f32.mrf.mxu0
      %v1378 = vadd.f32 0.0, %v1377
      %1379 = vdwg.mxu0
      %v1380 = vadd.f32 %v949, %v1301
      %v1381 = vadd.f32 %v951, %v1303
      %v1382 = vadd.f32 %v954, %v1306
      %v1383 = vadd.f32 %v956, %v1308
      %v1384 = vadd.f32 %v959, %v1311
      %v1385 = vadd.f32 %v961, %v1313
      %v1386 = vadd.f32 %v964, %v1316
      %v1387 = vadd.f32 %v966, %v1318
      %v1388 = vadd.f32 %v969, %v1321
      %v1389 = vadd.f32 %v971, %v1323
      %v1390 = vadd.f32 %v974, %v1326
      %v1391 = vadd.f32 %v976, %v1328
      %v1392 = vadd.f32 %v979, %v1331
      %v1393 = vadd.f32 %v981, %v1333
      %v1394 = vadd.f32 %v984, %v1336
      %v1395 = vadd.f32 %v986, %v1338
      %v1396 = vadd.f32 %v989, %v1341
      %v1397 = vadd.f32 %v991, %v1343
      %v1398 = vadd.f32 %v994, %v1346
      %v1399 = vadd.f32 %v996, %v1348
      %v1400 = vadd.f32 %v999, %v1351
      %v1401 = vadd.f32 %v1001, %v1353
      %v1402 = vadd.f32 %v1004, %v1356
      %v1403 = vadd.f32 %v1006, %v1358
      %v1404 = vadd.f32 %v1009, %v1361
      %v1405 = vadd.f32 %v1011, %v1363
      %v1406 = vadd.f32 %v1014, %v1366
      %v1407 = vadd.f32 %v1016, %v1368
      %v1408 = vadd.f32 %v1019, %v1371
      %v1409 = vadd.f32 %v1021, %v1373
      %v1410 = vadd.f32 %v1024, %v1376
      %v1411 = vadd.f32 %v1026, %v1378
      %s1412 = scalar_lea.vmem %s169, 12
      %v1413 = vld [vmem:[%s1412] sm:$0xf]
      %v1414 = vld [vmem:[%s1412 + $0x4] sm:$0xf]
      %v1415 = vld [vmem:[%s1412 + $0xc] sm:$0xf]
      %v1416 = vld [vmem:[%s1412 + $0x10] sm:$0xf]
      %v1417 = vld [vmem:[%s1412 + $0x18] sm:$0xf]
      %v1418 = vld [vmem:[%s1412 + $0x1c] sm:$0xf]
      %v1419 = vld [vmem:[%s1412 + $0x24] sm:$0xf]
      %v1420 = vld [vmem:[%s1412 + $0x28] sm:$0xf]
      %v1421 = vld [vmem:[%s1412 + $0x30] sm:$0xf]
      %v1422 = vld [vmem:[%s1412 + $0x34] sm:$0xf]
      %v1423 = vld [vmem:[%s1412 + $0x3c] sm:$0xf]
      %v1424 = vld [vmem:[%s1412 + $0x40] sm:$0xf]
      %v1425 = vld [vmem:[%s1412 + $0x48] sm:$0xf]
      %v1426 = vld [vmem:[%s1412 + $0x4c] sm:$0xf]
      %v1427 = vld [vmem:[%s1412 + $0x54] sm:$0xf]
      %v1428 = vld [vmem:[%s1412 + $0x58] sm:$0xf]
      %v1429 = vld [vmem:[%s1412 + $0x60] sm:$0xf]
      %v1430 = vld [vmem:[%s1412 + $0x64] sm:$0xf]
      %v1431 = vld [vmem:[%s1412 + $0x6c] sm:$0xf]
      %v1432 = vld [vmem:[%s1412 + $0x70] sm:$0xf]
      %v1433 = vld [vmem:[%s1412 + $0x78] sm:$0xf]
      %v1434 = vld [vmem:[%s1412 + $0x7c] sm:$0xf]
      %v1435 = vld [vmem:[%s1412 + $0x84] sm:$0xf]
      %v1436 = vld [vmem:[%s1412 + $0x88] sm:$0xf]
      %v1437 = vld [vmem:[%s1412 + $0x90] sm:$0xf]
      %v1438 = vld [vmem:[%s1412 + $0x94] sm:$0xf]
      %v1439 = vld [vmem:[%s1412 + $0x9c] sm:$0xf]
      %v1440 = vld [vmem:[%s1412 + $0xa0] sm:$0xf]
      %v1441 = vld [vmem:[%s1412 + $0xa8] sm:$0xf]
      %v1442 = vld [vmem:[%s1412 + $0xac] sm:$0xf]
      %v1443 = vld [vmem:[%s1412 + $0xb4] sm:$0xf]
      %v1444 = vld [vmem:[%s1412 + $0xb8] sm:$0xf]
      %v1445 = vld [vmem:[%s1 + $0x4] sm:$0xc]
      %v1478 = vunpack.c.l.b16 %v1413
      %v1479 = vunpack.c.l.b16 %v1414
      %v1480 = vunpack.c.l.b16 %v1415
      %v1481 = vunpack.c.l.b16 %v1416
      %v1482 = vunpack.c.l.b16 %v1417
      %v1483 = vunpack.c.l.b16 %v1418
      %v1484 = vunpack.c.l.b16 %v1419
      %v1485 = vunpack.c.l.b16 %v1420
      %v1486 = vunpack.c.l.b16 %v1421
      %v1487 = vunpack.c.l.b16 %v1422
      %v1488 = vunpack.c.l.b16 %v1423
      %v1489 = vunpack.c.l.b16 %v1424
      %v1490 = vunpack.c.l.b16 %v1425
      %v1491 = vunpack.c.l.b16 %v1426
      %v1492 = vunpack.c.l.b16 %v1427
      %v1493 = vunpack.c.l.b16 %v1428
      %v1494 = vunpack.c.l.b16 %v1429
      %v1495 = vunpack.c.l.b16 %v1430
      %v1496 = vunpack.c.l.b16 %v1431
      %v1497 = vunpack.c.l.b16 %v1432
      %v1498 = vunpack.c.l.b16 %v1433
      %v1499 = vunpack.c.l.b16 %v1434
      %v1500 = vunpack.c.l.b16 %v1435
      %v1501 = vunpack.c.l.b16 %v1436
      %v1502 = vunpack.c.l.b16 %v1437
      %v1503 = vunpack.c.l.b16 %v1438
      %v1504 = vunpack.c.l.b16 %v1439
      %v1505 = vunpack.c.l.b16 %v1440
      %v1506 = vunpack.c.l.b16 %v1441
      %v1507 = vunpack.c.l.b16 %v1442
      %v1508 = vunpack.c.l.b16 %v1443
      %v1509 = vunpack.c.l.b16 %v1444
      %v1510 = vpack.c.b16 %v1479, %v1478
      %v1511 = vpack.c.b16 %v1481, %v1480
      %v1512 = vpack.c.b16 %v1483, %v1482
      %v1513 = vpack.c.b16 %v1485, %v1484
      %v1514 = vpack.c.b16 %v1487, %v1486
      %v1515 = vpack.c.b16 %v1489, %v1488
      %v1516 = vpack.c.b16 %v1491, %v1490
      %v1517 = vpack.c.b16 %v1493, %v1492
      %v1518 = vpack.c.b16 %v1495, %v1494
      %v1519 = vpack.c.b16 %v1497, %v1496
      %v1520 = vpack.c.b16 %v1499, %v1498
      %v1521 = vpack.c.b16 %v1501, %v1500
      %v1522 = vpack.c.b16 %v1503, %v1502
      %v1523 = vpack.c.b16 %v1505, %v1504
      %v1524 = vpack.c.b16 %v1507, %v1506
      %v1525 = vpack.c.b16 %v1509, %v1508
      %v1527 = vunpack.c.l.b16 %v1445
      %v1528 = vpack.c.b16 %v1527, %v1527
      %v1529 = vrot.slane %v1528, 2
      %v1531 = vsel %vm666, %v1510, 0
      %v1534 = vsel %vm666, %v1511, 0
      %v1537 = vsel %vm666, %v1512, 0
      %v1540 = vsel %vm666, %v1513, 0
      %v1543 = vsel %vm666, %v1514, 0
      %v1546 = vsel %vm666, %v1515, 0
      %v1549 = vsel %vm666, %v1516, 0
      %v1552 = vsel %vm666, %v1517, 0
      %v1555 = vsel %vm666, %v1518, 0
      %v1558 = vsel %vm666, %v1519, 0
      %v1561 = vsel %vm666, %v1520, 0
      %v1564 = vsel %vm666, %v1521, 0
      %v1567 = vsel %vm666, %v1522, 0
      %v1570 = vsel %vm666, %v1523, 0
      %v1573 = vsel %vm666, %v1524, 0
      %v1576 = vsel %vm666, %v1525, 0
      %v1579 = vsel %vm715, %v1529, 0
      %1581 = vmatpush.bf16.msra.mxu0 0
      %1582 = vmatpush.bf16.msra.mxu0 0
      %1583 = vmatpush.bf16.msra.mxu0 0
      %1584 = vmatpush.bf16.msra.mxu0 0
      %1585 = vmatpush.bf16.msra.mxu0 0
      %1586 = vmatpush.bf16.msra.mxu0 0
      %1587 = vmatpush.bf16.msra.mxu0 0
      %1588 = vmatpush.bf16.msra.mxu0 %v1579
      %1589 = vmatmul.bf16.gmra.mxu0 %v1531
      %v1590 = vpop.f32.mrf.mxu0
      %v1591 = vadd.f32 0.0, %v1590
      %v1592 = vpop.f32.mrf.mxu0
      %v1593 = vadd.f32 0.0, %v1592
      %1594 = vmatmul.bf16.gmra.mxu0 %v1534
      %v1595 = vpop.f32.mrf.mxu0
      %v1596 = vadd.f32 0.0, %v1595
      %v1597 = vpop.f32.mrf.mxu0
      %v1598 = vadd.f32 0.0, %v1597
      %1599 = vmatmul.bf16.gmra.mxu0 %v1537
      %v1600 = vpop.f32.mrf.mxu0
      %v1601 = vadd.f32 0.0, %v1600
      %v1602 = vpop.f32.mrf.mxu0
      %v1603 = vadd.f32 0.0, %v1602
      %1604 = vmatmul.bf16.gmra.mxu0 %v1540
      %v1605 = vpop.f32.mrf.mxu0
      %v1606 = vadd.f32 0.0, %v1605
      %v1607 = vpop.f32.mrf.mxu0
      %v1608 = vadd.f32 0.0, %v1607
      %1609 = vmatmul.bf16.gmra.mxu0 %v1543
      %v1610 = vpop.f32.mrf.mxu0
      %v1611 = vadd.f32 0.0, %v1610
      %v1612 = vpop.f32.mrf.mxu0
      %v1613 = vadd.f32 0.0, %v1612
      %1614 = vmatmul.bf16.gmra.mxu0 %v1546
      %v1615 = vpop.f32.mrf.mxu0
      %v1616 = vadd.f32 0.0, %v1615
      %v1617 = vpop.f32.mrf.mxu0
      %v1618 = vadd.f32 0.0, %v1617
      %1619 = vmatmul.bf16.gmra.mxu0 %v1549
      %v1620 = vpop.f32.mrf.mxu0
      %v1621 = vadd.f32 0.0, %v1620
      %v1622 = vpop.f32.mrf.mxu0
      %v1623 = vadd.f32 0.0, %v1622
      %1624 = vmatmul.bf16.gmra.mxu0 %v1552
      %v1625 = vpop.f32.mrf.mxu0
      %v1626 = vadd.f32 0.0, %v1625
      %v1627 = vpop.f32.mrf.mxu0
      %v1628 = vadd.f32 0.0, %v1627
      %1629 = vmatmul.bf16.gmra.mxu0 %v1555
      %v1630 = vpop.f32.mrf.mxu0
      %v1631 = vadd.f32 0.0, %v1630
      %v1632 = vpop.f32.mrf.mxu0
      %v1633 = vadd.f32 0.0, %v1632
      %1634 = vmatmul.bf16.gmra.mxu0 %v1558
      %v1635 = vpop.f32.mrf.mxu0
      %v1636 = vadd.f32 0.0, %v1635
      %v1637 = vpop.f32.mrf.mxu0
      %v1638 = vadd.f32 0.0, %v1637
      %1639 = vmatmul.bf16.gmra.mxu0 %v1561
      %v1640 = vpop.f32.mrf.mxu0
      %v1641 = vadd.f32 0.0, %v1640
      %v1642 = vpop.f32.mrf.mxu0
      %v1643 = vadd.f32 0.0, %v1642
      %1644 = vmatmul.bf16.gmra.mxu0 %v1564
      %v1645 = vpop.f32.mrf.mxu0
      %v1646 = vadd.f32 0.0, %v1645
      %v1647 = vpop.f32.mrf.mxu0
      %v1648 = vadd.f32 0.0, %v1647
      %1649 = vmatmul.bf16.gmra.mxu0 %v1567
      %v1650 = vpop.f32.mrf.mxu0
      %v1651 = vadd.f32 0.0, %v1650
      %v1652 = vpop.f32.mrf.mxu0
      %v1653 = vadd.f32 0.0, %v1652
      %1654 = vmatmul.bf16.gmra.mxu0 %v1570
      %v1655 = vpop.f32.mrf.mxu0
      %v1656 = vadd.f32 0.0, %v1655
      %v1657 = vpop.f32.mrf.mxu0
      %v1658 = vadd.f32 0.0, %v1657
      %1659 = vmatmul.bf16.gmra.mxu0 %v1573
      %v1660 = vpop.f32.mrf.mxu0
      %v1661 = vadd.f32 0.0, %v1660
      %v1662 = vpop.f32.mrf.mxu0
      %v1663 = vadd.f32 0.0, %v1662
      %1664 = vmatmul.bf16.gmra.mxu0 %v1576
      %v1665 = vpop.f32.mrf.mxu0
      %v1666 = vadd.f32 0.0, %v1665
      %v1667 = vpop.f32.mrf.mxu0
      %v1668 = vadd.f32 0.0, %v1667
      %1669 = vdwg.mxu0
      %v1670 = vadd.f32 %v1380, %v1591
      %v1671 = vadd.f32 %v1381, %v1593
      %v1672 = vadd.f32 %v1382, %v1596
      %v1673 = vadd.f32 %v1383, %v1598
      %v1674 = vadd.f32 %v1384, %v1601
      %v1675 = vadd.f32 %v1385, %v1603
      %v1676 = vadd.f32 %v1386, %v1606
      %v1677 = vadd.f32 %v1387, %v1608
      %v1678 = vadd.f32 %v1388, %v1611
      %v1679 = vadd.f32 %v1389, %v1613
      %v1680 = vadd.f32 %v1390, %v1616
      %v1681 = vadd.f32 %v1391, %v1618
      %v1682 = vadd.f32 %v1392, %v1621
      %v1683 = vadd.f32 %v1393, %v1623
      %v1684 = vadd.f32 %v1394, %v1626
      %v1685 = vadd.f32 %v1395, %v1628
      %v1686 = vadd.f32 %v1396, %v1631
      %v1687 = vadd.f32 %v1397, %v1633
      %v1688 = vadd.f32 %v1398, %v1636
      %v1689 = vadd.f32 %v1399, %v1638
      %v1690 = vadd.f32 %v1400, %v1641
      %v1691 = vadd.f32 %v1401, %v1643
      %v1692 = vadd.f32 %v1402, %v1646
      %v1693 = vadd.f32 %v1403, %v1648
      %v1694 = vadd.f32 %v1404, %v1651
      %v1695 = vadd.f32 %v1405, %v1653
      %v1696 = vadd.f32 %v1406, %v1656
      %v1697 = vadd.f32 %v1407, %v1658
      %v1698 = vadd.f32 %v1408, %v1661
      %v1699 = vadd.f32 %v1409, %v1663
      %v1700 = vadd.f32 %v1410, %v1666
      %v1701 = vadd.f32 %v1411, %v1668
      %v1702 = vld [vmem:[%s1412] sm:$0xf]
      %v1703 = vld [vmem:[%s1412 + $0x4] sm:$0xf]
      %v1704 = vld [vmem:[%s1412 + $0x8] sm:$0x1]
      %v1705 = vld [vmem:[%s1412 + $0xc] sm:$0xf]
      %v1706 = vld [vmem:[%s1412 + $0x10] sm:$0xf]
      %v1707 = vld [vmem:[%s1412 + $0x14] sm:$0x1]
      %v1708 = vld [vmem:[%s1412 + $0x18] sm:$0xf]
      %v1709 = vld [vmem:[%s1412 + $0x1c] sm:$0xf]
      %v1710 = vld [vmem:[%s1412 + $0x20] sm:$0x1]
      %v1711 = vld [vmem:[%s1412 + $0x24] sm:$0xf]
      %v1712 = vld [vmem:[%s1412 + $0x28] sm:$0xf]
      %v1713 = vld [vmem:[%s1412 + $0x2c] sm:$0x1]
      %v1714 = vld [vmem:[%s1412 + $0x30] sm:$0xf]
      %v1715 = vld [vmem:[%s1412 + $0x34] sm:$0xf]
      %v1716 = vld [vmem:[%s1412 + $0x38] sm:$0x1]
      %v1717 = vld [vmem:[%s1412 + $0x3c] sm:$0xf]
      %v1718 = vld [vmem:[%s1412 + $0x40] sm:$0xf]
      %v1719 = vld [vmem:[%s1412 + $0x44] sm:$0x1]
      %v1720 = vld [vmem:[%s1412 + $0x48] sm:$0xf]
      %v1721 = vld [vmem:[%s1412 + $0x4c] sm:$0xf]
      %v1722 = vld [vmem:[%s1412 + $0x50] sm:$0x1]
      %v1723 = vld [vmem:[%s1412 + $0x54] sm:$0xf]
      %v1724 = vld [vmem:[%s1412 + $0x58] sm:$0xf]
      %v1725 = vld [vmem:[%s1412 + $0x5c] sm:$0x1]
      %v1726 = vld [vmem:[%s1412 + $0x60] sm:$0xf]
      %v1727 = vld [vmem:[%s1412 + $0x64] sm:$0xf]
      %v1728 = vld [vmem:[%s1412 + $0x68] sm:$0x1]
      %v1729 = vld [vmem:[%s1412 + $0x6c] sm:$0xf]
      %v1730 = vld [vmem:[%s1412 + $0x70] sm:$0xf]
      %v1731 = vld [vmem:[%s1412 + $0x74] sm:$0x1]
      %v1732 = vld [vmem:[%s1412 + $0x78] sm:$0xf]
      %v1733 = vld [vmem:[%s1412 + $0x7c] sm:$0xf]
      %v1734 = vld [vmem:[%s1412 + $0x80] sm:$0x1]
      %v1735 = vld [vmem:[%s1412 + $0x84] sm:$0xf]
      %v1736 = vld [vmem:[%s1412 + $0x88] sm:$0xf]
      %v1737 = vld [vmem:[%s1412 + $0x8c] sm:$0x1]
      %v1738 = vld [vmem:[%s1412 + $0x90] sm:$0xf]
      %v1739 = vld [vmem:[%s1412 + $0x94] sm:$0xf]
      %v1740 = vld [vmem:[%s1412 + $0x98] sm:$0x1]
      %v1741 = vld [vmem:[%s1412 + $0x9c] sm:$0xf]
      %v1742 = vld [vmem:[%s1412 + $0xa0] sm:$0xf]
      %v1743 = vld [vmem:[%s1412 + $0xa4] sm:$0x1]
      %v1744 = vld [vmem:[%s1412 + $0xa8] sm:$0xf]
      %v1745 = vld [vmem:[%s1412 + $0xac] sm:$0xf]
      %v1746 = vld [vmem:[%s1412 + $0xb0] sm:$0x1]
      %v1747 = vld [vmem:[%s1412 + $0xb4] sm:$0xf]
      %v1748 = vld [vmem:[%s1412 + $0xb8] sm:$0xf]
      %v1749 = vld [vmem:[%s1412 + $0xbc] sm:$0x1]
      %v1751 = vshrl.u32 %v1702, 16
      %v1753 = vrot.slane %v1751, 4
      %v1754 = vshll.u32 %v1702, 16
      %v1756 = vrot.slane %v1754, 5
      %v1757 = vor.u32 %v1753, %v1756
      %v1758 = vrot.slane %v1757, 4
      %v1760 = vshll.u32 %v1703, 16
      %v1762 = vrot.slane %v1760, 5
      %v1763 = vsel %vm228, %v1758, %v1762
      %v1764 = vshrl.u32 %v1703, 16
      %v1766 = vrot.slane %v1764, 4
      %v1767 = vor.u32 %v1766, %v1762
      %v1768 = vrot.slane %v1767, 4
      %v1770 = vshll.u32 %v1704, 16
      %v1772 = vrot.slane %v1770, 5
      %v1773 = vsel %vm228, %v1768, %v1772
      %v1775 = vshrl.u32 %v1705, 16
      %v1777 = vrot.slane %v1775, 4
      %v1778 = vshll.u32 %v1705, 16
      %v1780 = vrot.slane %v1778, 5
      %v1781 = vor.u32 %v1777, %v1780
      %v1782 = vrot.slane %v1781, 4
      %v1784 = vshll.u32 %v1706, 16
      %v1786 = vrot.slane %v1784, 5
      %v1787 = vsel %vm228, %v1782, %v1786
      %v1788 = vshrl.u32 %v1706, 16
      %v1790 = vrot.slane %v1788, 4
      %v1791 = vor.u32 %v1790, %v1786
      %v1792 = vrot.slane %v1791, 4
      %v1794 = vshll.u32 %v1707, 16
      %v1796 = vrot.slane %v1794, 5
      %v1797 = vsel %vm228, %v1792, %v1796
      %v1799 = vshrl.u32 %v1708, 16
      %v1801 = vrot.slane %v1799, 4
      %v1802 = vshll.u32 %v1708, 16
      %v1804 = vrot.slane %v1802, 5
      %v1805 = vor.u32 %v1801, %v1804
      %v1806 = vrot.slane %v1805, 4
      %v1808 = vshll.u32 %v1709, 16
      %v1810 = vrot.slane %v1808, 5
      %v1811 = vsel %vm228, %v1806, %v1810
      %v1812 = vshrl.u32 %v1709, 16
      %v1814 = vrot.slane %v1812, 4
      %v1815 = vor.u32 %v1814, %v1810
      %v1816 = vrot.slane %v1815, 4
      %v1818 = vshll.u32 %v1710, 16
      %v1820 = vrot.slane %v1818, 5
      %v1821 = vsel %vm228, %v1816, %v1820
      %v1823 = vshrl.u32 %v1711, 16
      %v1825 = vrot.slane %v1823, 4
      %v1826 = vshll.u32 %v1711, 16
      %v1828 = vrot.slane %v1826, 5
      %v1829 = vor.u32 %v1825, %v1828
      %v1830 = vrot.slane %v1829, 4
      %v1832 = vshll.u32 %v1712, 16
      %v1834 = vrot.slane %v1832, 5
      %v1835 = vsel %vm228, %v1830, %v1834
      %v1836 = vshrl.u32 %v1712, 16
      %v1838 = vrot.slane %v1836, 4
      %v1839 = vor.u32 %v1838, %v1834
      %v1840 = vrot.slane %v1839, 4
      %v1842 = vshll.u32 %v1713, 16
      %v1844 = vrot.slane %v1842, 5
      %v1845 = vsel %vm228, %v1840, %v1844
      %v1847 = vshrl.u32 %v1714, 16
      %v1849 = vrot.slane %v1847, 4
      %v1850 = vshll.u32 %v1714, 16
      %v1852 = vrot.slane %v1850, 5
      %v1853 = vor.u32 %v1849, %v1852
      %v1854 = vrot.slane %v1853, 4
      %v1856 = vshll.u32 %v1715, 16
      %v1858 = vrot.slane %v1856, 5
      %v1859 = vsel %vm228, %v1854, %v1858
      %v1860 = vshrl.u32 %v1715, 16
      %v1862 = vrot.slane %v1860, 4
      %v1863 = vor.u32 %v1862, %v1858
      %v1864 = vrot.slane %v1863, 4
      %v1866 = vshll.u32 %v1716, 16
      %v1868 = vrot.slane %v1866, 5
      %v1869 = vsel %vm228, %v1864, %v1868
      %v1871 = vshrl.u32 %v1717, 16
      %v1873 = vrot.slane %v1871, 4
      %v1874 = vshll.u32 %v1717, 16
      %v1876 = vrot.slane %v1874, 5
      %v1877 = vor.u32 %v1873, %v1876
      %v1878 = vrot.slane %v1877, 4
      %v1880 = vshll.u32 %v1718, 16
      %v1882 = vrot.slane %v1880, 5
      %v1883 = vsel %vm228, %v1878, %v1882
      %v1884 = vshrl.u32 %v1718, 16
      %v1886 = vrot.slane %v1884, 4
      %v1887 = vor.u32 %v1886, %v1882
      %v1888 = vrot.slane %v1887, 4
      %v1890 = vshll.u32 %v1719, 16
      %v1892 = vrot.slane %v1890, 5
      %v1893 = vsel %vm228, %v1888, %v1892
      %v1895 = vshrl.u32 %v1720, 16
      %v1897 = vrot.slane %v1895, 4
      %v1898 = vshll.u32 %v1720, 16
      %v1900 = vrot.slane %v1898, 5
      %v1901 = vor.u32 %v1897, %v1900
      %v1902 = vrot.slane %v1901, 4
      %v1904 = vshll.u32 %v1721, 16
      %v1906 = vrot.slane %v1904, 5
      %v1907 = vsel %vm228, %v1902, %v1906
      %v1908 = vshrl.u32 %v1721, 16
      %v1910 = vrot.slane %v1908, 4
      %v1911 = vor.u32 %v1910, %v1906
      %v1912 = vrot.slane %v1911, 4
      %v1914 = vshll.u32 %v1722, 16
      %v1916 = vrot.slane %v1914, 5
      %v1917 = vsel %vm228, %v1912, %v1916
      %v1919 = vshrl.u32 %v1723, 16
      %v1921 = vrot.slane %v1919, 4
      %v1922 = vshll.u32 %v1723, 16
      %v1924 = vrot.slane %v1922, 5
      %v1925 = vor.u32 %v1921, %v1924
      %v1926 = vrot.slane %v1925, 4
      %v1928 = vshll.u32 %v1724, 16
      %v1930 = vrot.slane %v1928, 5
      %v1931 = vsel %vm228, %v1926, %v1930
      %v1932 = vshrl.u32 %v1724, 16
      %v1934 = vrot.slane %v1932, 4
      %v1935 = vor.u32 %v1934, %v1930
      %v1936 = vrot.slane %v1935, 4
      %v1938 = vshll.u32 %v1725, 16
      %v1940 = vrot.slane %v1938, 5
      %v1941 = vsel %vm228, %v1936, %v1940
      %v1943 = vshrl.u32 %v1726, 16
      %v1945 = vrot.slane %v1943, 4
      %v1946 = vshll.u32 %v1726, 16
      %v1948 = vrot.slane %v1946, 5
      %v1949 = vor.u32 %v1945, %v1948
      %v1950 = vrot.slane %v1949, 4
      %v1952 = vshll.u32 %v1727, 16
      %v1954 = vrot.slane %v1952, 5
      %v1955 = vsel %vm228, %v1950, %v1954
      %v1956 = vshrl.u32 %v1727, 16
      %v1958 = vrot.slane %v1956, 4
      %v1959 = vor.u32 %v1958, %v1954
      %v1960 = vrot.slane %v1959, 4
      %v1962 = vshll.u32 %v1728, 16
      %v1964 = vrot.slane %v1962, 5
      %v1965 = vsel %vm228, %v1960, %v1964
      %v1967 = vshrl.u32 %v1729, 16
      %v1969 = vrot.slane %v1967, 4
      %v1970 = vshll.u32 %v1729, 16
      %v1972 = vrot.slane %v1970, 5
      %v1973 = vor.u32 %v1969, %v1972
      %v1974 = vrot.slane %v1973, 4
      %v1976 = vshll.u32 %v1730, 16
      %v1978 = vrot.slane %v1976, 5
      %v1979 = vsel %vm228, %v1974, %v1978
      %v1980 = vshrl.u32 %v1730, 16
      %v1982 = vrot.slane %v1980, 4
      %v1983 = vor.u32 %v1982, %v1978
      %v1984 = vrot.slane %v1983, 4
      %v1986 = vshll.u32 %v1731, 16
      %v1988 = vrot.slane %v1986, 5
      %v1989 = vsel %vm228, %v1984, %v1988
      %v1991 = vshrl.u32 %v1732, 16
      %v1993 = vrot.slane %v1991, 4
      %v1994 = vshll.u32 %v1732, 16
      %v1996 = vrot.slane %v1994, 5
      %v1997 = vor.u32 %v1993, %v1996
      %v1998 = vrot.slane %v1997, 4
      %v2000 = vshll.u32 %v1733, 16
      %v2002 = vrot.slane %v2000, 5
      %v2003 = vsel %vm228, %v1998, %v2002
      %v2004 = vshrl.u32 %v1733, 16
      %v2006 = vrot.slane %v2004, 4
      %v2007 = vor.u32 %v2006, %v2002
      %v2008 = vrot.slane %v2007, 4
      %v2010 = vshll.u32 %v1734, 16
      %v2012 = vrot.slane %v2010, 5
      %v2013 = vsel %vm228, %v2008, %v2012
      %v2015 = vshrl.u32 %v1735, 16
      %v2017 = vrot.slane %v2015, 4
      %v2018 = vshll.u32 %v1735, 16
      %v2020 = vrot.slane %v2018, 5
      %v2021 = vor.u32 %v2017, %v2020
      %v2022 = vrot.slane %v2021, 4
      %v2024 = vshll.u32 %v1736, 16
      %v2026 = vrot.slane %v2024, 5
      %v2027 = vsel %vm228, %v2022, %v2026
      %v2028 = vshrl.u32 %v1736, 16
      %v2030 = vrot.slane %v2028, 4
      %v2031 = vor.u32 %v2030, %v2026
      %v2032 = vrot.slane %v2031, 4
      %v2034 = vshll.u32 %v1737, 16
      %v2036 = vrot.slane %v2034, 5
      %v2037 = vsel %vm228, %v2032, %v2036
      %v2039 = vshrl.u32 %v1738, 16
      %v2041 = vrot.slane %v2039, 4
      %v2042 = vshll.u32 %v1738, 16
      %v2044 = vrot.slane %v2042, 5
      %v2045 = vor.u32 %v2041, %v2044
      %v2046 = vrot.slane %v2045, 4
      %v2048 = vshll.u32 %v1739, 16
      %v2050 = vrot.slane %v2048, 5
      %v2051 = vsel %vm228, %v2046, %v2050
      %v2052 = vshrl.u32 %v1739, 16
      %v2054 = vrot.slane %v2052, 4
      %v2055 = vor.u32 %v2054, %v2050
      %v2056 = vrot.slane %v2055, 4
      %v2058 = vshll.u32 %v1740, 16
      %v2060 = vrot.slane %v2058, 5
      %v2061 = vsel %vm228, %v2056, %v2060
      %v2063 = vshrl.u32 %v1741, 16
      %v2065 = vrot.slane %v2063, 4
      %v2066 = vshll.u32 %v1741, 16
      %v2068 = vrot.slane %v2066, 5
      %v2069 = vor.u32 %v2065, %v2068
      %v2070 = vrot.slane %v2069, 4
      %v2072 = vshll.u32 %v1742, 16
      %v2074 = vrot.slane %v2072, 5
      %v2075 = vsel %vm228, %v2070, %v2074
      %v2076 = vshrl.u32 %v1742, 16
      %v2078 = vrot.slane %v2076, 4
      %v2079 = vor.u32 %v2078, %v2074
      %v2080 = vrot.slane %v2079, 4
      %v2082 = vshll.u32 %v1743, 16
      %v2084 = vrot.slane %v2082, 5
      %v2085 = vsel %vm228, %v2080, %v2084
      %v2087 = vshrl.u32 %v1744, 16
      %v2089 = vrot.slane %v2087, 4
      %v2090 = vshll.u32 %v1744, 16
      %v2092 = vrot.slane %v2090, 5
      %v2093 = vor.u32 %v2089, %v2092
      %v2094 = vrot.slane %v2093, 4
      %v2096 = vshll.u32 %v1745, 16
      %v2098 = vrot.slane %v2096, 5
      %v2099 = vsel %vm228, %v2094, %v2098
      %v2100 = vshrl.u32 %v1745, 16
      %v2102 = vrot.slane %v2100, 4
      %v2103 = vor.u32 %v2102, %v2098
      %v2104 = vrot.slane %v2103, 4
      %v2106 = vshll.u32 %v1746, 16
      %v2108 = vrot.slane %v2106, 5
      %v2109 = vsel %vm228, %v2104, %v2108
      %v2111 = vshrl.u32 %v1747, 16
      %v2113 = vrot.slane %v2111, 4
      %v2114 = vshll.u32 %v1747, 16
      %v2116 = vrot.slane %v2114, 5
      %v2117 = vor.u32 %v2113, %v2116
      %v2118 = vrot.slane %v2117, 4
      %v2120 = vshll.u32 %v1748, 16
      %v2122 = vrot.slane %v2120, 5
      %v2123 = vsel %vm228, %v2118, %v2122
      %v2124 = vshrl.u32 %v1748, 16
      %v2126 = vrot.slane %v2124, 4
      %v2127 = vor.u32 %v2126, %v2122
      %v2128 = vrot.slane %v2127, 4
      %v2130 = vshll.u32 %v1749, 16
      %v2132 = vrot.slane %v2130, 5
      %v2133 = vsel %vm228, %v2128, %v2132
      %v2134 = vld [vmem:[%s1 + $0x8] sm:$0x3]
      %v2135 = vunpack.c.l.b16 %v1763
      %v2136 = vunpack.c.l.b16 %v1773
      %v2137 = vunpack.c.l.b16 %v1787
      %v2138 = vunpack.c.l.b16 %v1797
      %v2139 = vunpack.c.l.b16 %v1811
      %v2140 = vunpack.c.l.b16 %v1821
      %v2141 = vunpack.c.l.b16 %v1835
      %v2142 = vunpack.c.l.b16 %v1845
      %v2143 = vunpack.c.l.b16 %v1859
      %v2144 = vunpack.c.l.b16 %v1869
      %v2145 = vunpack.c.l.b16 %v1883
      %v2146 = vunpack.c.l.b16 %v1893
      %v2147 = vunpack.c.l.b16 %v1907
      %v2148 = vunpack.c.l.b16 %v1917
      %v2149 = vunpack.c.l.b16 %v1931
      %v2150 = vunpack.c.l.b16 %v1941
      %v2151 = vunpack.c.l.b16 %v1955
      %v2152 = vunpack.c.l.b16 %v1965
      %v2153 = vunpack.c.l.b16 %v1979
      %v2154 = vunpack.c.l.b16 %v1989
      %v2155 = vunpack.c.l.b16 %v2003
      %v2156 = vunpack.c.l.b16 %v2013
      %v2157 = vunpack.c.l.b16 %v2027
      %v2158 = vunpack.c.l.b16 %v2037
      %v2159 = vunpack.c.l.b16 %v2051
      %v2160 = vunpack.c.l.b16 %v2061
      %v2161 = vunpack.c.l.b16 %v2075
      %v2162 = vunpack.c.l.b16 %v2085
      %v2163 = vunpack.c.l.b16 %v2099
      %v2164 = vunpack.c.l.b16 %v2109
      %v2165 = vunpack.c.l.b16 %v2123
      %v2166 = vunpack.c.l.b16 %v2133
      %v2167 = vpack.c.b16 %v2136, %v2135
      %v2168 = vpack.c.b16 %v2138, %v2137
      %v2169 = vpack.c.b16 %v2140, %v2139
      %v2170 = vpack.c.b16 %v2142, %v2141
      %v2171 = vpack.c.b16 %v2144, %v2143
      %v2172 = vpack.c.b16 %v2146, %v2145
      %v2173 = vpack.c.b16 %v2148, %v2147
      %v2174 = vpack.c.b16 %v2150, %v2149
      %v2175 = vpack.c.b16 %v2152, %v2151
      %v2176 = vpack.c.b16 %v2154, %v2153
      %v2177 = vpack.c.b16 %v2156, %v2155
      %v2178 = vpack.c.b16 %v2158, %v2157
      %v2179 = vpack.c.b16 %v2160, %v2159
      %v2180 = vpack.c.b16 %v2162, %v2161
      %v2181 = vpack.c.b16 %v2164, %v2163
      %v2182 = vpack.c.b16 %v2166, %v2165
      %v2184 = vsel %vm666, %v2167, 0
      %v2187 = vsel %vm666, %v2168, 0
      %v2190 = vsel %vm666, %v2169, 0
      %v2193 = vsel %vm666, %v2170, 0
      %v2196 = vsel %vm666, %v2171, 0
      %v2199 = vsel %vm666, %v2172, 0
      %v2202 = vsel %vm666, %v2173, 0
      %v2205 = vsel %vm666, %v2174, 0
      %v2208 = vsel %vm666, %v2175, 0
      %v2211 = vsel %vm666, %v2176, 0
      %v2214 = vsel %vm666, %v2177, 0
      %v2217 = vsel %vm666, %v2178, 0
      %v2220 = vsel %vm666, %v2179, 0
      %v2223 = vsel %vm666, %v2180, 0
      %v2226 = vsel %vm666, %v2181, 0
      %v2229 = vsel %vm666, %v2182, 0
      %v2232 = vsel %vm715, %v2134, 0
      %2234 = vmatpush.bf16.msra.mxu0 0
      %2235 = vmatpush.bf16.msra.mxu0 0
      %2236 = vmatpush.bf16.msra.mxu0 0
      %2237 = vmatpush.bf16.msra.mxu0 0
      %2238 = vmatpush.bf16.msra.mxu0 0
      %2239 = vmatpush.bf16.msra.mxu0 0
      %2240 = vmatpush.bf16.msra.mxu0 0
      %2241 = vmatpush.bf16.msra.mxu0 %v2232
      %2242 = vmatmul.bf16.gmra.mxu0 %v2184
      %v2243 = vpop.f32.mrf.mxu0
      %v2244 = vadd.f32 0.0, %v2243
      %v2245 = vpop.f32.mrf.mxu0
      %v2246 = vadd.f32 0.0, %v2245
      %2247 = vmatmul.bf16.gmra.mxu0 %v2187
      %v2248 = vpop.f32.mrf.mxu0
      %v2249 = vadd.f32 0.0, %v2248
      %v2250 = vpop.f32.mrf.mxu0
      %v2251 = vadd.f32 0.0, %v2250
      %2252 = vmatmul.bf16.gmra.mxu0 %v2190
      %v2253 = vpop.f32.mrf.mxu0
      %v2254 = vadd.f32 0.0, %v2253
      %v2255 = vpop.f32.mrf.mxu0
      %v2256 = vadd.f32 0.0, %v2255
      %2257 = vmatmul.bf16.gmra.mxu0 %v2193
      %v2258 = vpop.f32.mrf.mxu0
      %v2259 = vadd.f32 0.0, %v2258
      %v2260 = vpop.f32.mrf.mxu0
      %v2261 = vadd.f32 0.0, %v2260
      %2262 = vmatmul.bf16.gmra.mxu0 %v2196
      %v2263 = vpop.f32.mrf.mxu0
      %v2264 = vadd.f32 0.0, %v2263
      %v2265 = vpop.f32.mrf.mxu0
      %v2266 = vadd.f32 0.0, %v2265
      %2267 = vmatmul.bf16.gmra.mxu0 %v2199
      %v2268 = vpop.f32.mrf.mxu0
      %v2269 = vadd.f32 0.0, %v2268
      %v2270 = vpop.f32.mrf.mxu0
      %v2271 = vadd.f32 0.0, %v2270
      %2272 = vmatmul.bf16.gmra.mxu0 %v2202
      %v2273 = vpop.f32.mrf.mxu0
      %v2274 = vadd.f32 0.0, %v2273
      %v2275 = vpop.f32.mrf.mxu0
      %v2276 = vadd.f32 0.0, %v2275
      %2277 = vmatmul.bf16.gmra.mxu0 %v2205
      %v2278 = vpop.f32.mrf.mxu0
      %v2279 = vadd.f32 0.0, %v2278
      %v2280 = vpop.f32.mrf.mxu0
      %v2281 = vadd.f32 0.0, %v2280
      %2282 = vmatmul.bf16.gmra.mxu0 %v2208
      %v2283 = vpop.f32.mrf.mxu0
      %v2284 = vadd.f32 0.0, %v2283
      %v2285 = vpop.f32.mrf.mxu0
      %v2286 = vadd.f32 0.0, %v2285
      %2287 = vmatmul.bf16.gmra.mxu0 %v2211
      %v2288 = vpop.f32.mrf.mxu0
      %v2289 = vadd.f32 0.0, %v2288
      %v2290 = vpop.f32.mrf.mxu0
      %v2291 = vadd.f32 0.0, %v2290
      %2292 = vmatmul.bf16.gmra.mxu0 %v2214
      %v2293 = vpop.f32.mrf.mxu0
      %v2294 = vadd.f32 0.0, %v2293
      %v2295 = vpop.f32.mrf.mxu0
      %v2296 = vadd.f32 0.0, %v2295
      %2297 = vmatmul.bf16.gmra.mxu0 %v2217
      %v2298 = vpop.f32.mrf.mxu0
      %v2299 = vadd.f32 0.0, %v2298
      %v2300 = vpop.f32.mrf.mxu0
      %v2301 = vadd.f32 0.0, %v2300
      %2302 = vmatmul.bf16.gmra.mxu0 %v2220
      %v2303 = vpop.f32.mrf.mxu0
      %v2304 = vadd.f32 0.0, %v2303
      %v2305 = vpop.f32.mrf.mxu0
      %v2306 = vadd.f32 0.0, %v2305
      %2307 = vmatmul.bf16.gmra.mxu0 %v2223
      %v2308 = vpop.f32.mrf.mxu0
      %v2309 = vadd.f32 0.0, %v2308
      %v2310 = vpop.f32.mrf.mxu0
      %v2311 = vadd.f32 0.0, %v2310
      %2312 = vmatmul.bf16.gmra.mxu0 %v2226
      %v2313 = vpop.f32.mrf.mxu0
      %v2314 = vadd.f32 0.0, %v2313
      %v2315 = vpop.f32.mrf.mxu0
      %v2316 = vadd.f32 0.0, %v2315
      %2317 = vmatmul.bf16.gmra.mxu0 %v2229
      %v2318 = vpop.f32.mrf.mxu0
      %v2319 = vadd.f32 0.0, %v2318
      %v2320 = vpop.f32.mrf.mxu0
      %v2321 = vadd.f32 0.0, %v2320
      %2322 = vdwg.mxu0
      %v2323 = vadd.f32 %v1670, %v2244
      %v2324 = vadd.f32 %v1671, %v2246
      %v2325 = vadd.f32 %v1672, %v2249
      %v2326 = vadd.f32 %v1673, %v2251
      %v2327 = vadd.f32 %v1674, %v2254
      %v2328 = vadd.f32 %v1675, %v2256
      %v2329 = vadd.f32 %v1676, %v2259
      %v2330 = vadd.f32 %v1677, %v2261
      %v2331 = vadd.f32 %v1678, %v2264
      %v2332 = vadd.f32 %v1679, %v2266
      %v2333 = vadd.f32 %v1680, %v2269
      %v2334 = vadd.f32 %v1681, %v2271
      %v2335 = vadd.f32 %v1682, %v2274
      %v2336 = vadd.f32 %v1683, %v2276
      %v2337 = vadd.f32 %v1684, %v2279
      %v2338 = vadd.f32 %v1685, %v2281
      %v2339 = vadd.f32 %v1686, %v2284
      %v2340 = vadd.f32 %v1687, %v2286
      %v2341 = vadd.f32 %v1688, %v2289
      %v2342 = vadd.f32 %v1689, %v2291
      %v2343 = vadd.f32 %v1690, %v2294
      %v2344 = vadd.f32 %v1691, %v2296
      %v2345 = vadd.f32 %v1692, %v2299
      %v2346 = vadd.f32 %v1693, %v2301
      %v2347 = vadd.f32 %v1694, %v2304
      %v2348 = vadd.f32 %v1695, %v2306
      %v2349 = vadd.f32 %v1696, %v2309
      %v2350 = vadd.f32 %v1697, %v2311
      %v2351 = vadd.f32 %v1698, %v2314
      %v2352 = vadd.f32 %v1699, %v2316
      %v2353 = vadd.f32 %v1700, %v2319
      %v2354 = vadd.f32 %v1701, %v2321
      %v2355 = vld [vmem:[%s1412] sm:$0xe]
      %v2356 = vld [vmem:[%s1412 + $0xc] sm:$0xe]
      %v2357 = vld [vmem:[%s1412 + $0x18] sm:$0xe]
      %v2358 = vld [vmem:[%s1412 + $0x24] sm:$0xe]
      %v2359 = vld [vmem:[%s1412 + $0x30] sm:$0xe]
      %v2360 = vld [vmem:[%s1412 + $0x3c] sm:$0xe]
      %v2361 = vld [vmem:[%s1412 + $0x48] sm:$0xe]
      %v2362 = vld [vmem:[%s1412 + $0x54] sm:$0xe]
      %v2363 = vld [vmem:[%s1412 + $0x60] sm:$0xe]
      %v2364 = vld [vmem:[%s1412 + $0x6c] sm:$0xe]
      %v2365 = vld [vmem:[%s1412 + $0x78] sm:$0xe]
      %v2366 = vld [vmem:[%s1412 + $0x84] sm:$0xe]
      %v2367 = vld [vmem:[%s1412 + $0x90] sm:$0xe]
      %v2368 = vld [vmem:[%s1412 + $0x9c] sm:$0xe]
      %v2369 = vld [vmem:[%s1412 + $0xa8] sm:$0xe]
      %v2370 = vld [vmem:[%s1412 + $0xb4] sm:$0xe]
      %v2419 = vrot.slane %v2355, 5
      %v2420 = vrot.slane %v2419, 4
      %v2421 = vrot.slane %v1703, 5
      %v2422 = vsel %vm1078, %v2420, %v2421
      %v2423 = vrot.slane %v2421, 4
      %v2424 = vrot.slane %v1704, 5
      %v2425 = vsel %vm1078, %v2423, %v2424
      %v2426 = vrot.slane %v2356, 5
      %v2427 = vrot.slane %v2426, 4
      %v2428 = vrot.slane %v1706, 5
      %v2429 = vsel %vm1078, %v2427, %v2428
      %v2430 = vrot.slane %v2428, 4
      %v2431 = vrot.slane %v1707, 5
      %v2432 = vsel %vm1078, %v2430, %v2431
      %v2433 = vrot.slane %v2357, 5
      %v2434 = vrot.slane %v2433, 4
      %v2435 = vrot.slane %v1709, 5
      %v2436 = vsel %vm1078, %v2434, %v2435
      %v2437 = vrot.slane %v2435, 4
      %v2438 = vrot.slane %v1710, 5
      %v2439 = vsel %vm1078, %v2437, %v2438
      %v2440 = vrot.slane %v2358, 5
      %v2441 = vrot.slane %v2440, 4
      %v2442 = vrot.slane %v1712, 5
      %v2443 = vsel %vm1078, %v2441, %v2442
      %v2444 = vrot.slane %v2442, 4
      %v2445 = vrot.slane %v1713, 5
      %v2446 = vsel %vm1078, %v2444, %v2445
      %v2447 = vrot.slane %v2359, 5
      %v2448 = vrot.slane %v2447, 4
      %v2449 = vrot.slane %v1715, 5
      %v2450 = vsel %vm1078, %v2448, %v2449
      %v2451 = vrot.slane %v2449, 4
      %v2452 = vrot.slane %v1716, 5
      %v2453 = vsel %vm1078, %v2451, %v2452
      %v2454 = vrot.slane %v2360, 5
      %v2455 = vrot.slane %v2454, 4
      %v2456 = vrot.slane %v1718, 5
      %v2457 = vsel %vm1078, %v2455, %v2456
      %v2458 = vrot.slane %v2456, 4
      %v2459 = vrot.slane %v1719, 5
      %v2460 = vsel %vm1078, %v2458, %v2459
      %v2461 = vrot.slane %v2361, 5
      %v2462 = vrot.slane %v2461, 4
      %v2463 = vrot.slane %v1721, 5
      %v2464 = vsel %vm1078, %v2462, %v2463
      %v2465 = vrot.slane %v2463, 4
      %v2466 = vrot.slane %v1722, 5
      %v2467 = vsel %vm1078, %v2465, %v2466
      %v2468 = vrot.slane %v2362, 5
      %v2469 = vrot.slane %v2468, 4
      %v2470 = vrot.slane %v1724, 5
      %v2471 = vsel %vm1078, %v2469, %v2470
      %v2472 = vrot.slane %v2470, 4
      %v2473 = vrot.slane %v1725, 5
      %v2474 = vsel %vm1078, %v2472, %v2473
      %v2475 = vrot.slane %v2363, 5
      %v2476 = vrot.slane %v2475, 4
      %v2477 = vrot.slane %v1727, 5
      %v2478 = vsel %vm1078, %v2476, %v2477
      %v2479 = vrot.slane %v2477, 4
      %v2480 = vrot.slane %v1728, 5
      %v2481 = vsel %vm1078, %v2479, %v2480
      %v2482 = vrot.slane %v2364, 5
      %v2483 = vrot.slane %v2482, 4
      %v2484 = vrot.slane %v1730, 5
      %v2485 = vsel %vm1078, %v2483, %v2484
      %v2486 = vrot.slane %v2484, 4
      %v2487 = vrot.slane %v1731, 5
      %v2488 = vsel %vm1078, %v2486, %v2487
      %v2489 = vrot.slane %v2365, 5
      %v2490 = vrot.slane %v2489, 4
      %v2491 = vrot.slane %v1733, 5
      %v2492 = vsel %vm1078, %v2490, %v2491
      %v2493 = vrot.slane %v2491, 4
      %v2494 = vrot.slane %v1734, 5
      %v2495 = vsel %vm1078, %v2493, %v2494
      %v2496 = vrot.slane %v2366, 5
      %v2497 = vrot.slane %v2496, 4
      %v2498 = vrot.slane %v1736, 5
      %v2499 = vsel %vm1078, %v2497, %v2498
      %v2500 = vrot.slane %v2498, 4
      %v2501 = vrot.slane %v1737, 5
      %v2502 = vsel %vm1078, %v2500, %v2501
      %v2503 = vrot.slane %v2367, 5
      %v2504 = vrot.slane %v2503, 4
      %v2505 = vrot.slane %v1739, 5
      %v2506 = vsel %vm1078, %v2504, %v2505
      %v2507 = vrot.slane %v2505, 4
      %v2508 = vrot.slane %v1740, 5
      %v2509 = vsel %vm1078, %v2507, %v2508
      %v2510 = vrot.slane %v2368, 5
      %v2511 = vrot.slane %v2510, 4
      %v2512 = vrot.slane %v1742, 5
      %v2513 = vsel %vm1078, %v2511, %v2512
      %v2514 = vrot.slane %v2512, 4
      %v2515 = vrot.slane %v1743, 5
      %v2516 = vsel %vm1078, %v2514, %v2515
      %v2517 = vrot.slane %v2369, 5
      %v2518 = vrot.slane %v2517, 4
      %v2519 = vrot.slane %v1745, 5
      %v2520 = vsel %vm1078, %v2518, %v2519
      %v2521 = vrot.slane %v2519, 4
      %v2522 = vrot.slane %v1746, 5
      %v2523 = vsel %vm1078, %v2521, %v2522
      %v2524 = vrot.slane %v2370, 5
      %v2525 = vrot.slane %v2524, 4
      %v2526 = vrot.slane %v1748, 5
      %v2527 = vsel %vm1078, %v2525, %v2526
      %v2528 = vrot.slane %v2526, 4
      %v2529 = vrot.slane %v1749, 5
      %v2530 = vsel %vm1078, %v2528, %v2529
      %v2531 = vld [vmem:[%s1 + $0x8] sm:$0xc]
      %v2532 = vunpack.c.l.b16 %v2422
      %v2533 = vunpack.c.l.b16 %v2425
      %v2534 = vunpack.c.l.b16 %v2429
      %v2535 = vunpack.c.l.b16 %v2432
      %v2536 = vunpack.c.l.b16 %v2436
      %v2537 = vunpack.c.l.b16 %v2439
      %v2538 = vunpack.c.l.b16 %v2443
      %v2539 = vunpack.c.l.b16 %v2446
      %v2540 = vunpack.c.l.b16 %v2450
      %v2541 = vunpack.c.l.b16 %v2453
      %v2542 = vunpack.c.l.b16 %v2457
      %v2543 = vunpack.c.l.b16 %v2460
      %v2544 = vunpack.c.l.b16 %v2464
      %v2545 = vunpack.c.l.b16 %v2467
      %v2546 = vunpack.c.l.b16 %v2471
      %v2547 = vunpack.c.l.b16 %v2474
      %v2548 = vunpack.c.l.b16 %v2478
      %v2549 = vunpack.c.l.b16 %v2481
      %v2550 = vunpack.c.l.b16 %v2485
      %v2551 = vunpack.c.l.b16 %v2488
      %v2552 = vunpack.c.l.b16 %v2492
      %v2553 = vunpack.c.l.b16 %v2495
      %v2554 = vunpack.c.l.b16 %v2499
      %v2555 = vunpack.c.l.b16 %v2502
      %v2556 = vunpack.c.l.b16 %v2506
      %v2557 = vunpack.c.l.b16 %v2509
      %v2558 = vunpack.c.l.b16 %v2513
      %v2559 = vunpack.c.l.b16 %v2516
      %v2560 = vunpack.c.l.b16 %v2520
      %v2561 = vunpack.c.l.b16 %v2523
      %v2562 = vunpack.c.l.b16 %v2527
      %v2563 = vunpack.c.l.b16 %v2530
      %v2564 = vpack.c.b16 %v2533, %v2532
      %v2565 = vpack.c.b16 %v2535, %v2534
      %v2566 = vpack.c.b16 %v2537, %v2536
      %v2567 = vpack.c.b16 %v2539, %v2538
      %v2568 = vpack.c.b16 %v2541, %v2540
      %v2569 = vpack.c.b16 %v2543, %v2542
      %v2570 = vpack.c.b16 %v2545, %v2544
      %v2571 = vpack.c.b16 %v2547, %v2546
      %v2572 = vpack.c.b16 %v2549, %v2548
      %v2573 = vpack.c.b16 %v2551, %v2550
      %v2574 = vpack.c.b16 %v2553, %v2552
      %v2575 = vpack.c.b16 %v2555, %v2554
      %v2576 = vpack.c.b16 %v2557, %v2556
      %v2577 = vpack.c.b16 %v2559, %v2558
      %v2578 = vpack.c.b16 %v2561, %v2560
      %v2579 = vpack.c.b16 %v2563, %v2562
      %v2581 = vunpack.c.l.b16 %v2531
      %v2582 = vpack.c.b16 %v2581, %v2581
      %v2583 = vrot.slane %v2582, 2
      %v2585 = vsel %vm666, %v2564, 0
      %v2588 = vsel %vm666, %v2565, 0
      %v2591 = vsel %vm666, %v2566, 0
      %v2594 = vsel %vm666, %v2567, 0
      %v2597 = vsel %vm666, %v2568, 0
      %v2600 = vsel %vm666, %v2569, 0
      %v2603 = vsel %vm666, %v2570, 0
      %v2606 = vsel %vm666, %v2571, 0
      %v2609 = vsel %vm666, %v2572, 0
      %v2612 = vsel %vm666, %v2573, 0
      %v2615 = vsel %vm666, %v2574, 0
      %v2618 = vsel %vm666, %v2575, 0
      %v2621 = vsel %vm666, %v2576, 0
      %v2624 = vsel %vm666, %v2577, 0
      %v2627 = vsel %vm666, %v2578, 0
      %v2630 = vsel %vm666, %v2579, 0
      %v2633 = vsel %vm715, %v2583, 0
      %2635 = vmatpush.bf16.msra.mxu0 0
      %2636 = vmatpush.bf16.msra.mxu0 0
      %2637 = vmatpush.bf16.msra.mxu0 0
      %2638 = vmatpush.bf16.msra.mxu0 0
      %2639 = vmatpush.bf16.msra.mxu0 0
      %2640 = vmatpush.bf16.msra.mxu0 0
      %2641 = vmatpush.bf16.msra.mxu0 0
      %2642 = vmatpush.bf16.msra.mxu0 %v2633
      %2643 = vmatmul.bf16.gmra.mxu0 %v2585
      %v2644 = vpop.f32.mrf.mxu0
      %v2645 = vadd.f32 0.0, %v2644
      %v2646 = vpop.f32.mrf.mxu0
      %v2647 = vadd.f32 0.0, %v2646
      %2648 = vmatmul.bf16.gmra.mxu0 %v2588
      %v2649 = vpop.f32.mrf.mxu0
      %v2650 = vadd.f32 0.0, %v2649
      %v2651 = vpop.f32.mrf.mxu0
      %v2652 = vadd.f32 0.0, %v2651
      %2653 = vmatmul.bf16.gmra.mxu0 %v2591
      %v2654 = vpop.f32.mrf.mxu0
      %v2655 = vadd.f32 0.0, %v2654
      %v2656 = vpop.f32.mrf.mxu0
      %v2657 = vadd.f32 0.0, %v2656
      %2658 = vmatmul.bf16.gmra.mxu0 %v2594
      %v2659 = vpop.f32.mrf.mxu0
      %v2660 = vadd.f32 0.0, %v2659
      %v2661 = vpop.f32.mrf.mxu0
      %v2662 = vadd.f32 0.0, %v2661
      %2663 = vmatmul.bf16.gmra.mxu0 %v2597
      %v2664 = vpop.f32.mrf.mxu0
      %v2665 = vadd.f32 0.0, %v2664
      %v2666 = vpop.f32.mrf.mxu0
      %v2667 = vadd.f32 0.0, %v2666
      %2668 = vmatmul.bf16.gmra.mxu0 %v2600
      %v2669 = vpop.f32.mrf.mxu0
      %v2670 = vadd.f32 0.0, %v2669
      %v2671 = vpop.f32.mrf.mxu0
      %v2672 = vadd.f32 0.0, %v2671
      %2673 = vmatmul.bf16.gmra.mxu0 %v2603
      %v2674 = vpop.f32.mrf.mxu0
      %v2675 = vadd.f32 0.0, %v2674
      %v2676 = vpop.f32.mrf.mxu0
      %v2677 = vadd.f32 0.0, %v2676
      %2678 = vmatmul.bf16.gmra.mxu0 %v2606
      %v2679 = vpop.f32.mrf.mxu0
      %v2680 = vadd.f32 0.0, %v2679
      %v2681 = vpop.f32.mrf.mxu0
      %v2682 = vadd.f32 0.0, %v2681
      %2683 = vmatmul.bf16.gmra.mxu0 %v2609
      %v2684 = vpop.f32.mrf.mxu0
      %v2685 = vadd.f32 0.0, %v2684
      %v2686 = vpop.f32.mrf.mxu0
      %v2687 = vadd.f32 0.0, %v2686
      %2688 = vmatmul.bf16.gmra.mxu0 %v2612
      %v2689 = vpop.f32.mrf.mxu0
      %v2690 = vadd.f32 0.0, %v2689
      %v2691 = vpop.f32.mrf.mxu0
      %v2692 = vadd.f32 0.0, %v2691
      %2693 = vmatmul.bf16.gmra.mxu0 %v2615
      %v2694 = vpop.f32.mrf.mxu0
      %v2695 = vadd.f32 0.0, %v2694
      %v2696 = vpop.f32.mrf.mxu0
      %v2697 = vadd.f32 0.0, %v2696
      %2698 = vmatmul.bf16.gmra.mxu0 %v2618
      %v2699 = vpop.f32.mrf.mxu0
      %v2700 = vadd.f32 0.0, %v2699
      %v2701 = vpop.f32.mrf.mxu0
      %v2702 = vadd.f32 0.0, %v2701
      %2703 = vmatmul.bf16.gmra.mxu0 %v2621
      %v2704 = vpop.f32.mrf.mxu0
      %v2705 = vadd.f32 0.0, %v2704
      %v2706 = vpop.f32.mrf.mxu0
      %v2707 = vadd.f32 0.0, %v2706
      %2708 = vmatmul.bf16.gmra.mxu0 %v2624
      %v2709 = vpop.f32.mrf.mxu0
      %v2710 = vadd.f32 0.0, %v2709
      %v2711 = vpop.f32.mrf.mxu0
      %v2712 = vadd.f32 0.0, %v2711
      %2713 = vmatmul.bf16.gmra.mxu0 %v2627
      %v2714 = vpop.f32.mrf.mxu0
      %v2715 = vadd.f32 0.0, %v2714
      %v2716 = vpop.f32.mrf.mxu0
      %v2717 = vadd.f32 0.0, %v2716
      %2718 = vmatmul.bf16.gmra.mxu0 %v2630
      %v2719 = vpop.f32.mrf.mxu0
      %v2720 = vadd.f32 0.0, %v2719
      %v2721 = vpop.f32.mrf.mxu0
      %v2722 = vadd.f32 0.0, %v2721
      %2723 = vdwg.mxu0
      %v2724 = vadd.f32 %v2323, %v2645
      %v2725 = vadd.f32 %v2324, %v2647
      %v2726 = vadd.f32 %v2325, %v2650
      %v2727 = vadd.f32 %v2326, %v2652
      %v2728 = vadd.f32 %v2327, %v2655
      %v2729 = vadd.f32 %v2328, %v2657
      %v2730 = vadd.f32 %v2329, %v2660
      %v2731 = vadd.f32 %v2330, %v2662
      %v2732 = vadd.f32 %v2331, %v2665
      %v2733 = vadd.f32 %v2332, %v2667
      %v2734 = vadd.f32 %v2333, %v2670
      %v2735 = vadd.f32 %v2334, %v2672
      %v2736 = vadd.f32 %v2335, %v2675
      %v2737 = vadd.f32 %v2336, %v2677
      %v2738 = vadd.f32 %v2337, %v2680
      %v2739 = vadd.f32 %v2338, %v2682
      %v2740 = vadd.f32 %v2339, %v2685
      %v2741 = vadd.f32 %v2340, %v2687
      %v2742 = vadd.f32 %v2341, %v2690
      %v2743 = vadd.f32 %v2342, %v2692
      %v2744 = vadd.f32 %v2343, %v2695
      %v2745 = vadd.f32 %v2344, %v2697
      %v2746 = vadd.f32 %v2345, %v2700
      %v2747 = vadd.f32 %v2346, %v2702
      %v2748 = vadd.f32 %v2347, %v2705
      %v2749 = vadd.f32 %v2348, %v2707
      %v2750 = vadd.f32 %v2349, %v2710
      %v2751 = vadd.f32 %v2350, %v2712
      %v2752 = vadd.f32 %v2351, %v2715
      %v2753 = vadd.f32 %v2352, %v2717
      %v2754 = vadd.f32 %v2353, %v2720
      %v2755 = vadd.f32 %v2354, %v2722
      %s2756 = scalar_lea.vmem %s169, 24
      %v2757 = vld [vmem:[%s2756] sm:$0xf]
      %v2758 = vld [vmem:[%s2756 + $0x4] sm:$0xf]
      %v2759 = vld [vmem:[%s2756 + $0xc] sm:$0xf]
      %v2760 = vld [vmem:[%s2756 + $0x10] sm:$0xf]
      %v2761 = vld [vmem:[%s2756 + $0x18] sm:$0xf]
      %v2762 = vld [vmem:[%s2756 + $0x1c] sm:$0xf]
      %v2763 = vld [vmem:[%s2756 + $0x24] sm:$0xf]
      %v2764 = vld [vmem:[%s2756 + $0x28] sm:$0xf]
      %v2765 = vld [vmem:[%s2756 + $0x30] sm:$0xf]
      %v2766 = vld [vmem:[%s2756 + $0x34] sm:$0xf]
      %v2767 = vld [vmem:[%s2756 + $0x3c] sm:$0xf]
      %v2768 = vld [vmem:[%s2756 + $0x40] sm:$0xf]
      %v2769 = vld [vmem:[%s2756 + $0x48] sm:$0xf]
      %v2770 = vld [vmem:[%s2756 + $0x4c] sm:$0xf]
      %v2771 = vld [vmem:[%s2756 + $0x54] sm:$0xf]
      %v2772 = vld [vmem:[%s2756 + $0x58] sm:$0xf]
      %v2773 = vld [vmem:[%s2756 + $0x60] sm:$0xf]
      %v2774 = vld [vmem:[%s2756 + $0x64] sm:$0xf]
      %v2775 = vld [vmem:[%s2756 + $0x6c] sm:$0xf]
      %v2776 = vld [vmem:[%s2756 + $0x70] sm:$0xf]
      %v2777 = vld [vmem:[%s2756 + $0x78] sm:$0xf]
      %v2778 = vld [vmem:[%s2756 + $0x7c] sm:$0xf]
      %v2779 = vld [vmem:[%s2756 + $0x84] sm:$0xf]
      %v2780 = vld [vmem:[%s2756 + $0x88] sm:$0xf]
      %v2781 = vld [vmem:[%s2756 + $0x90] sm:$0xf]
      %v2782 = vld [vmem:[%s2756 + $0x94] sm:$0xf]
      %v2783 = vld [vmem:[%s2756 + $0x9c] sm:$0xf]
      %v2784 = vld [vmem:[%s2756 + $0xa0] sm:$0xf]
      %v2785 = vld [vmem:[%s2756 + $0xa8] sm:$0xf]
      %v2786 = vld [vmem:[%s2756 + $0xac] sm:$0xf]
      %v2787 = vld [vmem:[%s2756 + $0xb4] sm:$0xf]
      %v2788 = vld [vmem:[%s2756 + $0xb8] sm:$0xf]
      %v2789 = vld [vmem:[%s1 + $0xc] sm:$0x3]
      %v2822 = vunpack.c.l.b16 %v2757
      %v2823 = vunpack.c.l.b16 %v2758
      %v2824 = vunpack.c.l.b16 %v2759
      %v2825 = vunpack.c.l.b16 %v2760
      %v2826 = vunpack.c.l.b16 %v2761
      %v2827 = vunpack.c.l.b16 %v2762
      %v2828 = vunpack.c.l.b16 %v2763
      %v2829 = vunpack.c.l.b16 %v2764
      %v2830 = vunpack.c.l.b16 %v2765
      %v2831 = vunpack.c.l.b16 %v2766
      %v2832 = vunpack.c.l.b16 %v2767
      %v2833 = vunpack.c.l.b16 %v2768
      %v2834 = vunpack.c.l.b16 %v2769
      %v2835 = vunpack.c.l.b16 %v2770
      %v2836 = vunpack.c.l.b16 %v2771
      %v2837 = vunpack.c.l.b16 %v2772
      %v2838 = vunpack.c.l.b16 %v2773
      %v2839 = vunpack.c.l.b16 %v2774
      %v2840 = vunpack.c.l.b16 %v2775
      %v2841 = vunpack.c.l.b16 %v2776
      %v2842 = vunpack.c.l.b16 %v2777
      %v2843 = vunpack.c.l.b16 %v2778
      %v2844 = vunpack.c.l.b16 %v2779
      %v2845 = vunpack.c.l.b16 %v2780
      %v2846 = vunpack.c.l.b16 %v2781
      %v2847 = vunpack.c.l.b16 %v2782
      %v2848 = vunpack.c.l.b16 %v2783
      %v2849 = vunpack.c.l.b16 %v2784
      %v2850 = vunpack.c.l.b16 %v2785
      %v2851 = vunpack.c.l.b16 %v2786
      %v2852 = vunpack.c.l.b16 %v2787
      %v2853 = vunpack.c.l.b16 %v2788
      %v2854 = vpack.c.b16 %v2823, %v2822
      %v2855 = vpack.c.b16 %v2825, %v2824
      %v2856 = vpack.c.b16 %v2827, %v2826
      %v2857 = vpack.c.b16 %v2829, %v2828
      %v2858 = vpack.c.b16 %v2831, %v2830
      %v2859 = vpack.c.b16 %v2833, %v2832
      %v2860 = vpack.c.b16 %v2835, %v2834
      %v2861 = vpack.c.b16 %v2837, %v2836
      %v2862 = vpack.c.b16 %v2839, %v2838
      %v2863 = vpack.c.b16 %v2841, %v2840
      %v2864 = vpack.c.b16 %v2843, %v2842
      %v2865 = vpack.c.b16 %v2845, %v2844
      %v2866 = vpack.c.b16 %v2847, %v2846
      %v2867 = vpack.c.b16 %v2849, %v2848
      %v2868 = vpack.c.b16 %v2851, %v2850
      %v2869 = vpack.c.b16 %v2853, %v2852
      %v2871 = vsel %vm666, %v2854, 0
      %v2874 = vsel %vm666, %v2855, 0
      %v2877 = vsel %vm666, %v2856, 0
      %v2880 = vsel %vm666, %v2857, 0
      %v2883 = vsel %vm666, %v2858, 0
      %v2886 = vsel %vm666, %v2859, 0
      %v2889 = vsel %vm666, %v2860, 0
      %v2892 = vsel %vm666, %v2861, 0
      %v2895 = vsel %vm666, %v2862, 0
      %v2898 = vsel %vm666, %v2863, 0
      %v2901 = vsel %vm666, %v2864, 0
      %v2904 = vsel %vm666, %v2865, 0
      %v2907 = vsel %vm666, %v2866, 0
      %v2910 = vsel %vm666, %v2867, 0
      %v2913 = vsel %vm666, %v2868, 0
      %v2916 = vsel %vm666, %v2869, 0
      %v2919 = vsel %vm715, %v2789, 0
      %2921 = vmatpush.bf16.msra.mxu0 0
      %2922 = vmatpush.bf16.msra.mxu0 0
      %2923 = vmatpush.bf16.msra.mxu0 0
      %2924 = vmatpush.bf16.msra.mxu0 0
      %2925 = vmatpush.bf16.msra.mxu0 0
      %2926 = vmatpush.bf16.msra.mxu0 0
      %2927 = vmatpush.bf16.msra.mxu0 0
      %2928 = vmatpush.bf16.msra.mxu0 %v2919
      %2929 = vmatmul.bf16.gmra.mxu0 %v2871
      %v2930 = vpop.f32.mrf.mxu0
      %v2931 = vadd.f32 0.0, %v2930
      %v2932 = vpop.f32.mrf.mxu0
      %v2933 = vadd.f32 0.0, %v2932
      %2934 = vmatmul.bf16.gmra.mxu0 %v2874
      %v2935 = vpop.f32.mrf.mxu0
      %v2936 = vadd.f32 0.0, %v2935
      %v2937 = vpop.f32.mrf.mxu0
      %v2938 = vadd.f32 0.0, %v2937
      %2939 = vmatmul.bf16.gmra.mxu0 %v2877
      %v2940 = vpop.f32.mrf.mxu0
      %v2941 = vadd.f32 0.0, %v2940
      %v2942 = vpop.f32.mrf.mxu0
      %v2943 = vadd.f32 0.0, %v2942
      %2944 = vmatmul.bf16.gmra.mxu0 %v2880
      %v2945 = vpop.f32.mrf.mxu0
      %v2946 = vadd.f32 0.0, %v2945
      %v2947 = vpop.f32.mrf.mxu0
      %v2948 = vadd.f32 0.0, %v2947
      %2949 = vmatmul.bf16.gmra.mxu0 %v2883
      %v2950 = vpop.f32.mrf.mxu0
      %v2951 = vadd.f32 0.0, %v2950
      %v2952 = vpop.f32.mrf.mxu0
      %v2953 = vadd.f32 0.0, %v2952
      %2954 = vmatmul.bf16.gmra.mxu0 %v2886
      %v2955 = vpop.f32.mrf.mxu0
      %v2956 = vadd.f32 0.0, %v2955
      %v2957 = vpop.f32.mrf.mxu0
      %v2958 = vadd.f32 0.0, %v2957
      %2959 = vmatmul.bf16.gmra.mxu0 %v2889
      %v2960 = vpop.f32.mrf.mxu0
      %v2961 = vadd.f32 0.0, %v2960
      %v2962 = vpop.f32.mrf.mxu0
      %v2963 = vadd.f32 0.0, %v2962
      %2964 = vmatmul.bf16.gmra.mxu0 %v2892
      %v2965 = vpop.f32.mrf.mxu0
      %v2966 = vadd.f32 0.0, %v2965
      %v2967 = vpop.f32.mrf.mxu0
      %v2968 = vadd.f32 0.0, %v2967
      %2969 = vmatmul.bf16.gmra.mxu0 %v2895
      %v2970 = vpop.f32.mrf.mxu0
      %v2971 = vadd.f32 0.0, %v2970
      %v2972 = vpop.f32.mrf.mxu0
      %v2973 = vadd.f32 0.0, %v2972
      %2974 = vmatmul.bf16.gmra.mxu0 %v2898
      %v2975 = vpop.f32.mrf.mxu0
      %v2976 = vadd.f32 0.0, %v2975
      %v2977 = vpop.f32.mrf.mxu0
      %v2978 = vadd.f32 0.0, %v2977
      %2979 = vmatmul.bf16.gmra.mxu0 %v2901
      %v2980 = vpop.f32.mrf.mxu0
      %v2981 = vadd.f32 0.0, %v2980
      %v2982 = vpop.f32.mrf.mxu0
      %v2983 = vadd.f32 0.0, %v2982
      %2984 = vmatmul.bf16.gmra.mxu0 %v2904
      %v2985 = vpop.f32.mrf.mxu0
      %v2986 = vadd.f32 0.0, %v2985
      %v2987 = vpop.f32.mrf.mxu0
      %v2988 = vadd.f32 0.0, %v2987
      %2989 = vmatmul.bf16.gmra.mxu0 %v2907
      %v2990 = vpop.f32.mrf.mxu0
      %v2991 = vadd.f32 0.0, %v2990
      %v2992 = vpop.f32.mrf.mxu0
      %v2993 = vadd.f32 0.0, %v2992
      %2994 = vmatmul.bf16.gmra.mxu0 %v2910
      %v2995 = vpop.f32.mrf.mxu0
      %v2996 = vadd.f32 0.0, %v2995
      %v2997 = vpop.f32.mrf.mxu0
      %v2998 = vadd.f32 0.0, %v2997
      %2999 = vmatmul.bf16.gmra.mxu0 %v2913
      %v3000 = vpop.f32.mrf.mxu0
      %v3001 = vadd.f32 0.0, %v3000
      %v3002 = vpop.f32.mrf.mxu0
      %v3003 = vadd.f32 0.0, %v3002
      %3004 = vmatmul.bf16.gmra.mxu0 %v2916
      %v3005 = vpop.f32.mrf.mxu0
      %v3006 = vadd.f32 0.0, %v3005
      %v3007 = vpop.f32.mrf.mxu0
      %v3008 = vadd.f32 0.0, %v3007
      %3009 = vdwg.mxu0
      %v3010 = vadd.f32 %v2724, %v2931
      %v3011 = vadd.f32 %v2725, %v2933
      %v3012 = vadd.f32 %v2726, %v2936
      %v3013 = vadd.f32 %v2727, %v2938
      %v3014 = vadd.f32 %v2728, %v2941
      %v3015 = vadd.f32 %v2729, %v2943
      %v3016 = vadd.f32 %v2730, %v2946
      %v3017 = vadd.f32 %v2731, %v2948
      %v3018 = vadd.f32 %v2732, %v2951
      %v3019 = vadd.f32 %v2733, %v2953
      %v3020 = vadd.f32 %v2734, %v2956
      %v3021 = vadd.f32 %v2735, %v2958
      %v3022 = vadd.f32 %v2736, %v2961
      %v3023 = vadd.f32 %v2737, %v2963
      %v3024 = vadd.f32 %v2738, %v2966
      %v3025 = vadd.f32 %v2739, %v2968
      %v3026 = vadd.f32 %v2740, %v2971
      %v3027 = vadd.f32 %v2741, %v2973
      %v3028 = vadd.f32 %v2742, %v2976
      %v3029 = vadd.f32 %v2743, %v2978
      %v3030 = vadd.f32 %v2744, %v2981
      %v3031 = vadd.f32 %v2745, %v2983
      %v3032 = vadd.f32 %v2746, %v2986
      %v3033 = vadd.f32 %v2747, %v2988
      %v3034 = vadd.f32 %v2748, %v2991
      %v3035 = vadd.f32 %v2749, %v2993
      %v3036 = vadd.f32 %v2750, %v2996
      %v3037 = vadd.f32 %v2751, %v2998
      %v3038 = vadd.f32 %v2752, %v3001
      %v3039 = vadd.f32 %v2753, %v3003
      %v3040 = vadd.f32 %v2754, %v3006
      %v3041 = vadd.f32 %v2755, %v3008
      %v3042 = vld [vmem:[%s2756] sm:$0xf]
      %v3043 = vld [vmem:[%s2756 + $0x4] sm:$0xf]
      %v3044 = vld [vmem:[%s2756 + $0x8] sm:$0x1]
      %v3045 = vld [vmem:[%s2756 + $0xc] sm:$0xf]
      %v3046 = vld [vmem:[%s2756 + $0x10] sm:$0xf]
      %v3047 = vld [vmem:[%s2756 + $0x14] sm:$0x1]
      %v3048 = vld [vmem:[%s2756 + $0x18] sm:$0xf]
      %v3049 = vld [vmem:[%s2756 + $0x1c] sm:$0xf]
      %v3050 = vld [vmem:[%s2756 + $0x20] sm:$0x1]
      %v3051 = vld [vmem:[%s2756 + $0x24] sm:$0xf]
      %v3052 = vld [vmem:[%s2756 + $0x28] sm:$0xf]
      %v3053 = vld [vmem:[%s2756 + $0x2c] sm:$0x1]
      %v3054 = vld [vmem:[%s2756 + $0x30] sm:$0xf]
      %v3055 = vld [vmem:[%s2756 + $0x34] sm:$0xf]
      %v3056 = vld [vmem:[%s2756 + $0x38] sm:$0x1]
      %v3057 = vld [vmem:[%s2756 + $0x3c] sm:$0xf]
      %v3058 = vld [vmem:[%s2756 + $0x40] sm:$0xf]
      %v3059 = vld [vmem:[%s2756 + $0x44] sm:$0x1]
      %v3060 = vld [vmem:[%s2756 + $0x48] sm:$0xf]
      %v3061 = vld [vmem:[%s2756 + $0x4c] sm:$0xf]
      %v3062 = vld [vmem:[%s2756 + $0x50] sm:$0x1]
      %v3063 = vld [vmem:[%s2756 + $0x54] sm:$0xf]
      %v3064 = vld [vmem:[%s2756 + $0x58] sm:$0xf]
      %v3065 = vld [vmem:[%s2756 + $0x5c] sm:$0x1]
      %v3066 = vld [vmem:[%s2756 + $0x60] sm:$0xf]
      %v3067 = vld [vmem:[%s2756 + $0x64] sm:$0xf]
      %v3068 = vld [vmem:[%s2756 + $0x68] sm:$0x1]
      %v3069 = vld [vmem:[%s2756 + $0x6c] sm:$0xf]
      %v3070 = vld [vmem:[%s2756 + $0x70] sm:$0xf]
      %v3071 = vld [vmem:[%s2756 + $0x74] sm:$0x1]
      %v3072 = vld [vmem:[%s2756 + $0x78] sm:$0xf]
      %v3073 = vld [vmem:[%s2756 + $0x7c] sm:$0xf]
      %v3074 = vld [vmem:[%s2756 + $0x80] sm:$0x1]
      %v3075 = vld [vmem:[%s2756 + $0x84] sm:$0xf]
      %v3076 = vld [vmem:[%s2756 + $0x88] sm:$0xf]
      %v3077 = vld [vmem:[%s2756 + $0x8c] sm:$0x1]
      %v3078 = vld [vmem:[%s2756 + $0x90] sm:$0xf]
      %v3079 = vld [vmem:[%s2756 + $0x94] sm:$0xf]
      %v3080 = vld [vmem:[%s2756 + $0x98] sm:$0x1]
      %v3081 = vld [vmem:[%s2756 + $0x9c] sm:$0xf]
      %v3082 = vld [vmem:[%s2756 + $0xa0] sm:$0xf]
      %v3083 = vld [vmem:[%s2756 + $0xa4] sm:$0x1]
      %v3084 = vld [vmem:[%s2756 + $0xa8] sm:$0xf]
      %v3085 = vld [vmem:[%s2756 + $0xac] sm:$0xf]
      %v3086 = vld [vmem:[%s2756 + $0xb0] sm:$0x1]
      %v3087 = vld [vmem:[%s2756 + $0xb4] sm:$0xf]
      %v3088 = vld [vmem:[%s2756 + $0xb8] sm:$0xf]
      %v3089 = vld [vmem:[%s2756 + $0xbc] sm:$0x1]
      %v3091 = vshrl.u32 %v3042, 16
      %v3093 = vrot.slane %v3091, 4
      %v3094 = vshll.u32 %v3042, 16
      %v3096 = vrot.slane %v3094, 5
      %v3097 = vor.u32 %v3093, %v3096
      %v3098 = vrot.slane %v3097, 4
      %v3100 = vshll.u32 %v3043, 16
      %v3102 = vrot.slane %v3100, 5
      %v3103 = vsel %vm228, %v3098, %v3102
      %v3104 = vshrl.u32 %v3043, 16
      %v3106 = vrot.slane %v3104, 4
      %v3107 = vor.u32 %v3106, %v3102
      %v3108 = vrot.slane %v3107, 4
      %v3110 = vshll.u32 %v3044, 16
      %v3112 = vrot.slane %v3110, 5
      %v3113 = vsel %vm228, %v3108, %v3112
      %v3115 = vshrl.u32 %v3045, 16
      %v3117 = vrot.slane %v3115, 4
      %v3118 = vshll.u32 %v3045, 16
      %v3120 = vrot.slane %v3118, 5
      %v3121 = vor.u32 %v3117, %v3120
      %v3122 = vrot.slane %v3121, 4
      %v3124 = vshll.u32 %v3046, 16
      %v3126 = vrot.slane %v3124, 5
      %v3127 = vsel %vm228, %v3122, %v3126
      %v3128 = vshrl.u32 %v3046, 16
      %v3130 = vrot.slane %v3128, 4
      %v3131 = vor.u32 %v3130, %v3126
      %v3132 = vrot.slane %v3131, 4
      %v3134 = vshll.u32 %v3047, 16
      %v3136 = vrot.slane %v3134, 5
      %v3137 = vsel %vm228, %v3132, %v3136
      %v3139 = vshrl.u32 %v3048, 16
      %v3141 = vrot.slane %v3139, 4
      %v3142 = vshll.u32 %v3048, 16
      %v3144 = vrot.slane %v3142, 5
      %v3145 = vor.u32 %v3141, %v3144
      %v3146 = vrot.slane %v3145, 4
      %v3148 = vshll.u32 %v3049, 16
      %v3150 = vrot.slane %v3148, 5
      %v3151 = vsel %vm228, %v3146, %v3150
      %v3152 = vshrl.u32 %v3049, 16
      %v3154 = vrot.slane %v3152, 4
      %v3155 = vor.u32 %v3154, %v3150
      %v3156 = vrot.slane %v3155, 4
      %v3158 = vshll.u32 %v3050, 16
      %v3160 = vrot.slane %v3158, 5
      %v3161 = vsel %vm228, %v3156, %v3160
      %v3163 = vshrl.u32 %v3051, 16
      %v3165 = vrot.slane %v3163, 4
      %v3166 = vshll.u32 %v3051, 16
      %v3168 = vrot.slane %v3166, 5
      %v3169 = vor.u32 %v3165, %v3168
      %v3170 = vrot.slane %v3169, 4
      %v3172 = vshll.u32 %v3052, 16
      %v3174 = vrot.slane %v3172, 5
      %v3175 = vsel %vm228, %v3170, %v3174
      %v3176 = vshrl.u32 %v3052, 16
      %v3178 = vrot.slane %v3176, 4
      %v3179 = vor.u32 %v3178, %v3174
      %v3180 = vrot.slane %v3179, 4
      %v3182 = vshll.u32 %v3053, 16
      %v3184 = vrot.slane %v3182, 5
      %v3185 = vsel %vm228, %v3180, %v3184
      %v3187 = vshrl.u32 %v3054, 16
      %v3189 = vrot.slane %v3187, 4
      %v3190 = vshll.u32 %v3054, 16
      %v3192 = vrot.slane %v3190, 5
      %v3193 = vor.u32 %v3189, %v3192
      %v3194 = vrot.slane %v3193, 4
      %v3196 = vshll.u32 %v3055, 16
      %v3198 = vrot.slane %v3196, 5
      %v3199 = vsel %vm228, %v3194, %v3198
      %v3200 = vshrl.u32 %v3055, 16
      %v3202 = vrot.slane %v3200, 4
      %v3203 = vor.u32 %v3202, %v3198
      %v3204 = vrot.slane %v3203, 4
      %v3206 = vshll.u32 %v3056, 16
      %v3208 = vrot.slane %v3206, 5
      %v3209 = vsel %vm228, %v3204, %v3208
      %v3211 = vshrl.u32 %v3057, 16
      %v3213 = vrot.slane %v3211, 4
      %v3214 = vshll.u32 %v3057, 16
      %v3216 = vrot.slane %v3214, 5
      %v3217 = vor.u32 %v3213, %v3216
      %v3218 = vrot.slane %v3217, 4
      %v3220 = vshll.u32 %v3058, 16
      %v3222 = vrot.slane %v3220, 5
      %v3223 = vsel %vm228, %v3218, %v3222
      %v3224 = vshrl.u32 %v3058, 16
      %v3226 = vrot.slane %v3224, 4
      %v3227 = vor.u32 %v3226, %v3222
      %v3228 = vrot.slane %v3227, 4
      %v3230 = vshll.u32 %v3059, 16
      %v3232 = vrot.slane %v3230, 5
      %v3233 = vsel %vm228, %v3228, %v3232
      %v3235 = vshrl.u32 %v3060, 16
      %v3237 = vrot.slane %v3235, 4
      %v3238 = vshll.u32 %v3060, 16
      %v3240 = vrot.slane %v3238, 5
      %v3241 = vor.u32 %v3237, %v3240
      %v3242 = vrot.slane %v3241, 4
      %v3244 = vshll.u32 %v3061, 16
      %v3246 = vrot.slane %v3244, 5
      %v3247 = vsel %vm228, %v3242, %v3246
      %v3248 = vshrl.u32 %v3061, 16
      %v3250 = vrot.slane %v3248, 4
      %v3251 = vor.u32 %v3250, %v3246
      %v3252 = vrot.slane %v3251, 4
      %v3254 = vshll.u32 %v3062, 16
      %v3256 = vrot.slane %v3254, 5
      %v3257 = vsel %vm228, %v3252, %v3256
      %v3259 = vshrl.u32 %v3063, 16
      %v3261 = vrot.slane %v3259, 4
      %v3262 = vshll.u32 %v3063, 16
      %v3264 = vrot.slane %v3262, 5
      %v3265 = vor.u32 %v3261, %v3264
      %v3266 = vrot.slane %v3265, 4
      %v3268 = vshll.u32 %v3064, 16
      %v3270 = vrot.slane %v3268, 5
      %v3271 = vsel %vm228, %v3266, %v3270
      %v3272 = vshrl.u32 %v3064, 16
      %v3274 = vrot.slane %v3272, 4
      %v3275 = vor.u32 %v3274, %v3270
      %v3276 = vrot.slane %v3275, 4
      %v3278 = vshll.u32 %v3065, 16
      %v3280 = vrot.slane %v3278, 5
      %v3281 = vsel %vm228, %v3276, %v3280
      %v3283 = vshrl.u32 %v3066, 16
      %v3285 = vrot.slane %v3283, 4
      %v3286 = vshll.u32 %v3066, 16
      %v3288 = vrot.slane %v3286, 5
      %v3289 = vor.u32 %v3285, %v3288
      %v3290 = vrot.slane %v3289, 4
      %v3292 = vshll.u32 %v3067, 16
      %v3294 = vrot.slane %v3292, 5
      %v3295 = vsel %vm228, %v3290, %v3294
      %v3296 = vshrl.u32 %v3067, 16
      %v3298 = vrot.slane %v3296, 4
      %v3299 = vor.u32 %v3298, %v3294
      %v3300 = vrot.slane %v3299, 4
      %v3302 = vshll.u32 %v3068, 16
      %v3304 = vrot.slane %v3302, 5
      %v3305 = vsel %vm228, %v3300, %v3304
      %v3307 = vshrl.u32 %v3069, 16
      %v3309 = vrot.slane %v3307, 4
      %v3310 = vshll.u32 %v3069, 16
      %v3312 = vrot.slane %v3310, 5
      %v3313 = vor.u32 %v3309, %v3312
      %v3314 = vrot.slane %v3313, 4
      %v3316 = vshll.u32 %v3070, 16
      %v3318 = vrot.slane %v3316, 5
      %v3319 = vsel %vm228, %v3314, %v3318
      %v3320 = vshrl.u32 %v3070, 16
      %v3322 = vrot.slane %v3320, 4
      %v3323 = vor.u32 %v3322, %v3318
      %v3324 = vrot.slane %v3323, 4
      %v3326 = vshll.u32 %v3071, 16
      %v3328 = vrot.slane %v3326, 5
      %v3329 = vsel %vm228, %v3324, %v3328
      %v3331 = vshrl.u32 %v3072, 16
      %v3333 = vrot.slane %v3331, 4
      %v3334 = vshll.u32 %v3072, 16
      %v3336 = vrot.slane %v3334, 5
      %v3337 = vor.u32 %v3333, %v3336
      %v3338 = vrot.slane %v3337, 4
      %v3340 = vshll.u32 %v3073, 16
      %v3342 = vrot.slane %v3340, 5
      %v3343 = vsel %vm228, %v3338, %v3342
      %v3344 = vshrl.u32 %v3073, 16
      %v3346 = vrot.slane %v3344, 4
      %v3347 = vor.u32 %v3346, %v3342
      %v3348 = vrot.slane %v3347, 4
      %v3350 = vshll.u32 %v3074, 16
      %v3352 = vrot.slane %v3350, 5
      %v3353 = vsel %vm228, %v3348, %v3352
      %v3355 = vshrl.u32 %v3075, 16
      %v3357 = vrot.slane %v3355, 4
      %v3358 = vshll.u32 %v3075, 16
      %v3360 = vrot.slane %v3358, 5
      %v3361 = vor.u32 %v3357, %v3360
      %v3362 = vrot.slane %v3361, 4
      %v3364 = vshll.u32 %v3076, 16
      %v3366 = vrot.slane %v3364, 5
      %v3367 = vsel %vm228, %v3362, %v3366
      %v3368 = vshrl.u32 %v3076, 16
      %v3370 = vrot.slane %v3368, 4
      %v3371 = vor.u32 %v3370, %v3366
      %v3372 = vrot.slane %v3371, 4
      %v3374 = vshll.u32 %v3077, 16
      %v3376 = vrot.slane %v3374, 5
      %v3377 = vsel %vm228, %v3372, %v3376
      %v3379 = vshrl.u32 %v3078, 16
      %v3381 = vrot.slane %v3379, 4
      %v3382 = vshll.u32 %v3078, 16
      %v3384 = vrot.slane %v3382, 5
      %v3385 = vor.u32 %v3381, %v3384
      %v3386 = vrot.slane %v3385, 4
      %v3388 = vshll.u32 %v3079, 16
      %v3390 = vrot.slane %v3388, 5
      %v3391 = vsel %vm228, %v3386, %v3390
      %v3392 = vshrl.u32 %v3079, 16
      %v3394 = vrot.slane %v3392, 4
      %v3395 = vor.u32 %v3394, %v3390
      %v3396 = vrot.slane %v3395, 4
      %v3398 = vshll.u32 %v3080, 16
      %v3400 = vrot.slane %v3398, 5
      %v3401 = vsel %vm228, %v3396, %v3400
      %v3403 = vshrl.u32 %v3081, 16
      %v3405 = vrot.slane %v3403, 4
      %v3406 = vshll.u32 %v3081, 16
      %v3408 = vrot.slane %v3406, 5
      %v3409 = vor.u32 %v3405, %v3408
      %v3410 = vrot.slane %v3409, 4
      %v3412 = vshll.u32 %v3082, 16
      %v3414 = vrot.slane %v3412, 5
      %v3415 = vsel %vm228, %v3410, %v3414
      %v3416 = vshrl.u32 %v3082, 16
      %v3418 = vrot.slane %v3416, 4
      %v3419 = vor.u32 %v3418, %v3414
      %v3420 = vrot.slane %v3419, 4
      %v3422 = vshll.u32 %v3083, 16
      %v3424 = vrot.slane %v3422, 5
      %v3425 = vsel %vm228, %v3420, %v3424
      %v3427 = vshrl.u32 %v3084, 16
      %v3429 = vrot.slane %v3427, 4
      %v3430 = vshll.u32 %v3084, 16
      %v3432 = vrot.slane %v3430, 5
      %v3433 = vor.u32 %v3429, %v3432
      %v3434 = vrot.slane %v3433, 4
      %v3436 = vshll.u32 %v3085, 16
      %v3438 = vrot.slane %v3436, 5
      %v3439 = vsel %vm228, %v3434, %v3438
      %v3440 = vshrl.u32 %v3085, 16
      %v3442 = vrot.slane %v3440, 4
      %v3443 = vor.u32 %v3442, %v3438
      %v3444 = vrot.slane %v3443, 4
      %v3446 = vshll.u32 %v3086, 16
      %v3448 = vrot.slane %v3446, 5
      %v3449 = vsel %vm228, %v3444, %v3448
      %v3451 = vshrl.u32 %v3087, 16
      %v3453 = vrot.slane %v3451, 4
      %v3454 = vshll.u32 %v3087, 16
      %v3456 = vrot.slane %v3454, 5
      %v3457 = vor.u32 %v3453, %v3456
      %v3458 = vrot.slane %v3457, 4
      %v3460 = vshll.u32 %v3088, 16
      %v3462 = vrot.slane %v3460, 5
      %v3463 = vsel %vm228, %v3458, %v3462
      %v3464 = vshrl.u32 %v3088, 16
      %v3466 = vrot.slane %v3464, 4
      %v3467 = vor.u32 %v3466, %v3462
      %v3468 = vrot.slane %v3467, 4
      %v3470 = vshll.u32 %v3089, 16
      %v3472 = vrot.slane %v3470, 5
      %v3473 = vsel %vm228, %v3468, %v3472
      %v3474 = vld [vmem:[%s1 + $0xc] sm:$0xc]
      %v3475 = vunpack.c.l.b16 %v3103
      %v3476 = vunpack.c.l.b16 %v3113
      %v3477 = vunpack.c.l.b16 %v3127
      %v3478 = vunpack.c.l.b16 %v3137
      %v3479 = vunpack.c.l.b16 %v3151
      %v3480 = vunpack.c.l.b16 %v3161
      %v3481 = vunpack.c.l.b16 %v3175
      %v3482 = vunpack.c.l.b16 %v3185
      %v3483 = vunpack.c.l.b16 %v3199
      %v3484 = vunpack.c.l.b16 %v3209
      %v3485 = vunpack.c.l.b16 %v3223
      %v3486 = vunpack.c.l.b16 %v3233
      %v3487 = vunpack.c.l.b16 %v3247
      %v3488 = vunpack.c.l.b16 %v3257
      %v3489 = vunpack.c.l.b16 %v3271
      %v3490 = vunpack.c.l.b16 %v3281
      %v3491 = vunpack.c.l.b16 %v3295
      %v3492 = vunpack.c.l.b16 %v3305
      %v3493 = vunpack.c.l.b16 %v3319
      %v3494 = vunpack.c.l.b16 %v3329
      %v3495 = vunpack.c.l.b16 %v3343
      %v3496 = vunpack.c.l.b16 %v3353
      %v3497 = vunpack.c.l.b16 %v3367
      %v3498 = vunpack.c.l.b16 %v3377
      %v3499 = vunpack.c.l.b16 %v3391
      %v3500 = vunpack.c.l.b16 %v3401
      %v3501 = vunpack.c.l.b16 %v3415
      %v3502 = vunpack.c.l.b16 %v3425
      %v3503 = vunpack.c.l.b16 %v3439
      %v3504 = vunpack.c.l.b16 %v3449
      %v3505 = vunpack.c.l.b16 %v3463
      %v3506 = vunpack.c.l.b16 %v3473
      %v3507 = vpack.c.b16 %v3476, %v3475
      %v3508 = vpack.c.b16 %v3478, %v3477
      %v3509 = vpack.c.b16 %v3480, %v3479
      %v3510 = vpack.c.b16 %v3482, %v3481
      %v3511 = vpack.c.b16 %v3484, %v3483
      %v3512 = vpack.c.b16 %v3486, %v3485
      %v3513 = vpack.c.b16 %v3488, %v3487
      %v3514 = vpack.c.b16 %v3490, %v3489
      %v3515 = vpack.c.b16 %v3492, %v3491
      %v3516 = vpack.c.b16 %v3494, %v3493
      %v3517 = vpack.c.b16 %v3496, %v3495
      %v3518 = vpack.c.b16 %v3498, %v3497
      %v3519 = vpack.c.b16 %v3500, %v3499
      %v3520 = vpack.c.b16 %v3502, %v3501
      %v3521 = vpack.c.b16 %v3504, %v3503
      %v3522 = vpack.c.b16 %v3506, %v3505
      %v3524 = vunpack.c.l.b16 %v3474
      %v3525 = vpack.c.b16 %v3524, %v3524
      %v3526 = vrot.slane %v3525, 2
      %v3528 = vsel %vm666, %v3507, 0
      %v3531 = vsel %vm666, %v3508, 0
      %v3534 = vsel %vm666, %v3509, 0
      %v3537 = vsel %vm666, %v3510, 0
      %v3540 = vsel %vm666, %v3511, 0
      %v3543 = vsel %vm666, %v3512, 0
      %v3546 = vsel %vm666, %v3513, 0
      %v3549 = vsel %vm666, %v3514, 0
      %v3552 = vsel %vm666, %v3515, 0
      %v3555 = vsel %vm666, %v3516, 0
      %v3558 = vsel %vm666, %v3517, 0
      %v3561 = vsel %vm666, %v3518, 0
      %v3564 = vsel %vm666, %v3519, 0
      %v3567 = vsel %vm666, %v3520, 0
      %v3570 = vsel %vm666, %v3521, 0
      %v3573 = vsel %vm666, %v3522, 0
      %v3576 = vsel %vm715, %v3526, 0
      %3578 = vmatpush.bf16.msra.mxu0 0
      %3579 = vmatpush.bf16.msra.mxu0 0
      %3580 = vmatpush.bf16.msra.mxu0 0
      %3581 = vmatpush.bf16.msra.mxu0 0
      %3582 = vmatpush.bf16.msra.mxu0 0
      %3583 = vmatpush.bf16.msra.mxu0 0
      %3584 = vmatpush.bf16.msra.mxu0 0
      %3585 = vmatpush.bf16.msra.mxu0 %v3576
      %3586 = vmatmul.bf16.gmra.mxu0 %v3528
      %v3587 = vpop.f32.mrf.mxu0
      %v3588 = vadd.f32 0.0, %v3587
      %v3589 = vpop.f32.mrf.mxu0
      %v3590 = vadd.f32 0.0, %v3589
      %3591 = vmatmul.bf16.gmra.mxu0 %v3531
      %v3592 = vpop.f32.mrf.mxu0
      %v3593 = vadd.f32 0.0, %v3592
      %v3594 = vpop.f32.mrf.mxu0
      %v3595 = vadd.f32 0.0, %v3594
      %3596 = vmatmul.bf16.gmra.mxu0 %v3534
      %v3597 = vpop.f32.mrf.mxu0
      %v3598 = vadd.f32 0.0, %v3597
      %v3599 = vpop.f32.mrf.mxu0
      %v3600 = vadd.f32 0.0, %v3599
      %3601 = vmatmul.bf16.gmra.mxu0 %v3537
      %v3602 = vpop.f32.mrf.mxu0
      %v3603 = vadd.f32 0.0, %v3602
      %v3604 = vpop.f32.mrf.mxu0
      %v3605 = vadd.f32 0.0, %v3604
      %3606 = vmatmul.bf16.gmra.mxu0 %v3540
      %v3607 = vpop.f32.mrf.mxu0
      %v3608 = vadd.f32 0.0, %v3607
      %v3609 = vpop.f32.mrf.mxu0
      %v3610 = vadd.f32 0.0, %v3609
      %3611 = vmatmul.bf16.gmra.mxu0 %v3543
      %v3612 = vpop.f32.mrf.mxu0
      %v3613 = vadd.f32 0.0, %v3612
      %v3614 = vpop.f32.mrf.mxu0
      %v3615 = vadd.f32 0.0, %v3614
      %3616 = vmatmul.bf16.gmra.mxu0 %v3546
      %v3617 = vpop.f32.mrf.mxu0
      %v3618 = vadd.f32 0.0, %v3617
      %v3619 = vpop.f32.mrf.mxu0
      %v3620 = vadd.f32 0.0, %v3619
      %3621 = vmatmul.bf16.gmra.mxu0 %v3549
      %v3622 = vpop.f32.mrf.mxu0
      %v3623 = vadd.f32 0.0, %v3622
      %v3624 = vpop.f32.mrf.mxu0
      %v3625 = vadd.f32 0.0, %v3624
      %3626 = vmatmul.bf16.gmra.mxu0 %v3552
      %v3627 = vpop.f32.mrf.mxu0
      %v3628 = vadd.f32 0.0, %v3627
      %v3629 = vpop.f32.mrf.mxu0
      %v3630 = vadd.f32 0.0, %v3629
      %3631 = vmatmul.bf16.gmra.mxu0 %v3555
      %v3632 = vpop.f32.mrf.mxu0
      %v3633 = vadd.f32 0.0, %v3632
      %v3634 = vpop.f32.mrf.mxu0
      %v3635 = vadd.f32 0.0, %v3634
      %3636 = vmatmul.bf16.gmra.mxu0 %v3558
      %v3637 = vpop.f32.mrf.mxu0
      %v3638 = vadd.f32 0.0, %v3637
      %v3639 = vpop.f32.mrf.mxu0
      %v3640 = vadd.f32 0.0, %v3639
      %3641 = vmatmul.bf16.gmra.mxu0 %v3561
      %v3642 = vpop.f32.mrf.mxu0
      %v3643 = vadd.f32 0.0, %v3642
      %v3644 = vpop.f32.mrf.mxu0
      %v3645 = vadd.f32 0.0, %v3644
      %3646 = vmatmul.bf16.gmra.mxu0 %v3564
      %v3647 = vpop.f32.mrf.mxu0
      %v3648 = vadd.f32 0.0, %v3647
      %v3649 = vpop.f32.mrf.mxu0
      %v3650 = vadd.f32 0.0, %v3649
      %3651 = vmatmul.bf16.gmra.mxu0 %v3567
      %v3652 = vpop.f32.mrf.mxu0
      %v3653 = vadd.f32 0.0, %v3652
      %v3654 = vpop.f32.mrf.mxu0
      %v3655 = vadd.f32 0.0, %v3654
      %3656 = vmatmul.bf16.gmra.mxu0 %v3570
      %v3657 = vpop.f32.mrf.mxu0
      %v3658 = vadd.f32 0.0, %v3657
      %v3659 = vpop.f32.mrf.mxu0
      %v3660 = vadd.f32 0.0, %v3659
      %3661 = vmatmul.bf16.gmra.mxu0 %v3573
      %v3662 = vpop.f32.mrf.mxu0
      %v3663 = vadd.f32 0.0, %v3662
      %v3664 = vpop.f32.mrf.mxu0
      %v3665 = vadd.f32 0.0, %v3664
      %3666 = vdwg.mxu0
      %v3667 = vadd.f32 %v3010, %v3588
      %v3668 = vadd.f32 %v3011, %v3590
      %v3669 = vadd.f32 %v3012, %v3593
      %v3670 = vadd.f32 %v3013, %v3595
      %v3671 = vadd.f32 %v3014, %v3598
      %v3672 = vadd.f32 %v3015, %v3600
      %v3673 = vadd.f32 %v3016, %v3603
      %v3674 = vadd.f32 %v3017, %v3605
      %v3675 = vadd.f32 %v3018, %v3608
      %v3676 = vadd.f32 %v3019, %v3610
      %v3677 = vadd.f32 %v3020, %v3613
      %v3678 = vadd.f32 %v3021, %v3615
      %v3679 = vadd.f32 %v3022, %v3618
      %v3680 = vadd.f32 %v3023, %v3620
      %v3681 = vadd.f32 %v3024, %v3623
      %v3682 = vadd.f32 %v3025, %v3625
      %v3683 = vadd.f32 %v3026, %v3628
      %v3684 = vadd.f32 %v3027, %v3630
      %v3685 = vadd.f32 %v3028, %v3633
      %v3686 = vadd.f32 %v3029, %v3635
      %v3687 = vadd.f32 %v3030, %v3638
      %v3688 = vadd.f32 %v3031, %v3640
      %v3689 = vadd.f32 %v3032, %v3643
      %v3690 = vadd.f32 %v3033, %v3645
      %v3691 = vadd.f32 %v3034, %v3648
      %v3692 = vadd.f32 %v3035, %v3650
      %v3693 = vadd.f32 %v3036, %v3653
      %v3694 = vadd.f32 %v3037, %v3655
      %v3695 = vadd.f32 %v3038, %v3658
      %v3696 = vadd.f32 %v3039, %v3660
      %v3697 = vadd.f32 %v3040, %v3663
      %v3698 = vadd.f32 %v3041, %v3665
      %v3699 = vld [vmem:[%s2756] sm:$0xe]
      %v3700 = vld [vmem:[%s2756 + $0xc] sm:$0xe]
      %v3701 = vld [vmem:[%s2756 + $0x18] sm:$0xe]
      %v3702 = vld [vmem:[%s2756 + $0x24] sm:$0xe]
      %v3703 = vld [vmem:[%s2756 + $0x30] sm:$0xe]
      %v3704 = vld [vmem:[%s2756 + $0x3c] sm:$0xe]
      %v3705 = vld [vmem:[%s2756 + $0x48] sm:$0xe]
      %v3706 = vld [vmem:[%s2756 + $0x54] sm:$0xe]
      %v3707 = vld [vmem:[%s2756 + $0x60] sm:$0xe]
      %v3708 = vld [vmem:[%s2756 + $0x6c] sm:$0xe]
      %v3709 = vld [vmem:[%s2756 + $0x78] sm:$0xe]
      %v3710 = vld [vmem:[%s2756 + $0x84] sm:$0xe]
      %v3711 = vld [vmem:[%s2756 + $0x90] sm:$0xe]
      %v3712 = vld [vmem:[%s2756 + $0x9c] sm:$0xe]
      %v3713 = vld [vmem:[%s2756 + $0xa8] sm:$0xe]
      %v3714 = vld [vmem:[%s2756 + $0xb4] sm:$0xe]
      %v3763 = vrot.slane %v3699, 5
      %v3764 = vrot.slane %v3763, 4
      %v3765 = vrot.slane %v3043, 5
      %v3766 = vsel %vm1078, %v3764, %v3765
      %v3767 = vrot.slane %v3765, 4
      %v3768 = vrot.slane %v3044, 5
      %v3769 = vsel %vm1078, %v3767, %v3768
      %v3770 = vrot.slane %v3700, 5
      %v3771 = vrot.slane %v3770, 4
      %v3772 = vrot.slane %v3046, 5
      %v3773 = vsel %vm1078, %v3771, %v3772
      %v3774 = vrot.slane %v3772, 4
      %v3775 = vrot.slane %v3047, 5
      %v3776 = vsel %vm1078, %v3774, %v3775
      %v3777 = vrot.slane %v3701, 5
      %v3778 = vrot.slane %v3777, 4
      %v3779 = vrot.slane %v3049, 5
      %v3780 = vsel %vm1078, %v3778, %v3779
      %v3781 = vrot.slane %v3779, 4
      %v3782 = vrot.slane %v3050, 5
      %v3783 = vsel %vm1078, %v3781, %v3782
      %v3784 = vrot.slane %v3702, 5
      %v3785 = vrot.slane %v3784, 4
      %v3786 = vrot.slane %v3052, 5
      %v3787 = vsel %vm1078, %v3785, %v3786
      %v3788 = vrot.slane %v3786, 4
      %v3789 = vrot.slane %v3053, 5
      %v3790 = vsel %vm1078, %v3788, %v3789
      %v3791 = vrot.slane %v3703, 5
      %v3792 = vrot.slane %v3791, 4
      %v3793 = vrot.slane %v3055, 5
      %v3794 = vsel %vm1078, %v3792, %v3793
      %v3795 = vrot.slane %v3793, 4
      %v3796 = vrot.slane %v3056, 5
      %v3797 = vsel %vm1078, %v3795, %v3796
      %v3798 = vrot.slane %v3704, 5
      %v3799 = vrot.slane %v3798, 4
      %v3800 = vrot.slane %v3058, 5
      %v3801 = vsel %vm1078, %v3799, %v3800
      %v3802 = vrot.slane %v3800, 4
      %v3803 = vrot.slane %v3059, 5
      %v3804 = vsel %vm1078, %v3802, %v3803
      %v3805 = vrot.slane %v3705, 5
      %v3806 = vrot.slane %v3805, 4
      %v3807 = vrot.slane %v3061, 5
      %v3808 = vsel %vm1078, %v3806, %v3807
      %v3809 = vrot.slane %v3807, 4
      %v3810 = vrot.slane %v3062, 5
      %v3811 = vsel %vm1078, %v3809, %v3810
      %v3812 = vrot.slane %v3706, 5
      %v3813 = vrot.slane %v3812, 4
      %v3814 = vrot.slane %v3064, 5
      %v3815 = vsel %vm1078, %v3813, %v3814
      %v3816 = vrot.slane %v3814, 4
      %v3817 = vrot.slane %v3065, 5
      %v3818 = vsel %vm1078, %v3816, %v3817
      %v3819 = vrot.slane %v3707, 5
      %v3820 = vrot.slane %v3819, 4
      %v3821 = vrot.slane %v3067, 5
      %v3822 = vsel %vm1078, %v3820, %v3821
      %v3823 = vrot.slane %v3821, 4
      %v3824 = vrot.slane %v3068, 5
      %v3825 = vsel %vm1078, %v3823, %v3824
      %v3826 = vrot.slane %v3708, 5
      %v3827 = vrot.slane %v3826, 4
      %v3828 = vrot.slane %v3070, 5
      %v3829 = vsel %vm1078, %v3827, %v3828
      %v3830 = vrot.slane %v3828, 4
      %v3831 = vrot.slane %v3071, 5
      %v3832 = vsel %vm1078, %v3830, %v3831
      %v3833 = vrot.slane %v3709, 5
      %v3834 = vrot.slane %v3833, 4
      %v3835 = vrot.slane %v3073, 5
      %v3836 = vsel %vm1078, %v3834, %v3835
      %v3837 = vrot.slane %v3835, 4
      %v3838 = vrot.slane %v3074, 5
      %v3839 = vsel %vm1078, %v3837, %v3838
      %v3840 = vrot.slane %v3710, 5
      %v3841 = vrot.slane %v3840, 4
      %v3842 = vrot.slane %v3076, 5
      %v3843 = vsel %vm1078, %v3841, %v3842
      %v3844 = vrot.slane %v3842, 4
      %v3845 = vrot.slane %v3077, 5
      %v3846 = vsel %vm1078, %v3844, %v3845
      %v3847 = vrot.slane %v3711, 5
      %v3848 = vrot.slane %v3847, 4
      %v3849 = vrot.slane %v3079, 5
      %v3850 = vsel %vm1078, %v3848, %v3849
      %v3851 = vrot.slane %v3849, 4
      %v3852 = vrot.slane %v3080, 5
      %v3853 = vsel %vm1078, %v3851, %v3852
      %v3854 = vrot.slane %v3712, 5
      %v3855 = vrot.slane %v3854, 4
      %v3856 = vrot.slane %v3082, 5
      %v3857 = vsel %vm1078, %v3855, %v3856
      %v3858 = vrot.slane %v3856, 4
      %v3859 = vrot.slane %v3083, 5
      %v3860 = vsel %vm1078, %v3858, %v3859
      %v3861 = vrot.slane %v3713, 5
      %v3862 = vrot.slane %v3861, 4
      %v3863 = vrot.slane %v3085, 5
      %v3864 = vsel %vm1078, %v3862, %v3863
      %v3865 = vrot.slane %v3863, 4
      %v3866 = vrot.slane %v3086, 5
      %v3867 = vsel %vm1078, %v3865, %v3866
      %v3868 = vrot.slane %v3714, 5
      %v3869 = vrot.slane %v3868, 4
      %v3870 = vrot.slane %v3088, 5
      %v3871 = vsel %vm1078, %v3869, %v3870
      %v3872 = vrot.slane %v3870, 4
      %v3873 = vrot.slane %v3089, 5
      %v3874 = vsel %vm1078, %v3872, %v3873
      %v3875 = vld [vmem:[%s1 + $0x10] sm:$0x3]
      %v3876 = vunpack.c.l.b16 %v3766
      %v3877 = vunpack.c.l.b16 %v3769
      %v3878 = vunpack.c.l.b16 %v3773
      %v3879 = vunpack.c.l.b16 %v3776
      %v3880 = vunpack.c.l.b16 %v3780
      %v3881 = vunpack.c.l.b16 %v3783
      %v3882 = vunpack.c.l.b16 %v3787
      %v3883 = vunpack.c.l.b16 %v3790
      %v3884 = vunpack.c.l.b16 %v3794
      %v3885 = vunpack.c.l.b16 %v3797
      %v3886 = vunpack.c.l.b16 %v3801
      %v3887 = vunpack.c.l.b16 %v3804
      %v3888 = vunpack.c.l.b16 %v3808
      %v3889 = vunpack.c.l.b16 %v3811
      %v3890 = vunpack.c.l.b16 %v3815
      %v3891 = vunpack.c.l.b16 %v3818
      %v3892 = vunpack.c.l.b16 %v3822
      %v3893 = vunpack.c.l.b16 %v3825
      %v3894 = vunpack.c.l.b16 %v3829
      %v3895 = vunpack.c.l.b16 %v3832
      %v3896 = vunpack.c.l.b16 %v3836
      %v3897 = vunpack.c.l.b16 %v3839
      %v3898 = vunpack.c.l.b16 %v3843
      %v3899 = vunpack.c.l.b16 %v3846
      %v3900 = vunpack.c.l.b16 %v3850
      %v3901 = vunpack.c.l.b16 %v3853
      %v3902 = vunpack.c.l.b16 %v3857
      %v3903 = vunpack.c.l.b16 %v3860
      %v3904 = vunpack.c.l.b16 %v3864
      %v3905 = vunpack.c.l.b16 %v3867
      %v3906 = vunpack.c.l.b16 %v3871
      %v3907 = vunpack.c.l.b16 %v3874
      %v3908 = vpack.c.b16 %v3877, %v3876
      %v3909 = vpack.c.b16 %v3879, %v3878
      %v3910 = vpack.c.b16 %v3881, %v3880
      %v3911 = vpack.c.b16 %v3883, %v3882
      %v3912 = vpack.c.b16 %v3885, %v3884
      %v3913 = vpack.c.b16 %v3887, %v3886
      %v3914 = vpack.c.b16 %v3889, %v3888
      %v3915 = vpack.c.b16 %v3891, %v3890
      %v3916 = vpack.c.b16 %v3893, %v3892
      %v3917 = vpack.c.b16 %v3895, %v3894
      %v3918 = vpack.c.b16 %v3897, %v3896
      %v3919 = vpack.c.b16 %v3899, %v3898
      %v3920 = vpack.c.b16 %v3901, %v3900
      %v3921 = vpack.c.b16 %v3903, %v3902
      %v3922 = vpack.c.b16 %v3905, %v3904
      %v3923 = vpack.c.b16 %v3907, %v3906
      %v3925 = vsel %vm666, %v3908, 0
      %v3928 = vsel %vm666, %v3909, 0
      %v3931 = vsel %vm666, %v3910, 0
      %v3934 = vsel %vm666, %v3911, 0
      %v3937 = vsel %vm666, %v3912, 0
      %v3940 = vsel %vm666, %v3913, 0
      %v3943 = vsel %vm666, %v3914, 0
      %v3946 = vsel %vm666, %v3915, 0
      %v3949 = vsel %vm666, %v3916, 0
      %v3952 = vsel %vm666, %v3917, 0
      %v3955 = vsel %vm666, %v3918, 0
      %v3958 = vsel %vm666, %v3919, 0
      %v3961 = vsel %vm666, %v3920, 0
      %v3964 = vsel %vm666, %v3921, 0
      %v3967 = vsel %vm666, %v3922, 0
      %v3970 = vsel %vm666, %v3923, 0
      %v3973 = vsel %vm715, %v3875, 0
      %3975 = vmatpush.bf16.msra.mxu0 0
      %3976 = vmatpush.bf16.msra.mxu0 0
      %3977 = vmatpush.bf16.msra.mxu0 0
      %3978 = vmatpush.bf16.msra.mxu0 0
      %3979 = vmatpush.bf16.msra.mxu0 0
      %3980 = vmatpush.bf16.msra.mxu0 0
      %3981 = vmatpush.bf16.msra.mxu0 0
      %3982 = vmatpush.bf16.msra.mxu0 %v3973
      %3983 = vmatmul.bf16.gmra.mxu0 %v3925
      %v3984 = vpop.f32.mrf.mxu0
      %v3985 = vadd.f32 0.0, %v3984
      %v3986 = vpop.f32.mrf.mxu0
      %v3987 = vadd.f32 0.0, %v3986
      %3988 = vmatmul.bf16.gmra.mxu0 %v3928
      %v3989 = vpop.f32.mrf.mxu0
      %v3990 = vadd.f32 0.0, %v3989
      %v3991 = vpop.f32.mrf.mxu0
      %v3992 = vadd.f32 0.0, %v3991
      %3993 = vmatmul.bf16.gmra.mxu0 %v3931
      %v3994 = vpop.f32.mrf.mxu0
      %v3995 = vadd.f32 0.0, %v3994
      %v3996 = vpop.f32.mrf.mxu0
      %v3997 = vadd.f32 0.0, %v3996
      %3998 = vmatmul.bf16.gmra.mxu0 %v3934
      %v3999 = vpop.f32.mrf.mxu0
      %v4000 = vadd.f32 0.0, %v3999
      %v4001 = vpop.f32.mrf.mxu0
      %v4002 = vadd.f32 0.0, %v4001
      %4003 = vmatmul.bf16.gmra.mxu0 %v3937
      %v4004 = vpop.f32.mrf.mxu0
      %v4005 = vadd.f32 0.0, %v4004
      %v4006 = vpop.f32.mrf.mxu0
      %v4007 = vadd.f32 0.0, %v4006
      %4008 = vmatmul.bf16.gmra.mxu0 %v3940
      %v4009 = vpop.f32.mrf.mxu0
      %v4010 = vadd.f32 0.0, %v4009
      %v4011 = vpop.f32.mrf.mxu0
      %v4012 = vadd.f32 0.0, %v4011
      %4013 = vmatmul.bf16.gmra.mxu0 %v3943
      %v4014 = vpop.f32.mrf.mxu0
      %v4015 = vadd.f32 0.0, %v4014
      %v4016 = vpop.f32.mrf.mxu0
      %v4017 = vadd.f32 0.0, %v4016
      %4018 = vmatmul.bf16.gmra.mxu0 %v3946
      %v4019 = vpop.f32.mrf.mxu0
      %v4020 = vadd.f32 0.0, %v4019
      %v4021 = vpop.f32.mrf.mxu0
      %v4022 = vadd.f32 0.0, %v4021
      %4023 = vmatmul.bf16.gmra.mxu0 %v3949
      %v4024 = vpop.f32.mrf.mxu0
      %v4025 = vadd.f32 0.0, %v4024
      %v4026 = vpop.f32.mrf.mxu0
      %v4027 = vadd.f32 0.0, %v4026
      %4028 = vmatmul.bf16.gmra.mxu0 %v3952
      %v4029 = vpop.f32.mrf.mxu0
      %v4030 = vadd.f32 0.0, %v4029
      %v4031 = vpop.f32.mrf.mxu0
      %v4032 = vadd.f32 0.0, %v4031
      %4033 = vmatmul.bf16.gmra.mxu0 %v3955
      %v4034 = vpop.f32.mrf.mxu0
      %v4035 = vadd.f32 0.0, %v4034
      %v4036 = vpop.f32.mrf.mxu0
      %v4037 = vadd.f32 0.0, %v4036
      %4038 = vmatmul.bf16.gmra.mxu0 %v3958
      %v4039 = vpop.f32.mrf.mxu0
      %v4040 = vadd.f32 0.0, %v4039
      %v4041 = vpop.f32.mrf.mxu0
      %v4042 = vadd.f32 0.0, %v4041
      %4043 = vmatmul.bf16.gmra.mxu0 %v3961
      %v4044 = vpop.f32.mrf.mxu0
      %v4045 = vadd.f32 0.0, %v4044
      %v4046 = vpop.f32.mrf.mxu0
      %v4047 = vadd.f32 0.0, %v4046
      %4048 = vmatmul.bf16.gmra.mxu0 %v3964
      %v4049 = vpop.f32.mrf.mxu0
      %v4050 = vadd.f32 0.0, %v4049
      %v4051 = vpop.f32.mrf.mxu0
      %v4052 = vadd.f32 0.0, %v4051
      %4053 = vmatmul.bf16.gmra.mxu0 %v3967
      %v4054 = vpop.f32.mrf.mxu0
      %v4055 = vadd.f32 0.0, %v4054
      %v4056 = vpop.f32.mrf.mxu0
      %v4057 = vadd.f32 0.0, %v4056
      %4058 = vmatmul.bf16.gmra.mxu0 %v3970
      %v4059 = vpop.f32.mrf.mxu0
      %v4060 = vadd.f32 0.0, %v4059
      %v4061 = vpop.f32.mrf.mxu0
      %v4062 = vadd.f32 0.0, %v4061
      %4063 = vdwg.mxu0
      %v4064 = vadd.f32 %v3667, %v3985
      %v4065 = vadd.f32 %v3668, %v3987
      %v4066 = vadd.f32 %v3669, %v3990
      %v4067 = vadd.f32 %v3670, %v3992
      %v4068 = vadd.f32 %v3671, %v3995
      %v4069 = vadd.f32 %v3672, %v3997
      %v4070 = vadd.f32 %v3673, %v4000
      %v4071 = vadd.f32 %v3674, %v4002
      %v4072 = vadd.f32 %v3675, %v4005
      %v4073 = vadd.f32 %v3676, %v4007
      %v4074 = vadd.f32 %v3677, %v4010
      %v4075 = vadd.f32 %v3678, %v4012
      %v4076 = vadd.f32 %v3679, %v4015
      %v4077 = vadd.f32 %v3680, %v4017
      %v4078 = vadd.f32 %v3681, %v4020
      %v4079 = vadd.f32 %v3682, %v4022
      %v4080 = vadd.f32 %v3683, %v4025
      %v4081 = vadd.f32 %v3684, %v4027
      %v4082 = vadd.f32 %v3685, %v4030
      %v4083 = vadd.f32 %v3686, %v4032
      %v4084 = vadd.f32 %v3687, %v4035
      %v4085 = vadd.f32 %v3688, %v4037
      %v4086 = vadd.f32 %v3689, %v4040
      %v4087 = vadd.f32 %v3690, %v4042
      %v4088 = vadd.f32 %v3691, %v4045
      %v4089 = vadd.f32 %v3692, %v4047
      %v4090 = vadd.f32 %v3693, %v4050
      %v4091 = vadd.f32 %v3694, %v4052
      %v4092 = vadd.f32 %v3695, %v4055
      %v4093 = vadd.f32 %v3696, %v4057
      %v4094 = vadd.f32 %v3697, %v4060
      %v4095 = vadd.f32 %v3698, %v4062
      %v4096 = vadd.f32 %v4064, %v4065
      %v4097 = vadd.f32 %v4096, %v4066
      %v4098 = vadd.f32 %v4097, %v4067
      %v4099 = vadd.f32 %v4098, %v4068
      %v4100 = vadd.f32 %v4099, %v4069
      %v4101 = vadd.f32 %v4100, %v4070
      %v4102 = vadd.f32 %v4101, %v4071
      %v4103 = vadd.f32 %v4102, %v4072
      %v4104 = vadd.f32 %v4103, %v4073
      %v4105 = vadd.f32 %v4104, %v4074
      %v4106 = vadd.f32 %v4105, %v4075
      %v4107 = vadd.f32 %v4106, %v4076
      %v4108 = vadd.f32 %v4107, %v4077
      %v4109 = vadd.f32 %v4108, %v4078
      %v4110 = vadd.f32 %v4109, %v4079
      %v4111 = vadd.f32 %v4110, %v4080
      %v4112 = vadd.f32 %v4111, %v4081
      %v4113 = vadd.f32 %v4112, %v4082
      %v4114 = vadd.f32 %v4113, %v4083
      %v4115 = vadd.f32 %v4114, %v4084
      %v4116 = vadd.f32 %v4115, %v4085
      %v4117 = vadd.f32 %v4116, %v4086
      %v4118 = vadd.f32 %v4117, %v4087
      %v4119 = vadd.f32 %v4118, %v4088
      %v4120 = vadd.f32 %v4119, %v4089
      %v4121 = vadd.f32 %v4120, %v4090
      %v4122 = vadd.f32 %v4121, %v4091
      %v4123 = vadd.f32 %v4122, %v4092
      %v4124 = vadd.f32 %v4123, %v4093
      %v4125 = vadd.f32 %v4124, %v4094
      %v4126 = vadd.f32 %v4125, %v4095
      %v4127 = vrot.slane %v4126, 4
      %v4128 = vadd.f32 %v4126, %v4127
      %v4129 = vrot.slane %v4128, 2
      %v4130 = vadd.f32 %v4128, %v4129
      %v4131 = vrot.slane %v4130, 1
      %v4132 = vadd.f32 %v4130, %v4131
      %4133 = vst [vmem:[%s172] sm:$0x1] %v4132
      %v4134 = vmul.f32 %v4064, %v4064
      %v4135 = vmul.f32 %v4065, %v4065
      %v4136 = vmul.f32 %v4066, %v4066
      %v4137 = vmul.f32 %v4067, %v4067
      %v4138 = vmul.f32 %v4068, %v4068
      %v4139 = vmul.f32 %v4069, %v4069
      %v4140 = vmul.f32 %v4070, %v4070
      %v4141 = vmul.f32 %v4071, %v4071
      %v4142 = vmul.f32 %v4072, %v4072
      %v4143 = vmul.f32 %v4073, %v4073
      %v4144 = vmul.f32 %v4074, %v4074
      %v4145 = vmul.f32 %v4075, %v4075
      %v4146 = vmul.f32 %v4076, %v4076
      %v4147 = vmul.f32 %v4077, %v4077
      %v4148 = vmul.f32 %v4078, %v4078
      %v4149 = vmul.f32 %v4079, %v4079
      %v4150 = vmul.f32 %v4080, %v4080
      %v4151 = vmul.f32 %v4081, %v4081
      %v4152 = vmul.f32 %v4082, %v4082
      %v4153 = vmul.f32 %v4083, %v4083
      %v4154 = vmul.f32 %v4084, %v4084
      %v4155 = vmul.f32 %v4085, %v4085
      %v4156 = vmul.f32 %v4086, %v4086
      %v4157 = vmul.f32 %v4087, %v4087
      %v4158 = vmul.f32 %v4088, %v4088
      %v4159 = vmul.f32 %v4089, %v4089
      %v4160 = vmul.f32 %v4090, %v4090
      %v4161 = vmul.f32 %v4091, %v4091
      %v4162 = vmul.f32 %v4092, %v4092
      %v4163 = vmul.f32 %v4093, %v4093
      %v4164 = vmul.f32 %v4094, %v4094
      %v4165 = vmul.f32 %v4095, %v4095
      %v4166 = vadd.f32 %v4134, %v4135
      %v4167 = vadd.f32 %v4166, %v4136
      %v4168 = vadd.f32 %v4167, %v4137
      %v4169 = vadd.f32 %v4168, %v4138
      %v4170 = vadd.f32 %v4169, %v4139
      %v4171 = vadd.f32 %v4170, %v4140
      %v4172 = vadd.f32 %v4171, %v4141
      %v4173 = vadd.f32 %v4172, %v4142
      %v4174 = vadd.f32 %v4173, %v4143
      %v4175 = vadd.f32 %v4174, %v4144
      %v4176 = vadd.f32 %v4175, %v4145
      %v4177 = vadd.f32 %v4176, %v4146
      %v4178 = vadd.f32 %v4177, %v4147
      %v4179 = vadd.f32 %v4178, %v4148
      %v4180 = vadd.f32 %v4179, %v4149
      %v4181 = vadd.f32 %v4180, %v4150
      %v4182 = vadd.f32 %v4181, %v4151
      %v4183 = vadd.f32 %v4182, %v4152
      %v4184 = vadd.f32 %v4183, %v4153
      %v4185 = vadd.f32 %v4184, %v4154
      %v4186 = vadd.f32 %v4185, %v4155
      %v4187 = vadd.f32 %v4186, %v4156
      %v4188 = vadd.f32 %v4187, %v4157
      %v4189 = vadd.f32 %v4188, %v4158
      %v4190 = vadd.f32 %v4189, %v4159
      %v4191 = vadd.f32 %v4190, %v4160
      %v4192 = vadd.f32 %v4191, %v4161
      %v4193 = vadd.f32 %v4192, %v4162
      %v4194 = vadd.f32 %v4193, %v4163
      %v4195 = vadd.f32 %v4194, %v4164
      %v4196 = vadd.f32 %v4195, %v4165
      %v4197 = vrot.slane %v4196, 4
      %v4198 = vadd.f32 %v4196, %v4197
      %v4199 = vrot.slane %v4198, 2
      %v4200 = vadd.f32 %v4198, %v4199
      %v4201 = vrot.slane %v4200, 1
      %v4202 = vadd.f32 %v4200, %v4201
      %4203 = vst [vmem:[%s175] sm:$0x1] %v4202
      %p4204 = scmp.lt.s32.totalorder %s15, 1
      %s4205 = scalar_select %p4204, %s15, 1
      %s4206 = scalar_lea.vmem %s2, %s4205
      %p4207 = scmp.lt.s32.totalorder %s15, 1
      %s4208 = scalar_select %p4207, %s15, 1
      %s4209 = scalar_lea.vmem %s3, %s4208
      // Predicated region
      $region29: #{conv_bn_block.2} parent=27 // pred_check
        %p4210 = pneg %p80
      $region30: #{conv_bn_block.2} parent=27 // pred_check_branch
        %4212 = sbr.rel (%p4210) target = $region32
      $region31: #{conv_bn_block.2} parent=27 // pred_region
        _
      $region32: #{conv_bn_block.2} parent=27 // pred_fallthru
        _
      // Predicated region
      $region33: #{conv_bn_block.2} parent=27 // pred_check
        %p4213 = pneg %p106
      $region34: #{conv_bn_block.2} parent=27 // pred_check_branch
        %4215 = sbr.rel (%p4213) target = $region36
      $region35: #{conv_bn_block.2} parent=27 // pred_region
        _
      $region36: #{conv_bn_block.2} parent=27 // pred_fallthru
        _
    $region28: #{conv_bn_block.2} parent=5 // pred_fallthru
      _
    %p4216 = scmp.le.s32.totalorder 2, %s10
    // Predicated region
    $region37: #{conv_bn_block.2} parent=5 // pred_check
      %p4217 = pneg %p4216
    $region38: #{conv_bn_block.2} parent=5 // pred_check_branch
      %4219 = sbr.rel (%p4217) target = $region40
    $region39: #{conv_bn_block.2} parent=5 // pred_region
      %s4220 = ssub.s32 %s10, 2
      // Predicated region
      $region41: #{conv_bn_block.2} parent=39 // pred_check
        %p4221 = pneg %p86
      $region42: #{conv_bn_block.2} parent=39 // pred_check_branch
        %4223 = sbr.rel (%p4221) target = $region44
      $region43: #{conv_bn_block.2} parent=39 // pred_region
        %p4224 = scmp.lt.s32.totalorder %s16, 1
        %s4225 = scalar_select %p4224, %s16, 1
        %s4226 = scalar_lea.vmem %s2, %s4225
      $region44: #{conv_bn_block.2} parent=39 // pred_fallthru
        _
      // Predicated region
      $region45: #{conv_bn_block.2} parent=39 // pred_check
        %p4227 = pneg %p112
      $region46: #{conv_bn_block.2} parent=39 // pred_check_branch
        %4229 = sbr.rel (%p4227) target = $region48
      $region47: #{conv_bn_block.2} parent=39 // pred_region
        %p4230 = scmp.lt.s32.totalorder %s16, 1
        %s4231 = scalar_select %p4230, %s16, 1
        %s4232 = scalar_lea.vmem %s3, %s4231
      $region48: #{conv_bn_block.2} parent=39 // pred_fallthru
        _
    $region40: #{conv_bn_block.2} parent=5 // pred_fallthru
      _
  $region6: #{conv_bn_block.2} parent=0 // loop_footer
    %s14 = sadd.s32 1, %s10
  $region7: #{conv_bn_block.2} parent=0 // loop_footer_branch
    %9 = sbr.rel target = $region3
  $region8: #{conv_bn_block.2} parent=0 // loop_exit
    _

// kernel: conv_bn_block.3
$region0: #{conv_bn_block.3}
  #allocation0 [shape = 'u32[]', space=smem, size = 0x4, offset = 0x4, fixed_abs, tag = 'smem constant byte address 0x4 - core index']
  #allocation1 [shape = 'u32[72,128]{1,0:T(1,128)}', space=vmem, size = 0x9000, scoped, tag = 'internal scratch']
  %s0 = inlined_call_operand.vmem [shape: bf16[2,18,18,4], index: 0, kind: input, shape index: {}]
  %s1 = inlined_call_operand.vmem [shape: bf16[36,128], index: 1, kind: input, shape index: {}]
  %s2 = inlined_call_operand.vmem [shape: f32[1,128], index: 2, kind: input, shape index: {}]
  %s3 = inlined_call_operand.vmem [shape: f32[1,128], index: 3, kind: input, shape index: {}]
  %s4 = inlined_call_operand.vmem [shape: bf16[2,256,8], index: 4, kind: output, shape index: {}]
  %s5 = sld [smem:[#allocation0]]
  $region49: #{conv_bn_block.3} parent=0
    _
  %s7 = ssub.s32 1, %s5
  %s8 = scalar_select 0, %s7, %s5
  loop: start=0, step=1, limit=4
  $region2: #{conv_bn_block.3} parent=0 // loop_pre_header
    _
  $region3: #{conv_bn_block.3} parent=0 // loop_header
    %s10 = sphi 0, %s14
    %p11 = scmp.ge.s32.totalorder %s10, 4
    %s20 = sphi 0, %s22
    %s23 = sphi 0, %s20
    %s24 = sphi 0, %s23
    %s40 = sphi 0, %s24
    %s44 = sphi 0, %s44
    %s46 = sphi 0, %s44
    %s47 = sphi 0, %s46
    %s61 = sphi 0, %s47
    %s65 = sphi 0, %s65
    %s67 = sphi 0, %s65
    %s68 = sphi 0, %s67
    %s82 = sphi 0, %s68
    %s86 = sphi 0, %s86
    %s88 = sphi 0, %s86
    %s89 = sphi 0, %s88
    %s103 = sphi 0, %s89
    %s109 = sphi 0, %s111
    %s112 = sphi 0, %s109
    %s113 = sphi 0, %s112
    %s129 = sphi 0, %s113
  $region4: #{conv_bn_block.3} parent=0 // loop_header_branch
    %13 = sbr.rel (%p11) target = $region8
  $region5: #{conv_bn_block.3} parent=0 // loop_body
    %s15 = ssub.s32 %s10, 1
    %s16 = ssub.s32 %s10, 2
    %s17 = sadd.s32 %s10, 1
    %s18 = ssub.s32 %s10, %s17
    %p19 = scmp.eq.s32.totalorder %s18, 0
    %s21 = sadd.s32 %s20, 1
    %s22 = scalar_select %p19, %s20, %s21
    %p25 = pneg %p19
    %p26 = scmp.eq.s32.totalorder %s10, 1
    %p27 = por %p25, %p26
    %p28 = scmp.ne.s32.totalorder %s20, %s23
    %p29 = scmp.eq.s32.totalorder %s10, 0
    %p30 = por %p28, %p29
    %p31 = scmp.ne.s32.totalorder %s20, %s23
    %p32 = scmp.eq.s32.totalorder %s15, 1
    %p33 = por %p31, %p32
    %p34 = scmp.ne.s32.totalorder %s23, %s24
    %p35 = scmp.eq.s32.totalorder %s15, 0
    %p36 = por %p34, %p35
    %p37 = scmp.ne.s32.totalorder %s23, %s24
    %p38 = scmp.eq.s32.totalorder %s16, 1
    %p39 = por %p37, %p38
    %p41 = scmp.ne.s32.totalorder %s24, %s40
    %p42 = scmp.eq.s32.totalorder %s16, 0
    %p43 = por %p41, %p42
    %s45 = sadd.s32 %s44, 1
    %p48 = scmp.eq.s32.totalorder %s10, 1
    %p49 = scmp.ne.s32.totalorder %s44, %s46
    %p50 = scmp.eq.s32.totalorder %s10, 0
    %p51 = por %p49, %p50
    %p52 = scmp.ne.s32.totalorder %s44, %s46
    %p53 = scmp.eq.s32.totalorder %s15, 1
    %p54 = por %p52, %p53
    %p55 = scmp.ne.s32.totalorder %s46, %s47
    %p56 = scmp.eq.s32.totalorder %s15, 0
    %p57 = por %p55, %p56
    %p58 = scmp.ne.s32.totalorder %s46, %s47
    %p59 = scmp.eq.s32.totalorder %s16, 1
    %p60 = por %p58, %p59
    %p62 = scmp.ne.s32.totalorder %s47, %s61
    %p63 = scmp.eq.s32.totalorder %s16, 0
    %p64 = por %p62, %p63
    %s66 = sadd.s32 %s65, 1
    %p69 = scmp.eq.s32.totalorder %s10, 1
    %p70 = scmp.ne.s32.totalorder %s65, %s67
    %p71 = scmp.eq.s32.totalorder %s10, 0
    %p72 = por %p70, %p71
    %p73 = scmp.ne.s32.totalorder %s65, %s67
    %p74 = scmp.eq.s32.totalorder %s15, 1
    %p75 = por %p73, %p74
    %p76 = scmp.ne.s32.totalorder %s67, %s68
    %p77 = scmp.eq.s32.totalorder %s15, 0
    %p78 = por %p76, %p77
    %p79 = scmp.ne.s32.totalorder %s67, %s68
    %p80 = scmp.eq.s32.totalorder %s16, 1
    %p81 = por %p79, %p80
    %p83 = scmp.ne.s32.totalorder %s68, %s82
    %p84 = scmp.eq.s32.totalorder %s16, 0
    %p85 = por %p83, %p84
    %s87 = sadd.s32 %s86, 1
    %p90 = scmp.eq.s32.totalorder %s10, 1
    %p91 = scmp.ne.s32.totalorder %s86, %s88
    %p92 = scmp.eq.s32.totalorder %s10, 0
    %p93 = por %p91, %p92
    %p94 = scmp.ne.s32.totalorder %s86, %s88
    %p95 = scmp.eq.s32.totalorder %s15, 1
    %p96 = por %p94, %p95
    %p97 = scmp.ne.s32.totalorder %s88, %s89
    %p98 = scmp.eq.s32.totalorder %s15, 0
    %p99 = por %p97, %p98
    %p100 = scmp.ne.s32.totalorder %s88, %s89
    %p101 = scmp.eq.s32.totalorder %s16, 1
    %p102 = por %p100, %p101
    %p104 = scmp.ne.s32.totalorder %s89, %s103
    %p105 = scmp.eq.s32.totalorder %s16, 0
    %p106 = por %p104, %p105
    %s107 = ssub.s32 %s10, %s17
    %p108 = scmp.eq.s32.totalorder %s107, 0
    %s110 = sadd.s32 %s109, 1
    %s111 = scalar_select %p108, %s109, %s110
    %p114 = pneg %p108
    %p115 = scmp.eq.s32.totalorder %s10, 1
    %p116 = por %p114, %p115
    %p117 = scmp.ne.s32.totalorder %s109, %s112
    %p118 = scmp.eq.s32.totalorder %s10, 0
    %p119 = por %p117, %p118
    %p120 = scmp.ne.s32.totalorder %s109, %s112
    %p121 = scmp.eq.s32.totalorder %s15, 1
    %p122 = por %p120, %p121
    %p123 = scmp.ne.s32.totalorder %s112, %s113
    %p124 = scmp.eq.s32.totalorder %s15, 0
    %p125 = por %p123, %p124
    %p126 = scmp.ne.s32.totalorder %s112, %s113
    %p127 = scmp.eq.s32.totalorder %s16, 1
    %p128 = por %p126, %p127
    %p130 = scmp.ne.s32.totalorder %s113, %s129
    %p131 = scmp.eq.s32.totalorder %s16, 0
    %p132 = por %p130, %p131
    %p133 = scmp.le.s32.totalorder 1, %s10
    %p134 = scmp.lt.s32.totalorder %s10, 3
    %p135 = pnand %p133, %p134
    %p136 = pneg %p135
    // Predicated region
    $region9: #{conv_bn_block.3} parent=5 // pred_check
      _
    $region10: #{conv_bn_block.3} parent=5 // pred_check_branch
      %138 = sbr.rel (%p135) target = $region12
    $region11: #{conv_bn_block.3} parent=5 // pred_region
      %s139 = ssub.s32 %s10, 1
      // Predicated region
      $region13: #{conv_bn_block.3} parent=11 // pred_check
        %p140 = pneg %p57
      $region14: #{conv_bn_block.3} parent=11 // pred_check_branch
        %142 = sbr.rel (%p140) target = $region16
      $region15: #{conv_bn_block.3} parent=11 // pred_region
        _
      $region16: #{conv_bn_block.3} parent=11 // pred_fallthru
        _
      // Predicated region
      $region17: #{conv_bn_block.3} parent=11 // pred_check
        %p143 = pneg %p78
      $region18: #{conv_bn_block.3} parent=11 // pred_check_branch
        %145 = sbr.rel (%p143) target = $region20
      $region19: #{conv_bn_block.3} parent=11 // pred_region
        _
      $region20: #{conv_bn_block.3} parent=11 // pred_fallthru
        _
      // Predicated region
      $region21: #{conv_bn_block.3} parent=11 // pred_check
        %p146 = pneg %p99
      $region22: #{conv_bn_block.3} parent=11 // pred_check_branch
        %148 = sbr.rel (%p146) target = $region24
      $region23: #{conv_bn_block.3} parent=11 // pred_region
        _
      $region24: #{conv_bn_block.3} parent=11 // pred_fallthru
        _
    $region12: #{conv_bn_block.3} parent=5 // pred_fallthru
      _
    %p149 = scmp.lt.s32.totalorder %s10, 2
    // Predicated region
    $region25: #{conv_bn_block.3} parent=5 // pred_check
      %p150 = pneg %p149
    $region26: #{conv_bn_block.3} parent=5 // pred_check_branch
      %152 = sbr.rel (%p150) target = $region28
    $region27: #{conv_bn_block.3} parent=5 // pred_region
      // Predicated region
      $region29: #{conv_bn_block.3} parent=27 // pred_check
        %p153 = pneg %p30
      $region30: #{conv_bn_block.3} parent=27 // pred_check_branch
        %155 = sbr.rel (%p153) target = $region32
      $region31: #{conv_bn_block.3} parent=27 // pred_region
        %p156 = scmp.lt.s32.totalorder %s10, 1
        %s157 = scalar_select %p156, %s10, 1
        %s158 = smul.addr %s157, 54
        %s159 = smul.addr %s158, 4
        %s160 = scalar_lea.vmem %s0, %s159
      $region32: #{conv_bn_block.3} parent=27 // pred_fallthru
        _
    $region28: #{conv_bn_block.3} parent=5 // pred_fallthru
      _
    %p161 = scmp.le.s32.totalorder 1, %s10
    %p162 = scmp.lt.s32.totalorder %s10, 3
    %p163 = pnand %p161, %p162
    %p164 = pneg %p163
    // Predicated region
    $region33: #{conv_bn_block.3} parent=5 // pred_check
      _
    $region34: #{conv_bn_block.3} parent=5 // pred_check_branch
      %166 = sbr.rel (%p163) target = $region36
    $region35: #{conv_bn_block.3} parent=5 // pred_region
      %s167 = ssub.s32 %s10, 1
      %p168 = scmp.lt.s32.totalorder %s15, 1
      %s169 = scalar_select %p168, %s15, 1
      %s170 = smul.addr %s169, 54
      %s171 = smul.addr %s170, 4
      %s172 = scalar_lea.vmem %s0, %s171
      %p173 = pneg %p36
      %p174 = pneg %p33
      %p175 = pneg %p57
      %p176 = pneg %p54
      %p177 = pneg %p78
      %p178 = pneg %p75
      %p179 = pneg %p99
      %p180 = pneg %p96
      %p181 = pneg %p125
      %p182 = pneg %p122
      %p183 = scmp.lt.s32.totalorder %s15, 1
      %s184 = scalar_select %p183, %s15, 1
      %s185 = smul.addr %s184, 32
      %s186 = smul.addr %s185, 4
      %s187 = scalar_lea.vmem %s4, %s186
      %p188 = scmp.lt.s32.totalorder %s15, 1
      %s189 = scalar_select %p188, %s15, 1
      %s190 = smul.addr %s189, 54
      %s191 = smul.addr %s190, 4
      %s192 = scalar_lea.vmem %s0, %s191
      %p193 = scmp.lt.s32.totalorder %s15, 1
      %s194 = scalar_select %p193, %s15, 1
      %s195 = smul.addr %s194, 32
      %s196 = smul.addr %s195, 4
      %s197 = scalar_lea.vmem %s4, %s196
      %v199 = vld [vmem:[%s192] sm:$0xf]
      %v200 = vld [vmem:[%s192 + $0x4] sm:$0xf]
      %v201 = vld [vmem:[%s192 + $0xc] sm:$0xf]
      %v202 = vld [vmem:[%s192 + $0x10] sm:$0xf]
      %v203 = vld [vmem:[%s192 + $0x18] sm:$0xf]
      %v204 = vld [vmem:[%s192 + $0x1c] sm:$0xf]
      %v205 = vld [vmem:[%s192 + $0x24] sm:$0xf]
      %v206 = vld [vmem:[%s192 + $0x28] sm:$0xf]
      %v207 = vld [vmem:[%s192 + $0x30] sm:$0xf]
      %v208 = vld [vmem:[%s192 + $0x34] sm:$0xf]
      %v209 = vld [vmem:[%s192 + $0x3c] sm:$0xf]
      %v210 = vld [vmem:[%s192 + $0x40] sm:$0xf]
      %v211 = vld [vmem:[%s192 + $0x48] sm:$0xf]
      %v212 = vld [vmem:[%s192 + $0x4c] sm:$0xf]
      %v213 = vld [vmem:[%s192 + $0x54] sm:$0xf]
      %v214 = vld [vmem:[%s192 + $0x58] sm:$0xf]
      %v215 = vld [vmem:[%s192 + $0x60] sm:$0xf]
      %v216 = vld [vmem:[%s192 + $0x64] sm:$0xf]
      %v217 = vld [vmem:[%s192 + $0x6c] sm:$0xf]
      %v218 = vld [vmem:[%s192 + $0x70] sm:$0xf]
      %v219 = vld [vmem:[%s192 + $0x78] sm:$0xf]
      %v220 = vld [vmem:[%s192 + $0x7c] sm:$0xf]
      %v221 = vld [vmem:[%s192 + $0x84] sm:$0xf]
      %v222 = vld [vmem:[%s192 + $0x88] sm:$0xf]
      %v223 = vld [vmem:[%s192 + $0x90] sm:$0xf]
      %v224 = vld [vmem:[%s192 + $0x94] sm:$0xf]
      %v225 = vld [vmem:[%s192 + $0x9c] sm:$0xf]
      %v226 = vld [vmem:[%s192 + $0xa0] sm:$0xf]
      %v227 = vld [vmem:[%s192 + $0xa8] sm:$0xf]
      %v228 = vld [vmem:[%s192 + $0xac] sm:$0xf]
      %v229 = vld [vmem:[%s192 + $0xb4] sm:$0xf]
      %v230 = vld [vmem:[%s192 + $0xb8] sm:$0xf]
      %v231 = vld [vmem:[%s1] sm:$0x3]
      %v232 = vld [vmem:[%s192 + $0x8] sm:$0x1]
      %v233 = vld [vmem:[%s192 + $0x14] sm:$0x1]
      %v234 = vld [vmem:[%s192 + $0x20] sm:$0x1]
      %v235 = vld [vmem:[%s192 + $0x2c] sm:$0x1]
      %v236 = vld [vmem:[%s192 + $0x38] sm:$0x1]
      %v237 = vld [vmem:[%s192 + $0x44] sm:$0x1]
      %v238 = vld [vmem:[%s192 + $0x50] sm:$0x1]
      %v239 = vld [vmem:[%s192 + $0x5c] sm:$0x1]
      %v240 = vld [vmem:[%s192 + $0x68] sm:$0x1]
      %v241 = vld [vmem:[%s192 + $0x74] sm:$0x1]
      %v242 = vld [vmem:[%s192 + $0x80] sm:$0x1]
      %v243 = vld [vmem:[%s192 + $0x8c] sm:$0x1]
      %v244 = vld [vmem:[%s192 + $0x98] sm:$0x1]
      %v245 = vld [vmem:[%s192 + $0xa4] sm:$0x1]
      %v246 = vld [vmem:[%s192 + $0xb0] sm:$0x1]
      %v247 = vld [vmem:[%s192 + $0xbc] sm:$0x1]
      %vm248 = vsmask.f32 3328
      %vm249 = vsmask.f32 7440
      %vm250 = vmor %vm248, %vm249
      %v252 = vshrl.u32 %v199, 16
      %v254 = vrot.slane %v252, 4
      %v255 = vshll.u32 %v199, 16
      %v257 = vrot.slane %v255, 5
      %v258 = vor.u32 %v254, %v257
      %v259 = vrot.slane %v258, 4
      %v261 = vshll.u32 %v200, 16
      %v263 = vrot.slane %v261, 5
      %v264 = vsel %vm250, %v259, %v263
      %v265 = vshrl.u32 %v200, 16
      %v267 = vrot.slane %v265, 4
      %v268 = vor.u32 %v267, %v263
      %v269 = vrot.slane %v268, 4
      %v271 = vshll.u32 %v232, 16
      %v273 = vrot.slane %v271, 5
      %v274 = vsel %vm250, %v269, %v273
      %v276 = vshrl.u32 %v201, 16
      %v278 = vrot.slane %v276, 4
      %v279 = vshll.u32 %v201, 16
      %v281 = vrot.slane %v279, 5
      %v282 = vor.u32 %v278, %v281
      %v283 = vrot.slane %v282, 4
      %v285 = vshll.u32 %v202, 16
      %v287 = vrot.slane %v285, 5
      %v288 = vsel %vm250, %v283, %v287
      %v289 = vshrl.u32 %v202, 16
      %v291 = vrot.slane %v289, 4
      %v292 = vor.u32 %v291, %v287
      %v293 = vrot.slane %v292, 4
      %v295 = vshll.u32 %v233, 16
      %v297 = vrot.slane %v295, 5
      %v298 = vsel %vm250, %v293, %v297
      %v300 = vshrl.u32 %v203, 16
      %v302 = vrot.slane %v300, 4
      %v303 = vshll.u32 %v203, 16
      %v305 = vrot.slane %v303, 5
      %v306 = vor.u32 %v302, %v305
      %v307 = vrot.slane %v306, 4
      %v309 = vshll.u32 %v204, 16
      %v311 = vrot.slane %v309, 5
      %v312 = vsel %vm250, %v307, %v311
      %v313 = vshrl.u32 %v204, 16
      %v315 = vrot.slane %v313, 4
      %v316 = vor.u32 %v315, %v311
      %v317 = vrot.slane %v316, 4
      %v319 = vshll.u32 %v234, 16
      %v321 = vrot.slane %v319, 5
      %v322 = vsel %vm250, %v317, %v321
      %v324 = vshrl.u32 %v205, 16
      %v326 = vrot.slane %v324, 4
      %v327 = vshll.u32 %v205, 16
      %v329 = vrot.slane %v327, 5
      %v330 = vor.u32 %v326, %v329
      %v331 = vrot.slane %v330, 4
      %v333 = vshll.u32 %v206, 16
      %v335 = vrot.slane %v333, 5
      %v336 = vsel %vm250, %v331, %v335
      %v337 = vshrl.u32 %v206, 16
      %v339 = vrot.slane %v337, 4
      %v340 = vor.u32 %v339, %v335
      %v341 = vrot.slane %v340, 4
      %v343 = vshll.u32 %v235, 16
      %v345 = vrot.slane %v343, 5
      %v346 = vsel %vm250, %v341, %v345
      %v348 = vshrl.u32 %v207, 16
      %v350 = vrot.slane %v348, 4
      %v351 = vshll.u32 %v207, 16
      %v353 = vrot.slane %v351, 5
      %v354 = vor.u32 %v350, %v353
      %v355 = vrot.slane %v354, 4
      %v357 = vshll.u32 %v208, 16
      %v359 = vrot.slane %v357, 5
      %v360 = vsel %vm250, %v355, %v359
      %v361 = vshrl.u32 %v208, 16
      %v363 = vrot.slane %v361, 4
      %v364 = vor.u32 %v363, %v359
      %v365 = vrot.slane %v364, 4
      %v367 = vshll.u32 %v236, 16
      %v369 = vrot.slane %v367, 5
      %v370 = vsel %vm250, %v365, %v369
      %v372 = vshrl.u32 %v209, 16
      %v374 = vrot.slane %v372, 4
      %v375 = vshll.u32 %v209, 16
      %v377 = vrot.slane %v375, 5
      %v378 = vor.u32 %v374, %v377
      %v379 = vrot.slane %v378, 4
      %v381 = vshll.u32 %v210, 16
      %v383 = vrot.slane %v381, 5
      %v384 = vsel %vm250, %v379, %v383
      %v385 = vshrl.u32 %v210, 16
      %v387 = vrot.slane %v385, 4
      %v388 = vor.u32 %v387, %v383
      %v389 = vrot.slane %v388, 4
      %v391 = vshll.u32 %v237, 16
      %v393 = vrot.slane %v391, 5
      %v394 = vsel %vm250, %v389, %v393
      %v396 = vshrl.u32 %v211, 16
      %v398 = vrot.slane %v396, 4
      %v399 = vshll.u32 %v211, 16
      %v401 = vrot.slane %v399, 5
      %v402 = vor.u32 %v398, %v401
      %v403 = vrot.slane %v402, 4
      %v405 = vshll.u32 %v212, 16
      %v407 = vrot.slane %v405, 5
      %v408 = vsel %vm250, %v403, %v407
      %v409 = vshrl.u32 %v212, 16
      %v411 = vrot.slane %v409, 4
      %v412 = vor.u32 %v411, %v407
      %v413 = vrot.slane %v412, 4
      %v415 = vshll.u32 %v238, 16
      %v417 = vrot.slane %v415, 5
      %v418 = vsel %vm250, %v413, %v417
      %v420 = vshrl.u32 %v213, 16
      %v422 = vrot.slane %v420, 4
      %v423 = vshll.u32 %v213, 16
      %v425 = vrot.slane %v423, 5
      %v426 = vor.u32 %v422, %v425
      %v427 = vrot.slane %v426, 4
      %v429 = vshll.u32 %v214, 16
      %v431 = vrot.slane %v429, 5
      %v432 = vsel %vm250, %v427, %v431
      %v433 = vshrl.u32 %v214, 16
      %v435 = vrot.slane %v433, 4
      %v436 = vor.u32 %v435, %v431
      %v437 = vrot.slane %v436, 4
      %v439 = vshll.u32 %v239, 16
      %v441 = vrot.slane %v439, 5
      %v442 = vsel %vm250, %v437, %v441
      %v444 = vshrl.u32 %v215, 16
      %v446 = vrot.slane %v444, 4
      %v447 = vshll.u32 %v215, 16
      %v449 = vrot.slane %v447, 5
      %v450 = vor.u32 %v446, %v449
      %v451 = vrot.slane %v450, 4
      %v453 = vshll.u32 %v216, 16
      %v455 = vrot.slane %v453, 5
      %v456 = vsel %vm250, %v451, %v455
      %v457 = vshrl.u32 %v216, 16
      %v459 = vrot.slane %v457, 4
      %v460 = vor.u32 %v459, %v455
      %v461 = vrot.slane %v460, 4
      %v463 = vshll.u32 %v240, 16
      %v465 = vrot.slane %v463, 5
      %v466 = vsel %vm250, %v461, %v465
      %v468 = vshrl.u32 %v217, 16
      %v470 = vrot.slane %v468, 4
      %v471 = vshll.u32 %v217, 16
      %v473 = vrot.slane %v471, 5
      %v474 = vor.u32 %v470, %v473
      %v475 = vrot.slane %v474, 4
      %v477 = vshll.u32 %v218, 16
      %v479 = vrot.slane %v477, 5
      %v480 = vsel %vm250, %v475, %v479
      %v481 = vshrl.u32 %v218, 16
      %v483 = vrot.slane %v481, 4
      %v484 = vor.u32 %v483, %v479
      %v485 = vrot.slane %v484, 4
      %v487 = vshll.u32 %v241, 16
      %v489 = vrot.slane %v487, 5
      %v490 = vsel %vm250, %v485, %v489
      %v492 = vshrl.u32 %v219, 16
      %v494 = vrot.slane %v492, 4
      %v495 = vshll.u32 %v219, 16
      %v497 = vrot.slane %v495, 5
      %v498 = vor.u32 %v494, %v497
      %v499 = vrot.slane %v498, 4
      %v501 = vshll.u32 %v220, 16
      %v503 = vrot.slane %v501, 5
      %v504 = vsel %vm250, %v499, %v503
      %v505 = vshrl.u32 %v220, 16
      %v507 = vrot.slane %v505, 4
      %v508 = vor.u32 %v507, %v503
      %v509 = vrot.slane %v508, 4
      %v511 = vshll.u32 %v242, 16
      %v513 = vrot.slane %v511, 5
      %v514 = vsel %vm250, %v509, %v513
      %v516 = vshrl.u32 %v221, 16
      %v518 = vrot.slane %v516, 4
      %v519 = vshll.u32 %v221, 16
      %v521 = vrot.slane %v519, 5
      %v522 = vor.u32 %v518, %v521
      %v523 = vrot.slane %v522, 4
      %v525 = vshll.u32 %v222, 16
      %v527 = vrot.slane %v525, 5
      %v528 = vsel %vm250, %v523, %v527
      %v529 = vshrl.u32 %v222, 16
      %v531 = vrot.slane %v529, 4
      %v532 = vor.u32 %v531, %v527
      %v533 = vrot.slane %v532, 4
      %v535 = vshll.u32 %v243, 16
      %v537 = vrot.slane %v535, 5
      %v538 = vsel %vm250, %v533, %v537
      %v540 = vshrl.u32 %v223, 16
      %v542 = vrot.slane %v540, 4
      %v543 = vshll.u32 %v223, 16
      %v545 = vrot.slane %v543, 5
      %v546 = vor.u32 %v542, %v545
      %v547 = vrot.slane %v546, 4
      %v549 = vshll.u32 %v224, 16
      %v551 = vrot.slane %v549, 5
      %v552 = vsel %vm250, %v547, %v551
      %v553 = vshrl.u32 %v224, 16
      %v555 = vrot.slane %v553, 4
      %v556 = vor.u32 %v555, %v551
      %v557 = vrot.slane %v556, 4
      %v559 = vshll.u32 %v244, 16
      %v561 = vrot.slane %v559, 5
      %v562 = vsel %vm250, %v557, %v561
      %v564 = vshrl.u32 %v225, 16
      %v566 = vrot.slane %v564, 4
      %v567 = vshll.u32 %v225, 16
      %v569 = vrot.slane %v567, 5
      %v570 = vor.u32 %v566, %v569
      %v571 = vrot.slane %v570, 4
      %v573 = vshll.u32 %v226, 16
      %v575 = vrot.slane %v573, 5
      %v576 = vsel %vm250, %v571, %v575
      %v577 = vshrl.u32 %v226, 16
      %v579 = vrot.slane %v577, 4
      %v580 = vor.u32 %v579, %v575
      %v581 = vrot.slane %v580, 4
      %v583 = vshll.u32 %v245, 16
      %v585 = vrot.slane %v583, 5
      %v586 = vsel %vm250, %v581, %v585
      %v588 = vshrl.u32 %v227, 16
      %v590 = vrot.slane %v588, 4
      %v591 = vshll.u32 %v227, 16
      %v593 = vrot.slane %v591, 5
      %v594 = vor.u32 %v590, %v593
      %v595 = vrot.slane %v594, 4
      %v597 = vshll.u32 %v228, 16
      %v599 = vrot.slane %v597, 5
      %v600 = vsel %vm250, %v595, %v599
      %v601 = vshrl.u32 %v228, 16
      %v603 = vrot.slane %v601, 4
      %v604 = vor.u32 %v603, %v599
      %v605 = vrot.slane %v604, 4
      %v607 = vshll.u32 %v246, 16
      %v609 = vrot.slane %v607, 5
      %v610 = vsel %vm250, %v605, %v609
      %v612 = vshrl.u32 %v229, 16
      %v614 = vrot.slane %v612, 4
      %v615 = vshll.u32 %v229, 16
      %v617 = vrot.slane %v615, 5
      %v618 = vor.u32 %v614, %v617
      %v619 = vrot.slane %v618, 4
      %v621 = vshll.u32 %v230, 16
      %v623 = vrot.slane %v621, 5
      %v624 = vsel %vm250, %v619, %v623
      %v625 = vshrl.u32 %v230, 16
      %v627 = vrot.slane %v625, 4
      %v628 = vor.u32 %v627, %v623
      %v629 = vrot.slane %v628, 4
      %v631 = vshll.u32 %v247, 16
      %v633 = vrot.slane %v631, 5
      %v634 = vsel %vm250, %v629, %v633
      %v635 = vld [vmem:[%s1] sm:$0xc]
      %v636 = vunpack.c.l.b16 %v264
      %v637 = vunpack.c.l.b16 %v274
      %v638 = vunpack.c.l.b16 %v288
      %v639 = vunpack.c.l.b16 %v298
      %v640 = vunpack.c.l.b16 %v312
      %v641 = vunpack.c.l.b16 %v322
      %v642 = vunpack.c.l.b16 %v336
      %v643 = vunpack.c.l.b16 %v346
      %v644 = vunpack.c.l.b16 %v360
      %v645 = vunpack.c.l.b16 %v370
      %v646 = vunpack.c.l.b16 %v384
      %v647 = vunpack.c.l.b16 %v394
      %v648 = vunpack.c.l.b16 %v408
      %v649 = vunpack.c.l.b16 %v418
      %v650 = vunpack.c.l.b16 %v432
      %v651 = vunpack.c.l.b16 %v442
      %v652 = vunpack.c.l.b16 %v456
      %v653 = vunpack.c.l.b16 %v466
      %v654 = vunpack.c.l.b16 %v480
      %v655 = vunpack.c.l.b16 %v490
      %v656 = vunpack.c.l.b16 %v504
      %v657 = vunpack.c.l.b16 %v514
      %v658 = vunpack.c.l.b16 %v528
      %v659 = vunpack.c.l.b16 %v538
      %v660 = vunpack.c.l.b16 %v552
      %v661 = vunpack.c.l.b16 %v562
      %v662 = vunpack.c.l.b16 %v576
      %v663 = vunpack.c.l.b16 %v586
      %v664 = vunpack.c.l.b16 %v600
      %v665 = vunpack.c.l.b16 %v610
      %v666 = vunpack.c.l.b16 %v624
      %v667 = vunpack.c.l.b16 %v634
      %v668 = vpack.c.b16 %v637, %v636
      %v669 = vpack.c.b16 %v639, %v638
      %v670 = vpack.c.b16 %v641, %v640
      %v671 = vpack.c.b16 %v643, %v642
      %v672 = vpack.c.b16 %v645, %v644
      %v673 = vpack.c.b16 %v647, %v646
      %v674 = vpack.c.b16 %v649, %v648
      %v675 = vpack.c.b16 %v651, %v650
      %v676 = vpack.c.b16 %v653, %v652
      %v677 = vpack.c.b16 %v655, %v654
      %v678 = vpack.c.b16 %v657, %v656
      %v679 = vpack.c.b16 %v659, %v658
      %v680 = vpack.c.b16 %v661, %v660
      %v681 = vpack.c.b16 %v663, %v662
      %v682 = vpack.c.b16 %v665, %v664
      %v683 = vpack.c.b16 %v667, %v666
      %v685 = vunpack.c.l.b16 %v635
      %v686 = vpack.c.b16 %v685, %v685
      %v687 = vrot.slane %v686, 2
      %vm688 = vcmask 31744
      %v690 = vsel %vm688, %v668, 0
      %v693 = vsel %vm688, %v669, 0
      %v696 = vsel %vm688, %v670, 0
      %v699 = vsel %vm688, %v671, 0
      %v702 = vsel %vm688, %v672, 0
      %v705 = vsel %vm688, %v673, 0
      %v708 = vsel %vm688, %v674, 0
      %v711 = vsel %vm688, %v675, 0
      %v714 = vsel %vm688, %v676, 0
      %v717 = vsel %vm688, %v677, 0
      %v720 = vsel %vm688, %v678, 0
      %v723 = vsel %vm688, %v679, 0
      %v726 = vsel %vm688, %v680, 0
      %v729 = vsel %vm688, %v681, 0
      %v732 = vsel %vm688, %v682, 0
      %v735 = vsel %vm688, %v683, 0
      %vm737 = vcmask 1041408
      %v739 = vsel %vm737, %v687, 0
      %741 = vmatpush.bf16.msra.mxu0 0
      %742 = vmatpush.bf16.msra.mxu0 0
      %743 = vmatpush.bf16.msra.mxu0 0
      %744 = vmatpush.bf16.msra.mxu0 0
      %745 = vmatpush.bf16.msra.mxu0 0
      %746 = vmatpush.bf16.msra.mxu0 0
      %747 = vmatpush.bf16.msra.mxu0 0
      %748 = vmatpush.bf16.msra.mxu0 %v739
      %749 = vmatmul.bf16.gmra.mxu0 %v690
      %v750 = vpop.f32.mrf.mxu0
      %v751 = vadd.f32 0.0, %v750
      %v752 = vpop.f32.mrf.mxu0
      %v753 = vadd.f32 0.0, %v752
      %754 = vmatmul.bf16.gmra.mxu0 %v693
      %v755 = vpop.f32.mrf.mxu0
      %v756 = vadd.f32 0.0, %v755
      %v757 = vpop.f32.mrf.mxu0
      %v758 = vadd.f32 0.0, %v757
      %759 = vmatmul.bf16.gmra.mxu0 %v696
      %v760 = vpop.f32.mrf.mxu0
      %v761 = vadd.f32 0.0, %v760
      %v762 = vpop.f32.mrf.mxu0
      %v763 = vadd.f32 0.0, %v762
      %764 = vmatmul.bf16.gmra.mxu0 %v699
      %v765 = vpop.f32.mrf.mxu0
      %v766 = vadd.f32 0.0, %v765
      %v767 = vpop.f32.mrf.mxu0
      %v768 = vadd.f32 0.0, %v767
      %769 = vmatmul.bf16.gmra.mxu0 %v702
      %v770 = vpop.f32.mrf.mxu0
      %v771 = vadd.f32 0.0, %v770
      %v772 = vpop.f32.mrf.mxu0
      %v773 = vadd.f32 0.0, %v772
      %774 = vmatmul.bf16.gmra.mxu0 %v705
      %v775 = vpop.f32.mrf.mxu0
      %v776 = vadd.f32 0.0, %v775
      %v777 = vpop.f32.mrf.mxu0
      %v778 = vadd.f32 0.0, %v777
      %779 = vmatmul.bf16.gmra.mxu0 %v708
      %v780 = vpop.f32.mrf.mxu0
      %v781 = vadd.f32 0.0, %v780
      %v782 = vpop.f32.mrf.mxu0
      %v783 = vadd.f32 0.0, %v782
      %784 = vmatmul.bf16.gmra.mxu0 %v711
      %v785 = vpop.f32.mrf.mxu0
      %v786 = vadd.f32 0.0, %v785
      %v787 = vpop.f32.mrf.mxu0
      %v788 = vadd.f32 0.0, %v787
      %789 = vmatmul.bf16.gmra.mxu0 %v714
      %v790 = vpop.f32.mrf.mxu0
      %v791 = vadd.f32 0.0, %v790
      %v792 = vpop.f32.mrf.mxu0
      %v793 = vadd.f32 0.0, %v792
      %794 = vmatmul.bf16.gmra.mxu0 %v717
      %v795 = vpop.f32.mrf.mxu0
      %v796 = vadd.f32 0.0, %v795
      %v797 = vpop.f32.mrf.mxu0
      %v798 = vadd.f32 0.0, %v797
      %799 = vmatmul.bf16.gmra.mxu0 %v720
      %v800 = vpop.f32.mrf.mxu0
      %v801 = vadd.f32 0.0, %v800
      %v802 = vpop.f32.mrf.mxu0
      %v803 = vadd.f32 0.0, %v802
      %804 = vmatmul.bf16.gmra.mxu0 %v723
      %v805 = vpop.f32.mrf.mxu0
      %v806 = vadd.f32 0.0, %v805
      %v807 = vpop.f32.mrf.mxu0
      %v808 = vadd.f32 0.0, %v807
      %809 = vmatmul.bf16.gmra.mxu0 %v726
      %v810 = vpop.f32.mrf.mxu0
      %v811 = vadd.f32 0.0, %v810
      %v812 = vpop.f32.mrf.mxu0
      %v813 = vadd.f32 0.0, %v812
      %814 = vmatmul.bf16.gmra.mxu0 %v729
      %v815 = vpop.f32.mrf.mxu0
      %v816 = vadd.f32 0.0, %v815
      %v817 = vpop.f32.mrf.mxu0
      %v818 = vadd.f32 0.0, %v817
      %819 = vmatmul.bf16.gmra.mxu0 %v732
      %v820 = vpop.f32.mrf.mxu0
      %v821 = vadd.f32 0.0, %v820
      %v822 = vpop.f32.mrf.mxu0
      %v823 = vadd.f32 0.0, %v822
      %824 = vmatmul.bf16.gmra.mxu0 %v735
      %v825 = vpop.f32.mrf.mxu0
      %v826 = vadd.f32 0.0, %v825
      %v827 = vpop.f32.mrf.mxu0
      %v828 = vadd.f32 0.0, %v827
      %829 = vdwg.mxu0
      %v862 = vunpack.c.l.b16 %v199
      %v863 = vunpack.c.l.b16 %v200
      %v864 = vunpack.c.l.b16 %v201
      %v865 = vunpack.c.l.b16 %v202
      %v866 = vunpack.c.l.b16 %v203
      %v867 = vunpack.c.l.b16 %v204
      %v868 = vunpack.c.l.b16 %v205
      %v869 = vunpack.c.l.b16 %v206
      %v870 = vunpack.c.l.b16 %v207
      %v871 = vunpack.c.l.b16 %v208
      %v872 = vunpack.c.l.b16 %v209
      %v873 = vunpack.c.l.b16 %v210
      %v874 = vunpack.c.l.b16 %v211
      %v875 = vunpack.c.l.b16 %v212
      %v876 = vunpack.c.l.b16 %v213
      %v877 = vunpack.c.l.b16 %v214
      %v878 = vunpack.c.l.b16 %v215
      %v879 = vunpack.c.l.b16 %v216
      %v880 = vunpack.c.l.b16 %v217
      %v881 = vunpack.c.l.b16 %v218
      %v882 = vunpack.c.l.b16 %v219
      %v883 = vunpack.c.l.b16 %v220
      %v884 = vunpack.c.l.b16 %v221
      %v885 = vunpack.c.l.b16 %v222
      %v886 = vunpack.c.l.b16 %v223
      %v887 = vunpack.c.l.b16 %v224
      %v888 = vunpack.c.l.b16 %v225
      %v889 = vunpack.c.l.b16 %v226
      %v890 = vunpack.c.l.b16 %v227
      %v891 = vunpack.c.l.b16 %v228
      %v892 = vunpack.c.l.b16 %v229
      %v893 = vunpack.c.l.b16 %v230
      %v894 = vpack.c.b16 %v863, %v862
      %v895 = vpack.c.b16 %v865, %v864
      %v896 = vpack.c.b16 %v867, %v866
      %v897 = vpack.c.b16 %v869, %v868
      %v898 = vpack.c.b16 %v871, %v870
      %v899 = vpack.c.b16 %v873, %v872
      %v900 = vpack.c.b16 %v875, %v874
      %v901 = vpack.c.b16 %v877, %v876
      %v902 = vpack.c.b16 %v879, %v878
      %v903 = vpack.c.b16 %v881, %v880
      %v904 = vpack.c.b16 %v883, %v882
      %v905 = vpack.c.b16 %v885, %v884
      %v906 = vpack.c.b16 %v887, %v886
      %v907 = vpack.c.b16 %v889, %v888
      %v908 = vpack.c.b16 %v891, %v890
      %v909 = vpack.c.b16 %v893, %v892
      %v911 = vsel %vm688, %v894, 0
      %v914 = vsel %vm688, %v895, 0
      %v917 = vsel %vm688, %v896, 0
      %v920 = vsel %vm688, %v897, 0
      %v923 = vsel %vm688, %v898, 0
      %v926 = vsel %vm688, %v899, 0
      %v929 = vsel %vm688, %v900, 0
      %v932 = vsel %vm688, %v901, 0
      %v935 = vsel %vm688, %v902, 0
      %v938 = vsel %vm688, %v903, 0
      %v941 = vsel %vm688, %v904, 0
      %v944 = vsel %vm688, %v905, 0
      %v947 = vsel %vm688, %v906, 0
      %v950 = vsel %vm688, %v907, 0
      %v953 = vsel %vm688, %v908, 0
      %v956 = vsel %vm688, %v909, 0
      %v959 = vsel %vm737, %v231, 0
      %961 = vmatpush.bf16.msra.mxu0 0
      %962 = vmatpush.bf16.msra.mxu0 0
      %963 = vmatpush.bf16.msra.mxu0 0
      %964 = vmatpush.bf16.msra.mxu0 0
      %965 = vmatpush.bf16.msra.mxu0 0
      %966 = vmatpush.bf16.msra.mxu0 0
      %967 = vmatpush.bf16.msra.mxu0 0
      %968 = vmatpush.bf16.msra.mxu0 %v959
      %969 = vmatmul.bf16.gmra.mxu0 %v911
      %v970 = vpop.f32.mrf.mxu0
      %v971 = vadd.f32 %v751, %v970
      %v972 = vpop.f32.mrf.mxu0
      %v973 = vadd.f32 %v753, %v972
      %974 = vmatmul.bf16.gmra.mxu0 %v914
      %v975 = vpop.f32.mrf.mxu0
      %v976 = vadd.f32 %v756, %v975
      %v977 = vpop.f32.mrf.mxu0
      %v978 = vadd.f32 %v758, %v977
      %979 = vmatmul.bf16.gmra.mxu0 %v917
      %v980 = vpop.f32.mrf.mxu0
      %v981 = vadd.f32 %v761, %v980
      %v982 = vpop.f32.mrf.mxu0
      %v983 = vadd.f32 %v763, %v982
      %984 = vmatmul.bf16.gmra.mxu0 %v920
      %v985 = vpop.f32.mrf.mxu0
      %v986 = vadd.f32 %v766, %v985
      %v987 = vpop.f32.mrf.mxu0
      %v988 = vadd.f32 %v768, %v987
      %989 = vmatmul.bf16.gmra.mxu0 %v923
      %v990 = vpop.f32.mrf.mxu0
      %v991 = vadd.f32 %v771, %v990
      %v992 = vpop.f32.mrf.mxu0
      %v993 = vadd.f32 %v773, %v992
      %994 = vmatmul.bf16.gmra.mxu0 %v926
      %v995 = vpop.f32.mrf.mxu0
      %v996 = vadd.f32 %v776, %v995
      %v997 = vpop.f32.mrf.mxu0
      %v998 = vadd.f32 %v778, %v997
      %999 = vmatmul.bf16.gmra.mxu0 %v929
      %v1000 = vpop.f32.mrf.mxu0
      %v1001 = vadd.f32 %v781, %v1000
      %v1002 = vpop.f32.mrf.mxu0
      %v1003 = vadd.f32 %v783, %v1002
      %1004 = vmatmul.bf16.gmra.mxu0 %v932
      %v1005 = vpop.f32.mrf.mxu0
      %v1006 = vadd.f32 %v786, %v1005
      %v1007 = vpop.f32.mrf.mxu0
      %v1008 = vadd.f32 %v788, %v1007
      %1009 = vmatmul.bf16.gmra.mxu0 %v935
      %v1010 = vpop.f32.mrf.mxu0
      %v1011 = vadd.f32 %v791, %v1010
      %v1012 = vpop.f32.mrf.mxu0
      %v1013 = vadd.f32 %v793, %v1012
      %1014 = vmatmul.bf16.gmra.mxu0 %v938
      %v1015 = vpop.f32.mrf.mxu0
      %v1016 = vadd.f32 %v796, %v1015
      %v1017 = vpop.f32.mrf.mxu0
      %v1018 = vadd.f32 %v798, %v1017
      %1019 = vmatmul.bf16.gmra.mxu0 %v941
      %v1020 = vpop.f32.mrf.mxu0
      %v1021 = vadd.f32 %v801, %v1020
      %v1022 = vpop.f32.mrf.mxu0
      %v1023 = vadd.f32 %v803, %v1022
      %1024 = vmatmul.bf16.gmra.mxu0 %v944
      %v1025 = vpop.f32.mrf.mxu0
      %v1026 = vadd.f32 %v806, %v1025
      %v1027 = vpop.f32.mrf.mxu0
      %v1028 = vadd.f32 %v808, %v1027
      %1029 = vmatmul.bf16.gmra.mxu0 %v947
      %v1030 = vpop.f32.mrf.mxu0
      %v1031 = vadd.f32 %v811, %v1030
      %v1032 = vpop.f32.mrf.mxu0
      %v1033 = vadd.f32 %v813, %v1032
      %1034 = vmatmul.bf16.gmra.mxu0 %v950
      %v1035 = vpop.f32.mrf.mxu0
      %v1036 = vadd.f32 %v816, %v1035
      %v1037 = vpop.f32.mrf.mxu0
      %v1038 = vadd.f32 %v818, %v1037
      %1039 = vmatmul.bf16.gmra.mxu0 %v953
      %v1040 = vpop.f32.mrf.mxu0
      %v1041 = vadd.f32 %v821, %v1040
      %v1042 = vpop.f32.mrf.mxu0
      %v1043 = vadd.f32 %v823, %v1042
      %1044 = vmatmul.bf16.gmra.mxu0 %v956
      %v1045 = vpop.f32.mrf.mxu0
      %v1046 = vadd.f32 %v826, %v1045
      %v1047 = vpop.f32.mrf.mxu0
      %v1048 = vadd.f32 %v828, %v1047
      %1049 = vdwg.mxu0
      %v1050 = vld [vmem:[%s192] sm:$0xe]
      %v1051 = vld [vmem:[%s192 + $0xc] sm:$0xe]
      %v1052 = vld [vmem:[%s192 + $0x18] sm:$0xe]
      %v1053 = vld [vmem:[%s192 + $0x24] sm:$0xe]
      %v1054 = vld [vmem:[%s192 + $0x30] sm:$0xe]
      %v1055 = vld [vmem:[%s192 + $0x3c] sm:$0xe]
      %v1056 = vld [vmem:[%s192 + $0x48] sm:$0xe]
      %v1057 = vld [vmem:[%s192 + $0x54] sm:$0xe]
      %v1058 = vld [vmem:[%s192 + $0x60] sm:$0xe]
      %v1059 = vld [vmem:[%s192 + $0x6c] sm:$0xe]
      %v1060 = vld [vmem:[%s192 + $0x78] sm:$0xe]
      %v1061 = vld [vmem:[%s192 + $0x84] sm:$0xe]
      %v1062 = vld [vmem:[%s192 + $0x90] sm:$0xe]
      %v1063 = vld [vmem:[%s192 + $0x9c] sm:$0xe]
      %v1064 = vld [vmem:[%s192 + $0xa8] sm:$0xe]
      %v1065 = vld [vmem:[%s192 + $0xb4] sm:$0xe]
      %vm1098 = vcmask 1042432
      %vm1099 = vcmask 1046532
      %vm1100 = vmor %vm1098, %vm1099
      %v1101 = vrot.slane %v1050, 5
      %v1102 = vrot.slane %v1101, 4
      %v1103 = vrot.slane %v200, 5
      %v1104 = vsel %vm1100, %v1102, %v1103
      %v1105 = vrot.slane %v1103, 4
      %v1106 = vrot.slane %v232, 5
      %v1107 = vsel %vm1100, %v1105, %v1106
      %v1108 = vrot.slane %v1051, 5
      %v1109 = vrot.slane %v1108, 4
      %v1110 = vrot.slane %v202, 5
      %v1111 = vsel %vm1100, %v1109, %v1110
      %v1112 = vrot.slane %v1110, 4
      %v1113 = vrot.slane %v233, 5
      %v1114 = vsel %vm1100, %v1112, %v1113
      %v1115 = vrot.slane %v1052, 5
      %v1116 = vrot.slane %v1115, 4
      %v1117 = vrot.slane %v204, 5
      %v1118 = vsel %vm1100, %v1116, %v1117
      %v1119 = vrot.slane %v1117, 4
      %v1120 = vrot.slane %v234, 5
      %v1121 = vsel %vm1100, %v1119, %v1120
      %v1122 = vrot.slane %v1053, 5
      %v1123 = vrot.slane %v1122, 4
      %v1124 = vrot.slane %v206, 5
      %v1125 = vsel %vm1100, %v1123, %v1124
      %v1126 = vrot.slane %v1124, 4
      %v1127 = vrot.slane %v235, 5
      %v1128 = vsel %vm1100, %v1126, %v1127
      %v1129 = vrot.slane %v1054, 5
      %v1130 = vrot.slane %v1129, 4
      %v1131 = vrot.slane %v208, 5
      %v1132 = vsel %vm1100, %v1130, %v1131
      %v1133 = vrot.slane %v1131, 4
      %v1134 = vrot.slane %v236, 5
      %v1135 = vsel %vm1100, %v1133, %v1134
      %v1136 = vrot.slane %v1055, 5
      %v1137 = vrot.slane %v1136, 4
      %v1138 = vrot.slane %v210, 5
      %v1139 = vsel %vm1100, %v1137, %v1138
      %v1140 = vrot.slane %v1138, 4
      %v1141 = vrot.slane %v237, 5
      %v1142 = vsel %vm1100, %v1140, %v1141
      %v1143 = vrot.slane %v1056, 5
      %v1144 = vrot.slane %v1143, 4
      %v1145 = vrot.slane %v212, 5
      %v1146 = vsel %vm1100, %v1144, %v1145
      %v1147 = vrot.slane %v1145, 4
      %v1148 = vrot.slane %v238, 5
      %v1149 = vsel %vm1100, %v1147, %v1148
      %v1150 = vrot.slane %v1057, 5
      %v1151 = vrot.slane %v1150, 4
      %v1152 = vrot.slane %v214, 5
      %v1153 = vsel %vm1100, %v1151, %v1152
      %v1154 = vrot.slane %v1152, 4
      %v1155 = vrot.slane %v239, 5
      %v1156 = vsel %vm1100, %v1154, %v1155
      %v1157 = vrot.slane %v1058, 5
      %v1158 = vrot.slane %v1157, 4
      %v1159 = vrot.slane %v216, 5
      %v1160 = vsel %vm1100, %v1158, %v1159
      %v1161 = vrot.slane %v1159, 4
      %v1162 = vrot.slane %v240, 5
      %v1163 = vsel %vm1100, %v1161, %v1162
      %v1164 = vrot.slane %v1059, 5
      %v1165 = vrot.slane %v1164, 4
      %v1166 = vrot.slane %v218, 5
      %v1167 = vsel %vm1100, %v1165, %v1166
      %v1168 = vrot.slane %v1166, 4
      %v1169 = vrot.slane %v241, 5
      %v1170 = vsel %vm1100, %v1168, %v1169
      %v1171 = vrot.slane %v1060, 5
      %v1172 = vrot.slane %v1171, 4
      %v1173 = vrot.slane %v220, 5
      %v1174 = vsel %vm1100, %v1172, %v1173
      %v1175 = vrot.slane %v1173, 4
      %v1176 = vrot.slane %v242, 5
      %v1177 = vsel %vm1100, %v1175, %v1176
      %v1178 = vrot.slane %v1061, 5
      %v1179 = vrot.slane %v1178, 4
      %v1180 = vrot.slane %v222, 5
      %v1181 = vsel %vm1100, %v1179, %v1180
      %v1182 = vrot.slane %v1180, 4
      %v1183 = vrot.slane %v243, 5
      %v1184 = vsel %vm1100, %v1182, %v1183
      %v1185 = vrot.slane %v1062, 5
      %v1186 = vrot.slane %v1185, 4
      %v1187 = vrot.slane %v224, 5
      %v1188 = vsel %vm1100, %v1186, %v1187
      %v1189 = vrot.slane %v1187, 4
      %v1190 = vrot.slane %v244, 5
      %v1191 = vsel %vm1100, %v1189, %v1190
      %v1192 = vrot.slane %v1063, 5
      %v1193 = vrot.slane %v1192, 4
      %v1194 = vrot.slane %v226, 5
      %v1195 = vsel %vm1100, %v1193, %v1194
      %v1196 = vrot.slane %v1194, 4
      %v1197 = vrot.slane %v245, 5
      %v1198 = vsel %vm1100, %v1196, %v1197
      %v1199 = vrot.slane %v1064, 5
      %v1200 = vrot.slane %v1199, 4
      %v1201 = vrot.slane %v228, 5
      %v1202 = vsel %vm1100, %v1200, %v1201
      %v1203 = vrot.slane %v1201, 4
      %v1204 = vrot.slane %v246, 5
      %v1205 = vsel %vm1100, %v1203, %v1204
      %v1206 = vrot.slane %v1065, 5
      %v1207 = vrot.slane %v1206, 4
      %v1208 = vrot.slane %v230, 5
      %v1209 = vsel %vm1100, %v1207, %v1208
      %v1210 = vrot.slane %v1208, 4
      %v1211 = vrot.slane %v247, 5
      %v1212 = vsel %vm1100, %v1210, %v1211
      %v1213 = vld [vmem:[%s1 + $0x4] sm:$0x3]
      %v1214 = vunpack.c.l.b16 %v1104
      %v1215 = vunpack.c.l.b16 %v1107
      %v1216 = vunpack.c.l.b16 %v1111
      %v1217 = vunpack.c.l.b16 %v1114
      %v1218 = vunpack.c.l.b16 %v1118
      %v1219 = vunpack.c.l.b16 %v1121
      %v1220 = vunpack.c.l.b16 %v1125
      %v1221 = vunpack.c.l.b16 %v1128
      %v1222 = vunpack.c.l.b16 %v1132
      %v1223 = vunpack.c.l.b16 %v1135
      %v1224 = vunpack.c.l.b16 %v1139
      %v1225 = vunpack.c.l.b16 %v1142
      %v1226 = vunpack.c.l.b16 %v1146
      %v1227 = vunpack.c.l.b16 %v1149
      %v1228 = vunpack.c.l.b16 %v1153
      %v1229 = vunpack.c.l.b16 %v1156
      %v1230 = vunpack.c.l.b16 %v1160
      %v1231 = vunpack.c.l.b16 %v1163
      %v1232 = vunpack.c.l.b16 %v1167
      %v1233 = vunpack.c.l.b16 %v1170
      %v1234 = vunpack.c.l.b16 %v1174
      %v1235 = vunpack.c.l.b16 %v1177
      %v1236 = vunpack.c.l.b16 %v1181
      %v1237 = vunpack.c.l.b16 %v1184
      %v1238 = vunpack.c.l.b16 %v1188
      %v1239 = vunpack.c.l.b16 %v1191
      %v1240 = vunpack.c.l.b16 %v1195
      %v1241 = vunpack.c.l.b16 %v1198
      %v1242 = vunpack.c.l.b16 %v1202
      %v1243 = vunpack.c.l.b16 %v1205
      %v1244 = vunpack.c.l.b16 %v1209
      %v1245 = vunpack.c.l.b16 %v1212
      %v1246 = vpack.c.b16 %v1215, %v1214
      %v1247 = vpack.c.b16 %v1217, %v1216
      %v1248 = vpack.c.b16 %v1219, %v1218
      %v1249 = vpack.c.b16 %v1221, %v1220
      %v1250 = vpack.c.b16 %v1223, %v1222
      %v1251 = vpack.c.b16 %v1225, %v1224
      %v1252 = vpack.c.b16 %v1227, %v1226
      %v1253 = vpack.c.b16 %v1229, %v1228
      %v1254 = vpack.c.b16 %v1231, %v1230
      %v1255 = vpack.c.b16 %v1233, %v1232
      %v1256 = vpack.c.b16 %v1235, %v1234
      %v1257 = vpack.c.b16 %v1237, %v1236
      %v1258 = vpack.c.b16 %v1239, %v1238
      %v1259 = vpack.c.b16 %v1241, %v1240
      %v1260 = vpack.c.b16 %v1243, %v1242
      %v1261 = vpack.c.b16 %v1245, %v1244
      %v1263 = vsel %vm688, %v1246, 0
      %v1266 = vsel %vm688, %v1247, 0
      %v1269 = vsel %vm688, %v1248, 0
      %v1272 = vsel %vm688, %v1249, 0
      %v1275 = vsel %vm688, %v1250, 0
      %v1278 = vsel %vm688, %v1251, 0
      %v1281 = vsel %vm688, %v1252, 0
      %v1284 = vsel %vm688, %v1253, 0
      %v1287 = vsel %vm688, %v1254, 0
      %v1290 = vsel %vm688, %v1255, 0
      %v1293 = vsel %vm688, %v1256, 0
      %v1296 = vsel %vm688, %v1257, 0
      %v1299 = vsel %vm688, %v1258, 0
      %v1302 = vsel %vm688, %v1259, 0
      %v1305 = vsel %vm688, %v1260, 0
      %v1308 = vsel %vm688, %v1261, 0
      %v1311 = vsel %vm737, %v1213, 0
      %1313 = vmatpush.bf16.msra.mxu0 0
      %1314 = vmatpush.bf16.msra.mxu0 0
      %1315 = vmatpush.bf16.msra.mxu0 0
      %1316 = vmatpush.bf16.msra.mxu0 0
      %1317 = vmatpush.bf16.msra.mxu0 0
      %1318 = vmatpush.bf16.msra.mxu0 0
      %1319 = vmatpush.bf16.msra.mxu0 0
      %1320 = vmatpush.bf16.msra.mxu0 %v1311
      %1321 = vmatmul.bf16.gmra.mxu0 %v1263
      %v1322 = vpop.f32.mrf.mxu0
      %v1323 = vadd.f32 0.0, %v1322
      %v1324 = vpop.f32.mrf.mxu0
      %v1325 = vadd.f32 0.0, %v1324
      %1326 = vmatmul.bf16.gmra.mxu0 %v1266
      %v1327 = vpop.f32.mrf.mxu0
      %v1328 = vadd.f32 0.0, %v1327
      %v1329 = vpop.f32.mrf.mxu0
      %v1330 = vadd.f32 0.0, %v1329
      %1331 = vmatmul.bf16.gmra.mxu0 %v1269
      %v1332 = vpop.f32.mrf.mxu0
      %v1333 = vadd.f32 0.0, %v1332
      %v1334 = vpop.f32.mrf.mxu0
      %v1335 = vadd.f32 0.0, %v1334
      %1336 = vmatmul.bf16.gmra.mxu0 %v1272
      %v1337 = vpop.f32.mrf.mxu0
      %v1338 = vadd.f32 0.0, %v1337
      %v1339 = vpop.f32.mrf.mxu0
      %v1340 = vadd.f32 0.0, %v1339
      %1341 = vmatmul.bf16.gmra.mxu0 %v1275
      %v1342 = vpop.f32.mrf.mxu0
      %v1343 = vadd.f32 0.0, %v1342
      %v1344 = vpop.f32.mrf.mxu0
      %v1345 = vadd.f32 0.0, %v1344
      %1346 = vmatmul.bf16.gmra.mxu0 %v1278
      %v1347 = vpop.f32.mrf.mxu0
      %v1348 = vadd.f32 0.0, %v1347
      %v1349 = vpop.f32.mrf.mxu0
      %v1350 = vadd.f32 0.0, %v1349
      %1351 = vmatmul.bf16.gmra.mxu0 %v1281
      %v1352 = vpop.f32.mrf.mxu0
      %v1353 = vadd.f32 0.0, %v1352
      %v1354 = vpop.f32.mrf.mxu0
      %v1355 = vadd.f32 0.0, %v1354
      %1356 = vmatmul.bf16.gmra.mxu0 %v1284
      %v1357 = vpop.f32.mrf.mxu0
      %v1358 = vadd.f32 0.0, %v1357
      %v1359 = vpop.f32.mrf.mxu0
      %v1360 = vadd.f32 0.0, %v1359
      %1361 = vmatmul.bf16.gmra.mxu0 %v1287
      %v1362 = vpop.f32.mrf.mxu0
      %v1363 = vadd.f32 0.0, %v1362
      %v1364 = vpop.f32.mrf.mxu0
      %v1365 = vadd.f32 0.0, %v1364
      %1366 = vmatmul.bf16.gmra.mxu0 %v1290
      %v1367 = vpop.f32.mrf.mxu0
      %v1368 = vadd.f32 0.0, %v1367
      %v1369 = vpop.f32.mrf.mxu0
      %v1370 = vadd.f32 0.0, %v1369
      %1371 = vmatmul.bf16.gmra.mxu0 %v1293
      %v1372 = vpop.f32.mrf.mxu0
      %v1373 = vadd.f32 0.0, %v1372
      %v1374 = vpop.f32.mrf.mxu0
      %v1375 = vadd.f32 0.0, %v1374
      %1376 = vmatmul.bf16.gmra.mxu0 %v1296
      %v1377 = vpop.f32.mrf.mxu0
      %v1378 = vadd.f32 0.0, %v1377
      %v1379 = vpop.f32.mrf.mxu0
      %v1380 = vadd.f32 0.0, %v1379
      %1381 = vmatmul.bf16.gmra.mxu0 %v1299
      %v1382 = vpop.f32.mrf.mxu0
      %v1383 = vadd.f32 0.0, %v1382
      %v1384 = vpop.f32.mrf.mxu0
      %v1385 = vadd.f32 0.0, %v1384
      %1386 = vmatmul.bf16.gmra.mxu0 %v1302
      %v1387 = vpop.f32.mrf.mxu0
      %v1388 = vadd.f32 0.0, %v1387
      %v1389 = vpop.f32.mrf.mxu0
      %v1390 = vadd.f32 0.0, %v1389
      %1391 = vmatmul.bf16.gmra.mxu0 %v1305
      %v1392 = vpop.f32.mrf.mxu0
      %v1393 = vadd.f32 0.0, %v1392
      %v1394 = vpop.f32.mrf.mxu0
      %v1395 = vadd.f32 0.0, %v1394
      %1396 = vmatmul.bf16.gmra.mxu0 %v1308
      %v1397 = vpop.f32.mrf.mxu0
      %v1398 = vadd.f32 0.0, %v1397
      %v1399 = vpop.f32.mrf.mxu0
      %v1400 = vadd.f32 0.0, %v1399
      %1401 = vdwg.mxu0
      %v1402 = vadd.f32 %v971, %v1323
      %v1403 = vadd.f32 %v973, %v1325
      %v1404 = vadd.f32 %v976, %v1328
      %v1405 = vadd.f32 %v978, %v1330
      %v1406 = vadd.f32 %v981, %v1333
      %v1407 = vadd.f32 %v983, %v1335
      %v1408 = vadd.f32 %v986, %v1338
      %v1409 = vadd.f32 %v988, %v1340
      %v1410 = vadd.f32 %v991, %v1343
      %v1411 = vadd.f32 %v993, %v1345
      %v1412 = vadd.f32 %v996, %v1348
      %v1413 = vadd.f32 %v998, %v1350
      %v1414 = vadd.f32 %v1001, %v1353
      %v1415 = vadd.f32 %v1003, %v1355
      %v1416 = vadd.f32 %v1006, %v1358
      %v1417 = vadd.f32 %v1008, %v1360
      %v1418 = vadd.f32 %v1011, %v1363
      %v1419 = vadd.f32 %v1013, %v1365
      %v1420 = vadd.f32 %v1016, %v1368
      %v1421 = vadd.f32 %v1018, %v1370
      %v1422 = vadd.f32 %v1021, %v1373
      %v1423 = vadd.f32 %v1023, %v1375
      %v1424 = vadd.f32 %v1026, %v1378
      %v1425 = vadd.f32 %v1028, %v1380
      %v1426 = vadd.f32 %v1031, %v1383
      %v1427 = vadd.f32 %v1033, %v1385
      %v1428 = vadd.f32 %v1036, %v1388
      %v1429 = vadd.f32 %v1038, %v1390
      %v1430 = vadd.f32 %v1041, %v1393
      %v1431 = vadd.f32 %v1043, %v1395
      %v1432 = vadd.f32 %v1046, %v1398
      %v1433 = vadd.f32 %v1048, %v1400
      %s1434 = scalar_lea.vmem %s192, 12
      %v1435 = vld [vmem:[%s1434] sm:$0xf]
      %v1436 = vld [vmem:[%s1434 + $0x4] sm:$0xf]
      %v1437 = vld [vmem:[%s1434 + $0xc] sm:$0xf]
      %v1438 = vld [vmem:[%s1434 + $0x10] sm:$0xf]
      %v1439 = vld [vmem:[%s1434 + $0x18] sm:$0xf]
      %v1440 = vld [vmem:[%s1434 + $0x1c] sm:$0xf]
      %v1441 = vld [vmem:[%s1434 + $0x24] sm:$0xf]
      %v1442 = vld [vmem:[%s1434 + $0x28] sm:$0xf]
      %v1443 = vld [vmem:[%s1434 + $0x30] sm:$0xf]
      %v1444 = vld [vmem:[%s1434 + $0x34] sm:$0xf]
      %v1445 = vld [vmem:[%s1434 + $0x3c] sm:$0xf]
      %v1446 = vld [vmem:[%s1434 + $0x40] sm:$0xf]
      %v1447 = vld [vmem:[%s1434 + $0x48] sm:$0xf]
      %v1448 = vld [vmem:[%s1434 + $0x4c] sm:$0xf]
      %v1449 = vld [vmem:[%s1434 + $0x54] sm:$0xf]
      %v1450 = vld [vmem:[%s1434 + $0x58] sm:$0xf]
      %v1451 = vld [vmem:[%s1434 + $0x60] sm:$0xf]
      %v1452 = vld [vmem:[%s1434 + $0x64] sm:$0xf]
      %v1453 = vld [vmem:[%s1434 + $0x6c] sm:$0xf]
      %v1454 = vld [vmem:[%s1434 + $0x70] sm:$0xf]
      %v1455 = vld [vmem:[%s1434 + $0x78] sm:$0xf]
      %v1456 = vld [vmem:[%s1434 + $0x7c] sm:$0xf]
      %v1457 = vld [vmem:[%s1434 + $0x84] sm:$0xf]
      %v1458 = vld [vmem:[%s1434 + $0x88] sm:$0xf]
      %v1459 = vld [vmem:[%s1434 + $0x90] sm:$0xf]
      %v1460 = vld [vmem:[%s1434 + $0x94] sm:$0xf]
      %v1461 = vld [vmem:[%s1434 + $0x9c] sm:$0xf]
      %v1462 = vld [vmem:[%s1434 + $0xa0] sm:$0xf]
      %v1463 = vld [vmem:[%s1434 + $0xa8] sm:$0xf]
      %v1464 = vld [vmem:[%s1434 + $0xac] sm:$0xf]
      %v1465 = vld [vmem:[%s1434 + $0xb4] sm:$0xf]
      %v1466 = vld [vmem:[%s1434 + $0xb8] sm:$0xf]
      %v1467 = vld [vmem:[%s1 + $0x4] sm:$0xc]
      %v1500 = vunpack.c.l.b16 %v1435
      %v1501 = vunpack.c.l.b16 %v1436
      %v1502 = vunpack.c.l.b16 %v1437
      %v1503 = vunpack.c.l.b16 %v1438
      %v1504 = vunpack.c.l.b16 %v1439
      %v1505 = vunpack.c.l.b16 %v1440
      %v1506 = vunpack.c.l.b16 %v1441
      %v1507 = vunpack.c.l.b16 %v1442
      %v1508 = vunpack.c.l.b16 %v1443
      %v1509 = vunpack.c.l.b16 %v1444
      %v1510 = vunpack.c.l.b16 %v1445
      %v1511 = vunpack.c.l.b16 %v1446
      %v1512 = vunpack.c.l.b16 %v1447
      %v1513 = vunpack.c.l.b16 %v1448
      %v1514 = vunpack.c.l.b16 %v1449
      %v1515 = vunpack.c.l.b16 %v1450
      %v1516 = vunpack.c.l.b16 %v1451
      %v1517 = vunpack.c.l.b16 %v1452
      %v1518 = vunpack.c.l.b16 %v1453
      %v1519 = vunpack.c.l.b16 %v1454
      %v1520 = vunpack.c.l.b16 %v1455
      %v1521 = vunpack.c.l.b16 %v1456
      %v1522 = vunpack.c.l.b16 %v1457
      %v1523 = vunpack.c.l.b16 %v1458
      %v1524 = vunpack.c.l.b16 %v1459
      %v1525 = vunpack.c.l.b16 %v1460
      %v1526 = vunpack.c.l.b16 %v1461
      %v1527 = vunpack.c.l.b16 %v1462
      %v1528 = vunpack.c.l.b16 %v1463
      %v1529 = vunpack.c.l.b16 %v1464
      %v1530 = vunpack.c.l.b16 %v1465
      %v1531 = vunpack.c.l.b16 %v1466
      %v1532 = vpack.c.b16 %v1501, %v1500
      %v1533 = vpack.c.b16 %v1503, %v1502
      %v1534 = vpack.c.b16 %v1505, %v1504
      %v1535 = vpack.c.b16 %v1507, %v1506
      %v1536 = vpack.c.b16 %v1509, %v1508
      %v1537 = vpack.c.b16 %v1511, %v1510
      %v1538 = vpack.c.b16 %v1513, %v1512
      %v1539 = vpack.c.b16 %v1515, %v1514
      %v1540 = vpack.c.b16 %v1517, %v1516
      %v1541 = vpack.c.b16 %v1519, %v1518
      %v1542 = vpack.c.b16 %v1521, %v1520
      %v1543 = vpack.c.b16 %v1523, %v1522
      %v1544 = vpack.c.b16 %v1525, %v1524
      %v1545 = vpack.c.b16 %v1527, %v1526
      %v1546 = vpack.c.b16 %v1529, %v1528
      %v1547 = vpack.c.b16 %v1531, %v1530
      %v1549 = vunpack.c.l.b16 %v1467
      %v1550 = vpack.c.b16 %v1549, %v1549
      %v1551 = vrot.slane %v1550, 2
      %v1553 = vsel %vm688, %v1532, 0
      %v1556 = vsel %vm688, %v1533, 0
      %v1559 = vsel %vm688, %v1534, 0
      %v1562 = vsel %vm688, %v1535, 0
      %v1565 = vsel %vm688, %v1536, 0
      %v1568 = vsel %vm688, %v1537, 0
      %v1571 = vsel %vm688, %v1538, 0
      %v1574 = vsel %vm688, %v1539, 0
      %v1577 = vsel %vm688, %v1540, 0
      %v1580 = vsel %vm688, %v1541, 0
      %v1583 = vsel %vm688, %v1542, 0
      %v1586 = vsel %vm688, %v1543, 0
      %v1589 = vsel %vm688, %v1544, 0
      %v1592 = vsel %vm688, %v1545, 0
      %v1595 = vsel %vm688, %v1546, 0
      %v1598 = vsel %vm688, %v1547, 0
      %v1601 = vsel %vm737, %v1551, 0
      %1603 = vmatpush.bf16.msra.mxu0 0
      %1604 = vmatpush.bf16.msra.mxu0 0
      %1605 = vmatpush.bf16.msra.mxu0 0
      %1606 = vmatpush.bf16.msra.mxu0 0
      %1607 = vmatpush.bf16.msra.mxu0 0
      %1608 = vmatpush.bf16.msra.mxu0 0
      %1609 = vmatpush.bf16.msra.mxu0 0
      %1610 = vmatpush.bf16.msra.mxu0 %v1601
      %1611 = vmatmul.bf16.gmra.mxu0 %v1553
      %v1612 = vpop.f32.mrf.mxu0
      %v1613 = vadd.f32 0.0, %v1612
      %v1614 = vpop.f32.mrf.mxu0
      %v1615 = vadd.f32 0.0, %v1614
      %1616 = vmatmul.bf16.gmra.mxu0 %v1556
      %v1617 = vpop.f32.mrf.mxu0
      %v1618 = vadd.f32 0.0, %v1617
      %v1619 = vpop.f32.mrf.mxu0
      %v1620 = vadd.f32 0.0, %v1619
      %1621 = vmatmul.bf16.gmra.mxu0 %v1559
      %v1622 = vpop.f32.mrf.mxu0
      %v1623 = vadd.f32 0.0, %v1622
      %v1624 = vpop.f32.mrf.mxu0
      %v1625 = vadd.f32 0.0, %v1624
      %1626 = vmatmul.bf16.gmra.mxu0 %v1562
      %v1627 = vpop.f32.mrf.mxu0
      %v1628 = vadd.f32 0.0, %v1627
      %v1629 = vpop.f32.mrf.mxu0
      %v1630 = vadd.f32 0.0, %v1629
      %1631 = vmatmul.bf16.gmra.mxu0 %v1565
      %v1632 = vpop.f32.mrf.mxu0
      %v1633 = vadd.f32 0.0, %v1632
      %v1634 = vpop.f32.mrf.mxu0
      %v1635 = vadd.f32 0.0, %v1634
      %1636 = vmatmul.bf16.gmra.mxu0 %v1568
      %v1637 = vpop.f32.mrf.mxu0
      %v1638 = vadd.f32 0.0, %v1637
      %v1639 = vpop.f32.mrf.mxu0
      %v1640 = vadd.f32 0.0, %v1639
      %1641 = vmatmul.bf16.gmra.mxu0 %v1571
      %v1642 = vpop.f32.mrf.mxu0
      %v1643 = vadd.f32 0.0, %v1642
      %v1644 = vpop.f32.mrf.mxu0
      %v1645 = vadd.f32 0.0, %v1644
      %1646 = vmatmul.bf16.gmra.mxu0 %v1574
      %v1647 = vpop.f32.mrf.mxu0
      %v1648 = vadd.f32 0.0, %v1647
      %v1649 = vpop.f32.mrf.mxu0
      %v1650 = vadd.f32 0.0, %v1649
      %1651 = vmatmul.bf16.gmra.mxu0 %v1577
      %v1652 = vpop.f32.mrf.mxu0
      %v1653 = vadd.f32 0.0, %v1652
      %v1654 = vpop.f32.mrf.mxu0
      %v1655 = vadd.f32 0.0, %v1654
      %1656 = vmatmul.bf16.gmra.mxu0 %v1580
      %v1657 = vpop.f32.mrf.mxu0
      %v1658 = vadd.f32 0.0, %v1657
      %v1659 = vpop.f32.mrf.mxu0
      %v1660 = vadd.f32 0.0, %v1659
      %1661 = vmatmul.bf16.gmra.mxu0 %v1583
      %v1662 = vpop.f32.mrf.mxu0
      %v1663 = vadd.f32 0.0, %v1662
      %v1664 = vpop.f32.mrf.mxu0
      %v1665 = vadd.f32 0.0, %v1664
      %1666 = vmatmul.bf16.gmra.mxu0 %v1586
      %v1667 = vpop.f32.mrf.mxu0
      %v1668 = vadd.f32 0.0, %v1667
      %v1669 = vpop.f32.mrf.mxu0
      %v1670 = vadd.f32 0.0, %v1669
      %1671 = vmatmul.bf16.gmra.mxu0 %v1589
      %v1672 = vpop.f32.mrf.mxu0
      %v1673 = vadd.f32 0.0, %v1672
      %v1674 = vpop.f32.mrf.mxu0
      %v1675 = vadd.f32 0.0, %v1674
      %1676 = vmatmul.bf16.gmra.mxu0 %v1592
      %v1677 = vpop.f32.mrf.mxu0
      %v1678 = vadd.f32 0.0, %v1677
      %v1679 = vpop.f32.mrf.mxu0
      %v1680 = vadd.f32 0.0, %v1679
      %1681 = vmatmul.bf16.gmra.mxu0 %v1595
      %v1682 = vpop.f32.mrf.mxu0
      %v1683 = vadd.f32 0.0, %v1682
      %v1684 = vpop.f32.mrf.mxu0
      %v1685 = vadd.f32 0.0, %v1684
      %1686 = vmatmul.bf16.gmra.mxu0 %v1598
      %v1687 = vpop.f32.mrf.mxu0
      %v1688 = vadd.f32 0.0, %v1687
      %v1689 = vpop.f32.mrf.mxu0
      %v1690 = vadd.f32 0.0, %v1689
      %1691 = vdwg.mxu0
      %v1692 = vadd.f32 %v1402, %v1613
      %v1693 = vadd.f32 %v1403, %v1615
      %v1694 = vadd.f32 %v1404, %v1618
      %v1695 = vadd.f32 %v1405, %v1620
      %v1696 = vadd.f32 %v1406, %v1623
      %v1697 = vadd.f32 %v1407, %v1625
      %v1698 = vadd.f32 %v1408, %v1628
      %v1699 = vadd.f32 %v1409, %v1630
      %v1700 = vadd.f32 %v1410, %v1633
      %v1701 = vadd.f32 %v1411, %v1635
      %v1702 = vadd.f32 %v1412, %v1638
      %v1703 = vadd.f32 %v1413, %v1640
      %v1704 = vadd.f32 %v1414, %v1643
      %v1705 = vadd.f32 %v1415, %v1645
      %v1706 = vadd.f32 %v1416, %v1648
      %v1707 = vadd.f32 %v1417, %v1650
      %v1708 = vadd.f32 %v1418, %v1653
      %v1709 = vadd.f32 %v1419, %v1655
      %v1710 = vadd.f32 %v1420, %v1658
      %v1711 = vadd.f32 %v1421, %v1660
      %v1712 = vadd.f32 %v1422, %v1663
      %v1713 = vadd.f32 %v1423, %v1665
      %v1714 = vadd.f32 %v1424, %v1668
      %v1715 = vadd.f32 %v1425, %v1670
      %v1716 = vadd.f32 %v1426, %v1673
      %v1717 = vadd.f32 %v1427, %v1675
      %v1718 = vadd.f32 %v1428, %v1678
      %v1719 = vadd.f32 %v1429, %v1680
      %v1720 = vadd.f32 %v1430, %v1683
      %v1721 = vadd.f32 %v1431, %v1685
      %v1722 = vadd.f32 %v1432, %v1688
      %v1723 = vadd.f32 %v1433, %v1690
      %v1724 = vld [vmem:[%s1434] sm:$0xf]
      %v1725 = vld [vmem:[%s1434 + $0x4] sm:$0xf]
      %v1726 = vld [vmem:[%s1434 + $0x8] sm:$0x1]
      %v1727 = vld [vmem:[%s1434 + $0xc] sm:$0xf]
      %v1728 = vld [vmem:[%s1434 + $0x10] sm:$0xf]
      %v1729 = vld [vmem:[%s1434 + $0x14] sm:$0x1]
      %v1730 = vld [vmem:[%s1434 + $0x18] sm:$0xf]
      %v1731 = vld [vmem:[%s1434 + $0x1c] sm:$0xf]
      %v1732 = vld [vmem:[%s1434 + $0x20] sm:$0x1]
      %v1733 = vld [vmem:[%s1434 + $0x24] sm:$0xf]
      %v1734 = vld [vmem:[%s1434 + $0x28] sm:$0xf]
      %v1735 = vld [vmem:[%s1434 + $0x2c] sm:$0x1]
      %v1736 = vld [vmem:[%s1434 + $0x30] sm:$0xf]
      %v1737 = vld [vmem:[%s1434 + $0x34] sm:$0xf]
      %v1738 = vld [vmem:[%s1434 + $0x38] sm:$0x1]
      %v1739 = vld [vmem:[%s1434 + $0x3c] sm:$0xf]
      %v1740 = vld [vmem:[%s1434 + $0x40] sm:$0xf]
      %v1741 = vld [vmem:[%s1434 + $0x44] sm:$0x1]
      %v1742 = vld [vmem:[%s1434 + $0x48] sm:$0xf]
      %v1743 = vld [vmem:[%s1434 + $0x4c] sm:$0xf]
      %v1744 = vld [vmem:[%s1434 + $0x50] sm:$0x1]
      %v1745 = vld [vmem:[%s1434 + $0x54] sm:$0xf]
      %v1746 = vld [vmem:[%s1434 + $0x58] sm:$0xf]
      %v1747 = vld [vmem:[%s1434 + $0x5c] sm:$0x1]
      %v1748 = vld [vmem:[%s1434 + $0x60] sm:$0xf]
      %v1749 = vld [vmem:[%s1434 + $0x64] sm:$0xf]
      %v1750 = vld [vmem:[%s1434 + $0x68] sm:$0x1]
      %v1751 = vld [vmem:[%s1434 + $0x6c] sm:$0xf]
      %v1752 = vld [vmem:[%s1434 + $0x70] sm:$0xf]
      %v1753 = vld [vmem:[%s1434 + $0x74] sm:$0x1]
      %v1754 = vld [vmem:[%s1434 + $0x78] sm:$0xf]
      %v1755 = vld [vmem:[%s1434 + $0x7c] sm:$0xf]
      %v1756 = vld [vmem:[%s1434 + $0x80] sm:$0x1]
      %v1757 = vld [vmem:[%s1434 + $0x84] sm:$0xf]
      %v1758 = vld [vmem:[%s1434 + $0x88] sm:$0xf]
      %v1759 = vld [vmem:[%s1434 + $0x8c] sm:$0x1]
      %v1760 = vld [vmem:[%s1434 + $0x90] sm:$0xf]
      %v1761 = vld [vmem:[%s1434 + $0x94] sm:$0xf]
      %v1762 = vld [vmem:[%s1434 + $0x98] sm:$0x1]
      %v1763 = vld [vmem:[%s1434 + $0x9c] sm:$0xf]
      %v1764 = vld [vmem:[%s1434 + $0xa0] sm:$0xf]
      %v1765 = vld [vmem:[%s1434 + $0xa4] sm:$0x1]
      %v1766 = vld [vmem:[%s1434 + $0xa8] sm:$0xf]
      %v1767 = vld [vmem:[%s1434 + $0xac] sm:$0xf]
      %v1768 = vld [vmem:[%s1434 + $0xb0] sm:$0x1]
      %v1769 = vld [vmem:[%s1434 + $0xb4] sm:$0xf]
      %v1770 = vld [vmem:[%s1434 + $0xb8] sm:$0xf]
      %v1771 = vld [vmem:[%s1434 + $0xbc] sm:$0x1]
      %v1773 = vshrl.u32 %v1724, 16
      %v1775 = vrot.slane %v1773, 4
      %v1776 = vshll.u32 %v1724, 16
      %v1778 = vrot.slane %v1776, 5
      %v1779 = vor.u32 %v1775, %v1778
      %v1780 = vrot.slane %v1779, 4
      %v1782 = vshll.u32 %v1725, 16
      %v1784 = vrot.slane %v1782, 5
      %v1785 = vsel %vm250, %v1780, %v1784
      %v1786 = vshrl.u32 %v1725, 16
      %v1788 = vrot.slane %v1786, 4
      %v1789 = vor.u32 %v1788, %v1784
      %v1790 = vrot.slane %v1789, 4
      %v1792 = vshll.u32 %v1726, 16
      %v1794 = vrot.slane %v1792, 5
      %v1795 = vsel %vm250, %v1790, %v1794
      %v1797 = vshrl.u32 %v1727, 16
      %v1799 = vrot.slane %v1797, 4
      %v1800 = vshll.u32 %v1727, 16
      %v1802 = vrot.slane %v1800, 5
      %v1803 = vor.u32 %v1799, %v1802
      %v1804 = vrot.slane %v1803, 4
      %v1806 = vshll.u32 %v1728, 16
      %v1808 = vrot.slane %v1806, 5
      %v1809 = vsel %vm250, %v1804, %v1808
      %v1810 = vshrl.u32 %v1728, 16
      %v1812 = vrot.slane %v1810, 4
      %v1813 = vor.u32 %v1812, %v1808
      %v1814 = vrot.slane %v1813, 4
      %v1816 = vshll.u32 %v1729, 16
      %v1818 = vrot.slane %v1816, 5
      %v1819 = vsel %vm250, %v1814, %v1818
      %v1821 = vshrl.u32 %v1730, 16
      %v1823 = vrot.slane %v1821, 4
      %v1824 = vshll.u32 %v1730, 16
      %v1826 = vrot.slane %v1824, 5
      %v1827 = vor.u32 %v1823, %v1826
      %v1828 = vrot.slane %v1827, 4
      %v1830 = vshll.u32 %v1731, 16
      %v1832 = vrot.slane %v1830, 5
      %v1833 = vsel %vm250, %v1828, %v1832
      %v1834 = vshrl.u32 %v1731, 16
      %v1836 = vrot.slane %v1834, 4
      %v1837 = vor.u32 %v1836, %v1832
      %v1838 = vrot.slane %v1837, 4
      %v1840 = vshll.u32 %v1732, 16
      %v1842 = vrot.slane %v1840, 5
      %v1843 = vsel %vm250, %v1838, %v1842
      %v1845 = vshrl.u32 %v1733, 16
      %v1847 = vrot.slane %v1845, 4
      %v1848 = vshll.u32 %v1733, 16
      %v1850 = vrot.slane %v1848, 5
      %v1851 = vor.u32 %v1847, %v1850
      %v1852 = vrot.slane %v1851, 4
      %v1854 = vshll.u32 %v1734, 16
      %v1856 = vrot.slane %v1854, 5
      %v1857 = vsel %vm250, %v1852, %v1856
      %v1858 = vshrl.u32 %v1734, 16
      %v1860 = vrot.slane %v1858, 4
      %v1861 = vor.u32 %v1860, %v1856
      %v1862 = vrot.slane %v1861, 4
      %v1864 = vshll.u32 %v1735, 16
      %v1866 = vrot.slane %v1864, 5
      %v1867 = vsel %vm250, %v1862, %v1866
      %v1869 = vshrl.u32 %v1736, 16
      %v1871 = vrot.slane %v1869, 4
      %v1872 = vshll.u32 %v1736, 16
      %v1874 = vrot.slane %v1872, 5
      %v1875 = vor.u32 %v1871, %v1874
      %v1876 = vrot.slane %v1875, 4
      %v1878 = vshll.u32 %v1737, 16
      %v1880 = vrot.slane %v1878, 5
      %v1881 = vsel %vm250, %v1876, %v1880
      %v1882 = vshrl.u32 %v1737, 16
      %v1884 = vrot.slane %v1882, 4
      %v1885 = vor.u32 %v1884, %v1880
      %v1886 = vrot.slane %v1885, 4
      %v1888 = vshll.u32 %v1738, 16
      %v1890 = vrot.slane %v1888, 5
      %v1891 = vsel %vm250, %v1886, %v1890
      %v1893 = vshrl.u32 %v1739, 16
      %v1895 = vrot.slane %v1893, 4
      %v1896 = vshll.u32 %v1739, 16
      %v1898 = vrot.slane %v1896, 5
      %v1899 = vor.u32 %v1895, %v1898
      %v1900 = vrot.slane %v1899, 4
      %v1902 = vshll.u32 %v1740, 16
      %v1904 = vrot.slane %v1902, 5
      %v1905 = vsel %vm250, %v1900, %v1904
      %v1906 = vshrl.u32 %v1740, 16
      %v1908 = vrot.slane %v1906, 4
      %v1909 = vor.u32 %v1908, %v1904
      %v1910 = vrot.slane %v1909, 4
      %v1912 = vshll.u32 %v1741, 16
      %v1914 = vrot.slane %v1912, 5
      %v1915 = vsel %vm250, %v1910, %v1914
      %v1917 = vshrl.u32 %v1742, 16
      %v1919 = vrot.slane %v1917, 4
      %v1920 = vshll.u32 %v1742, 16
      %v1922 = vrot.slane %v1920, 5
      %v1923 = vor.u32 %v1919, %v1922
      %v1924 = vrot.slane %v1923, 4
      %v1926 = vshll.u32 %v1743, 16
      %v1928 = vrot.slane %v1926, 5
      %v1929 = vsel %vm250, %v1924, %v1928
      %v1930 = vshrl.u32 %v1743, 16
      %v1932 = vrot.slane %v1930, 4
      %v1933 = vor.u32 %v1932, %v1928
      %v1934 = vrot.slane %v1933, 4
      %v1936 = vshll.u32 %v1744, 16
      %v1938 = vrot.slane %v1936, 5
      %v1939 = vsel %vm250, %v1934, %v1938
      %v1941 = vshrl.u32 %v1745, 16
      %v1943 = vrot.slane %v1941, 4
      %v1944 = vshll.u32 %v1745, 16
      %v1946 = vrot.slane %v1944, 5
      %v1947 = vor.u32 %v1943, %v1946
      %v1948 = vrot.slane %v1947, 4
      %v1950 = vshll.u32 %v1746, 16
      %v1952 = vrot.slane %v1950, 5
      %v1953 = vsel %vm250, %v1948, %v1952
      %v1954 = vshrl.u32 %v1746, 16
      %v1956 = vrot.slane %v1954, 4
      %v1957 = vor.u32 %v1956, %v1952
      %v1958 = vrot.slane %v1957, 4
      %v1960 = vshll.u32 %v1747, 16
      %v1962 = vrot.slane %v1960, 5
      %v1963 = vsel %vm250, %v1958, %v1962
      %v1965 = vshrl.u32 %v1748, 16
      %v1967 = vrot.slane %v1965, 4
      %v1968 = vshll.u32 %v1748, 16
      %v1970 = vrot.slane %v1968, 5
      %v1971 = vor.u32 %v1967, %v1970
      %v1972 = vrot.slane %v1971, 4
      %v1974 = vshll.u32 %v1749, 16
      %v1976 = vrot.slane %v1974, 5
      %v1977 = vsel %vm250, %v1972, %v1976
      %v1978 = vshrl.u32 %v1749, 16
      %v1980 = vrot.slane %v1978, 4
      %v1981 = vor.u32 %v1980, %v1976
      %v1982 = vrot.slane %v1981, 4
      %v1984 = vshll.u32 %v1750, 16
      %v1986 = vrot.slane %v1984, 5
      %v1987 = vsel %vm250, %v1982, %v1986
      %v1989 = vshrl.u32 %v1751, 16
      %v1991 = vrot.slane %v1989, 4
      %v1992 = vshll.u32 %v1751, 16
      %v1994 = vrot.slane %v1992, 5
      %v1995 = vor.u32 %v1991, %v1994
      %v1996 = vrot.slane %v1995, 4
      %v1998 = vshll.u32 %v1752, 16
      %v2000 = vrot.slane %v1998, 5
      %v2001 = vsel %vm250, %v1996, %v2000
      %v2002 = vshrl.u32 %v1752, 16
      %v2004 = vrot.slane %v2002, 4
      %v2005 = vor.u32 %v2004, %v2000
      %v2006 = vrot.slane %v2005, 4
      %v2008 = vshll.u32 %v1753, 16
      %v2010 = vrot.slane %v2008, 5
      %v2011 = vsel %vm250, %v2006, %v2010
      %v2013 = vshrl.u32 %v1754, 16
      %v2015 = vrot.slane %v2013, 4
      %v2016 = vshll.u32 %v1754, 16
      %v2018 = vrot.slane %v2016, 5
      %v2019 = vor.u32 %v2015, %v2018
      %v2020 = vrot.slane %v2019, 4
      %v2022 = vshll.u32 %v1755, 16
      %v2024 = vrot.slane %v2022, 5
      %v2025 = vsel %vm250, %v2020, %v2024
      %v2026 = vshrl.u32 %v1755, 16
      %v2028 = vrot.slane %v2026, 4
      %v2029 = vor.u32 %v2028, %v2024
      %v2030 = vrot.slane %v2029, 4
      %v2032 = vshll.u32 %v1756, 16
      %v2034 = vrot.slane %v2032, 5
      %v2035 = vsel %vm250, %v2030, %v2034
      %v2037 = vshrl.u32 %v1757, 16
      %v2039 = vrot.slane %v2037, 4
      %v2040 = vshll.u32 %v1757, 16
      %v2042 = vrot.slane %v2040, 5
      %v2043 = vor.u32 %v2039, %v2042
      %v2044 = vrot.slane %v2043, 4
      %v2046 = vshll.u32 %v1758, 16
      %v2048 = vrot.slane %v2046, 5
      %v2049 = vsel %vm250, %v2044, %v2048
      %v2050 = vshrl.u32 %v1758, 16
      %v2052 = vrot.slane %v2050, 4
      %v2053 = vor.u32 %v2052, %v2048
      %v2054 = vrot.slane %v2053, 4
      %v2056 = vshll.u32 %v1759, 16
      %v2058 = vrot.slane %v2056, 5
      %v2059 = vsel %vm250, %v2054, %v2058
      %v2061 = vshrl.u32 %v1760, 16
      %v2063 = vrot.slane %v2061, 4
      %v2064 = vshll.u32 %v1760, 16
      %v2066 = vrot.slane %v2064, 5
      %v2067 = vor.u32 %v2063, %v2066
      %v2068 = vrot.slane %v2067, 4
      %v2070 = vshll.u32 %v1761, 16
      %v2072 = vrot.slane %v2070, 5
      %v2073 = vsel %vm250, %v2068, %v2072
      %v2074 = vshrl.u32 %v1761, 16
      %v2076 = vrot.slane %v2074, 4
      %v2077 = vor.u32 %v2076, %v2072
      %v2078 = vrot.slane %v2077, 4
      %v2080 = vshll.u32 %v1762, 16
      %v2082 = vrot.slane %v2080, 5
      %v2083 = vsel %vm250, %v2078, %v2082
      %v2085 = vshrl.u32 %v1763, 16
      %v2087 = vrot.slane %v2085, 4
      %v2088 = vshll.u32 %v1763, 16
      %v2090 = vrot.slane %v2088, 5
      %v2091 = vor.u32 %v2087, %v2090
      %v2092 = vrot.slane %v2091, 4
      %v2094 = vshll.u32 %v1764, 16
      %v2096 = vrot.slane %v2094, 5
      %v2097 = vsel %vm250, %v2092, %v2096
      %v2098 = vshrl.u32 %v1764, 16
      %v2100 = vrot.slane %v2098, 4
      %v2101 = vor.u32 %v2100, %v2096
      %v2102 = vrot.slane %v2101, 4
      %v2104 = vshll.u32 %v1765, 16
      %v2106 = vrot.slane %v2104, 5
      %v2107 = vsel %vm250, %v2102, %v2106
      %v2109 = vshrl.u32 %v1766, 16
      %v2111 = vrot.slane %v2109, 4
      %v2112 = vshll.u32 %v1766, 16
      %v2114 = vrot.slane %v2112, 5
      %v2115 = vor.u32 %v2111, %v2114
      %v2116 = vrot.slane %v2115, 4
      %v2118 = vshll.u32 %v1767, 16
      %v2120 = vrot.slane %v2118, 5
      %v2121 = vsel %vm250, %v2116, %v2120
      %v2122 = vshrl.u32 %v1767, 16
      %v2124 = vrot.slane %v2122, 4
      %v2125 = vor.u32 %v2124, %v2120
      %v2126 = vrot.slane %v2125, 4
      %v2128 = vshll.u32 %v1768, 16
      %v2130 = vrot.slane %v2128, 5
      %v2131 = vsel %vm250, %v2126, %v2130
      %v2133 = vshrl.u32 %v1769, 16
      %v2135 = vrot.slane %v2133, 4
      %v2136 = vshll.u32 %v1769, 16
      %v2138 = vrot.slane %v2136, 5
      %v2139 = vor.u32 %v2135, %v2138
      %v2140 = vrot.slane %v2139, 4
      %v2142 = vshll.u32 %v1770, 16
      %v2144 = vrot.slane %v2142, 5
      %v2145 = vsel %vm250, %v2140, %v2144
      %v2146 = vshrl.u32 %v1770, 16
      %v2148 = vrot.slane %v2146, 4
      %v2149 = vor.u32 %v2148, %v2144
      %v2150 = vrot.slane %v2149, 4
      %v2152 = vshll.u32 %v1771, 16
      %v2154 = vrot.slane %v2152, 5
      %v2155 = vsel %vm250, %v2150, %v2154
      %v2156 = vld [vmem:[%s1 + $0x8] sm:$0x3]
      %v2157 = vunpack.c.l.b16 %v1785
      %v2158 = vunpack.c.l.b16 %v1795
      %v2159 = vunpack.c.l.b16 %v1809
      %v2160 = vunpack.c.l.b16 %v1819
      %v2161 = vunpack.c.l.b16 %v1833
      %v2162 = vunpack.c.l.b16 %v1843
      %v2163 = vunpack.c.l.b16 %v1857
      %v2164 = vunpack.c.l.b16 %v1867
      %v2165 = vunpack.c.l.b16 %v1881
      %v2166 = vunpack.c.l.b16 %v1891
      %v2167 = vunpack.c.l.b16 %v1905
      %v2168 = vunpack.c.l.b16 %v1915
      %v2169 = vunpack.c.l.b16 %v1929
      %v2170 = vunpack.c.l.b16 %v1939
      %v2171 = vunpack.c.l.b16 %v1953
      %v2172 = vunpack.c.l.b16 %v1963
      %v2173 = vunpack.c.l.b16 %v1977
      %v2174 = vunpack.c.l.b16 %v1987
      %v2175 = vunpack.c.l.b16 %v2001
      %v2176 = vunpack.c.l.b16 %v2011
      %v2177 = vunpack.c.l.b16 %v2025
      %v2178 = vunpack.c.l.b16 %v2035
      %v2179 = vunpack.c.l.b16 %v2049
      %v2180 = vunpack.c.l.b16 %v2059
      %v2181 = vunpack.c.l.b16 %v2073
      %v2182 = vunpack.c.l.b16 %v2083
      %v2183 = vunpack.c.l.b16 %v2097
      %v2184 = vunpack.c.l.b16 %v2107
      %v2185 = vunpack.c.l.b16 %v2121
      %v2186 = vunpack.c.l.b16 %v2131
      %v2187 = vunpack.c.l.b16 %v2145
      %v2188 = vunpack.c.l.b16 %v2155
      %v2189 = vpack.c.b16 %v2158, %v2157
      %v2190 = vpack.c.b16 %v2160, %v2159
      %v2191 = vpack.c.b16 %v2162, %v2161
      %v2192 = vpack.c.b16 %v2164, %v2163
      %v2193 = vpack.c.b16 %v2166, %v2165
      %v2194 = vpack.c.b16 %v2168, %v2167
      %v2195 = vpack.c.b16 %v2170, %v2169
      %v2196 = vpack.c.b16 %v2172, %v2171
      %v2197 = vpack.c.b16 %v2174, %v2173
      %v2198 = vpack.c.b16 %v2176, %v2175
      %v2199 = vpack.c.b16 %v2178, %v2177
      %v2200 = vpack.c.b16 %v2180, %v2179
      %v2201 = vpack.c.b16 %v2182, %v2181
      %v2202 = vpack.c.b16 %v2184, %v2183
      %v2203 = vpack.c.b16 %v2186, %v2185
      %v2204 = vpack.c.b16 %v2188, %v2187
      %v2206 = vsel %vm688, %v2189, 0
      %v2209 = vsel %vm688, %v2190, 0
      %v2212 = vsel %vm688, %v2191, 0
      %v2215 = vsel %vm688, %v2192, 0
      %v2218 = vsel %vm688, %v2193, 0
      %v2221 = vsel %vm688, %v2194, 0
      %v2224 = vsel %vm688, %v2195, 0
      %v2227 = vsel %vm688, %v2196, 0
      %v2230 = vsel %vm688, %v2197, 0
      %v2233 = vsel %vm688, %v2198, 0
      %v2236 = vsel %vm688, %v2199, 0
      %v2239 = vsel %vm688, %v2200, 0
      %v2242 = vsel %vm688, %v2201, 0
      %v2245 = vsel %vm688, %v2202, 0
      %v2248 = vsel %vm688, %v2203, 0
      %v2251 = vsel %vm688, %v2204, 0
      %v2254 = vsel %vm737, %v2156, 0
      %2256 = vmatpush.bf16.msra.mxu0 0
      %2257 = vmatpush.bf16.msra.mxu0 0
      %2258 = vmatpush.bf16.msra.mxu0 0
      %2259 = vmatpush.bf16.msra.mxu0 0
      %2260 = vmatpush.bf16.msra.mxu0 0
      %2261 = vmatpush.bf16.msra.mxu0 0
      %2262 = vmatpush.bf16.msra.mxu0 0
      %2263 = vmatpush.bf16.msra.mxu0 %v2254
      %2264 = vmatmul.bf16.gmra.mxu0 %v2206
      %v2265 = vpop.f32.mrf.mxu0
      %v2266 = vadd.f32 0.0, %v2265
      %v2267 = vpop.f32.mrf.mxu0
      %v2268 = vadd.f32 0.0, %v2267
      %2269 = vmatmul.bf16.gmra.mxu0 %v2209
      %v2270 = vpop.f32.mrf.mxu0
      %v2271 = vadd.f32 0.0, %v2270
      %v2272 = vpop.f32.mrf.mxu0
      %v2273 = vadd.f32 0.0, %v2272
      %2274 = vmatmul.bf16.gmra.mxu0 %v2212
      %v2275 = vpop.f32.mrf.mxu0
      %v2276 = vadd.f32 0.0, %v2275
      %v2277 = vpop.f32.mrf.mxu0
      %v2278 = vadd.f32 0.0, %v2277
      %2279 = vmatmul.bf16.gmra.mxu0 %v2215
      %v2280 = vpop.f32.mrf.mxu0
      %v2281 = vadd.f32 0.0, %v2280
      %v2282 = vpop.f32.mrf.mxu0
      %v2283 = vadd.f32 0.0, %v2282
      %2284 = vmatmul.bf16.gmra.mxu0 %v2218
      %v2285 = vpop.f32.mrf.mxu0
      %v2286 = vadd.f32 0.0, %v2285
      %v2287 = vpop.f32.mrf.mxu0
      %v2288 = vadd.f32 0.0, %v2287
      %2289 = vmatmul.bf16.gmra.mxu0 %v2221
      %v2290 = vpop.f32.mrf.mxu0
      %v2291 = vadd.f32 0.0, %v2290
      %v2292 = vpop.f32.mrf.mxu0
      %v2293 = vadd.f32 0.0, %v2292
      %2294 = vmatmul.bf16.gmra.mxu0 %v2224
      %v2295 = vpop.f32.mrf.mxu0
      %v2296 = vadd.f32 0.0, %v2295
      %v2297 = vpop.f32.mrf.mxu0
      %v2298 = vadd.f32 0.0, %v2297
      %2299 = vmatmul.bf16.gmra.mxu0 %v2227
      %v2300 = vpop.f32.mrf.mxu0
      %v2301 = vadd.f32 0.0, %v2300
      %v2302 = vpop.f32.mrf.mxu0
      %v2303 = vadd.f32 0.0, %v2302
      %2304 = vmatmul.bf16.gmra.mxu0 %v2230
      %v2305 = vpop.f32.mrf.mxu0
      %v2306 = vadd.f32 0.0, %v2305
      %v2307 = vpop.f32.mrf.mxu0
      %v2308 = vadd.f32 0.0, %v2307
      %2309 = vmatmul.bf16.gmra.mxu0 %v2233
      %v2310 = vpop.f32.mrf.mxu0
      %v2311 = vadd.f32 0.0, %v2310
      %v2312 = vpop.f32.mrf.mxu0
      %v2313 = vadd.f32 0.0, %v2312
      %2314 = vmatmul.bf16.gmra.mxu0 %v2236
      %v2315 = vpop.f32.mrf.mxu0
      %v2316 = vadd.f32 0.0, %v2315
      %v2317 = vpop.f32.mrf.mxu0
      %v2318 = vadd.f32 0.0, %v2317
      %2319 = vmatmul.bf16.gmra.mxu0 %v2239
      %v2320 = vpop.f32.mrf.mxu0
      %v2321 = vadd.f32 0.0, %v2320
      %v2322 = vpop.f32.mrf.mxu0
      %v2323 = vadd.f32 0.0, %v2322
      %2324 = vmatmul.bf16.gmra.mxu0 %v2242
      %v2325 = vpop.f32.mrf.mxu0
      %v2326 = vadd.f32 0.0, %v2325
      %v2327 = vpop.f32.mrf.mxu0
      %v2328 = vadd.f32 0.0, %v2327
      %2329 = vmatmul.bf16.gmra.mxu0 %v2245
      %v2330 = vpop.f32.mrf.mxu0
      %v2331 = vadd.f32 0.0, %v2330
      %v2332 = vpop.f32.mrf.mxu0
      %v2333 = vadd.f32 0.0, %v2332
      %2334 = vmatmul.bf16.gmra.mxu0 %v2248
      %v2335 = vpop.f32.mrf.mxu0
      %v2336 = vadd.f32 0.0, %v2335
      %v2337 = vpop.f32.mrf.mxu0
      %v2338 = vadd.f32 0.0, %v2337
      %2339 = vmatmul.bf16.gmra.mxu0 %v2251
      %v2340 = vpop.f32.mrf.mxu0
      %v2341 = vadd.f32 0.0, %v2340
      %v2342 = vpop.f32.mrf.mxu0
      %v2343 = vadd.f32 0.0, %v2342
      %2344 = vdwg.mxu0
      %v2345 = vadd.f32 %v1692, %v2266
      %v2346 = vadd.f32 %v1693, %v2268
      %v2347 = vadd.f32 %v1694, %v2271
      %v2348 = vadd.f32 %v1695, %v2273
      %v2349 = vadd.f32 %v1696, %v2276
      %v2350 = vadd.f32 %v1697, %v2278
      %v2351 = vadd.f32 %v1698, %v2281
      %v2352 = vadd.f32 %v1699, %v2283
      %v2353 = vadd.f32 %v1700, %v2286
      %v2354 = vadd.f32 %v1701, %v2288
      %v2355 = vadd.f32 %v1702, %v2291
      %v2356 = vadd.f32 %v1703, %v2293
      %v2357 = vadd.f32 %v1704, %v2296
      %v2358 = vadd.f32 %v1705, %v2298
      %v2359 = vadd.f32 %v1706, %v2301
      %v2360 = vadd.f32 %v1707, %v2303
      %v2361 = vadd.f32 %v1708, %v2306
      %v2362 = vadd.f32 %v1709, %v2308
      %v2363 = vadd.f32 %v1710, %v2311
      %v2364 = vadd.f32 %v1711, %v2313
      %v2365 = vadd.f32 %v1712, %v2316
      %v2366 = vadd.f32 %v1713, %v2318
      %v2367 = vadd.f32 %v1714, %v2321
      %v2368 = vadd.f32 %v1715, %v2323
      %v2369 = vadd.f32 %v1716, %v2326
      %v2370 = vadd.f32 %v1717, %v2328
      %v2371 = vadd.f32 %v1718, %v2331
      %v2372 = vadd.f32 %v1719, %v2333
      %v2373 = vadd.f32 %v1720, %v2336
      %v2374 = vadd.f32 %v1721, %v2338
      %v2375 = vadd.f32 %v1722, %v2341
      %v2376 = vadd.f32 %v1723, %v2343
      %v2377 = vld [vmem:[%s1434] sm:$0xe]
      %v2378 = vld [vmem:[%s1434 + $0xc] sm:$0xe]
      %v2379 = vld [vmem:[%s1434 + $0x18] sm:$0xe]
      %v2380 = vld [vmem:[%s1434 + $0x24] sm:$0xe]
      %v2381 = vld [vmem:[%s1434 + $0x30] sm:$0xe]
      %v2382 = vld [vmem:[%s1434 + $0x3c] sm:$0xe]
      %v2383 = vld [vmem:[%s1434 + $0x48] sm:$0xe]
      %v2384 = vld [vmem:[%s1434 + $0x54] sm:$0xe]
      %v2385 = vld [vmem:[%s1434 + $0x60] sm:$0xe]
      %v2386 = vld [vmem:[%s1434 + $0x6c] sm:$0xe]
      %v2387 = vld [vmem:[%s1434 + $0x78] sm:$0xe]
      %v2388 = vld [vmem:[%s1434 + $0x84] sm:$0xe]
      %v2389 = vld [vmem:[%s1434 + $0x90] sm:$0xe]
      %v2390 = vld [vmem:[%s1434 + $0x9c] sm:$0xe]
      %v2391 = vld [vmem:[%s1434 + $0xa8] sm:$0xe]
      %v2392 = vld [vmem:[%s1434 + $0xb4] sm:$0xe]
      %v2441 = vrot.slane %v2377, 5
      %v2442 = vrot.slane %v2441, 4
      %v2443 = vrot.slane %v1725, 5
      %v2444 = vsel %vm1100, %v2442, %v2443
      %v2445 = vrot.slane %v2443, 4
      %v2446 = vrot.slane %v1726, 5
      %v2447 = vsel %vm1100, %v2445, %v2446
      %v2448 = vrot.slane %v2378, 5
      %v2449 = vrot.slane %v2448, 4
      %v2450 = vrot.slane %v1728, 5
      %v2451 = vsel %vm1100, %v2449, %v2450
      %v2452 = vrot.slane %v2450, 4
      %v2453 = vrot.slane %v1729, 5
      %v2454 = vsel %vm1100, %v2452, %v2453
      %v2455 = vrot.slane %v2379, 5
      %v2456 = vrot.slane %v2455, 4
      %v2457 = vrot.slane %v1731, 5
      %v2458 = vsel %vm1100, %v2456, %v2457
      %v2459 = vrot.slane %v2457, 4
      %v2460 = vrot.slane %v1732, 5
      %v2461 = vsel %vm1100, %v2459, %v2460
      %v2462 = vrot.slane %v2380, 5
      %v2463 = vrot.slane %v2462, 4
      %v2464 = vrot.slane %v1734, 5
      %v2465 = vsel %vm1100, %v2463, %v2464
      %v2466 = vrot.slane %v2464, 4
      %v2467 = vrot.slane %v1735, 5
      %v2468 = vsel %vm1100, %v2466, %v2467
      %v2469 = vrot.slane %v2381, 5
      %v2470 = vrot.slane %v2469, 4
      %v2471 = vrot.slane %v1737, 5
      %v2472 = vsel %vm1100, %v2470, %v2471
      %v2473 = vrot.slane %v2471, 4
      %v2474 = vrot.slane %v1738, 5
      %v2475 = vsel %vm1100, %v2473, %v2474
      %v2476 = vrot.slane %v2382, 5
      %v2477 = vrot.slane %v2476, 4
      %v2478 = vrot.slane %v1740, 5
      %v2479 = vsel %vm1100, %v2477, %v2478
      %v2480 = vrot.slane %v2478, 4
      %v2481 = vrot.slane %v1741, 5
      %v2482 = vsel %vm1100, %v2480, %v2481
      %v2483 = vrot.slane %v2383, 5
      %v2484 = vrot.slane %v2483, 4
      %v2485 = vrot.slane %v1743, 5
      %v2486 = vsel %vm1100, %v2484, %v2485
      %v2487 = vrot.slane %v2485, 4
      %v2488 = vrot.slane %v1744, 5
      %v2489 = vsel %vm1100, %v2487, %v2488
      %v2490 = vrot.slane %v2384, 5
      %v2491 = vrot.slane %v2490, 4
      %v2492 = vrot.slane %v1746, 5
      %v2493 = vsel %vm1100, %v2491, %v2492
      %v2494 = vrot.slane %v2492, 4
      %v2495 = vrot.slane %v1747, 5
      %v2496 = vsel %vm1100, %v2494, %v2495
      %v2497 = vrot.slane %v2385, 5
      %v2498 = vrot.slane %v2497, 4
      %v2499 = vrot.slane %v1749, 5
      %v2500 = vsel %vm1100, %v2498, %v2499
      %v2501 = vrot.slane %v2499, 4
      %v2502 = vrot.slane %v1750, 5
      %v2503 = vsel %vm1100, %v2501, %v2502
      %v2504 = vrot.slane %v2386, 5
      %v2505 = vrot.slane %v2504, 4
      %v2506 = vrot.slane %v1752, 5
      %v2507 = vsel %vm1100, %v2505, %v2506
      %v2508 = vrot.slane %v2506, 4
      %v2509 = vrot.slane %v1753, 5
      %v2510 = vsel %vm1100, %v2508, %v2509
      %v2511 = vrot.slane %v2387, 5
      %v2512 = vrot.slane %v2511, 4
      %v2513 = vrot.slane %v1755, 5
      %v2514 = vsel %vm1100, %v2512, %v2513
      %v2515 = vrot.slane %v2513, 4
      %v2516 = vrot.slane %v1756, 5
      %v2517 = vsel %vm1100, %v2515, %v2516
      %v2518 = vrot.slane %v2388, 5
      %v2519 = vrot.slane %v2518, 4
      %v2520 = vrot.slane %v1758, 5
      %v2521 = vsel %vm1100, %v2519, %v2520
      %v2522 = vrot.slane %v2520, 4
      %v2523 = vrot.slane %v1759, 5
      %v2524 = vsel %vm1100, %v2522, %v2523
      %v2525 = vrot.slane %v2389, 5
      %v2526 = vrot.slane %v2525, 4
      %v2527 = vrot.slane %v1761, 5
      %v2528 = vsel %vm1100, %v2526, %v2527
      %v2529 = vrot.slane %v2527, 4
      %v2530 = vrot.slane %v1762, 5
      %v2531 = vsel %vm1100, %v2529, %v2530
      %v2532 = vrot.slane %v2390, 5
      %v2533 = vrot.slane %v2532, 4
      %v2534 = vrot.slane %v1764, 5
      %v2535 = vsel %vm1100, %v2533, %v2534
      %v2536 = vrot.slane %v2534, 4
      %v2537 = vrot.slane %v1765, 5
      %v2538 = vsel %vm1100, %v2536, %v2537
      %v2539 = vrot.slane %v2391, 5
      %v2540 = vrot.slane %v2539, 4
      %v2541 = vrot.slane %v1767, 5
      %v2542 = vsel %vm1100, %v2540, %v2541
      %v2543 = vrot.slane %v2541, 4
      %v2544 = vrot.slane %v1768, 5
      %v2545 = vsel %vm1100, %v2543, %v2544
      %v2546 = vrot.slane %v2392, 5
      %v2547 = vrot.slane %v2546, 4
      %v2548 = vrot.slane %v1770, 5
      %v2549 = vsel %vm1100, %v2547, %v2548
      %v2550 = vrot.slane %v2548, 4
      %v2551 = vrot.slane %v1771, 5
      %v2552 = vsel %vm1100, %v2550, %v2551
      %v2553 = vld [vmem:[%s1 + $0x8] sm:$0xc]
      %v2554 = vunpack.c.l.b16 %v2444
      %v2555 = vunpack.c.l.b16 %v2447
      %v2556 = vunpack.c.l.b16 %v2451
      %v2557 = vunpack.c.l.b16 %v2454
      %v2558 = vunpack.c.l.b16 %v2458
      %v2559 = vunpack.c.l.b16 %v2461
      %v2560 = vunpack.c.l.b16 %v2465
      %v2561 = vunpack.c.l.b16 %v2468
      %v2562 = vunpack.c.l.b16 %v2472
      %v2563 = vunpack.c.l.b16 %v2475
      %v2564 = vunpack.c.l.b16 %v2479
      %v2565 = vunpack.c.l.b16 %v2482
      %v2566 = vunpack.c.l.b16 %v2486
      %v2567 = vunpack.c.l.b16 %v2489
      %v2568 = vunpack.c.l.b16 %v2493
      %v2569 = vunpack.c.l.b16 %v2496
      %v2570 = vunpack.c.l.b16 %v2500
      %v2571 = vunpack.c.l.b16 %v2503
      %v2572 = vunpack.c.l.b16 %v2507
      %v2573 = vunpack.c.l.b16 %v2510
      %v2574 = vunpack.c.l.b16 %v2514
      %v2575 = vunpack.c.l.b16 %v2517
      %v2576 = vunpack.c.l.b16 %v2521
      %v2577 = vunpack.c.l.b16 %v2524
      %v2578 = vunpack.c.l.b16 %v2528
      %v2579 = vunpack.c.l.b16 %v2531
      %v2580 = vunpack.c.l.b16 %v2535
      %v2581 = vunpack.c.l.b16 %v2538
      %v2582 = vunpack.c.l.b16 %v2542
      %v2583 = vunpack.c.l.b16 %v2545
      %v2584 = vunpack.c.l.b16 %v2549
      %v2585 = vunpack.c.l.b16 %v2552
      %v2586 = vpack.c.b16 %v2555, %v2554
      %v2587 = vpack.c.b16 %v2557, %v2556
      %v2588 = vpack.c.b16 %v2559, %v2558
      %v2589 = vpack.c.b16 %v2561, %v2560
      %v2590 = vpack.c.b16 %v2563, %v2562
      %v2591 = vpack.c.b16 %v2565, %v2564
      %v2592 = vpack.c.b16 %v2567, %v2566
      %v2593 = vpack.c.b16 %v2569, %v2568
      %v2594 = vpack.c.b16 %v2571, %v2570
      %v2595 = vpack.c.b16 %v2573, %v2572
      %v2596 = vpack.c.b16 %v2575, %v2574
      %v2597 = vpack.c.b16 %v2577, %v2576
      %v2598 = vpack.c.b16 %v2579, %v2578
      %v2599 = vpack.c.b16 %v2581, %v2580
      %v2600 = vpack.c.b16 %v2583, %v2582
      %v2601 = vpack.c.b16 %v2585, %v2584
      %v2603 = vunpack.c.l.b16 %v2553
      %v2604 = vpack.c.b16 %v2603, %v2603
      %v2605 = vrot.slane %v2604, 2
      %v2607 = vsel %vm688, %v2586, 0
      %v2610 = vsel %vm688, %v2587, 0
      %v2613 = vsel %vm688, %v2588, 0
      %v2616 = vsel %vm688, %v2589, 0
      %v2619 = vsel %vm688, %v2590, 0
      %v2622 = vsel %vm688, %v2591, 0
      %v2625 = vsel %vm688, %v2592, 0
      %v2628 = vsel %vm688, %v2593, 0
      %v2631 = vsel %vm688, %v2594, 0
      %v2634 = vsel %vm688, %v2595, 0
      %v2637 = vsel %vm688, %v2596, 0
      %v2640 = vsel %vm688, %v2597, 0
      %v2643 = vsel %vm688, %v2598, 0
      %v2646 = vsel %vm688, %v2599, 0
      %v2649 = vsel %vm688, %v2600, 0
      %v2652 = vsel %vm688, %v2601, 0
      %v2655 = vsel %vm737, %v2605, 0
      %2657 = vmatpush.bf16.msra.mxu0 0
      %2658 = vmatpush.bf16.msra.mxu0 0
      %2659 = vmatpush.bf16.msra.mxu0 0
      %2660 = vmatpush.bf16.msra.mxu0 0
      %2661 = vmatpush.bf16.msra.mxu0 0
      %2662 = vmatpush.bf16.msra.mxu0 0
      %2663 = vmatpush.bf16.msra.mxu0 0
      %2664 = vmatpush.bf16.msra.mxu0 %v2655
      %2665 = vmatmul.bf16.gmra.mxu0 %v2607
      %v2666 = vpop.f32.mrf.mxu0
      %v2667 = vadd.f32 0.0, %v2666
      %v2668 = vpop.f32.mrf.mxu0
      %v2669 = vadd.f32 0.0, %v2668
      %2670 = vmatmul.bf16.gmra.mxu0 %v2610
      %v2671 = vpop.f32.mrf.mxu0
      %v2672 = vadd.f32 0.0, %v2671
      %v2673 = vpop.f32.mrf.mxu0
      %v2674 = vadd.f32 0.0, %v2673
      %2675 = vmatmul.bf16.gmra.mxu0 %v2613
      %v2676 = vpop.f32.mrf.mxu0
      %v2677 = vadd.f32 0.0, %v2676
      %v2678 = vpop.f32.mrf.mxu0
      %v2679 = vadd.f32 0.0, %v2678
      %2680 = vmatmul.bf16.gmra.mxu0 %v2616
      %v2681 = vpop.f32.mrf.mxu0
      %v2682 = vadd.f32 0.0, %v2681
      %v2683 = vpop.f32.mrf.mxu0
      %v2684 = vadd.f32 0.0, %v2683
      %2685 = vmatmul.bf16.gmra.mxu0 %v2619
      %v2686 = vpop.f32.mrf.mxu0
      %v2687 = vadd.f32 0.0, %v2686
      %v2688 = vpop.f32.mrf.mxu0
      %v2689 = vadd.f32 0.0, %v2688
      %2690 = vmatmul.bf16.gmra.mxu0 %v2622
      %v2691 = vpop.f32.mrf.mxu0
      %v2692 = vadd.f32 0.0, %v2691
      %v2693 = vpop.f32.mrf.mxu0
      %v2694 = vadd.f32 0.0, %v2693
      %2695 = vmatmul.bf16.gmra.mxu0 %v2625
      %v2696 = vpop.f32.mrf.mxu0
      %v2697 = vadd.f32 0.0, %v2696
      %v2698 = vpop.f32.mrf.mxu0
      %v2699 = vadd.f32 0.0, %v2698
      %2700 = vmatmul.bf16.gmra.mxu0 %v2628
      %v2701 = vpop.f32.mrf.mxu0
      %v2702 = vadd.f32 0.0, %v2701
      %v2703 = vpop.f32.mrf.mxu0
      %v2704 = vadd.f32 0.0, %v2703
      %2705 = vmatmul.bf16.gmra.mxu0 %v2631
      %v2706 = vpop.f32.mrf.mxu0
      %v2707 = vadd.f32 0.0, %v2706
      %v2708 = vpop.f32.mrf.mxu0
      %v2709 = vadd.f32 0.0, %v2708
      %2710 = vmatmul.bf16.gmra.mxu0 %v2634
      %v2711 = vpop.f32.mrf.mxu0
      %v2712 = vadd.f32 0.0, %v2711
      %v2713 = vpop.f32.mrf.mxu0
      %v2714 = vadd.f32 0.0, %v2713
      %2715 = vmatmul.bf16.gmra.mxu0 %v2637
      %v2716 = vpop.f32.mrf.mxu0
      %v2717 = vadd.f32 0.0, %v2716
      %v2718 = vpop.f32.mrf.mxu0
      %v2719 = vadd.f32 0.0, %v2718
      %2720 = vmatmul.bf16.gmra.mxu0 %v2640
      %v2721 = vpop.f32.mrf.mxu0
      %v2722 = vadd.f32 0.0, %v2721
      %v2723 = vpop.f32.mrf.mxu0
      %v2724 = vadd.f32 0.0, %v2723
      %2725 = vmatmul.bf16.gmra.mxu0 %v2643
      %v2726 = vpop.f32.mrf.mxu0
      %v2727 = vadd.f32 0.0, %v2726
      %v2728 = vpop.f32.mrf.mxu0
      %v2729 = vadd.f32 0.0, %v2728
      %2730 = vmatmul.bf16.gmra.mxu0 %v2646
      %v2731 = vpop.f32.mrf.mxu0
      %v2732 = vadd.f32 0.0, %v2731
      %v2733 = vpop.f32.mrf.mxu0
      %v2734 = vadd.f32 0.0, %v2733
      %2735 = vmatmul.bf16.gmra.mxu0 %v2649
      %v2736 = vpop.f32.mrf.mxu0
      %v2737 = vadd.f32 0.0, %v2736
      %v2738 = vpop.f32.mrf.mxu0
      %v2739 = vadd.f32 0.0, %v2738
      %2740 = vmatmul.bf16.gmra.mxu0 %v2652
      %v2741 = vpop.f32.mrf.mxu0
      %v2742 = vadd.f32 0.0, %v2741
      %v2743 = vpop.f32.mrf.mxu0
      %v2744 = vadd.f32 0.0, %v2743
      %2745 = vdwg.mxu0
      %v2746 = vadd.f32 %v2345, %v2667
      %v2747 = vadd.f32 %v2346, %v2669
      %v2748 = vadd.f32 %v2347, %v2672
      %v2749 = vadd.f32 %v2348, %v2674
      %v2750 = vadd.f32 %v2349, %v2677
      %v2751 = vadd.f32 %v2350, %v2679
      %v2752 = vadd.f32 %v2351, %v2682
      %v2753 = vadd.f32 %v2352, %v2684
      %v2754 = vadd.f32 %v2353, %v2687
      %v2755 = vadd.f32 %v2354, %v2689
      %v2756 = vadd.f32 %v2355, %v2692
      %v2757 = vadd.f32 %v2356, %v2694
      %v2758 = vadd.f32 %v2357, %v2697
      %v2759 = vadd.f32 %v2358, %v2699
      %v2760 = vadd.f32 %v2359, %v2702
      %v2761 = vadd.f32 %v2360, %v2704
      %v2762 = vadd.f32 %v2361, %v2707
      %v2763 = vadd.f32 %v2362, %v2709
      %v2764 = vadd.f32 %v2363, %v2712
      %v2765 = vadd.f32 %v2364, %v2714
      %v2766 = vadd.f32 %v2365, %v2717
      %v2767 = vadd.f32 %v2366, %v2719
      %v2768 = vadd.f32 %v2367, %v2722
      %v2769 = vadd.f32 %v2368, %v2724
      %v2770 = vadd.f32 %v2369, %v2727
      %v2771 = vadd.f32 %v2370, %v2729
      %v2772 = vadd.f32 %v2371, %v2732
      %v2773 = vadd.f32 %v2372, %v2734
      %v2774 = vadd.f32 %v2373, %v2737
      %v2775 = vadd.f32 %v2374, %v2739
      %v2776 = vadd.f32 %v2375, %v2742
      %v2777 = vadd.f32 %v2376, %v2744
      %s2778 = scalar_lea.vmem %s192, 24
      %v2779 = vld [vmem:[%s2778] sm:$0xf]
      %v2780 = vld [vmem:[%s2778 + $0x4] sm:$0xf]
      %v2781 = vld [vmem:[%s2778 + $0xc] sm:$0xf]
      %v2782 = vld [vmem:[%s2778 + $0x10] sm:$0xf]
      %v2783 = vld [vmem:[%s2778 + $0x18] sm:$0xf]
      %v2784 = vld [vmem:[%s2778 + $0x1c] sm:$0xf]
      %v2785 = vld [vmem:[%s2778 + $0x24] sm:$0xf]
      %v2786 = vld [vmem:[%s2778 + $0x28] sm:$0xf]
      %v2787 = vld [vmem:[%s2778 + $0x30] sm:$0xf]
      %v2788 = vld [vmem:[%s2778 + $0x34] sm:$0xf]
      %v2789 = vld [vmem:[%s2778 + $0x3c] sm:$0xf]
      %v2790 = vld [vmem:[%s2778 + $0x40] sm:$0xf]
      %v2791 = vld [vmem:[%s2778 + $0x48] sm:$0xf]
      %v2792 = vld [vmem:[%s2778 + $0x4c] sm:$0xf]
      %v2793 = vld [vmem:[%s2778 + $0x54] sm:$0xf]
      %v2794 = vld [vmem:[%s2778 + $0x58] sm:$0xf]
      %v2795 = vld [vmem:[%s2778 + $0x60] sm:$0xf]
      %v2796 = vld [vmem:[%s2778 + $0x64] sm:$0xf]
      %v2797 = vld [vmem:[%s2778 + $0x6c] sm:$0xf]
      %v2798 = vld [vmem:[%s2778 + $0x70] sm:$0xf]
      %v2799 = vld [vmem:[%s2778 + $0x78] sm:$0xf]
      %v2800 = vld [vmem:[%s2778 + $0x7c] sm:$0xf]
      %v2801 = vld [vmem:[%s2778 + $0x84] sm:$0xf]
      %v2802 = vld [vmem:[%s2778 + $0x88] sm:$0xf]
      %v2803 = vld [vmem:[%s2778 + $0x90] sm:$0xf]
      %v2804 = vld [vmem:[%s2778 + $0x94] sm:$0xf]
      %v2805 = vld [vmem:[%s2778 + $0x9c] sm:$0xf]
      %v2806 = vld [vmem:[%s2778 + $0xa0] sm:$0xf]
      %v2807 = vld [vmem:[%s2778 + $0xa8] sm:$0xf]
      %v2808 = vld [vmem:[%s2778 + $0xac] sm:$0xf]
      %v2809 = vld [vmem:[%s2778 + $0xb4] sm:$0xf]
      %v2810 = vld [vmem:[%s2778 + $0xb8] sm:$0xf]
      %v2811 = vld [vmem:[%s1 + $0xc] sm:$0x3]
      %v2844 = vunpack.c.l.b16 %v2779
      %v2845 = vunpack.c.l.b16 %v2780
      %v2846 = vunpack.c.l.b16 %v2781
      %v2847 = vunpack.c.l.b16 %v2782
      %v2848 = vunpack.c.l.b16 %v2783
      %v2849 = vunpack.c.l.b16 %v2784
      %v2850 = vunpack.c.l.b16 %v2785
      %v2851 = vunpack.c.l.b16 %v2786
      %v2852 = vunpack.c.l.b16 %v2787
      %v2853 = vunpack.c.l.b16 %v2788
      %v2854 = vunpack.c.l.b16 %v2789
      %v2855 = vunpack.c.l.b16 %v2790
      %v2856 = vunpack.c.l.b16 %v2791
      %v2857 = vunpack.c.l.b16 %v2792
      %v2858 = vunpack.c.l.b16 %v2793
      %v2859 = vunpack.c.l.b16 %v2794
      %v2860 = vunpack.c.l.b16 %v2795
      %v2861 = vunpack.c.l.b16 %v2796
      %v2862 = vunpack.c.l.b16 %v2797
      %v2863 = vunpack.c.l.b16 %v2798
      %v2864 = vunpack.c.l.b16 %v2799
      %v2865 = vunpack.c.l.b16 %v2800
      %v2866 = vunpack.c.l.b16 %v2801
      %v2867 = vunpack.c.l.b16 %v2802
      %v2868 = vunpack.c.l.b16 %v2803
      %v2869 = vunpack.c.l.b16 %v2804
      %v2870 = vunpack.c.l.b16 %v2805
      %v2871 = vunpack.c.l.b16 %v2806
      %v2872 = vunpack.c.l.b16 %v2807
      %v2873 = vunpack.c.l.b16 %v2808
      %v2874 = vunpack.c.l.b16 %v2809
      %v2875 = vunpack.c.l.b16 %v2810
      %v2876 = vpack.c.b16 %v2845, %v2844
      %v2877 = vpack.c.b16 %v2847, %v2846
      %v2878 = vpack.c.b16 %v2849, %v2848
      %v2879 = vpack.c.b16 %v2851, %v2850
      %v2880 = vpack.c.b16 %v2853, %v2852
      %v2881 = vpack.c.b16 %v2855, %v2854
      %v2882 = vpack.c.b16 %v2857, %v2856
      %v2883 = vpack.c.b16 %v2859, %v2858
      %v2884 = vpack.c.b16 %v2861, %v2860
      %v2885 = vpack.c.b16 %v2863, %v2862
      %v2886 = vpack.c.b16 %v2865, %v2864
      %v2887 = vpack.c.b16 %v2867, %v2866
      %v2888 = vpack.c.b16 %v2869, %v2868
      %v2889 = vpack.c.b16 %v2871, %v2870
      %v2890 = vpack.c.b16 %v2873, %v2872
      %v2891 = vpack.c.b16 %v2875, %v2874
      %v2893 = vsel %vm688, %v2876, 0
      %v2896 = vsel %vm688, %v2877, 0
      %v2899 = vsel %vm688, %v2878, 0
      %v2902 = vsel %vm688, %v2879, 0
      %v2905 = vsel %vm688, %v2880, 0
      %v2908 = vsel %vm688, %v2881, 0
      %v2911 = vsel %vm688, %v2882, 0
      %v2914 = vsel %vm688, %v2883, 0
      %v2917 = vsel %vm688, %v2884, 0
      %v2920 = vsel %vm688, %v2885, 0
      %v2923 = vsel %vm688, %v2886, 0
      %v2926 = vsel %vm688, %v2887, 0
      %v2929 = vsel %vm688, %v2888, 0
      %v2932 = vsel %vm688, %v2889, 0
      %v2935 = vsel %vm688, %v2890, 0
      %v2938 = vsel %vm688, %v2891, 0
      %v2941 = vsel %vm737, %v2811, 0
      %2943 = vmatpush.bf16.msra.mxu0 0
      %2944 = vmatpush.bf16.msra.mxu0 0
      %2945 = vmatpush.bf16.msra.mxu0 0
      %2946 = vmatpush.bf16.msra.mxu0 0
      %2947 = vmatpush.bf16.msra.mxu0 0
      %2948 = vmatpush.bf16.msra.mxu0 0
      %2949 = vmatpush.bf16.msra.mxu0 0
      %2950 = vmatpush.bf16.msra.mxu0 %v2941
      %2951 = vmatmul.bf16.gmra.mxu0 %v2893
      %v2952 = vpop.f32.mrf.mxu0
      %v2953 = vadd.f32 0.0, %v2952
      %v2954 = vpop.f32.mrf.mxu0
      %v2955 = vadd.f32 0.0, %v2954
      %2956 = vmatmul.bf16.gmra.mxu0 %v2896
      %v2957 = vpop.f32.mrf.mxu0
      %v2958 = vadd.f32 0.0, %v2957
      %v2959 = vpop.f32.mrf.mxu0
      %v2960 = vadd.f32 0.0, %v2959
      %2961 = vmatmul.bf16.gmra.mxu0 %v2899
      %v2962 = vpop.f32.mrf.mxu0
      %v2963 = vadd.f32 0.0, %v2962
      %v2964 = vpop.f32.mrf.mxu0
      %v2965 = vadd.f32 0.0, %v2964
      %2966 = vmatmul.bf16.gmra.mxu0 %v2902
      %v2967 = vpop.f32.mrf.mxu0
      %v2968 = vadd.f32 0.0, %v2967
      %v2969 = vpop.f32.mrf.mxu0
      %v2970 = vadd.f32 0.0, %v2969
      %2971 = vmatmul.bf16.gmra.mxu0 %v2905
      %v2972 = vpop.f32.mrf.mxu0
      %v2973 = vadd.f32 0.0, %v2972
      %v2974 = vpop.f32.mrf.mxu0
      %v2975 = vadd.f32 0.0, %v2974
      %2976 = vmatmul.bf16.gmra.mxu0 %v2908
      %v2977 = vpop.f32.mrf.mxu0
      %v2978 = vadd.f32 0.0, %v2977
      %v2979 = vpop.f32.mrf.mxu0
      %v2980 = vadd.f32 0.0, %v2979
      %2981 = vmatmul.bf16.gmra.mxu0 %v2911
      %v2982 = vpop.f32.mrf.mxu0
      %v2983 = vadd.f32 0.0, %v2982
      %v2984 = vpop.f32.mrf.mxu0
      %v2985 = vadd.f32 0.0, %v2984
      %2986 = vmatmul.bf16.gmra.mxu0 %v2914
      %v2987 = vpop.f32.mrf.mxu0
      %v2988 = vadd.f32 0.0, %v2987
      %v2989 = vpop.f32.mrf.mxu0
      %v2990 = vadd.f32 0.0, %v2989
      %2991 = vmatmul.bf16.gmra.mxu0 %v2917
      %v2992 = vpop.f32.mrf.mxu0
      %v2993 = vadd.f32 0.0, %v2992
      %v2994 = vpop.f32.mrf.mxu0
      %v2995 = vadd.f32 0.0, %v2994
      %2996 = vmatmul.bf16.gmra.mxu0 %v2920
      %v2997 = vpop.f32.mrf.mxu0
      %v2998 = vadd.f32 0.0, %v2997
      %v2999 = vpop.f32.mrf.mxu0
      %v3000 = vadd.f32 0.0, %v2999
      %3001 = vmatmul.bf16.gmra.mxu0 %v2923
      %v3002 = vpop.f32.mrf.mxu0
      %v3003 = vadd.f32 0.0, %v3002
      %v3004 = vpop.f32.mrf.mxu0
      %v3005 = vadd.f32 0.0, %v3004
      %3006 = vmatmul.bf16.gmra.mxu0 %v2926
      %v3007 = vpop.f32.mrf.mxu0
      %v3008 = vadd.f32 0.0, %v3007
      %v3009 = vpop.f32.mrf.mxu0
      %v3010 = vadd.f32 0.0, %v3009
      %3011 = vmatmul.bf16.gmra.mxu0 %v2929
      %v3012 = vpop.f32.mrf.mxu0
      %v3013 = vadd.f32 0.0, %v3012
      %v3014 = vpop.f32.mrf.mxu0
      %v3015 = vadd.f32 0.0, %v3014
      %3016 = vmatmul.bf16.gmra.mxu0 %v2932
      %v3017 = vpop.f32.mrf.mxu0
      %v3018 = vadd.f32 0.0, %v3017
      %v3019 = vpop.f32.mrf.mxu0
      %v3020 = vadd.f32 0.0, %v3019
      %3021 = vmatmul.bf16.gmra.mxu0 %v2935
      %v3022 = vpop.f32.mrf.mxu0
      %v3023 = vadd.f32 0.0, %v3022
      %v3024 = vpop.f32.mrf.mxu0
      %v3025 = vadd.f32 0.0, %v3024
      %3026 = vmatmul.bf16.gmra.mxu0 %v2938
      %v3027 = vpop.f32.mrf.mxu0
      %v3028 = vadd.f32 0.0, %v3027
      %v3029 = vpop.f32.mrf.mxu0
      %v3030 = vadd.f32 0.0, %v3029
      %3031 = vdwg.mxu0
      %v3032 = vadd.f32 %v2746, %v2953
      %v3033 = vadd.f32 %v2747, %v2955
      %v3034 = vadd.f32 %v2748, %v2958
      %v3035 = vadd.f32 %v2749, %v2960
      %v3036 = vadd.f32 %v2750, %v2963
      %v3037 = vadd.f32 %v2751, %v2965
      %v3038 = vadd.f32 %v2752, %v2968
      %v3039 = vadd.f32 %v2753, %v2970
      %v3040 = vadd.f32 %v2754, %v2973
      %v3041 = vadd.f32 %v2755, %v2975
      %v3042 = vadd.f32 %v2756, %v2978
      %v3043 = vadd.f32 %v2757, %v2980
      %v3044 = vadd.f32 %v2758, %v2983
      %v3045 = vadd.f32 %v2759, %v2985
      %v3046 = vadd.f32 %v2760, %v2988
      %v3047 = vadd.f32 %v2761, %v2990
      %v3048 = vadd.f32 %v2762, %v2993
      %v3049 = vadd.f32 %v2763, %v2995
      %v3050 = vadd.f32 %v2764, %v2998
      %v3051 = vadd.f32 %v2765, %v3000
      %v3052 = vadd.f32 %v2766, %v3003
      %v3053 = vadd.f32 %v2767, %v3005
      %v3054 = vadd.f32 %v2768, %v3008
      %v3055 = vadd.f32 %v2769, %v3010
      %v3056 = vadd.f32 %v2770, %v3013
      %v3057 = vadd.f32 %v2771, %v3015
      %v3058 = vadd.f32 %v2772, %v3018
      %v3059 = vadd.f32 %v2773, %v3020
      %v3060 = vadd.f32 %v2774, %v3023
      %v3061 = vadd.f32 %v2775, %v3025
      %v3062 = vadd.f32 %v2776, %v3028
      %v3063 = vadd.f32 %v2777, %v3030
      %v3064 = vld [vmem:[%s2778] sm:$0xf]
      %v3065 = vld [vmem:[%s2778 + $0x4] sm:$0xf]
      %v3066 = vld [vmem:[%s2778 + $0x8] sm:$0x1]
      %v3067 = vld [vmem:[%s2778 + $0xc] sm:$0xf]
      %v3068 = vld [vmem:[%s2778 + $0x10] sm:$0xf]
      %v3069 = vld [vmem:[%s2778 + $0x14] sm:$0x1]
      %v3070 = vld [vmem:[%s2778 + $0x18] sm:$0xf]
      %v3071 = vld [vmem:[%s2778 + $0x1c] sm:$0xf]
      %v3072 = vld [vmem:[%s2778 + $0x20] sm:$0x1]
      %v3073 = vld [vmem:[%s2778 + $0x24] sm:$0xf]
      %v3074 = vld [vmem:[%s2778 + $0x28] sm:$0xf]
      %v3075 = vld [vmem:[%s2778 + $0x2c] sm:$0x1]
      %v3076 = vld [vmem:[%s2778 + $0x30] sm:$0xf]
      %v3077 = vld [vmem:[%s2778 + $0x34] sm:$0xf]
      %v3078 = vld [vmem:[%s2778 + $0x38] sm:$0x1]
      %v3079 = vld [vmem:[%s2778 + $0x3c] sm:$0xf]
      %v3080 = vld [vmem:[%s2778 + $0x40] sm:$0xf]
      %v3081 = vld [vmem:[%s2778 + $0x44] sm:$0x1]
      %v3082 = vld [vmem:[%s2778 + $0x48] sm:$0xf]
      %v3083 = vld [vmem:[%s2778 + $0x4c] sm:$0xf]
      %v3084 = vld [vmem:[%s2778 + $0x50] sm:$0x1]
      %v3085 = vld [vmem:[%s2778 + $0x54] sm:$0xf]
      %v3086 = vld [vmem:[%s2778 + $0x58] sm:$0xf]
      %v3087 = vld [vmem:[%s2778 + $0x5c] sm:$0x1]
      %v3088 = vld [vmem:[%s2778 + $0x60] sm:$0xf]
      %v3089 = vld [vmem:[%s2778 + $0x64] sm:$0xf]
      %v3090 = vld [vmem:[%s2778 + $0x68] sm:$0x1]
      %v3091 = vld [vmem:[%s2778 + $0x6c] sm:$0xf]
      %v3092 = vld [vmem:[%s2778 + $0x70] sm:$0xf]
      %v3093 = vld [vmem:[%s2778 + $0x74] sm:$0x1]
      %v3094 = vld [vmem:[%s2778 + $0x78] sm:$0xf]
      %v3095 = vld [vmem:[%s2778 + $0x7c] sm:$0xf]
      %v3096 = vld [vmem:[%s2778 + $0x80] sm:$0x1]
      %v3097 = vld [vmem:[%s2778 + $0x84] sm:$0xf]
      %v3098 = vld [vmem:[%s2778 + $0x88] sm:$0xf]
      %v3099 = vld [vmem:[%s2778 + $0x8c] sm:$0x1]
      %v3100 = vld [vmem:[%s2778 + $0x90] sm:$0xf]
      %v3101 = vld [vmem:[%s2778 + $0x94] sm:$0xf]
      %v3102 = vld [vmem:[%s2778 + $0x98] sm:$0x1]
      %v3103 = vld [vmem:[%s2778 + $0x9c] sm:$0xf]
      %v3104 = vld [vmem:[%s2778 + $0xa0] sm:$0xf]
      %v3105 = vld [vmem:[%s2778 + $0xa4] sm:$0x1]
      %v3106 = vld [vmem:[%s2778 + $0xa8] sm:$0xf]
      %v3107 = vld [vmem:[%s2778 + $0xac] sm:$0xf]
      %v3108 = vld [vmem:[%s2778 + $0xb0] sm:$0x1]
      %v3109 = vld [vmem:[%s2778 + $0xb4] sm:$0xf]
      %v3110 = vld [vmem:[%s2778 + $0xb8] sm:$0xf]
      %v3111 = vld [vmem:[%s2778 + $0xbc] sm:$0x1]
      %v3113 = vshrl.u32 %v3064, 16
      %v3115 = vrot.slane %v3113, 4
      %v3116 = vshll.u32 %v3064, 16
      %v3118 = vrot.slane %v3116, 5
      %v3119 = vor.u32 %v3115, %v3118
      %v3120 = vrot.slane %v3119, 4
      %v3122 = vshll.u32 %v3065, 16
      %v3124 = vrot.slane %v3122, 5
      %v3125 = vsel %vm250, %v3120, %v3124
      %v3126 = vshrl.u32 %v3065, 16
      %v3128 = vrot.slane %v3126, 4
      %v3129 = vor.u32 %v3128, %v3124
      %v3130 = vrot.slane %v3129, 4
      %v3132 = vshll.u32 %v3066, 16
      %v3134 = vrot.slane %v3132, 5
      %v3135 = vsel %vm250, %v3130, %v3134
      %v3137 = vshrl.u32 %v3067, 16
      %v3139 = vrot.slane %v3137, 4
      %v3140 = vshll.u32 %v3067, 16
      %v3142 = vrot.slane %v3140, 5
      %v3143 = vor.u32 %v3139, %v3142
      %v3144 = vrot.slane %v3143, 4
      %v3146 = vshll.u32 %v3068, 16
      %v3148 = vrot.slane %v3146, 5
      %v3149 = vsel %vm250, %v3144, %v3148
      %v3150 = vshrl.u32 %v3068, 16
      %v3152 = vrot.slane %v3150, 4
      %v3153 = vor.u32 %v3152, %v3148
      %v3154 = vrot.slane %v3153, 4
      %v3156 = vshll.u32 %v3069, 16
      %v3158 = vrot.slane %v3156, 5
      %v3159 = vsel %vm250, %v3154, %v3158
      %v3161 = vshrl.u32 %v3070, 16
      %v3163 = vrot.slane %v3161, 4
      %v3164 = vshll.u32 %v3070, 16
      %v3166 = vrot.slane %v3164, 5
      %v3167 = vor.u32 %v3163, %v3166
      %v3168 = vrot.slane %v3167, 4
      %v3170 = vshll.u32 %v3071, 16
      %v3172 = vrot.slane %v3170, 5
      %v3173 = vsel %vm250, %v3168, %v3172
      %v3174 = vshrl.u32 %v3071, 16
      %v3176 = vrot.slane %v3174, 4
      %v3177 = vor.u32 %v3176, %v3172
      %v3178 = vrot.slane %v3177, 4
      %v3180 = vshll.u32 %v3072, 16
      %v3182 = vrot.slane %v3180, 5
      %v3183 = vsel %vm250, %v3178, %v3182
      %v3185 = vshrl.u32 %v3073, 16
      %v3187 = vrot.slane %v3185, 4
      %v3188 = vshll.u32 %v3073, 16
      %v3190 = vrot.slane %v3188, 5
      %v3191 = vor.u32 %v3187, %v3190
      %v3192 = vrot.slane %v3191, 4
      %v3194 = vshll.u32 %v3074, 16
      %v3196 = vrot.slane %v3194, 5
      %v3197 = vsel %vm250, %v3192, %v3196
      %v3198 = vshrl.u32 %v3074, 16
      %v3200 = vrot.slane %v3198, 4
      %v3201 = vor.u32 %v3200, %v3196
      %v3202 = vrot.slane %v3201, 4
      %v3204 = vshll.u32 %v3075, 16
      %v3206 = vrot.slane %v3204, 5
      %v3207 = vsel %vm250, %v3202, %v3206
      %v3209 = vshrl.u32 %v3076, 16
      %v3211 = vrot.slane %v3209, 4
      %v3212 = vshll.u32 %v3076, 16
      %v3214 = vrot.slane %v3212, 5
      %v3215 = vor.u32 %v3211, %v3214
      %v3216 = vrot.slane %v3215, 4
      %v3218 = vshll.u32 %v3077, 16
      %v3220 = vrot.slane %v3218, 5
      %v3221 = vsel %vm250, %v3216, %v3220
      %v3222 = vshrl.u32 %v3077, 16
      %v3224 = vrot.slane %v3222, 4
      %v3225 = vor.u32 %v3224, %v3220
      %v3226 = vrot.slane %v3225, 4
      %v3228 = vshll.u32 %v3078, 16
      %v3230 = vrot.slane %v3228, 5
      %v3231 = vsel %vm250, %v3226, %v3230
      %v3233 = vshrl.u32 %v3079, 16
      %v3235 = vrot.slane %v3233, 4
      %v3236 = vshll.u32 %v3079, 16
      %v3238 = vrot.slane %v3236, 5
      %v3239 = vor.u32 %v3235, %v3238
      %v3240 = vrot.slane %v3239, 4
      %v3242 = vshll.u32 %v3080, 16
      %v3244 = vrot.slane %v3242, 5
      %v3245 = vsel %vm250, %v3240, %v3244
      %v3246 = vshrl.u32 %v3080, 16
      %v3248 = vrot.slane %v3246, 4
      %v3249 = vor.u32 %v3248, %v3244
      %v3250 = vrot.slane %v3249, 4
      %v3252 = vshll.u32 %v3081, 16
      %v3254 = vrot.slane %v3252, 5
      %v3255 = vsel %vm250, %v3250, %v3254
      %v3257 = vshrl.u32 %v3082, 16
      %v3259 = vrot.slane %v3257, 4
      %v3260 = vshll.u32 %v3082, 16
      %v3262 = vrot.slane %v3260, 5
      %v3263 = vor.u32 %v3259, %v3262
      %v3264 = vrot.slane %v3263, 4
      %v3266 = vshll.u32 %v3083, 16
      %v3268 = vrot.slane %v3266, 5
      %v3269 = vsel %vm250, %v3264, %v3268
      %v3270 = vshrl.u32 %v3083, 16
      %v3272 = vrot.slane %v3270, 4
      %v3273 = vor.u32 %v3272, %v3268
      %v3274 = vrot.slane %v3273, 4
      %v3276 = vshll.u32 %v3084, 16
      %v3278 = vrot.slane %v3276, 5
      %v3279 = vsel %vm250, %v3274, %v3278
      %v3281 = vshrl.u32 %v3085, 16
      %v3283 = vrot.slane %v3281, 4
      %v3284 = vshll.u32 %v3085, 16
      %v3286 = vrot.slane %v3284, 5
      %v3287 = vor.u32 %v3283, %v3286
      %v3288 = vrot.slane %v3287, 4
      %v3290 = vshll.u32 %v3086, 16
      %v3292 = vrot.slane %v3290, 5
      %v3293 = vsel %vm250, %v3288, %v3292
      %v3294 = vshrl.u32 %v3086, 16
      %v3296 = vrot.slane %v3294, 4
      %v3297 = vor.u32 %v3296, %v3292
      %v3298 = vrot.slane %v3297, 4
      %v3300 = vshll.u32 %v3087, 16
      %v3302 = vrot.slane %v3300, 5
      %v3303 = vsel %vm250, %v3298, %v3302
      %v3305 = vshrl.u32 %v3088, 16
      %v3307 = vrot.slane %v3305, 4
      %v3308 = vshll.u32 %v3088, 16
      %v3310 = vrot.slane %v3308, 5
      %v3311 = vor.u32 %v3307, %v3310
      %v3312 = vrot.slane %v3311, 4
      %v3314 = vshll.u32 %v3089, 16
      %v3316 = vrot.slane %v3314, 5
      %v3317 = vsel %vm250, %v3312, %v3316
      %v3318 = vshrl.u32 %v3089, 16
      %v3320 = vrot.slane %v3318, 4
      %v3321 = vor.u32 %v3320, %v3316
      %v3322 = vrot.slane %v3321, 4
      %v3324 = vshll.u32 %v3090, 16
      %v3326 = vrot.slane %v3324, 5
      %v3327 = vsel %vm250, %v3322, %v3326
      %v3329 = vshrl.u32 %v3091, 16
      %v3331 = vrot.slane %v3329, 4
      %v3332 = vshll.u32 %v3091, 16
      %v3334 = vrot.slane %v3332, 5
      %v3335 = vor.u32 %v3331, %v3334
      %v3336 = vrot.slane %v3335, 4
      %v3338 = vshll.u32 %v3092, 16
      %v3340 = vrot.slane %v3338, 5
      %v3341 = vsel %vm250, %v3336, %v3340
      %v3342 = vshrl.u32 %v3092, 16
      %v3344 = vrot.slane %v3342, 4
      %v3345 = vor.u32 %v3344, %v3340
      %v3346 = vrot.slane %v3345, 4
      %v3348 = vshll.u32 %v3093, 16
      %v3350 = vrot.slane %v3348, 5
      %v3351 = vsel %vm250, %v3346, %v3350
      %v3353 = vshrl.u32 %v3094, 16
      %v3355 = vrot.slane %v3353, 4
      %v3356 = vshll.u32 %v3094, 16
      %v3358 = vrot.slane %v3356, 5
      %v3359 = vor.u32 %v3355, %v3358
      %v3360 = vrot.slane %v3359, 4
      %v3362 = vshll.u32 %v3095, 16
      %v3364 = vrot.slane %v3362, 5
      %v3365 = vsel %vm250, %v3360, %v3364
      %v3366 = vshrl.u32 %v3095, 16
      %v3368 = vrot.slane %v3366, 4
      %v3369 = vor.u32 %v3368, %v3364
      %v3370 = vrot.slane %v3369, 4
      %v3372 = vshll.u32 %v3096, 16
      %v3374 = vrot.slane %v3372, 5
      %v3375 = vsel %vm250, %v3370, %v3374
      %v3377 = vshrl.u32 %v3097, 16
      %v3379 = vrot.slane %v3377, 4
      %v3380 = vshll.u32 %v3097, 16
      %v3382 = vrot.slane %v3380, 5
      %v3383 = vor.u32 %v3379, %v3382
      %v3384 = vrot.slane %v3383, 4
      %v3386 = vshll.u32 %v3098, 16
      %v3388 = vrot.slane %v3386, 5
      %v3389 = vsel %vm250, %v3384, %v3388
      %v3390 = vshrl.u32 %v3098, 16
      %v3392 = vrot.slane %v3390, 4
      %v3393 = vor.u32 %v3392, %v3388
      %v3394 = vrot.slane %v3393, 4
      %v3396 = vshll.u32 %v3099, 16
      %v3398 = vrot.slane %v3396, 5
      %v3399 = vsel %vm250, %v3394, %v3398
      %v3401 = vshrl.u32 %v3100, 16
      %v3403 = vrot.slane %v3401, 4
      %v3404 = vshll.u32 %v3100, 16
      %v3406 = vrot.slane %v3404, 5
      %v3407 = vor.u32 %v3403, %v3406
      %v3408 = vrot.slane %v3407, 4
      %v3410 = vshll.u32 %v3101, 16
      %v3412 = vrot.slane %v3410, 5
      %v3413 = vsel %vm250, %v3408, %v3412
      %v3414 = vshrl.u32 %v3101, 16
      %v3416 = vrot.slane %v3414, 4
      %v3417 = vor.u32 %v3416, %v3412
      %v3418 = vrot.slane %v3417, 4
      %v3420 = vshll.u32 %v3102, 16
      %v3422 = vrot.slane %v3420, 5
      %v3423 = vsel %vm250, %v3418, %v3422
      %v3425 = vshrl.u32 %v3103, 16
      %v3427 = vrot.slane %v3425, 4
      %v3428 = vshll.u32 %v3103, 16
      %v3430 = vrot.slane %v3428, 5
      %v3431 = vor.u32 %v3427, %v3430
      %v3432 = vrot.slane %v3431, 4
      %v3434 = vshll.u32 %v3104, 16
      %v3436 = vrot.slane %v3434, 5
      %v3437 = vsel %vm250, %v3432, %v3436
      %v3438 = vshrl.u32 %v3104, 16
      %v3440 = vrot.slane %v3438, 4
      %v3441 = vor.u32 %v3440, %v3436
      %v3442 = vrot.slane %v3441, 4
      %v3444 = vshll.u32 %v3105, 16
      %v3446 = vrot.slane %v3444, 5
      %v3447 = vsel %vm250, %v3442, %v3446
      %v3449 = vshrl.u32 %v3106, 16
      %v3451 = vrot.slane %v3449, 4
      %v3452 = vshll.u32 %v3106, 16
      %v3454 = vrot.slane %v3452, 5
      %v3455 = vor.u32 %v3451, %v3454
      %v3456 = vrot.slane %v3455, 4
      %v3458 = vshll.u32 %v3107, 16
      %v3460 = vrot.slane %v3458, 5
      %v3461 = vsel %vm250, %v3456, %v3460
      %v3462 = vshrl.u32 %v3107, 16
      %v3464 = vrot.slane %v3462, 4
      %v3465 = vor.u32 %v3464, %v3460
      %v3466 = vrot.slane %v3465, 4
      %v3468 = vshll.u32 %v3108, 16
      %v3470 = vrot.slane %v3468, 5
      %v3471 = vsel %vm250, %v3466, %v3470
      %v3473 = vshrl.u32 %v3109, 16
      %v3475 = vrot.slane %v3473, 4
      %v3476 = vshll.u32 %v3109, 16
      %v3478 = vrot.slane %v3476, 5
      %v3479 = vor.u32 %v3475, %v3478
      %v3480 = vrot.slane %v3479, 4
      %v3482 = vshll.u32 %v3110, 16
      %v3484 = vrot.slane %v3482, 5
      %v3485 = vsel %vm250, %v3480, %v3484
      %v3486 = vshrl.u32 %v3110, 16
      %v3488 = vrot.slane %v3486, 4
      %v3489 = vor.u32 %v3488, %v3484
      %v3490 = vrot.slane %v3489, 4
      %v3492 = vshll.u32 %v3111, 16
      %v3494 = vrot.slane %v3492, 5
      %v3495 = vsel %vm250, %v3490, %v3494
      %v3496 = vld [vmem:[%s1 + $0xc] sm:$0xc]
      %v3497 = vunpack.c.l.b16 %v3125
      %v3498 = vunpack.c.l.b16 %v3135
      %v3499 = vunpack.c.l.b16 %v3149
      %v3500 = vunpack.c.l.b16 %v3159
      %v3501 = vunpack.c.l.b16 %v3173
      %v3502 = vunpack.c.l.b16 %v3183
      %v3503 = vunpack.c.l.b16 %v3197
      %v3504 = vunpack.c.l.b16 %v3207
      %v3505 = vunpack.c.l.b16 %v3221
      %v3506 = vunpack.c.l.b16 %v3231
      %v3507 = vunpack.c.l.b16 %v3245
      %v3508 = vunpack.c.l.b16 %v3255
      %v3509 = vunpack.c.l.b16 %v3269
      %v3510 = vunpack.c.l.b16 %v3279
      %v3511 = vunpack.c.l.b16 %v3293
      %v3512 = vunpack.c.l.b16 %v3303
      %v3513 = vunpack.c.l.b16 %v3317
      %v3514 = vunpack.c.l.b16 %v3327
      %v3515 = vunpack.c.l.b16 %v3341
      %v3516 = vunpack.c.l.b16 %v3351
      %v3517 = vunpack.c.l.b16 %v3365
      %v3518 = vunpack.c.l.b16 %v3375
      %v3519 = vunpack.c.l.b16 %v3389
      %v3520 = vunpack.c.l.b16 %v3399
      %v3521 = vunpack.c.l.b16 %v3413
      %v3522 = vunpack.c.l.b16 %v3423
      %v3523 = vunpack.c.l.b16 %v3437
      %v3524 = vunpack.c.l.b16 %v3447
      %v3525 = vunpack.c.l.b16 %v3461
      %v3526 = vunpack.c.l.b16 %v3471
      %v3527 = vunpack.c.l.b16 %v3485
      %v3528 = vunpack.c.l.b16 %v3495
      %v3529 = vpack.c.b16 %v3498, %v3497
      %v3530 = vpack.c.b16 %v3500, %v3499
      %v3531 = vpack.c.b16 %v3502, %v3501
      %v3532 = vpack.c.b16 %v3504, %v3503
      %v3533 = vpack.c.b16 %v3506, %v3505
      %v3534 = vpack.c.b16 %v3508, %v3507
      %v3535 = vpack.c.b16 %v3510, %v3509
      %v3536 = vpack.c.b16 %v3512, %v3511
      %v3537 = vpack.c.b16 %v3514, %v3513
      %v3538 = vpack.c.b16 %v3516, %v3515
      %v3539 = vpack.c.b16 %v3518, %v3517
      %v3540 = vpack.c.b16 %v3520, %v3519
      %v3541 = vpack.c.b16 %v3522, %v3521
      %v3542 = vpack.c.b16 %v3524, %v3523
      %v3543 = vpack.c.b16 %v3526, %v3525
      %v3544 = vpack.c.b16 %v3528, %v3527
      %v3546 = vunpack.c.l.b16 %v3496
      %v3547 = vpack.c.b16 %v3546, %v3546
      %v3548 = vrot.slane %v3547, 2
      %v3550 = vsel %vm688, %v3529, 0
      %v3553 = vsel %vm688, %v3530, 0
      %v3556 = vsel %vm688, %v3531, 0
      %v3559 = vsel %vm688, %v3532, 0
      %v3562 = vsel %vm688, %v3533, 0
      %v3565 = vsel %vm688, %v3534, 0
      %v3568 = vsel %vm688, %v3535, 0
      %v3571 = vsel %vm688, %v3536, 0
      %v3574 = vsel %vm688, %v3537, 0
      %v3577 = vsel %vm688, %v3538, 0
      %v3580 = vsel %vm688, %v3539, 0
      %v3583 = vsel %vm688, %v3540, 0
      %v3586 = vsel %vm688, %v3541, 0
      %v3589 = vsel %vm688, %v3542, 0
      %v3592 = vsel %vm688, %v3543, 0
      %v3595 = vsel %vm688, %v3544, 0
      %v3598 = vsel %vm737, %v3548, 0
      %3600 = vmatpush.bf16.msra.mxu0 0
      %3601 = vmatpush.bf16.msra.mxu0 0
      %3602 = vmatpush.bf16.msra.mxu0 0
      %3603 = vmatpush.bf16.msra.mxu0 0
      %3604 = vmatpush.bf16.msra.mxu0 0
      %3605 = vmatpush.bf16.msra.mxu0 0
      %3606 = vmatpush.bf16.msra.mxu0 0
      %3607 = vmatpush.bf16.msra.mxu0 %v3598
      %3608 = vmatmul.bf16.gmra.mxu0 %v3550
      %v3609 = vpop.f32.mrf.mxu0
      %v3610 = vadd.f32 0.0, %v3609
      %v3611 = vpop.f32.mrf.mxu0
      %v3612 = vadd.f32 0.0, %v3611
      %3613 = vmatmul.bf16.gmra.mxu0 %v3553
      %v3614 = vpop.f32.mrf.mxu0
      %v3615 = vadd.f32 0.0, %v3614
      %v3616 = vpop.f32.mrf.mxu0
      %v3617 = vadd.f32 0.0, %v3616
      %3618 = vmatmul.bf16.gmra.mxu0 %v3556
      %v3619 = vpop.f32.mrf.mxu0
      %v3620 = vadd.f32 0.0, %v3619
      %v3621 = vpop.f32.mrf.mxu0
      %v3622 = vadd.f32 0.0, %v3621
      %3623 = vmatmul.bf16.gmra.mxu0 %v3559
      %v3624 = vpop.f32.mrf.mxu0
      %v3625 = vadd.f32 0.0, %v3624
      %v3626 = vpop.f32.mrf.mxu0
      %v3627 = vadd.f32 0.0, %v3626
      %3628 = vmatmul.bf16.gmra.mxu0 %v3562
      %v3629 = vpop.f32.mrf.mxu0
      %v3630 = vadd.f32 0.0, %v3629
      %v3631 = vpop.f32.mrf.mxu0
      %v3632 = vadd.f32 0.0, %v3631
      %3633 = vmatmul.bf16.gmra.mxu0 %v3565
      %v3634 = vpop.f32.mrf.mxu0
      %v3635 = vadd.f32 0.0, %v3634
      %v3636 = vpop.f32.mrf.mxu0
      %v3637 = vadd.f32 0.0, %v3636
      %3638 = vmatmul.bf16.gmra.mxu0 %v3568
      %v3639 = vpop.f32.mrf.mxu0
      %v3640 = vadd.f32 0.0, %v3639
      %v3641 = vpop.f32.mrf.mxu0
      %v3642 = vadd.f32 0.0, %v3641
      %3643 = vmatmul.bf16.gmra.mxu0 %v3571
      %v3644 = vpop.f32.mrf.mxu0
      %v3645 = vadd.f32 0.0, %v3644
      %v3646 = vpop.f32.mrf.mxu0
      %v3647 = vadd.f32 0.0, %v3646
      %3648 = vmatmul.bf16.gmra.mxu0 %v3574
      %v3649 = vpop.f32.mrf.mxu0
      %v3650 = vadd.f32 0.0, %v3649
      %v3651 = vpop.f32.mrf.mxu0
      %v3652 = vadd.f32 0.0, %v3651
      %3653 = vmatmul.bf16.gmra.mxu0 %v3577
      %v3654 = vpop.f32.mrf.mxu0
      %v3655 = vadd.f32 0.0, %v3654
      %v3656 = vpop.f32.mrf.mxu0
      %v3657 = vadd.f32 0.0, %v3656
      %3658 = vmatmul.bf16.gmra.mxu0 %v3580
      %v3659 = vpop.f32.mrf.mxu0
      %v3660 = vadd.f32 0.0, %v3659
      %v3661 = vpop.f32.mrf.mxu0
      %v3662 = vadd.f32 0.0, %v3661
      %3663 = vmatmul.bf16.gmra.mxu0 %v3583
      %v3664 = vpop.f32.mrf.mxu0
      %v3665 = vadd.f32 0.0, %v3664
      %v3666 = vpop.f32.mrf.mxu0
      %v3667 = vadd.f32 0.0, %v3666
      %3668 = vmatmul.bf16.gmra.mxu0 %v3586
      %v3669 = vpop.f32.mrf.mxu0
      %v3670 = vadd.f32 0.0, %v3669
      %v3671 = vpop.f32.mrf.mxu0
      %v3672 = vadd.f32 0.0, %v3671
      %3673 = vmatmul.bf16.gmra.mxu0 %v3589
      %v3674 = vpop.f32.mrf.mxu0
      %v3675 = vadd.f32 0.0, %v3674
      %v3676 = vpop.f32.mrf.mxu0
      %v3677 = vadd.f32 0.0, %v3676
      %3678 = vmatmul.bf16.gmra.mxu0 %v3592
      %v3679 = vpop.f32.mrf.mxu0
      %v3680 = vadd.f32 0.0, %v3679
      %v3681 = vpop.f32.mrf.mxu0
      %v3682 = vadd.f32 0.0, %v3681
      %3683 = vmatmul.bf16.gmra.mxu0 %v3595
      %v3684 = vpop.f32.mrf.mxu0
      %v3685 = vadd.f32 0.0, %v3684
      %v3686 = vpop.f32.mrf.mxu0
      %v3687 = vadd.f32 0.0, %v3686
      %3688 = vdwg.mxu0
      %v3689 = vadd.f32 %v3032, %v3610
      %v3690 = vadd.f32 %v3033, %v3612
      %v3691 = vadd.f32 %v3034, %v3615
      %v3692 = vadd.f32 %v3035, %v3617
      %v3693 = vadd.f32 %v3036, %v3620
      %v3694 = vadd.f32 %v3037, %v3622
      %v3695 = vadd.f32 %v3038, %v3625
      %v3696 = vadd.f32 %v3039, %v3627
      %v3697 = vadd.f32 %v3040, %v3630
      %v3698 = vadd.f32 %v3041, %v3632
      %v3699 = vadd.f32 %v3042, %v3635
      %v3700 = vadd.f32 %v3043, %v3637
      %v3701 = vadd.f32 %v3044, %v3640
      %v3702 = vadd.f32 %v3045, %v3642
      %v3703 = vadd.f32 %v3046, %v3645
      %v3704 = vadd.f32 %v3047, %v3647
      %v3705 = vadd.f32 %v3048, %v3650
      %v3706 = vadd.f32 %v3049, %v3652
      %v3707 = vadd.f32 %v3050, %v3655
      %v3708 = vadd.f32 %v3051, %v3657
      %v3709 = vadd.f32 %v3052, %v3660
      %v3710 = vadd.f32 %v3053, %v3662
      %v3711 = vadd.f32 %v3054, %v3665
      %v3712 = vadd.f32 %v3055, %v3667
      %v3713 = vadd.f32 %v3056, %v3670
      %v3714 = vadd.f32 %v3057, %v3672
      %v3715 = vadd.f32 %v3058, %v3675
      %v3716 = vadd.f32 %v3059, %v3677
      %v3717 = vadd.f32 %v3060, %v3680
      %v3718 = vadd.f32 %v3061, %v3682
      %v3719 = vadd.f32 %v3062, %v3685
      %v3720 = vadd.f32 %v3063, %v3687
      %v3721 = vld [vmem:[%s2778] sm:$0xe]
      %v3722 = vld [vmem:[%s2778 + $0xc] sm:$0xe]
      %v3723 = vld [vmem:[%s2778 + $0x18] sm:$0xe]
      %v3724 = vld [vmem:[%s2778 + $0x24] sm:$0xe]
      %v3725 = vld [vmem:[%s2778 + $0x30] sm:$0xe]
      %v3726 = vld [vmem:[%s2778 + $0x3c] sm:$0xe]
      %v3727 = vld [vmem:[%s2778 + $0x48] sm:$0xe]
      %v3728 = vld [vmem:[%s2778 + $0x54] sm:$0xe]
      %v3729 = vld [vmem:[%s2778 + $0x60] sm:$0xe]
      %v3730 = vld [vmem:[%s2778 + $0x6c] sm:$0xe]
      %v3731 = vld [vmem:[%s2778 + $0x78] sm:$0xe]
      %v3732 = vld [vmem:[%s2778 + $0x84] sm:$0xe]
      %v3733 = vld [vmem:[%s2778 + $0x90] sm:$0xe]
      %v3734 = vld [vmem:[%s2778 + $0x9c] sm:$0xe]
      %v3735 = vld [vmem:[%s2778 + $0xa8] sm:$0xe]
      %v3736 = vld [vmem:[%s2778 + $0xb4] sm:$0xe]
      %v3785 = vrot.slane %v3721, 5
      %v3786 = vrot.slane %v3785, 4
      %v3787 = vrot.slane %v3065, 5
      %v3788 = vsel %vm1100, %v3786, %v3787
      %v3789 = vrot.slane %v3787, 4
      %v3790 = vrot.slane %v3066, 5
      %v3791 = vsel %vm1100, %v3789, %v3790
      %v3792 = vrot.slane %v3722, 5
      %v3793 = vrot.slane %v3792, 4
      %v3794 = vrot.slane %v3068, 5
      %v3795 = vsel %vm1100, %v3793, %v3794
      %v3796 = vrot.slane %v3794, 4
      %v3797 = vrot.slane %v3069, 5
      %v3798 = vsel %vm1100, %v3796, %v3797
      %v3799 = vrot.slane %v3723, 5
      %v3800 = vrot.slane %v3799, 4
      %v3801 = vrot.slane %v3071, 5
      %v3802 = vsel %vm1100, %v3800, %v3801
      %v3803 = vrot.slane %v3801, 4
      %v3804 = vrot.slane %v3072, 5
      %v3805 = vsel %vm1100, %v3803, %v3804
      %v3806 = vrot.slane %v3724, 5
      %v3807 = vrot.slane %v3806, 4
      %v3808 = vrot.slane %v3074, 5
      %v3809 = vsel %vm1100, %v3807, %v3808
      %v3810 = vrot.slane %v3808, 4
      %v3811 = vrot.slane %v3075, 5
      %v3812 = vsel %vm1100, %v3810, %v3811
      %v3813 = vrot.slane %v3725, 5
      %v3814 = vrot.slane %v3813, 4
      %v3815 = vrot.slane %v3077, 5
      %v3816 = vsel %vm1100, %v3814, %v3815
      %v3817 = vrot.slane %v3815, 4
      %v3818 = vrot.slane %v3078, 5
      %v3819 = vsel %vm1100, %v3817, %v3818
      %v3820 = vrot.slane %v3726, 5
      %v3821 = vrot.slane %v3820, 4
      %v3822 = vrot.slane %v3080, 5
      %v3823 = vsel %vm1100, %v3821, %v3822
      %v3824 = vrot.slane %v3822, 4
      %v3825 = vrot.slane %v3081, 5
      %v3826 = vsel %vm1100, %v3824, %v3825
      %v3827 = vrot.slane %v3727, 5
      %v3828 = vrot.slane %v3827, 4
      %v3829 = vrot.slane %v3083, 5
      %v3830 = vsel %vm1100, %v3828, %v3829
      %v3831 = vrot.slane %v3829, 4
      %v3832 = vrot.slane %v3084, 5
      %v3833 = vsel %vm1100, %v3831, %v3832
      %v3834 = vrot.slane %v3728, 5
      %v3835 = vrot.slane %v3834, 4
      %v3836 = vrot.slane %v3086, 5
      %v3837 = vsel %vm1100, %v3835, %v3836
      %v3838 = vrot.slane %v3836, 4
      %v3839 = vrot.slane %v3087, 5
      %v3840 = vsel %vm1100, %v3838, %v3839
      %v3841 = vrot.slane %v3729, 5
      %v3842 = vrot.slane %v3841, 4
      %v3843 = vrot.slane %v3089, 5
      %v3844 = vsel %vm1100, %v3842, %v3843
      %v3845 = vrot.slane %v3843, 4
      %v3846 = vrot.slane %v3090, 5
      %v3847 = vsel %vm1100, %v3845, %v3846
      %v3848 = vrot.slane %v3730, 5
      %v3849 = vrot.slane %v3848, 4
      %v3850 = vrot.slane %v3092, 5
      %v3851 = vsel %vm1100, %v3849, %v3850
      %v3852 = vrot.slane %v3850, 4
      %v3853 = vrot.slane %v3093, 5
      %v3854 = vsel %vm1100, %v3852, %v3853
      %v3855 = vrot.slane %v3731, 5
      %v3856 = vrot.slane %v3855, 4
      %v3857 = vrot.slane %v3095, 5
      %v3858 = vsel %vm1100, %v3856, %v3857
      %v3859 = vrot.slane %v3857, 4
      %v3860 = vrot.slane %v3096, 5
      %v3861 = vsel %vm1100, %v3859, %v3860
      %v3862 = vrot.slane %v3732, 5
      %v3863 = vrot.slane %v3862, 4
      %v3864 = vrot.slane %v3098, 5
      %v3865 = vsel %vm1100, %v3863, %v3864
      %v3866 = vrot.slane %v3864, 4
      %v3867 = vrot.slane %v3099, 5
      %v3868 = vsel %vm1100, %v3866, %v3867
      %v3869 = vrot.slane %v3733, 5
      %v3870 = vrot.slane %v3869, 4
      %v3871 = vrot.slane %v3101, 5
      %v3872 = vsel %vm1100, %v3870, %v3871
      %v3873 = vrot.slane %v3871, 4
      %v3874 = vrot.slane %v3102, 5
      %v3875 = vsel %vm1100, %v3873, %v3874
      %v3876 = vrot.slane %v3734, 5
      %v3877 = vrot.slane %v3876, 4
      %v3878 = vrot.slane %v3104, 5
      %v3879 = vsel %vm1100, %v3877, %v3878
      %v3880 = vrot.slane %v3878, 4
      %v3881 = vrot.slane %v3105, 5
      %v3882 = vsel %vm1100, %v3880, %v3881
      %v3883 = vrot.slane %v3735, 5
      %v3884 = vrot.slane %v3883, 4
      %v3885 = vrot.slane %v3107, 5
      %v3886 = vsel %vm1100, %v3884, %v3885
      %v3887 = vrot.slane %v3885, 4
      %v3888 = vrot.slane %v3108, 5
      %v3889 = vsel %vm1100, %v3887, %v3888
      %v3890 = vrot.slane %v3736, 5
      %v3891 = vrot.slane %v3890, 4
      %v3892 = vrot.slane %v3110, 5
      %v3893 = vsel %vm1100, %v3891, %v3892
      %v3894 = vrot.slane %v3892, 4
      %v3895 = vrot.slane %v3111, 5
      %v3896 = vsel %vm1100, %v3894, %v3895
      %v3897 = vld [vmem:[%s1 + $0x10] sm:$0x3]
      %v3898 = vunpack.c.l.b16 %v3788
      %v3899 = vunpack.c.l.b16 %v3791
      %v3900 = vunpack.c.l.b16 %v3795
      %v3901 = vunpack.c.l.b16 %v3798
      %v3902 = vunpack.c.l.b16 %v3802
      %v3903 = vunpack.c.l.b16 %v3805
      %v3904 = vunpack.c.l.b16 %v3809
      %v3905 = vunpack.c.l.b16 %v3812
      %v3906 = vunpack.c.l.b16 %v3816
      %v3907 = vunpack.c.l.b16 %v3819
      %v3908 = vunpack.c.l.b16 %v3823
      %v3909 = vunpack.c.l.b16 %v3826
      %v3910 = vunpack.c.l.b16 %v3830
      %v3911 = vunpack.c.l.b16 %v3833
      %v3912 = vunpack.c.l.b16 %v3837
      %v3913 = vunpack.c.l.b16 %v3840
      %v3914 = vunpack.c.l.b16 %v3844
      %v3915 = vunpack.c.l.b16 %v3847
      %v3916 = vunpack.c.l.b16 %v3851
      %v3917 = vunpack.c.l.b16 %v3854
      %v3918 = vunpack.c.l.b16 %v3858
      %v3919 = vunpack.c.l.b16 %v3861
      %v3920 = vunpack.c.l.b16 %v3865
      %v3921 = vunpack.c.l.b16 %v3868
      %v3922 = vunpack.c.l.b16 %v3872
      %v3923 = vunpack.c.l.b16 %v3875
      %v3924 = vunpack.c.l.b16 %v3879
      %v3925 = vunpack.c.l.b16 %v3882
      %v3926 = vunpack.c.l.b16 %v3886
      %v3927 = vunpack.c.l.b16 %v3889
      %v3928 = vunpack.c.l.b16 %v3893
      %v3929 = vunpack.c.l.b16 %v3896
      %v3930 = vpack.c.b16 %v3899, %v3898
      %v3931 = vpack.c.b16 %v3901, %v3900
      %v3932 = vpack.c.b16 %v3903, %v3902
      %v3933 = vpack.c.b16 %v3905, %v3904
      %v3934 = vpack.c.b16 %v3907, %v3906
      %v3935 = vpack.c.b16 %v3909, %v3908
      %v3936 = vpack.c.b16 %v3911, %v3910
      %v3937 = vpack.c.b16 %v3913, %v3912
      %v3938 = vpack.c.b16 %v3915, %v3914
      %v3939 = vpack.c.b16 %v3917, %v3916
      %v3940 = vpack.c.b16 %v3919, %v3918
      %v3941 = vpack.c.b16 %v3921, %v3920
      %v3942 = vpack.c.b16 %v3923, %v3922
      %v3943 = vpack.c.b16 %v3925, %v3924
      %v3944 = vpack.c.b16 %v3927, %v3926
      %v3945 = vpack.c.b16 %v3929, %v3928
      %v3947 = vsel %vm688, %v3930, 0
      %v3950 = vsel %vm688, %v3931, 0
      %v3953 = vsel %vm688, %v3932, 0
      %v3956 = vsel %vm688, %v3933, 0
      %v3959 = vsel %vm688, %v3934, 0
      %v3962 = vsel %vm688, %v3935, 0
      %v3965 = vsel %vm688, %v3936, 0
      %v3968 = vsel %vm688, %v3937, 0
      %v3971 = vsel %vm688, %v3938, 0
      %v3974 = vsel %vm688, %v3939, 0
      %v3977 = vsel %vm688, %v3940, 0
      %v3980 = vsel %vm688, %v3941, 0
      %v3983 = vsel %vm688, %v3942, 0
      %v3986 = vsel %vm688, %v3943, 0
      %v3989 = vsel %vm688, %v3944, 0
      %v3992 = vsel %vm688, %v3945, 0
      %v3995 = vsel %vm737, %v3897, 0
      %3997 = vmatpush.bf16.msra.mxu0 0
      %3998 = vmatpush.bf16.msra.mxu0 0
      %3999 = vmatpush.bf16.msra.mxu0 0
      %4000 = vmatpush.bf16.msra.mxu0 0
      %4001 = vmatpush.bf16.msra.mxu0 0
      %4002 = vmatpush.bf16.msra.mxu0 0
      %4003 = vmatpush.bf16.msra.mxu0 0
      %4004 = vmatpush.bf16.msra.mxu0 %v3995
      %4005 = vmatmul.bf16.gmra.mxu0 %v3947
      %v4006 = vpop.f32.mrf.mxu0
      %v4007 = vadd.f32 0.0, %v4006
      %v4008 = vpop.f32.mrf.mxu0
      %v4009 = vadd.f32 0.0, %v4008
      %4010 = vmatmul.bf16.gmra.mxu0 %v3950
      %v4011 = vpop.f32.mrf.mxu0
      %v4012 = vadd.f32 0.0, %v4011
      %v4013 = vpop.f32.mrf.mxu0
      %v4014 = vadd.f32 0.0, %v4013
      %4015 = vmatmul.bf16.gmra.mxu0 %v3953
      %v4016 = vpop.f32.mrf.mxu0
      %v4017 = vadd.f32 0.0, %v4016
      %v4018 = vpop.f32.mrf.mxu0
      %v4019 = vadd.f32 0.0, %v4018
      %4020 = vmatmul.bf16.gmra.mxu0 %v3956
      %v4021 = vpop.f32.mrf.mxu0
      %v4022 = vadd.f32 0.0, %v4021
      %v4023 = vpop.f32.mrf.mxu0
      %v4024 = vadd.f32 0.0, %v4023
      %4025 = vmatmul.bf16.gmra.mxu0 %v3959
      %v4026 = vpop.f32.mrf.mxu0
      %v4027 = vadd.f32 0.0, %v4026
      %v4028 = vpop.f32.mrf.mxu0
      %v4029 = vadd.f32 0.0, %v4028
      %4030 = vmatmul.bf16.gmra.mxu0 %v3962
      %v4031 = vpop.f32.mrf.mxu0
      %v4032 = vadd.f32 0.0, %v4031
      %v4033 = vpop.f32.mrf.mxu0
      %v4034 = vadd.f32 0.0, %v4033
      %4035 = vmatmul.bf16.gmra.mxu0 %v3965
      %v4036 = vpop.f32.mrf.mxu0
      %v4037 = vadd.f32 0.0, %v4036
      %v4038 = vpop.f32.mrf.mxu0
      %v4039 = vadd.f32 0.0, %v4038
      %4040 = vmatmul.bf16.gmra.mxu0 %v3968
      %v4041 = vpop.f32.mrf.mxu0
      %v4042 = vadd.f32 0.0, %v4041
      %v4043 = vpop.f32.mrf.mxu0
      %v4044 = vadd.f32 0.0, %v4043
      %4045 = vmatmul.bf16.gmra.mxu0 %v3971
      %v4046 = vpop.f32.mrf.mxu0
      %v4047 = vadd.f32 0.0, %v4046
      %v4048 = vpop.f32.mrf.mxu0
      %v4049 = vadd.f32 0.0, %v4048
      %4050 = vmatmul.bf16.gmra.mxu0 %v3974
      %v4051 = vpop.f32.mrf.mxu0
      %v4052 = vadd.f32 0.0, %v4051
      %v4053 = vpop.f32.mrf.mxu0
      %v4054 = vadd.f32 0.0, %v4053
      %4055 = vmatmul.bf16.gmra.mxu0 %v3977
      %v4056 = vpop.f32.mrf.mxu0
      %v4057 = vadd.f32 0.0, %v4056
      %v4058 = vpop.f32.mrf.mxu0
      %v4059 = vadd.f32 0.0, %v4058
      %4060 = vmatmul.bf16.gmra.mxu0 %v3980
      %v4061 = vpop.f32.mrf.mxu0
      %v4062 = vadd.f32 0.0, %v4061
      %v4063 = vpop.f32.mrf.mxu0
      %v4064 = vadd.f32 0.0, %v4063
      %4065 = vmatmul.bf16.gmra.mxu0 %v3983
      %v4066 = vpop.f32.mrf.mxu0
      %v4067 = vadd.f32 0.0, %v4066
      %v4068 = vpop.f32.mrf.mxu0
      %v4069 = vadd.f32 0.0, %v4068
      %4070 = vmatmul.bf16.gmra.mxu0 %v3986
      %v4071 = vpop.f32.mrf.mxu0
      %v4072 = vadd.f32 0.0, %v4071
      %v4073 = vpop.f32.mrf.mxu0
      %v4074 = vadd.f32 0.0, %v4073
      %4075 = vmatmul.bf16.gmra.mxu0 %v3989
      %v4076 = vpop.f32.mrf.mxu0
      %v4077 = vadd.f32 0.0, %v4076
      %v4078 = vpop.f32.mrf.mxu0
      %v4079 = vadd.f32 0.0, %v4078
      %4080 = vmatmul.bf16.gmra.mxu0 %v3992
      %v4081 = vpop.f32.mrf.mxu0
      %v4082 = vadd.f32 0.0, %v4081
      %v4083 = vpop.f32.mrf.mxu0
      %v4084 = vadd.f32 0.0, %v4083
      %4085 = vdwg.mxu0
      %v4086 = vadd.f32 %v3689, %v4007
      %v4087 = vadd.f32 %v3690, %v4009
      %v4088 = vadd.f32 %v3691, %v4012
      %v4089 = vadd.f32 %v3692, %v4014
      %v4090 = vadd.f32 %v3693, %v4017
      %v4091 = vadd.f32 %v3694, %v4019
      %v4092 = vadd.f32 %v3695, %v4022
      %v4093 = vadd.f32 %v3696, %v4024
      %v4094 = vadd.f32 %v3697, %v4027
      %v4095 = vadd.f32 %v3698, %v4029
      %v4096 = vadd.f32 %v3699, %v4032
      %v4097 = vadd.f32 %v3700, %v4034
      %v4098 = vadd.f32 %v3701, %v4037
      %v4099 = vadd.f32 %v3702, %v4039
      %v4100 = vadd.f32 %v3703, %v4042
      %v4101 = vadd.f32 %v3704, %v4044
      %v4102 = vadd.f32 %v3705, %v4047
      %v4103 = vadd.f32 %v3706, %v4049
      %v4104 = vadd.f32 %v3707, %v4052
      %v4105 = vadd.f32 %v3708, %v4054
      %v4106 = vadd.f32 %v3709, %v4057
      %v4107 = vadd.f32 %v3710, %v4059
      %v4108 = vadd.f32 %v3711, %v4062
      %v4109 = vadd.f32 %v3712, %v4064
      %v4110 = vadd.f32 %v3713, %v4067
      %v4111 = vadd.f32 %v3714, %v4069
      %v4112 = vadd.f32 %v3715, %v4072
      %v4113 = vadd.f32 %v3716, %v4074
      %v4114 = vadd.f32 %v3717, %v4077
      %v4115 = vadd.f32 %v3718, %v4079
      %v4116 = vadd.f32 %v3719, %v4082
      %v4117 = vadd.f32 %v3720, %v4084
      %v4118 = vld [vmem:[%s2] sm:$0x1]
      %v4120 = vperm.slane %v4118, 0
      %v4122 = vmul.f32 %v4086, %v4120
      %v4123 = vmul.f32 %v4087, %v4120
      %v4124 = vmul.f32 %v4088, %v4120
      %v4125 = vmul.f32 %v4089, %v4120
      %v4126 = vmul.f32 %v4090, %v4120
      %v4127 = vmul.f32 %v4091, %v4120
      %v4128 = vmul.f32 %v4092, %v4120
      %v4129 = vmul.f32 %v4093, %v4120
      %v4130 = vmul.f32 %v4094, %v4120
      %v4131 = vmul.f32 %v4095, %v4120
      %v4132 = vmul.f32 %v4096, %v4120
      %v4133 = vmul.f32 %v4097, %v4120
      %v4134 = vmul.f32 %v4098, %v4120
      %v4135 = vmul.f32 %v4099, %v4120
      %v4136 = vmul.f32 %v4100, %v4120
      %v4137 = vmul.f32 %v4101, %v4120
      %v4138 = vmul.f32 %v4102, %v4120
      %v4139 = vmul.f32 %v4103, %v4120
      %v4140 = vmul.f32 %v4104, %v4120
      %v4141 = vmul.f32 %v4105, %v4120
      %v4142 = vmul.f32 %v4106, %v4120
      %v4143 = vmul.f32 %v4107, %v4120
      %v4144 = vmul.f32 %v4108, %v4120
      %v4145 = vmul.f32 %v4109, %v4120
      %v4146 = vmul.f32 %v4110, %v4120
      %v4147 = vmul.f32 %v4111, %v4120
      %v4148 = vmul.f32 %v4112, %v4120
      %v4149 = vmul.f32 %v4113, %v4120
      %v4150 = vmul.f32 %v4114, %v4120
      %v4151 = vmul.f32 %v4115, %v4120
      %v4152 = vmul.f32 %v4116, %v4120
      %v4153 = vmul.f32 %v4117, %v4120
      %v4154 = vld [vmem:[%s3] sm:$0x1]
      %v4156 = vperm.slane %v4154, 0
      %v4158 = vadd.f32 %v4122, %v4156
      %v4159 = vadd.f32 %v4123, %v4156
      %v4160 = vadd.f32 %v4124, %v4156
      %v4161 = vadd.f32 %v4125, %v4156
      %v4162 = vadd.f32 %v4126, %v4156
      %v4163 = vadd.f32 %v4127, %v4156
      %v4164 = vadd.f32 %v4128, %v4156
      %v4165 = vadd.f32 %v4129, %v4156
      %v4166 = vadd.f32 %v4130, %v4156
      %v4167 = vadd.f32 %v4131, %v4156
      %v4168 = vadd.f32 %v4132, %v4156
      %v4169 = vadd.f32 %v4133, %v4156
      %v4170 = vadd.f32 %v4134, %v4156
      %v4171 = vadd.f32 %v4135, %v4156
      %v4172 = vadd.f32 %v4136, %v4156
      %v4173 = vadd.f32 %v4137, %v4156
      %v4174 = vadd.f32 %v4138, %v4156
      %v4175 = vadd.f32 %v4139, %v4156
      %v4176 = vadd.f32 %v4140, %v4156
      %v4177 = vadd.f32 %v4141, %v4156
      %v4178 = vadd.f32 %v4142, %v4156
      %v4179 = vadd.f32 %v4143, %v4156
      %v4180 = vadd.f32 %v4144, %v4156
      %v4181 = vadd.f32 %v4145, %v4156
      %v4182 = vadd.f32 %v4146, %v4156
      %v4183 = vadd.f32 %v4147, %v4156
      %v4184 = vadd.f32 %v4148, %v4156
      %v4185 = vadd.f32 %v4149, %v4156
      %v4186 = vadd.f32 %v4150, %v4156
      %v4187 = vadd.f32 %v4151, %v4156
      %v4188 = vadd.f32 %v4152, %v4156
      %v4189 = vadd.f32 %v4153, %v4156
      %v4190 = vmax.f32 %v4158, 0.0
      %v4191 = vmax.f32 %v4159, 0.0
      %v4192 = vmax.f32 %v4160, 0.0
      %v4193 = vmax.f32 %v4161, 0.0
      %v4194 = vmax.f32 %v4162, 0.0
      %v4195 = vmax.f32 %v4163, 0.0
      %v4196 = vmax.f32 %v4164, 0.0
      %v4197 = vmax.f32 %v4165, 0.0
      %v4198 = vmax.f32 %v4166, 0.0
      %v4199 = vmax.f32 %v4167, 0.0
      %v4200 = vmax.f32 %v4168, 0.0
      %v4201 = vmax.f32 %v4169, 0.0
      %v4202 = vmax.f32 %v4170, 0.0
      %v4203 = vmax.f32 %v4171, 0.0
      %v4204 = vmax.f32 %v4172, 0.0
      %v4205 = vmax.f32 %v4173, 0.0
      %v4206 = vmax.f32 %v4174, 0.0
      %v4207 = vmax.f32 %v4175, 0.0
      %v4208 = vmax.f32 %v4176, 0.0
      %v4209 = vmax.f32 %v4177, 0.0
      %v4210 = vmax.f32 %v4178, 0.0
      %v4211 = vmax.f32 %v4179, 0.0
      %v4212 = vmax.f32 %v4180, 0.0
      %v4213 = vmax.f32 %v4181, 0.0
      %v4214 = vmax.f32 %v4182, 0.0
      %v4215 = vmax.f32 %v4183, 0.0
      %v4216 = vmax.f32 %v4184, 0.0
      %v4217 = vmax.f32 %v4185, 0.0
      %v4218 = vmax.f32 %v4186, 0.0
      %v4219 = vmax.f32 %v4187, 0.0
      %v4220 = vmax.f32 %v4188, 0.0
      %v4221 = vmax.f32 %v4189, 0.0
      %v4222 = vpack.c.bf16 %v4190, %v4190
      %v4223 = vpack.c.bf16 %v4191, %v4191
      %v4224 = vpack.c.bf16 %v4192, %v4192
      %v4225 = vpack.c.bf16 %v4193, %v4193
      %v4226 = vpack.c.bf16 %v4194, %v4194
      %v4227 = vpack.c.bf16 %v4195, %v4195
      %v4228 = vpack.c.bf16 %v4196, %v4196
      %v4229 = vpack.c.bf16 %v4197, %v4197
      %v4230 = vpack.c.bf16 %v4198, %v4198
      %v4231 = vpack.c.bf16 %v4199, %v4199
      %v4232 = vpack.c.bf16 %v4200, %v4200
      %v4233 = vpack.c.bf16 %v4201, %v4201
      %v4234 = vpack.c.bf16 %v4202, %v4202
      %v4235 = vpack.c.bf16 %v4203, %v4203
      %v4236 = vpack.c.bf16 %v4204, %v4204
      %v4237 = vpack.c.bf16 %v4205, %v4205
      %v4238 = vpack.c.bf16 %v4206, %v4206
      %v4239 = vpack.c.bf16 %v4207, %v4207
      %v4240 = vpack.c.bf16 %v4208, %v4208
      %v4241 = vpack.c.bf16 %v4209, %v4209
      %v4242 = vpack.c.bf16 %v4210, %v4210
      %v4243 = vpack.c.bf16 %v4211, %v4211
      %v4244 = vpack.c.bf16 %v4212, %v4212
      %v4245 = vpack.c.bf16 %v4213, %v4213
      %v4246 = vpack.c.bf16 %v4214, %v4214
      %v4247 = vpack.c.bf16 %v4215, %v4215
      %v4248 = vpack.c.bf16 %v4216, %v4216
      %v4249 = vpack.c.bf16 %v4217, %v4217
      %v4250 = vpack.c.bf16 %v4218, %v4218
      %v4251 = vpack.c.bf16 %v4219, %v4219
      %v4252 = vpack.c.bf16 %v4220, %v4220
      %v4253 = vpack.c.bf16 %v4221, %v4221
      %vm4254 = vcmask 60416
      %4255 = vst.msk [vmem:[%s197] sm:$0xf] %vm4254, %v4222
      %4256 = vst.msk [vmem:[%s197 + $0x4] sm:$0xf] %vm4254, %v4223
      %4257 = vst.msk [vmem:[%s197 + $0x8] sm:$0xf] %vm4254, %v4224
      %4258 = vst.msk [vmem:[%s197 + $0xc] sm:$0xf] %vm4254, %v4225
      %4259 = vst.msk [vmem:[%s197 + $0x10] sm:$0xf] %vm4254, %v4226
      %4260 = vst.msk [vmem:[%s197 + $0x14] sm:$0xf] %vm4254, %v4227
      %4261 = vst.msk [vmem:[%s197 + $0x18] sm:$0xf] %vm4254, %v4228
      %4262 = vst.msk [vmem:[%s197 + $0x1c] sm:$0xf] %vm4254, %v4229
      %4263 = vst.msk [vmem:[%s197 + $0x20] sm:$0xf] %vm4254, %v4230
      %4264 = vst.msk [vmem:[%s197 + $0x24] sm:$0xf] %vm4254, %v4231
      %4265 = vst.msk [vmem:[%s197 + $0x28] sm:$0xf] %vm4254, %v4232
      %4266 = vst.msk [vmem:[%s197 + $0x2c] sm:$0xf] %vm4254, %v4233
      %4267 = vst.msk [vmem:[%s197 + $0x30] sm:$0xf] %vm4254, %v4234
      %4268 = vst.msk [vmem:[%s197 + $0x34] sm:$0xf] %vm4254, %v4235
      %4269 = vst.msk [vmem:[%s197 + $0x38] sm:$0xf] %vm4254, %v4236
      %4270 = vst.msk [vmem:[%s197 + $0x3c] sm:$0xf] %vm4254, %v4237
      %4271 = vst.msk [vmem:[%s197 + $0x40] sm:$0xf] %vm4254, %v4238
      %4272 = vst.msk [vmem:[%s197 + $0x44] sm:$0xf] %vm4254, %v4239
      %4273 = vst.msk [vmem:[%s197 + $0x48] sm:$0xf] %vm4254, %v4240
      %4274 = vst.msk [vmem:[%s197 + $0x4c] sm:$0xf] %vm4254, %v4241
      %4275 = vst.msk [vmem:[%s197 + $0x50] sm:$0xf] %vm4254, %v4242
      %4276 = vst.msk [vmem:[%s197 + $0x54] sm:$0xf] %vm4254, %v4243
      %4277 = vst.msk [vmem:[%s197 + $0x58] sm:$0xf] %vm4254, %v4244
      %4278 = vst.msk [vmem:[%s197 + $0x5c] sm:$0xf] %vm4254, %v4245
      %4279 = vst.msk [vmem:[%s197 + $0x60] sm:$0xf] %vm4254, %v4246
      %4280 = vst.msk [vmem:[%s197 + $0x64] sm:$0xf] %vm4254, %v4247
      %4281 = vst.msk [vmem:[%s197 + $0x68] sm:$0xf] %vm4254, %v4248
      %4282 = vst.msk [vmem:[%s197 + $0x6c] sm:$0xf] %vm4254, %v4249
      %4283 = vst.msk [vmem:[%s197 + $0x70] sm:$0xf] %vm4254, %v4250
      %4284 = vst.msk [vmem:[%s197 + $0x74] sm:$0xf] %vm4254, %v4251
      %4285 = vst.msk [vmem:[%s197 + $0x78] sm:$0xf] %vm4254, %v4252
      %4286 = vst.msk [vmem:[%s197 + $0x7c] sm:$0xf] %vm4254, %v4253
      %p4287 = scmp.lt.s32.totalorder %s15, 1
      %s4288 = scalar_select %p4287, %s15, 1
      %s4289 = smul.addr %s4288, 32
      %s4290 = smul.addr %s4289, 4
      %s4291 = scalar_lea.vmem %s4, %s4290
      // Predicated region
      $region37: #{conv_bn_block.3} parent=35 // pred_check
        %p4292 = pneg %p122
      $region38: #{conv_bn_block.3} parent=35 // pred_check_branch
        %4294 = sbr.rel (%p4292) target = $region40
      $region39: #{conv_bn_block.3} parent=35 // pred_region
        _
      $region40: #{conv_bn_block.3} parent=35 // pred_fallthru
        _
    $region36: #{conv_bn_block.3} parent=5 // pred_fallthru
      _
    %p4295 = scmp.le.s32.totalorder 2, %s10
    // Predicated region
    $region41: #{conv_bn_block.3} parent=5 // pred_check
      %p4296 = pneg %p4295
    $region42: #{conv_bn_block.3} parent=5 // pred_check_branch
      %4298 = sbr.rel (%p4296) target = $region44
    $region43: #{conv_bn_block.3} parent=5 // pred_region
      %s4299 = ssub.s32 %s10, 2
      // Predicated region
      $region45: #{conv_bn_block.3} parent=43 // pred_check
        %p4300 = pneg %p128
      $region46: #{conv_bn_block.3} parent=43 // pred_check_branch
        %4302 = sbr.rel (%p4300) target = $region48
      $region47: #{conv_bn_block.3} parent=43 // pred_region
        %p4303 = scmp.lt.s32.totalorder %s16, 1
        %s4304 = scalar_select %p4303, %s16, 1
        %s4305 = smul.addr %s4304, 32
        %s4306 = smul.addr %s4305, 4
        %s4307 = scalar_lea.vmem %s4, %s4306
      $region48: #{conv_bn_block.3} parent=43 // pred_fallthru
        _
    $region44: #{conv_bn_block.3} parent=5 // pred_fallthru
      _
  $region6: #{conv_bn_block.3} parent=0 // loop_footer
    %s14 = sadd.s32 1, %s10
  $region7: #{conv_bn_block.3} parent=0 // loop_footer_branch
    %9 = sbr.rel target = $region3
  $region8: #{conv_bn_block.3} parent=0 // loop_exit
    _

</llo_original>
